<compile_context>
chip_gen: v7x
topology: tpu7x:2x2x1
jax: 0.10.0
libtpu: 0.0.40
codegen_flags: <defaults>
</compile_context>

<pallas_src>
import functools

import jax
import jax.numpy as jnp
from jax.experimental import pallas as pl
from jax.experimental.pallas import tpu as pltpu


_CIN0_PAD = 8  # conv0's Cin=3 padded to 8 so its tiles are not degenerate 3-lane.


# --------------------------- in-kernel helpers ------------------------------

def _conv3x3(act, W, cmask, w_ref, b_ref, *, relu):
    """3x3 conv, stride 1, zero padding 1 (PyTorch Conv2d semantics) on a
    flattened (H*W, Cin) slab.

    act   : (H*W, Cin) f32 activations, spatial flattened row-major (h*W + w).
    cmask : (H*W, 2) f32; col 0 = (w != 0), col 1 = (w != W-1).
    w_ref : (9*Cin, Cout) bf16 weights, tap-major (kh, kw) then cin.
    b_ref : (1, Cout) f32 bias.
    Returns (pre, act_out): pre is the pre-ReLU output (the hooked feature),
    act_out the ReLU'd activation for the next layer (None if relu=False).
    """
    HW, cin = act.shape
    cout = b_ref.shape[-1]

    # Source-side column masks guard the flat-layout wraparound: a tap reading
    # column w+1 must see zeros where the source pixel sits at w == 0 (of the
    # next spatial row), and symmetrically for w-1 / w == W-1.  Row
    # out-of-bounds is handled by the zero padding below.
    src = {0: act,
           1: act * cmask[:, 0:1],
           -1: act * cmask[:, 1:2]}
    zpad = jnp.zeros((W + 1, cin), act.dtype)
    padded = {d: jnp.concatenate([zpad, s, zpad], axis=0) for d, s in src.items()}

    acc = jnp.zeros((HW, cout), jnp.float32)
    for kh in range(3):
        for kw in range(3):
            start = (W + 1) + (kh - 1) * W + (kw - 1)          # static offset
            tap = padded[kw - 1][start:start + HW, :].astype(jnp.bfloat16)
            t = kh * 3 + kw
            w_tap = w_ref[t * cin:(t + 1) * cin, :]            # (Cin, Cout) bf16
            acc = acc + jnp.dot(tap, w_tap, preferred_element_type=jnp.float32)

    pre = acc + b_ref[...]
    if not relu:
        return pre, None
    return pre, jnp.maximum(pre, 0.0)


def _maxpool2x2(act, W, s_ref):
    """2x2 max pool, stride 2 (PyTorch MaxPool2d(2, 2)) on a flat (H*W, C) slab.

    Adjacent-column and adjacent-row maxima via two shift+max slab ops, then a
    0/1 selection matmul picks rows p = 2i*W + 2j (exact selection; the next
    conv rounds its operands to bf16 anyway).
    """
    HW, C = act.shape
    z1 = jnp.zeros((1, C), act.dtype)
    zW = jnp.zeros((W, C), act.dtype)
    m1 = jnp.maximum(act, jnp.concatenate([act[1:, :], z1], axis=0))   # max(w, w+1)
    m2 = jnp.maximum(m1, jnp.concatenate([m1[W:, :], zW], axis=0))     # max(h, h+1)
    return jnp.dot(s_ref[...], m2.astype(jnp.bfloat16),
                   preferred_element_type=jnp.float32)


# ------------------------------ fused kernel --------------------------------
# vgg19.features[0..10]:
#   0: Conv(3,64)   1: ReLU  2: Conv(64,64)   3: ReLU  4: MaxPool
#   5: Conv(64,128) 6: ReLU  7: Conv(128,128) 8: ReLU  9: MaxPool  10: Conv(128,256)
# Hooks at [0, 2, 5, 7, 10] capture the pre-ReLU conv outputs.

def _vgg19_prefix_kernel(x_ref, mean_ref, cm_a_ref, cm_b_ref, cm_c_ref,
                         s1_ref, s2_ref,
                         w0_ref, b0_ref, w1_ref, b1_ref, w2_ref, b2_ref,
                         w3_ref, b3_ref, w4_ref, b4_ref,
                         f01_ref, f2_ref, f3_ref, f4_ref, *, H, W):
    W2 = W // 2
    W4 = W // 4

    # ImageNet normalization: mean subtraction only (1/std folded into conv0's
    # weights in the wrapper), done once on the whole (H*W, 8) slab.
    x0 = x_ref[...] - mean_ref[...]

    cm_a = cm_a_ref[...]
    cm_b = cm_b_ref[...]
    cm_c = cm_c_ref[...]

    pre0, act0 = _conv3x3(x0, W, cm_a, w0_ref, b0_ref, relu=True)     # features[0]
    pre1, act1 = _conv3x3(act0, W, cm_a, w1_ref, b1_ref, relu=True)   # features[2]
    f01_ref[...] = jnp.concatenate([pre0, pre1], axis=1)   # lane-dense (H*W, 128)

    p1 = _maxpool2x2(act1, W, s1_ref)                                 # features[4]
    pre2, act2 = _conv3x3(p1, W2, cm_b, w2_ref, b2_ref, relu=True)    # features[5]
    f2_ref[...] = pre2
    pre3, act3 = _conv3x3(act2, W2, cm_b, w3_ref, b3_ref, relu=True)  # features[7]
    f3_ref[...] = pre3

    p2 = _maxpool2x2(act3, W2, s2_ref)                                # features[9]
    pre4, _ = _conv3x3(p2, W4, cm_c, w4_ref, b4_ref, relu=False)      # features[10]
    f4_ref[...] = pre4


# ------------------------------- wrapper -------------------------------------

_VGG_CFG = [(3, 64), (64, 64), (64, 128), (128, 128), (128, 256)]


def init_params(key):
    """Synthetic deterministic weights (PyTorch OIHW conv layout)."""
    params = []
    keys = jax.random.split(key, 2 * len(_VGG_CFG))
    for i, (cin, cout) in enumerate(_VGG_CFG):
        w = jax.random.normal(keys[2 * i], (cout, cin, 3, 3), jnp.float32) * 0.05
        b = jax.random.normal(keys[2 * i + 1], (cout,), jnp.float32) * 0.05
        params.append((w, b))
    return params


def _col_masks(H, W):
    w = jnp.arange(H * W, dtype=jnp.int32) % W
    m_plus = (w != 0).astype(jnp.float32)        # guard for taps reading w+1
    m_minus = (w != W - 1).astype(jnp.float32)   # guard for taps reading w-1
    return jnp.stack([m_plus, m_minus], axis=1)  # (H*W, 2)


def _pool_select(H, W):
    """0/1 matrix selecting rows p = 2i*W + 2j of the pre-pooled flat slab."""
    H2, W2 = H // 2, W // 2
    r = jnp.arange(H2 * W2, dtype=jnp.int32)
    p = (r // W2) * (2 * W) + (r % W2) * 2
    cols = jnp.arange(H * W, dtype=jnp.int32)
    return (p[:, None] == cols[None, :]).astype(jnp.bfloat16)   # (H2*W2, H*W)


def vgg19_features(x_chw, params):
    """x_chw: (3, H, W) float32 image.  Returns the 5 hooked NCHW feature maps."""
    C, H, W = x_chw.shape
    assert C == 3 and H % 4 == 0 and W % 4 == 0
    H2, W2, H4, W4 = H // 2, W // 2, H // 4, W // 4

    mean = jnp.array([0.485, 0.456, 0.406], jnp.float32)
    istd = 1.0 / jnp.array([0.229, 0.224, 0.225], jnp.float32)

    # Input: CHW -> flattened lane-major (H*W, 3), channel-padded to 8 lanes.
    x_flat = jnp.transpose(x_chw, (1, 2, 0)).reshape(H * W, 3).astype(jnp.float32)
    x_flat = jnp.pad(x_flat, ((0, 0), (0, _CIN0_PAD - 3)))
    mean_pad = jnp.pad(mean, (0, _CIN0_PAD - 3)).reshape(1, _CIN0_PAD)

    # Weights: fold 1/std into conv0 (per-input-channel scaling keeps the conv
    # zero padding exactly zero), pad conv0 Cin 3 -> 8, reshape every conv to
    # tap-major (9*Cin, Cout), cast matmul operands to bf16.
    w0, b0 = params[0]
    w0 = w0 * istd.reshape(1, 3, 1, 1)
    w0 = jnp.pad(w0, ((0, 0), (0, _CIN0_PAD - 3), (0, 0), (0, 0)))
    prepared = [(w0, b0)] + list(params[1:])

    flat_params, couts = [], []
    for w, b in prepared:
        cout, cin = int(w.shape[0]), int(w.shape[1])
        couts.append(cout)
        wk = jnp.transpose(w, (2, 3, 1, 0)).reshape(9 * cin, cout).astype(jnp.bfloat16)
        flat_params += [wk, b.reshape(1, cout).astype(jnp.float32)]

    out_shape = (
        jax.ShapeDtypeStruct((H * W, couts[0] + couts[1]), jnp.float32),  # pre0||pre1
        jax.ShapeDtypeStruct((H2 * W2, couts[2]), jnp.float32),
        jax.ShapeDtypeStruct((H2 * W2, couts[3]), jnp.float32),
        jax.ShapeDtypeStruct((H4 * W4, couts[4]), jnp.float32),
    )

    # No grid: the whole (tiny) network runs in a single invocation with every
    # operand VMEM-resident (~2 MiB total, well under the 32 MiB scoped default
    # on every generation).
    kernel = functools.partial(_vgg19_prefix_kernel, H=H, W=W)
    f01, f2, f3, f4 = pl.pallas_call(
        kernel,
        out_shape=out_shape,
        compiler_params=pltpu.CompilerParams(vmem_limit_bytes=32 * 1024 * 1024),
    )(x_flat, mean_pad,
      _col_masks(H, W), _col_masks(H2, W2), _col_masks(H4, W4),
      _pool_select(H, W), _pool_select(H2, W2),
      *flat_params)

    def to_nchw(f, h, w, c):
        return f.reshape(h, w, c).transpose(2, 0, 1)[None]

    c0, c1 = couts[0], couts[1]
    return [to_nchw(f01[:, :c0], H, W, c0),
            to_nchw(f01[:, c0:], H, W, c1),
            to_nchw(f2, H2, W2, couts[2]),
            to_nchw(f3, H2, W2, couts[3]),
            to_nchw(f4, H4, W4, couts[4])]


# ----------------------------- pure-JAX reference ----------------------------

def _reference_features(x_chw, params):
    mean = jnp.array([0.485, 0.456, 0.406], jnp.float32).reshape(3, 1, 1)
    std = jnp.array([0.229, 0.224, 0.225], jnp.float32).reshape(3, 1, 1)
    x = ((x_chw - mean) / std)[None]                                   # (1, 3, H, W)

    def conv(z, w, b):
        y = jax.lax.conv_general_dilated(z, w, (1, 1), ((1, 1), (1, 1)),
                                         dimension_numbers=("NCHW", "OIHW", "NCHW"),
                                         precision=jax.lax.Precision.HIGHEST)
        return y + b.reshape(1, -1, 1, 1)

    def pool(z):
        return jax.lax.reduce_window(z, -jnp.inf, jax.lax.max,
                                     (1, 1, 2, 2), (1, 1, 2, 2), "VALID")

    feats = []
    c0 = conv(x, *params[0]); feats.append(c0)
    c2 = conv(jax.nn.relu(c0), *params[1]); feats.append(c2)
    p4 = pool(jax.nn.relu(c2))
    c5 = conv(p4, *params[2]); feats.append(c5)
    c7 = conv(jax.nn.relu(c5), *params[3]); feats.append(c7)
    p9 = pool(jax.nn.relu(c7))
    c10 = conv(p9, *params[4]); feats.append(c10)
    return feats


# ---------------------------------- main -------------------------------------

if __name__ == "__main__":
    key = jax.random.PRNGKey(0)
    k_img, k_par = jax.random.split(key)
    H = W = 16
    x = jax.random.uniform(k_img, (3, H, W), jnp.float32)   # image-like input in [0, 1)
    params = init_params(k_par)

    feats = jax.jit(vgg19_features)(x, params)
    feats = jax.block_until_ready(feats)

    expected = [(1, 64, 16, 16), (1, 64, 16, 16), (1, 128, 8, 8),
                (1, 128, 8, 8), (1, 256, 4, 4)]
    assert [tuple(f.shape) for f in feats] == expected, [f.shape for f in feats]
    assert all(f.dtype == jnp.float32 for f in feats)

    # Numerical check against an f32 HIGHEST-precision reference.  The kernel
    # uses single-pass bf16 MXU matmuls (f32 accumulation), so allow ~1e-2
    # drift on the deeper features.
    refs = _reference_features(x, params)
    for i, (f, r) in enumerate(zip(feats, refs)):
        err = float(jnp.max(jnp.abs(f - r)))
        assert jnp.allclose(f, r, rtol=2e-2, atol=2e-2), (i, err)

    print("KERNEL_OK")
</pallas_src>

<mosaic_0001>
module attributes {stable_mosaic.version = 11 : i64} {
  func.func @_vgg19_prefix_kernel(%arg0: memref<256x8xf32, #tpu.memory_space<vmem>>, %arg1: memref<1x8xf32, #tpu.memory_space<vmem>>, %arg2: memref<256x2xf32, #tpu.memory_space<vmem>>, %arg3: memref<64x2xf32, #tpu.memory_space<vmem>>, %arg4: memref<16x2xf32, #tpu.memory_space<vmem>>, %arg5: memref<64x256xbf16, #tpu.memory_space<vmem>>, %arg6: memref<16x64xbf16, #tpu.memory_space<vmem>>, %arg7: memref<72x64xbf16, #tpu.memory_space<vmem>>, %arg8: memref<1x64xf32, #tpu.memory_space<vmem>>, %arg9: memref<576x64xbf16, #tpu.memory_space<vmem>>, %arg10: memref<1x64xf32, #tpu.memory_space<vmem>>, %arg11: memref<576x128xbf16, #tpu.memory_space<vmem>>, %arg12: memref<1x128xf32, #tpu.memory_space<vmem>>, %arg13: memref<1152x128xbf16, #tpu.memory_space<vmem>>, %arg14: memref<1x128xf32, #tpu.memory_space<vmem>>, %arg15: memref<1152x256xbf16, #tpu.memory_space<vmem>>, %arg16: memref<1x256xf32, #tpu.memory_space<vmem>>, %arg17: memref<256x128xf32, #tpu.memory_space<vmem>>, %arg18: memref<64x128xf32, #tpu.memory_space<vmem>>, %arg19: memref<64x128xf32, #tpu.memory_space<vmem>>, %arg20: memref<16x256xf32, #tpu.memory_space<vmem>>) attributes {dimension_semantics = [], scalar_prefetch = 0 : i64, scratch_operands = 0 : i64, tpu.core_type = #tpu.core_type<tc>} {
    %c0 = arith.constant 0 : index
    %c0_0 = arith.constant 0 : index
    %0 = vector.load %arg0[%c0, %c0_0] : memref<256x8xf32, #tpu.memory_space<vmem>>, vector<256x8xf32>
    %c0_1 = arith.constant 0 : index
    %c0_2 = arith.constant 0 : index
    %1 = vector.load %arg1[%c0_1, %c0_2] : memref<1x8xf32, #tpu.memory_space<vmem>>, vector<1x8xf32>
    %2 = vector.broadcast %1 : vector<1x8xf32> to vector<256x8xf32>
    %3 = arith.subf %0, %2 : vector<256x8xf32>
    %c0_3 = arith.constant 0 : index
    %c0_4 = arith.constant 0 : index
    %4 = vector.load %arg2[%c0_3, %c0_4] : memref<256x2xf32, #tpu.memory_space<vmem>>, vector<256x2xf32>
    %c0_5 = arith.constant 0 : index
    %c0_6 = arith.constant 0 : index
    %5 = vector.load %arg3[%c0_5, %c0_6] : memref<64x2xf32, #tpu.memory_space<vmem>>, vector<64x2xf32>
    %c0_7 = arith.constant 0 : index
    %c0_8 = arith.constant 0 : index
    %6 = vector.load %arg4[%c0_7, %c0_8] : memref<16x2xf32, #tpu.memory_space<vmem>>, vector<16x2xf32>
    %7 = vector.extract_strided_slice %4 {offsets = [0, 0], sizes = [256, 1], strides = [1, 1]} : vector<256x2xf32> to vector<256x1xf32>
    %8 = vector.broadcast %7 : vector<256x1xf32> to vector<256x8xf32>
    %9 = arith.mulf %3, %8 : vector<256x8xf32>
    %10 = vector.extract_strided_slice %4 {offsets = [0, 1], sizes = [256, 1], strides = [1, 1]} : vector<256x2xf32> to vector<256x1xf32>
    %11 = vector.broadcast %10 : vector<256x1xf32> to vector<256x8xf32>
    %12 = arith.mulf %3, %11 : vector<256x8xf32>
    %cst = arith.constant 0.000000e+00 : f32
    %13 = vector.broadcast %cst : f32 to vector<17x8xf32>
    %14 = tpu.concatenate %13, %3, %13 in 0 : vector<17x8xf32>, vector<256x8xf32>, vector<17x8xf32> -> vector<290x8xf32>
    %15 = tpu.concatenate %13, %9, %13 in 0 : vector<17x8xf32>, vector<256x8xf32>, vector<17x8xf32> -> vector<290x8xf32>
    %16 = tpu.concatenate %13, %12, %13 in 0 : vector<17x8xf32>, vector<256x8xf32>, vector<17x8xf32> -> vector<290x8xf32>
    %cst_9 = arith.constant 0.000000e+00 : f32
    %17 = vector.broadcast %cst_9 : f32 to vector<256x64xf32>
    %18 = vector.extract_strided_slice %16 {offsets = [0, 0], sizes = [256, 8], strides = [1, 1]} : vector<290x8xf32> to vector<256x8xf32>
    %19 = arith.truncf %18 : vector<256x8xf32> to vector<256x8xbf16>
    %c0_10 = arith.constant 0 : index
    %c0_11 = arith.constant 0 : index
    %20 = vector.load %arg7[%c0_10, %c0_11] : memref<72x64xbf16, #tpu.memory_space<vmem>>, vector<8x64xbf16>
    %cst_12 = arith.constant dense<0.000000e+00> : vector<256x64xf32>
    %21 = tpu.matmul %19, %20, %cst_12 {dimension_numbers = #tpu.dot_dimension_numbers<[1], [0], [0], [1], [0, 0, 1, 1], [], []>} : vector<256x8xbf16>, vector<8x64xbf16>, vector<256x64xf32> -> vector<256x64xf32>
    %22 = arith.addf %17, %21 : vector<256x64xf32>
    %23 = vector.extract_strided_slice %14 {offsets = [1, 0], sizes = [256, 8], strides = [1, 1]} : vector<290x8xf32> to vector<256x8xf32>
    %24 = arith.truncf %23 : vector<256x8xf32> to vector<256x8xbf16>
    %c8 = arith.constant 8 : index
    %c0_13 = arith.constant 0 : index
    %25 = vector.load %arg7[%c8, %c0_13] : memref<72x64xbf16, #tpu.memory_space<vmem>>, vector<8x64xbf16>
    %cst_14 = arith.constant dense<0.000000e+00> : vector<256x64xf32>
    %26 = tpu.matmul %24, %25, %cst_14 {dimension_numbers = #tpu.dot_dimension_numbers<[1], [0], [0], [1], [0, 0, 1, 1], [], []>} : vector<256x8xbf16>, vector<8x64xbf16>, vector<256x64xf32> -> vector<256x64xf32>
    %27 = arith.addf %22, %26 : vector<256x64xf32>
    %28 = vector.extract_strided_slice %15 {offsets = [2, 0], sizes = [256, 8], strides = [1, 1]} : vector<290x8xf32> to vector<256x8xf32>
    %29 = arith.truncf %28 : vector<256x8xf32> to vector<256x8xbf16>
    %c16 = arith.constant 16 : index
    %c0_15 = arith.constant 0 : index
    %30 = vector.load %arg7[%c16, %c0_15] : memref<72x64xbf16, #tpu.memory_space<vmem>>, vector<8x64xbf16>
    %cst_16 = arith.constant dense<0.000000e+00> : vector<256x64xf32>
    %31 = tpu.matmul %29, %30, %cst_16 {dimension_numbers = #tpu.dot_dimension_numbers<[1], [0], [0], [1], [0, 0, 1, 1], [], []>} : vector<256x8xbf16>, vector<8x64xbf16>, vector<256x64xf32> -> vector<256x64xf32>
    %32 = arith.addf %27, %31 : vector<256x64xf32>
    %33 = vector.extract_strided_slice %16 {offsets = [16, 0], sizes = [256, 8], strides = [1, 1]} : vector<290x8xf32> to vector<256x8xf32>
    %34 = arith.truncf %33 : vector<256x8xf32> to vector<256x8xbf16>
    %c24 = arith.constant 24 : index
    %c0_17 = arith.constant 0 : index
    %35 = vector.load %arg7[%c24, %c0_17] : memref<72x64xbf16, #tpu.memory_space<vmem>>, vector<8x64xbf16>
    %cst_18 = arith.constant dense<0.000000e+00> : vector<256x64xf32>
    %36 = tpu.matmul %34, %35, %cst_18 {dimension_numbers = #tpu.dot_dimension_numbers<[1], [0], [0], [1], [0, 0, 1, 1], [], []>} : vector<256x8xbf16>, vector<8x64xbf16>, vector<256x64xf32> -> vector<256x64xf32>
    %37 = arith.addf %32, %36 : vector<256x64xf32>
    %38 = vector.extract_strided_slice %14 {offsets = [17, 0], sizes = [256, 8], strides = [1, 1]} : vector<290x8xf32> to vector<256x8xf32>
    %39 = arith.truncf %38 : vector<256x8xf32> to vector<256x8xbf16>
    %c32 = arith.constant 32 : index
    %c0_19 = arith.constant 0 : index
    %40 = vector.load %arg7[%c32, %c0_19] : memref<72x64xbf16, #tpu.memory_space<vmem>>, vector<8x64xbf16>
    %cst_20 = arith.constant dense<0.000000e+00> : vector<256x64xf32>
    %41 = tpu.matmul %39, %40, %cst_20 {dimension_numbers = #tpu.dot_dimension_numbers<[1], [0], [0], [1], [0, 0, 1, 1], [], []>} : vector<256x8xbf16>, vector<8x64xbf16>, vector<256x64xf32> -> vector<256x64xf32>
    %42 = arith.addf %37, %41 : vector<256x64xf32>
    %43 = vector.extract_strided_slice %15 {offsets = [18, 0], sizes = [256, 8], strides = [1, 1]} : vector<290x8xf32> to vector<256x8xf32>
    %44 = arith.truncf %43 : vector<256x8xf32> to vector<256x8xbf16>
    %c40 = arith.constant 40 : index
    %c0_21 = arith.constant 0 : index
    %45 = vector.load %arg7[%c40, %c0_21] : memref<72x64xbf16, #tpu.memory_space<vmem>>, vector<8x64xbf16>
    %cst_22 = arith.constant dense<0.000000e+00> : vector<256x64xf32>
    %46 = tpu.matmul %44, %45, %cst_22 {dimension_numbers = #tpu.dot_dimension_numbers<[1], [0], [0], [1], [0, 0, 1, 1], [], []>} : vector<256x8xbf16>, vector<8x64xbf16>, vector<256x64xf32> -> vector<256x64xf32>
    %47 = arith.addf %42, %46 : vector<256x64xf32>
    %48 = vector.extract_strided_slice %16 {offsets = [32, 0], sizes = [256, 8], strides = [1, 1]} : vector<290x8xf32> to vector<256x8xf32>
    %49 = arith.truncf %48 : vector<256x8xf32> to vector<256x8xbf16>
    %c48 = arith.constant 48 : index
    %c0_23 = arith.constant 0 : index
    %50 = vector.load %arg7[%c48, %c0_23] : memref<72x64xbf16, #tpu.memory_space<vmem>>, vector<8x64xbf16>
    %cst_24 = arith.constant dense<0.000000e+00> : vector<256x64xf32>
    %51 = tpu.matmul %49, %50, %cst_24 {dimension_numbers = #tpu.dot_dimension_numbers<[1], [0], [0], [1], [0, 0, 1, 1], [], []>} : vector<256x8xbf16>, vector<8x64xbf16>, vector<256x64xf32> -> vector<256x64xf32>
    %52 = arith.addf %47, %51 : vector<256x64xf32>
    %53 = vector.extract_strided_slice %14 {offsets = [33, 0], sizes = [256, 8], strides = [1, 1]} : vector<290x8xf32> to vector<256x8xf32>
    %54 = arith.truncf %53 : vector<256x8xf32> to vector<256x8xbf16>
    %c56 = arith.constant 56 : index
    %c0_25 = arith.constant 0 : index
    %55 = vector.load %arg7[%c56, %c0_25] : memref<72x64xbf16, #tpu.memory_space<vmem>>, vector<8x64xbf16>
    %cst_26 = arith.constant dense<0.000000e+00> : vector<256x64xf32>
    %56 = tpu.matmul %54, %55, %cst_26 {dimension_numbers = #tpu.dot_dimension_numbers<[1], [0], [0], [1], [0, 0, 1, 1], [], []>} : vector<256x8xbf16>, vector<8x64xbf16>, vector<256x64xf32> -> vector<256x64xf32>
    %57 = arith.addf %52, %56 : vector<256x64xf32>
    %58 = vector.extract_strided_slice %15 {offsets = [34, 0], sizes = [256, 8], strides = [1, 1]} : vector<290x8xf32> to vector<256x8xf32>
    %59 = arith.truncf %58 : vector<256x8xf32> to vector<256x8xbf16>
    %c64 = arith.constant 64 : index
    %c0_27 = arith.constant 0 : index
    %60 = vector.load %arg7[%c64, %c0_27] : memref<72x64xbf16, #tpu.memory_space<vmem>>, vector<8x64xbf16>
    %cst_28 = arith.constant dense<0.000000e+00> : vector<256x64xf32>
    %61 = tpu.matmul %59, %60, %cst_28 {dimension_numbers = #tpu.dot_dimension_numbers<[1], [0], [0], [1], [0, 0, 1, 1], [], []>} : vector<256x8xbf16>, vector<8x64xbf16>, vector<256x64xf32> -> vector<256x64xf32>
    %62 = arith.addf %57, %61 : vector<256x64xf32>
    %c0_29 = arith.constant 0 : index
    %c0_30 = arith.constant 0 : index
    %63 = vector.load %arg8[%c0_29, %c0_30] : memref<1x64xf32, #tpu.memory_space<vmem>>, vector<1x64xf32>
    %64 = vector.broadcast %63 : vector<1x64xf32> to vector<256x64xf32>
    %65 = arith.addf %62, %64 : vector<256x64xf32>
    %cst_31 = arith.constant 0.000000e+00 : f32
    %66 = vector.broadcast %cst_31 : f32 to vector<256x64xf32>
    %67 = arith.maximumf %65, %66 : vector<256x64xf32>
    %68 = vector.extract_strided_slice %4 {offsets = [0, 0], sizes = [256, 1], strides = [1, 1]} : vector<256x2xf32> to vector<256x1xf32>
    %69 = vector.broadcast %68 : vector<256x1xf32> to vector<256x64xf32>
    %70 = arith.mulf %67, %69 : vector<256x64xf32>
    %71 = vector.extract_strided_slice %4 {offsets = [0, 1], sizes = [256, 1], strides = [1, 1]} : vector<256x2xf32> to vector<256x1xf32>
    %72 = vector.broadcast %71 : vector<256x1xf32> to vector<256x64xf32>
    %73 = arith.mulf %67, %72 : vector<256x64xf32>
    %cst_32 = arith.constant 0.000000e+00 : f32
    %74 = vector.broadcast %cst_32 : f32 to vector<17x64xf32>
    %75 = tpu.concatenate %74, %67, %74 in 0 : vector<17x64xf32>, vector<256x64xf32>, vector<17x64xf32> -> vector<290x64xf32>
    %76 = tpu.concatenate %74, %70, %74 in 0 : vector<17x64xf32>, vector<256x64xf32>, vector<17x64xf32> -> vector<290x64xf32>
    %77 = tpu.concatenate %74, %73, %74 in 0 : vector<17x64xf32>, vector<256x64xf32>, vector<17x64xf32> -> vector<290x64xf32>
    %cst_33 = arith.constant 0.000000e+00 : f32
    %78 = vector.broadcast %cst_33 : f32 to vector<256x64xf32>
    %79 = vector.extract_strided_slice %77 {offsets = [0, 0], sizes = [256, 64], strides = [1, 1]} : vector<290x64xf32> to vector<256x64xf32>
    %80 = arith.truncf %79 : vector<256x64xf32> to vector<256x64xbf16>
    %c0_34 = arith.constant 0 : index
    %c0_35 = arith.constant 0 : index
    %81 = vector.load %arg9[%c0_34, %c0_35] : memref<576x64xbf16, #tpu.memory_space<vmem>>, vector<64x64xbf16>
    %cst_36 = arith.constant dense<0.000000e+00> : vector<256x64xf32>
    %82 = tpu.matmul %80, %81, %cst_36 {dimension_numbers = #tpu.dot_dimension_numbers<[1], [0], [0], [1], [0, 0, 1, 1], [], []>} : vector<256x64xbf16>, vector<64x64xbf16>, vector<256x64xf32> -> vector<256x64xf32>
    %83 = arith.addf %78, %82 : vector<256x64xf32>
    %84 = vector.extract_strided_slice %75 {offsets = [1, 0], sizes = [256, 64], strides = [1, 1]} : vector<290x64xf32> to vector<256x64xf32>
    %85 = arith.truncf %84 : vector<256x64xf32> to vector<256x64xbf16>
    %c64_37 = arith.constant 64 : index
    %c0_38 = arith.constant 0 : index
    %86 = vector.load %arg9[%c64_37, %c0_38] : memref<576x64xbf16, #tpu.memory_space<vmem>>, vector<64x64xbf16>
    %cst_39 = arith.constant dense<0.000000e+00> : vector<256x64xf32>
    %87 = tpu.matmul %85, %86, %cst_39 {dimension_numbers = #tpu.dot_dimension_numbers<[1], [0], [0], [1], [0, 0, 1, 1], [], []>} : vector<256x64xbf16>, vector<64x64xbf16>, vector<256x64xf32> -> vector<256x64xf32>
    %88 = arith.addf %83, %87 : vector<256x64xf32>
    %89 = vector.extract_strided_slice %76 {offsets = [2, 0], sizes = [256, 64], strides = [1, 1]} : vector<290x64xf32> to vector<256x64xf32>
    %90 = arith.truncf %89 : vector<256x64xf32> to vector<256x64xbf16>
    %c128 = arith.constant 128 : index
    %c0_40 = arith.constant 0 : index
    %91 = vector.load %arg9[%c128, %c0_40] : memref<576x64xbf16, #tpu.memory_space<vmem>>, vector<64x64xbf16>
    %cst_41 = arith.constant dense<0.000000e+00> : vector<256x64xf32>
    %92 = tpu.matmul %90, %91, %cst_41 {dimension_numbers = #tpu.dot_dimension_numbers<[1], [0], [0], [1], [0, 0, 1, 1], [], []>} : vector<256x64xbf16>, vector<64x64xbf16>, vector<256x64xf32> -> vector<256x64xf32>
    %93 = arith.addf %88, %92 : vector<256x64xf32>
    %94 = vector.extract_strided_slice %77 {offsets = [16, 0], sizes = [256, 64], strides = [1, 1]} : vector<290x64xf32> to vector<256x64xf32>
    %95 = arith.truncf %94 : vector<256x64xf32> to vector<256x64xbf16>
    %c192 = arith.constant 192 : index
    %c0_42 = arith.constant 0 : index
    %96 = vector.load %arg9[%c192, %c0_42] : memref<576x64xbf16, #tpu.memory_space<vmem>>, vector<64x64xbf16>
    %cst_43 = arith.constant dense<0.000000e+00> : vector<256x64xf32>
    %97 = tpu.matmul %95, %96, %cst_43 {dimension_numbers = #tpu.dot_dimension_numbers<[1], [0], [0], [1], [0, 0, 1, 1], [], []>} : vector<256x64xbf16>, vector<64x64xbf16>, vector<256x64xf32> -> vector<256x64xf32>
    %98 = arith.addf %93, %97 : vector<256x64xf32>
    %99 = vector.extract_strided_slice %75 {offsets = [17, 0], sizes = [256, 64], strides = [1, 1]} : vector<290x64xf32> to vector<256x64xf32>
    %100 = arith.truncf %99 : vector<256x64xf32> to vector<256x64xbf16>
    %c256 = arith.constant 256 : index
    %c0_44 = arith.constant 0 : index
    %101 = vector.load %arg9[%c256, %c0_44] : memref<576x64xbf16, #tpu.memory_space<vmem>>, vector<64x64xbf16>
    %cst_45 = arith.constant dense<0.000000e+00> : vector<256x64xf32>
    %102 = tpu.matmul %100, %101, %cst_45 {dimension_numbers = #tpu.dot_dimension_numbers<[1], [0], [0], [1], [0, 0, 1, 1], [], []>} : vector<256x64xbf16>, vector<64x64xbf16>, vector<256x64xf32> -> vector<256x64xf32>
    %103 = arith.addf %98, %102 : vector<256x64xf32>
    %104 = vector.extract_strided_slice %76 {offsets = [18, 0], sizes = [256, 64], strides = [1, 1]} : vector<290x64xf32> to vector<256x64xf32>
    %105 = arith.truncf %104 : vector<256x64xf32> to vector<256x64xbf16>
    %c320 = arith.constant 320 : index
    %c0_46 = arith.constant 0 : index
    %106 = vector.load %arg9[%c320, %c0_46] : memref<576x64xbf16, #tpu.memory_space<vmem>>, vector<64x64xbf16>
    %cst_47 = arith.constant dense<0.000000e+00> : vector<256x64xf32>
    %107 = tpu.matmul %105, %106, %cst_47 {dimension_numbers = #tpu.dot_dimension_numbers<[1], [0], [0], [1], [0, 0, 1, 1], [], []>} : vector<256x64xbf16>, vector<64x64xbf16>, vector<256x64xf32> -> vector<256x64xf32>
    %108 = arith.addf %103, %107 : vector<256x64xf32>
    %109 = vector.extract_strided_slice %77 {offsets = [32, 0], sizes = [256, 64], strides = [1, 1]} : vector<290x64xf32> to vector<256x64xf32>
    %110 = arith.truncf %109 : vector<256x64xf32> to vector<256x64xbf16>
    %c384 = arith.constant 384 : index
    %c0_48 = arith.constant 0 : index
    %111 = vector.load %arg9[%c384, %c0_48] : memref<576x64xbf16, #tpu.memory_space<vmem>>, vector<64x64xbf16>
    %cst_49 = arith.constant dense<0.000000e+00> : vector<256x64xf32>
    %112 = tpu.matmul %110, %111, %cst_49 {dimension_numbers = #tpu.dot_dimension_numbers<[1], [0], [0], [1], [0, 0, 1, 1], [], []>} : vector<256x64xbf16>, vector<64x64xbf16>, vector<256x64xf32> -> vector<256x64xf32>
    %113 = arith.addf %108, %112 : vector<256x64xf32>
    %114 = vector.extract_strided_slice %75 {offsets = [33, 0], sizes = [256, 64], strides = [1, 1]} : vector<290x64xf32> to vector<256x64xf32>
    %115 = arith.truncf %114 : vector<256x64xf32> to vector<256x64xbf16>
    %c448 = arith.constant 448 : index
    %c0_50 = arith.constant 0 : index
    %116 = vector.load %arg9[%c448, %c0_50] : memref<576x64xbf16, #tpu.memory_space<vmem>>, vector<64x64xbf16>
    %cst_51 = arith.constant dense<0.000000e+00> : vector<256x64xf32>
    %117 = tpu.matmul %115, %116, %cst_51 {dimension_numbers = #tpu.dot_dimension_numbers<[1], [0], [0], [1], [0, 0, 1, 1], [], []>} : vector<256x64xbf16>, vector<64x64xbf16>, vector<256x64xf32> -> vector<256x64xf32>
    %118 = arith.addf %113, %117 : vector<256x64xf32>
    %119 = vector.extract_strided_slice %76 {offsets = [34, 0], sizes = [256, 64], strides = [1, 1]} : vector<290x64xf32> to vector<256x64xf32>
    %120 = arith.truncf %119 : vector<256x64xf32> to vector<256x64xbf16>
    %c512 = arith.constant 512 : index
    %c0_52 = arith.constant 0 : index
    %121 = vector.load %arg9[%c512, %c0_52] : memref<576x64xbf16, #tpu.memory_space<vmem>>, vector<64x64xbf16>
    %cst_53 = arith.constant dense<0.000000e+00> : vector<256x64xf32>
    %122 = tpu.matmul %120, %121, %cst_53 {dimension_numbers = #tpu.dot_dimension_numbers<[1], [0], [0], [1], [0, 0, 1, 1], [], []>} : vector<256x64xbf16>, vector<64x64xbf16>, vector<256x64xf32> -> vector<256x64xf32>
    %123 = arith.addf %118, %122 : vector<256x64xf32>
    %c0_54 = arith.constant 0 : index
    %c0_55 = arith.constant 0 : index
    %124 = vector.load %arg10[%c0_54, %c0_55] : memref<1x64xf32, #tpu.memory_space<vmem>>, vector<1x64xf32>
    %125 = vector.broadcast %124 : vector<1x64xf32> to vector<256x64xf32>
    %126 = arith.addf %123, %125 : vector<256x64xf32>
    %cst_56 = arith.constant 0.000000e+00 : f32
    %127 = vector.broadcast %cst_56 : f32 to vector<256x64xf32>
    %128 = arith.maximumf %126, %127 : vector<256x64xf32>
    %129 = tpu.concatenate %65, %126 in 1 : vector<256x64xf32>, vector<256x64xf32> -> vector<256x128xf32>
    %c0_57 = arith.constant 0 : index
    %c0_58 = arith.constant 0 : index
    %130 = vector.load %arg17[%c0_57, %c0_58] : memref<256x128xf32, #tpu.memory_space<vmem>>, vector<256x128xf32>
    tpu.vector_store %arg17[%c0_57, %c0_58], %129 {strides = array<i32>} : memref<256x128xf32, #tpu.memory_space<vmem>>, vector<256x128xf32>,
    %cst_59 = arith.constant 0.000000e+00 : f32
    %131 = vector.broadcast %cst_59 : f32 to vector<1x64xf32>
    %cst_60 = arith.constant 0.000000e+00 : f32
    %132 = vector.broadcast %cst_60 : f32 to vector<16x64xf32>
    %133 = vector.extract_strided_slice %128 {offsets = [1, 0], sizes = [255, 64], strides = [1, 1]} : vector<256x64xf32> to vector<255x64xf32>
    %134 = tpu.concatenate %133, %131 in 0 : vector<255x64xf32>, vector<1x64xf32> -> vector<256x64xf32>
    %135 = arith.maximumf %128, %134 : vector<256x64xf32>
    %136 = vector.extract_strided_slice %135 {offsets = [16, 0], sizes = [240, 64], strides = [1, 1]} : vector<256x64xf32> to vector<240x64xf32>
    %137 = tpu.concatenate %136, %132 in 0 : vector<240x64xf32>, vector<16x64xf32> -> vector<256x64xf32>
    %138 = arith.maximumf %135, %137 : vector<256x64xf32>
    %c0_61 = arith.constant 0 : index
    %c0_62 = arith.constant 0 : index
    %139 = vector.load %arg5[%c0_61, %c0_62] : memref<64x256xbf16, #tpu.memory_space<vmem>>, vector<64x256xbf16>
    %140 = arith.truncf %138 : vector<256x64xf32> to vector<256x64xbf16>
    %cst_63 = arith.constant dense<0.000000e+00> : vector<64x64xf32>
    %141 = tpu.matmul %139, %140, %cst_63 {dimension_numbers = #tpu.dot_dimension_numbers<[1], [0], [0], [1], [0, 0, 1, 1], [], []>} : vector<64x256xbf16>, vector<256x64xbf16>, vector<64x64xf32> -> vector<64x64xf32>
    %142 = vector.extract_strided_slice %5 {offsets = [0, 0], sizes = [64, 1], strides = [1, 1]} : vector<64x2xf32> to vector<64x1xf32>
    %143 = vector.broadcast %142 : vector<64x1xf32> to vector<64x64xf32>
    %144 = arith.mulf %141, %143 : vector<64x64xf32>
    %145 = vector.extract_strided_slice %5 {offsets = [0, 1], sizes = [64, 1], strides = [1, 1]} : vector<64x2xf32> to vector<64x1xf32>
    %146 = vector.broadcast %145 : vector<64x1xf32> to vector<64x64xf32>
    %147 = arith.mulf %141, %146 : vector<64x64xf32>
    %cst_64 = arith.constant 0.000000e+00 : f32
    %148 = vector.broadcast %cst_64 : f32 to vector<9x64xf32>
    %149 = tpu.concatenate %148, %141, %148 in 0 : vector<9x64xf32>, vector<64x64xf32>, vector<9x64xf32> -> vector<82x64xf32>
    %150 = tpu.concatenate %148, %144, %148 in 0 : vector<9x64xf32>, vector<64x64xf32>, vector<9x64xf32> -> vector<82x64xf32>
    %151 = tpu.concatenate %148, %147, %148 in 0 : vector<9x64xf32>, vector<64x64xf32>, vector<9x64xf32> -> vector<82x64xf32>
    %cst_65 = arith.constant 0.000000e+00 : f32
    %152 = vector.broadcast %cst_65 : f32 to vector<64x128xf32>
    %153 = vector.extract_strided_slice %151 {offsets = [0, 0], sizes = [64, 64], strides = [1, 1]} : vector<82x64xf32> to vector<64x64xf32>
    %154 = arith.truncf %153 : vector<64x64xf32> to vector<64x64xbf16>
    %c0_66 = arith.constant 0 : index
    %c0_67 = arith.constant 0 : index
    %155 = vector.load %arg11[%c0_66, %c0_67] : memref<576x128xbf16, #tpu.memory_space<vmem>>, vector<64x128xbf16>
    %cst_68 = arith.constant dense<0.000000e+00> : vector<64x128xf32>
    %156 = tpu.matmul %154, %155, %cst_68 {dimension_numbers = #tpu.dot_dimension_numbers<[1], [0], [0], [1], [0, 0, 1, 1], [], []>} : vector<64x64xbf16>, vector<64x128xbf16>, vector<64x128xf32> -> vector<64x128xf32>
    %157 = arith.addf %152, %156 : vector<64x128xf32>
    %158 = vector.extract_strided_slice %149 {offsets = [1, 0], sizes = [64, 64], strides = [1, 1]} : vector<82x64xf32> to vector<64x64xf32>
    %159 = arith.truncf %158 : vector<64x64xf32> to vector<64x64xbf16>
    %c64_69 = arith.constant 64 : index
    %c0_70 = arith.constant 0 : index
    %160 = vector.load %arg11[%c64_69, %c0_70] : memref<576x128xbf16, #tpu.memory_space<vmem>>, vector<64x128xbf16>
    %cst_71 = arith.constant dense<0.000000e+00> : vector<64x128xf32>
    %161 = tpu.matmul %159, %160, %cst_71 {dimension_numbers = #tpu.dot_dimension_numbers<[1], [0], [0], [1], [0, 0, 1, 1], [], []>} : vector<64x64xbf16>, vector<64x128xbf16>, vector<64x128xf32> -> vector<64x128xf32>
    %162 = arith.addf %157, %161 : vector<64x128xf32>
    %163 = vector.extract_strided_slice %150 {offsets = [2, 0], sizes = [64, 64], strides = [1, 1]} : vector<82x64xf32> to vector<64x64xf32>
    %164 = arith.truncf %163 : vector<64x64xf32> to vector<64x64xbf16>
    %c128_72 = arith.constant 128 : index
    %c0_73 = arith.constant 0 : index
    %165 = vector.load %arg11[%c128_72, %c0_73] : memref<576x128xbf16, #tpu.memory_space<vmem>>, vector<64x128xbf16>
    %cst_74 = arith.constant dense<0.000000e+00> : vector<64x128xf32>
    %166 = tpu.matmul %164, %165, %cst_74 {dimension_numbers = #tpu.dot_dimension_numbers<[1], [0], [0], [1], [0, 0, 1, 1], [], []>} : vector<64x64xbf16>, vector<64x128xbf16>, vector<64x128xf32> -> vector<64x128xf32>
    %167 = arith.addf %162, %166 : vector<64x128xf32>
    %168 = vector.extract_strided_slice %151 {offsets = [8, 0], sizes = [64, 64], strides = [1, 1]} : vector<82x64xf32> to vector<64x64xf32>
    %169 = arith.truncf %168 : vector<64x64xf32> to vector<64x64xbf16>
    %c192_75 = arith.constant 192 : index
    %c0_76 = arith.constant 0 : index
    %170 = vector.load %arg11[%c192_75, %c0_76] : memref<576x128xbf16, #tpu.memory_space<vmem>>, vector<64x128xbf16>
    %cst_77 = arith.constant dense<0.000000e+00> : vector<64x128xf32>
    %171 = tpu.matmul %169, %170, %cst_77 {dimension_numbers = #tpu.dot_dimension_numbers<[1], [0], [0], [1], [0, 0, 1, 1], [], []>} : vector<64x64xbf16>, vector<64x128xbf16>, vector<64x128xf32> -> vector<64x128xf32>
    %172 = arith.addf %167, %171 : vector<64x128xf32>
    %173 = vector.extract_strided_slice %149 {offsets = [9, 0], sizes = [64, 64], strides = [1, 1]} : vector<82x64xf32> to vector<64x64xf32>
    %174 = arith.truncf %173 : vector<64x64xf32> to vector<64x64xbf16>
    %c256_78 = arith.constant 256 : index
    %c0_79 = arith.constant 0 : index
    %175 = vector.load %arg11[%c256_78, %c0_79] : memref<576x128xbf16, #tpu.memory_space<vmem>>, vector<64x128xbf16>
    %cst_80 = arith.constant dense<0.000000e+00> : vector<64x128xf32>
    %176 = tpu.matmul %174, %175, %cst_80 {dimension_numbers = #tpu.dot_dimension_numbers<[1], [0], [0], [1], [0, 0, 1, 1], [], []>} : vector<64x64xbf16>, vector<64x128xbf16>, vector<64x128xf32> -> vector<64x128xf32>
    %177 = arith.addf %172, %176 : vector<64x128xf32>
    %178 = vector.extract_strided_slice %150 {offsets = [10, 0], sizes = [64, 64], strides = [1, 1]} : vector<82x64xf32> to vector<64x64xf32>
    %179 = arith.truncf %178 : vector<64x64xf32> to vector<64x64xbf16>
    %c320_81 = arith.constant 320 : index
    %c0_82 = arith.constant 0 : index
    %180 = vector.load %arg11[%c320_81, %c0_82] : memref<576x128xbf16, #tpu.memory_space<vmem>>, vector<64x128xbf16>
    %cst_83 = arith.constant dense<0.000000e+00> : vector<64x128xf32>
    %181 = tpu.matmul %179, %180, %cst_83 {dimension_numbers = #tpu.dot_dimension_numbers<[1], [0], [0], [1], [0, 0, 1, 1], [], []>} : vector<64x64xbf16>, vector<64x128xbf16>, vector<64x128xf32> -> vector<64x128xf32>
    %182 = arith.addf %177, %181 : vector<64x128xf32>
    %183 = vector.extract_strided_slice %151 {offsets = [16, 0], sizes = [64, 64], strides = [1, 1]} : vector<82x64xf32> to vector<64x64xf32>
    %184 = arith.truncf %183 : vector<64x64xf32> to vector<64x64xbf16>
    %c384_84 = arith.constant 384 : index
    %c0_85 = arith.constant 0 : index
    %185 = vector.load %arg11[%c384_84, %c0_85] : memref<576x128xbf16, #tpu.memory_space<vmem>>, vector<64x128xbf16>
    %cst_86 = arith.constant dense<0.000000e+00> : vector<64x128xf32>
    %186 = tpu.matmul %184, %185, %cst_86 {dimension_numbers = #tpu.dot_dimension_numbers<[1], [0], [0], [1], [0, 0, 1, 1], [], []>} : vector<64x64xbf16>, vector<64x128xbf16>, vector<64x128xf32> -> vector<64x128xf32>
    %187 = arith.addf %182, %186 : vector<64x128xf32>
    %188 = vector.extract_strided_slice %149 {offsets = [17, 0], sizes = [64, 64], strides = [1, 1]} : vector<82x64xf32> to vector<64x64xf32>
    %189 = arith.truncf %188 : vector<64x64xf32> to vector<64x64xbf16>
    %c448_87 = arith.constant 448 : index
    %c0_88 = arith.constant 0 : index
    %190 = vector.load %arg11[%c448_87, %c0_88] : memref<576x128xbf16, #tpu.memory_space<vmem>>, vector<64x128xbf16>
    %cst_89 = arith.constant dense<0.000000e+00> : vector<64x128xf32>
    %191 = tpu.matmul %189, %190, %cst_89 {dimension_numbers = #tpu.dot_dimension_numbers<[1], [0], [0], [1], [0, 0, 1, 1], [], []>} : vector<64x64xbf16>, vector<64x128xbf16>, vector<64x128xf32> -> vector<64x128xf32>
    %192 = arith.addf %187, %191 : vector<64x128xf32>
    %193 = vector.extract_strided_slice %150 {offsets = [18, 0], sizes = [64, 64], strides = [1, 1]} : vector<82x64xf32> to vector<64x64xf32>
    %194 = arith.truncf %193 : vector<64x64xf32> to vector<64x64xbf16>
    %c512_90 = arith.constant 512 : index
    %c0_91 = arith.constant 0 : index
    %195 = vector.load %arg11[%c512_90, %c0_91] : memref<576x128xbf16, #tpu.memory_space<vmem>>, vector<64x128xbf16>
    %cst_92 = arith.constant dense<0.000000e+00> : vector<64x128xf32>
    %196 = tpu.matmul %194, %195, %cst_92 {dimension_numbers = #tpu.dot_dimension_numbers<[1], [0], [0], [1], [0, 0, 1, 1], [], []>} : vector<64x64xbf16>, vector<64x128xbf16>, vector<64x128xf32> -> vector<64x128xf32>
    %197 = arith.addf %192, %196 : vector<64x128xf32>
    %c0_93 = arith.constant 0 : index
    %c0_94 = arith.constant 0 : index
    %198 = vector.load %arg12[%c0_93, %c0_94] : memref<1x128xf32, #tpu.memory_space<vmem>>, vector<1x128xf32>
    %199 = vector.broadcast %198 : vector<1x128xf32> to vector<64x128xf32>
    %200 = arith.addf %197, %199 : vector<64x128xf32>
    %cst_95 = arith.constant 0.000000e+00 : f32
    %201 = vector.broadcast %cst_95 : f32 to vector<64x128xf32>
    %202 = arith.maximumf %200, %201 : vector<64x128xf32>
    %c0_96 = arith.constant 0 : index
    %c0_97 = arith.constant 0 : index
    %203 = vector.load %arg18[%c0_96, %c0_97] : memref<64x128xf32, #tpu.memory_space<vmem>>, vector<64x128xf32>
    tpu.vector_store %arg18[%c0_96, %c0_97], %200 {strides = array<i32>} : memref<64x128xf32, #tpu.memory_space<vmem>>, vector<64x128xf32>,
    %204 = vector.extract_strided_slice %5 {offsets = [0, 0], sizes = [64, 1], strides = [1, 1]} : vector<64x2xf32> to vector<64x1xf32>
    %205 = vector.broadcast %204 : vector<64x1xf32> to vector<64x128xf32>
    %206 = arith.mulf %202, %205 : vector<64x128xf32>
    %207 = vector.extract_strided_slice %5 {offsets = [0, 1], sizes = [64, 1], strides = [1, 1]} : vector<64x2xf32> to vector<64x1xf32>
    %208 = vector.broadcast %207 : vector<64x1xf32> to vector<64x128xf32>
    %209 = arith.mulf %202, %208 : vector<64x128xf32>
    %cst_98 = arith.constant 0.000000e+00 : f32
    %210 = vector.broadcast %cst_98 : f32 to vector<9x128xf32>
    %211 = tpu.concatenate %210, %202, %210 in 0 : vector<9x128xf32>, vector<64x128xf32>, vector<9x128xf32> -> vector<82x128xf32>
    %212 = tpu.concatenate %210, %206, %210 in 0 : vector<9x128xf32>, vector<64x128xf32>, vector<9x128xf32> -> vector<82x128xf32>
    %213 = tpu.concatenate %210, %209, %210 in 0 : vector<9x128xf32>, vector<64x128xf32>, vector<9x128xf32> -> vector<82x128xf32>
    %cst_99 = arith.constant 0.000000e+00 : f32
    %214 = vector.broadcast %cst_99 : f32 to vector<64x128xf32>
    %215 = vector.extract_strided_slice %213 {offsets = [0, 0], sizes = [64, 128], strides = [1, 1]} : vector<82x128xf32> to vector<64x128xf32>
    %216 = arith.truncf %215 : vector<64x128xf32> to vector<64x128xbf16>
    %c0_100 = arith.constant 0 : index
    %c0_101 = arith.constant 0 : index
    %217 = vector.load %arg13[%c0_100, %c0_101] : memref<1152x128xbf16, #tpu.memory_space<vmem>>, vector<128x128xbf16>
    %cst_102 = arith.constant dense<0.000000e+00> : vector<64x128xf32>
    %218 = tpu.matmul %216, %217, %cst_102 {dimension_numbers = #tpu.dot_dimension_numbers<[1], [0], [0], [1], [0, 0, 1, 1], [], []>} : vector<64x128xbf16>, vector<128x128xbf16>, vector<64x128xf32> -> vector<64x128xf32>
    %219 = arith.addf %214, %218 : vector<64x128xf32>
    %220 = vector.extract_strided_slice %211 {offsets = [1, 0], sizes = [64, 128], strides = [1, 1]} : vector<82x128xf32> to vector<64x128xf32>
    %221 = arith.truncf %220 : vector<64x128xf32> to vector<64x128xbf16>
    %c128_103 = arith.constant 128 : index
    %c0_104 = arith.constant 0 : index
    %222 = vector.load %arg13[%c128_103, %c0_104] : memref<1152x128xbf16, #tpu.memory_space<vmem>>, vector<128x128xbf16>
    %cst_105 = arith.constant dense<0.000000e+00> : vector<64x128xf32>
    %223 = tpu.matmul %221, %222, %cst_105 {dimension_numbers = #tpu.dot_dimension_numbers<[1], [0], [0], [1], [0, 0, 1, 1], [], []>} : vector<64x128xbf16>, vector<128x128xbf16>, vector<64x128xf32> -> vector<64x128xf32>
    %224 = arith.addf %219, %223 : vector<64x128xf32>
    %225 = vector.extract_strided_slice %212 {offsets = [2, 0], sizes = [64, 128], strides = [1, 1]} : vector<82x128xf32> to vector<64x128xf32>
    %226 = arith.truncf %225 : vector<64x128xf32> to vector<64x128xbf16>
    %c256_106 = arith.constant 256 : index
    %c0_107 = arith.constant 0 : index
    %227 = vector.load %arg13[%c256_106, %c0_107] : memref<1152x128xbf16, #tpu.memory_space<vmem>>, vector<128x128xbf16>
    %cst_108 = arith.constant dense<0.000000e+00> : vector<64x128xf32>
    %228 = tpu.matmul %226, %227, %cst_108 {dimension_numbers = #tpu.dot_dimension_numbers<[1], [0], [0], [1], [0, 0, 1, 1], [], []>} : vector<64x128xbf16>, vector<128x128xbf16>, vector<64x128xf32> -> vector<64x128xf32>
    %229 = arith.addf %224, %228 : vector<64x128xf32>
    %230 = vector.extract_strided_slice %213 {offsets = [8, 0], sizes = [64, 128], strides = [1, 1]} : vector<82x128xf32> to vector<64x128xf32>
    %231 = arith.truncf %230 : vector<64x128xf32> to vector<64x128xbf16>
    %c384_109 = arith.constant 384 : index
    %c0_110 = arith.constant 0 : index
    %232 = vector.load %arg13[%c384_109, %c0_110] : memref<1152x128xbf16, #tpu.memory_space<vmem>>, vector<128x128xbf16>
    %cst_111 = arith.constant dense<0.000000e+00> : vector<64x128xf32>
    %233 = tpu.matmul %231, %232, %cst_111 {dimension_numbers = #tpu.dot_dimension_numbers<[1], [0], [0], [1], [0, 0, 1, 1], [], []>} : vector<64x128xbf16>, vector<128x128xbf16>, vector<64x128xf32> -> vector<64x128xf32>
    %234 = arith.addf %229, %233 : vector<64x128xf32>
    %235 = vector.extract_strided_slice %211 {offsets = [9, 0], sizes = [64, 128], strides = [1, 1]} : vector<82x128xf32> to vector<64x128xf32>
    %236 = arith.truncf %235 : vector<64x128xf32> to vector<64x128xbf16>
    %c512_112 = arith.constant 512 : index
    %c0_113 = arith.constant 0 : index
    %237 = vector.load %arg13[%c512_112, %c0_113] : memref<1152x128xbf16, #tpu.memory_space<vmem>>, vector<128x128xbf16>
    %cst_114 = arith.constant dense<0.000000e+00> : vector<64x128xf32>
    %238 = tpu.matmul %236, %237, %cst_114 {dimension_numbers = #tpu.dot_dimension_numbers<[1], [0], [0], [1], [0, 0, 1, 1], [], []>} : vector<64x128xbf16>, vector<128x128xbf16>, vector<64x128xf32> -> vector<64x128xf32>
    %239 = arith.addf %234, %238 : vector<64x128xf32>
    %240 = vector.extract_strided_slice %212 {offsets = [10, 0], sizes = [64, 128], strides = [1, 1]} : vector<82x128xf32> to vector<64x128xf32>
    %241 = arith.truncf %240 : vector<64x128xf32> to vector<64x128xbf16>
    %c640 = arith.constant 640 : index
    %c0_115 = arith.constant 0 : index
    %242 = vector.load %arg13[%c640, %c0_115] : memref<1152x128xbf16, #tpu.memory_space<vmem>>, vector<128x128xbf16>
    %cst_116 = arith.constant dense<0.000000e+00> : vector<64x128xf32>
    %243 = tpu.matmul %241, %242, %cst_116 {dimension_numbers = #tpu.dot_dimension_numbers<[1], [0], [0], [1], [0, 0, 1, 1], [], []>} : vector<64x128xbf16>, vector<128x128xbf16>, vector<64x128xf32> -> vector<64x128xf32>
    %244 = arith.addf %239, %243 : vector<64x128xf32>
    %245 = vector.extract_strided_slice %213 {offsets = [16, 0], sizes = [64, 128], strides = [1, 1]} : vector<82x128xf32> to vector<64x128xf32>
    %246 = arith.truncf %245 : vector<64x128xf32> to vector<64x128xbf16>
    %c768 = arith.constant 768 : index
    %c0_117 = arith.constant 0 : index
    %247 = vector.load %arg13[%c768, %c0_117] : memref<1152x128xbf16, #tpu.memory_space<vmem>>, vector<128x128xbf16>
    %cst_118 = arith.constant dense<0.000000e+00> : vector<64x128xf32>
    %248 = tpu.matmul %246, %247, %cst_118 {dimension_numbers = #tpu.dot_dimension_numbers<[1], [0], [0], [1], [0, 0, 1, 1], [], []>} : vector<64x128xbf16>, vector<128x128xbf16>, vector<64x128xf32> -> vector<64x128xf32>
    %249 = arith.addf %244, %248 : vector<64x128xf32>
    %250 = vector.extract_strided_slice %211 {offsets = [17, 0], sizes = [64, 128], strides = [1, 1]} : vector<82x128xf32> to vector<64x128xf32>
    %251 = arith.truncf %250 : vector<64x128xf32> to vector<64x128xbf16>
    %c896 = arith.constant 896 : index
    %c0_119 = arith.constant 0 : index
    %252 = vector.load %arg13[%c896, %c0_119] : memref<1152x128xbf16, #tpu.memory_space<vmem>>, vector<128x128xbf16>
    %cst_120 = arith.constant dense<0.000000e+00> : vector<64x128xf32>
    %253 = tpu.matmul %251, %252, %cst_120 {dimension_numbers = #tpu.dot_dimension_numbers<[1], [0], [0], [1], [0, 0, 1, 1], [], []>} : vector<64x128xbf16>, vector<128x128xbf16>, vector<64x128xf32> -> vector<64x128xf32>
    %254 = arith.addf %249, %253 : vector<64x128xf32>
    %255 = vector.extract_strided_slice %212 {offsets = [18, 0], sizes = [64, 128], strides = [1, 1]} : vector<82x128xf32> to vector<64x128xf32>
    %256 = arith.truncf %255 : vector<64x128xf32> to vector<64x128xbf16>
    %c1024 = arith.constant 1024 : index
    %c0_121 = arith.constant 0 : index
    %257 = vector.load %arg13[%c1024, %c0_121] : memref<1152x128xbf16, #tpu.memory_space<vmem>>, vector<128x128xbf16>
    %cst_122 = arith.constant dense<0.000000e+00> : vector<64x128xf32>
    %258 = tpu.matmul %256, %257, %cst_122 {dimension_numbers = #tpu.dot_dimension_numbers<[1], [0], [0], [1], [0, 0, 1, 1], [], []>} : vector<64x128xbf16>, vector<128x128xbf16>, vector<64x128xf32> -> vector<64x128xf32>
    %259 = arith.addf %254, %258 : vector<64x128xf32>
    %c0_123 = arith.constant 0 : index
    %c0_124 = arith.constant 0 : index
    %260 = vector.load %arg14[%c0_123, %c0_124] : memref<1x128xf32, #tpu.memory_space<vmem>>, vector<1x128xf32>
    %261 = vector.broadcast %260 : vector<1x128xf32> to vector<64x128xf32>
    %262 = arith.addf %259, %261 : vector<64x128xf32>
    %cst_125 = arith.constant 0.000000e+00 : f32
    %263 = vector.broadcast %cst_125 : f32 to vector<64x128xf32>
    %264 = arith.maximumf %262, %263 : vector<64x128xf32>
    %c0_126 = arith.constant 0 : index
    %c0_127 = arith.constant 0 : index
    %265 = vector.load %arg19[%c0_126, %c0_127] : memref<64x128xf32, #tpu.memory_space<vmem>>, vector<64x128xf32>
    tpu.vector_store %arg19[%c0_126, %c0_127], %262 {strides = array<i32>} : memref<64x128xf32, #tpu.memory_space<vmem>>, vector<64x128xf32>,
    %cst_128 = arith.constant 0.000000e+00 : f32
    %266 = vector.broadcast %cst_128 : f32 to vector<1x128xf32>
    %cst_129 = arith.constant 0.000000e+00 : f32
    %267 = vector.broadcast %cst_129 : f32 to vector<8x128xf32>
    %268 = vector.extract_strided_slice %264 {offsets = [1, 0], sizes = [63, 128], strides = [1, 1]} : vector<64x128xf32> to vector<63x128xf32>
    %269 = tpu.concatenate %268, %266 in 0 : vector<63x128xf32>, vector<1x128xf32> -> vector<64x128xf32>
    %270 = arith.maximumf %264, %269 : vector<64x128xf32>
    %271 = vector.extract_strided_slice %270 {offsets = [8, 0], sizes = [56, 128], strides = [1, 1]} : vector<64x128xf32> to vector<56x128xf32>
    %272 = tpu.concatenate %271, %267 in 0 : vector<56x128xf32>, vector<8x128xf32> -> vector<64x128xf32>
    %273 = arith.maximumf %270, %272 : vector<64x128xf32>
    %c0_130 = arith.constant 0 : index
    %c0_131 = arith.constant 0 : index
    %274 = vector.load %arg6[%c0_130, %c0_131] : memref<16x64xbf16, #tpu.memory_space<vmem>>, vector<16x64xbf16>
    %275 = arith.truncf %273 : vector<64x128xf32> to vector<64x128xbf16>
    %cst_132 = arith.constant dense<0.000000e+00> : vector<16x128xf32>
    %276 = tpu.matmul %274, %275, %cst_132 {dimension_numbers = #tpu.dot_dimension_numbers<[1], [0], [0], [1], [0, 0, 1, 1], [], []>} : vector<16x64xbf16>, vector<64x128xbf16>, vector<16x128xf32> -> vector<16x128xf32>
    %277 = vector.extract_strided_slice %6 {offsets = [0, 0], sizes = [16, 1], strides = [1, 1]} : vector<16x2xf32> to vector<16x1xf32>
    %278 = vector.broadcast %277 : vector<16x1xf32> to vector<16x128xf32>
    %279 = arith.mulf %276, %278 : vector<16x128xf32>
    %280 = vector.extract_strided_slice %6 {offsets = [0, 1], sizes = [16, 1], strides = [1, 1]} : vector<16x2xf32> to vector<16x1xf32>
    %281 = vector.broadcast %280 : vector<16x1xf32> to vector<16x128xf32>
    %282 = arith.mulf %276, %281 : vector<16x128xf32>
    %cst_133 = arith.constant 0.000000e+00 : f32
    %283 = vector.broadcast %cst_133 : f32 to vector<5x128xf32>
    %284 = tpu.concatenate %283, %276, %283 in 0 : vector<5x128xf32>, vector<16x128xf32>, vector<5x128xf32> -> vector<26x128xf32>
    %285 = tpu.concatenate %283, %279, %283 in 0 : vector<5x128xf32>, vector<16x128xf32>, vector<5x128xf32> -> vector<26x128xf32>
    %286 = tpu.concatenate %283, %282, %283 in 0 : vector<5x128xf32>, vector<16x128xf32>, vector<5x128xf32> -> vector<26x128xf32>
    %cst_134 = arith.constant 0.000000e+00 : f32
    %287 = vector.broadcast %cst_134 : f32 to vector<16x256xf32>
    %288 = vector.extract_strided_slice %286 {offsets = [0, 0], sizes = [16, 128], strides = [1, 1]} : vector<26x128xf32> to vector<16x128xf32>
    %289 = arith.truncf %288 : vector<16x128xf32> to vector<16x128xbf16>
    %c0_135 = arith.constant 0 : index
    %c0_136 = arith.constant 0 : index
    %290 = vector.load %arg15[%c0_135, %c0_136] : memref<1152x256xbf16, #tpu.memory_space<vmem>>, vector<128x256xbf16>
    %cst_137 = arith.constant dense<0.000000e+00> : vector<16x256xf32>
    %291 = tpu.matmul %289, %290, %cst_137 {dimension_numbers = #tpu.dot_dimension_numbers<[1], [0], [0], [1], [0, 0, 1, 1], [], []>} : vector<16x128xbf16>, vector<128x256xbf16>, vector<16x256xf32> -> vector<16x256xf32>
    %292 = arith.addf %287, %291 : vector<16x256xf32>
    %293 = vector.extract_strided_slice %284 {offsets = [1, 0], sizes = [16, 128], strides = [1, 1]} : vector<26x128xf32> to vector<16x128xf32>
    %294 = arith.truncf %293 : vector<16x128xf32> to vector<16x128xbf16>
    %c128_138 = arith.constant 128 : index
    %c0_139 = arith.constant 0 : index
    %295 = vector.load %arg15[%c128_138, %c0_139] : memref<1152x256xbf16, #tpu.memory_space<vmem>>, vector<128x256xbf16>
    %cst_140 = arith.constant dense<0.000000e+00> : vector<16x256xf32>
    %296 = tpu.matmul %294, %295, %cst_140 {dimension_numbers = #tpu.dot_dimension_numbers<[1], [0], [0], [1], [0, 0, 1, 1], [], []>} : vector<16x128xbf16>, vector<128x256xbf16>, vector<16x256xf32> -> vector<16x256xf32>
    %297 = arith.addf %292, %296 : vector<16x256xf32>
    %298 = vector.extract_strided_slice %285 {offsets = [2, 0], sizes = [16, 128], strides = [1, 1]} : vector<26x128xf32> to vector<16x128xf32>
    %299 = arith.truncf %298 : vector<16x128xf32> to vector<16x128xbf16>
    %c256_141 = arith.constant 256 : index
    %c0_142 = arith.constant 0 : index
    %300 = vector.load %arg15[%c256_141, %c0_142] : memref<1152x256xbf16, #tpu.memory_space<vmem>>, vector<128x256xbf16>
    %cst_143 = arith.constant dense<0.000000e+00> : vector<16x256xf32>
    %301 = tpu.matmul %299, %300, %cst_143 {dimension_numbers = #tpu.dot_dimension_numbers<[1], [0], [0], [1], [0, 0, 1, 1], [], []>} : vector<16x128xbf16>, vector<128x256xbf16>, vector<16x256xf32> -> vector<16x256xf32>
    %302 = arith.addf %297, %301 : vector<16x256xf32>
    %303 = vector.extract_strided_slice %286 {offsets = [4, 0], sizes = [16, 128], strides = [1, 1]} : vector<26x128xf32> to vector<16x128xf32>
    %304 = arith.truncf %303 : vector<16x128xf32> to vector<16x128xbf16>
    %c384_144 = arith.constant 384 : index
    %c0_145 = arith.constant 0 : index
    %305 = vector.load %arg15[%c384_144, %c0_145] : memref<1152x256xbf16, #tpu.memory_space<vmem>>, vector<128x256xbf16>
    %cst_146 = arith.constant dense<0.000000e+00> : vector<16x256xf32>
    %306 = tpu.matmul %304, %305, %cst_146 {dimension_numbers = #tpu.dot_dimension_numbers<[1], [0], [0], [1], [0, 0, 1, 1], [], []>} : vector<16x128xbf16>, vector<128x256xbf16>, vector<16x256xf32> -> vector<16x256xf32>
    %307 = arith.addf %302, %306 : vector<16x256xf32>
    %308 = vector.extract_strided_slice %284 {offsets = [5, 0], sizes = [16, 128], strides = [1, 1]} : vector<26x128xf32> to vector<16x128xf32>
    %309 = arith.truncf %308 : vector<16x128xf32> to vector<16x128xbf16>
    %c512_147 = arith.constant 512 : index
    %c0_148 = arith.constant 0 : index
    %310 = vector.load %arg15[%c512_147, %c0_148] : memref<1152x256xbf16, #tpu.memory_space<vmem>>, vector<128x256xbf16>
    %cst_149 = arith.constant dense<0.000000e+00> : vector<16x256xf32>
    %311 = tpu.matmul %309, %310, %cst_149 {dimension_numbers = #tpu.dot_dimension_numbers<[1], [0], [0], [1], [0, 0, 1, 1], [], []>} : vector<16x128xbf16>, vector<128x256xbf16>, vector<16x256xf32> -> vector<16x256xf32>
    %312 = arith.addf %307, %311 : vector<16x256xf32>
    %313 = vector.extract_strided_slice %285 {offsets = [6, 0], sizes = [16, 128], strides = [1, 1]} : vector<26x128xf32> to vector<16x128xf32>
    %314 = arith.truncf %313 : vector<16x128xf32> to vector<16x128xbf16>
    %c640_150 = arith.constant 640 : index
    %c0_151 = arith.constant 0 : index
    %315 = vector.load %arg15[%c640_150, %c0_151] : memref<1152x256xbf16, #tpu.memory_space<vmem>>, vector<128x256xbf16>
    %cst_152 = arith.constant dense<0.000000e+00> : vector<16x256xf32>
    %316 = tpu.matmul %314, %315, %cst_152 {dimension_numbers = #tpu.dot_dimension_numbers<[1], [0], [0], [1], [0, 0, 1, 1], [], []>} : vector<16x128xbf16>, vector<128x256xbf16>, vector<16x256xf32> -> vector<16x256xf32>
    %317 = arith.addf %312, %316 : vector<16x256xf32>
    %318 = vector.extract_strided_slice %286 {offsets = [8, 0], sizes = [16, 128], strides = [1, 1]} : vector<26x128xf32> to vector<16x128xf32>
    %319 = arith.truncf %318 : vector<16x128xf32> to vector<16x128xbf16>
    %c768_153 = arith.constant 768 : index
    %c0_154 = arith.constant 0 : index
    %320 = vector.load %arg15[%c768_153, %c0_154] : memref<1152x256xbf16, #tpu.memory_space<vmem>>, vector<128x256xbf16>
    %cst_155 = arith.constant dense<0.000000e+00> : vector<16x256xf32>
    %321 = tpu.matmul %319, %320, %cst_155 {dimension_numbers = #tpu.dot_dimension_numbers<[1], [0], [0], [1], [0, 0, 1, 1], [], []>} : vector<16x128xbf16>, vector<128x256xbf16>, vector<16x256xf32> -> vector<16x256xf32>
    %322 = arith.addf %317, %321 : vector<16x256xf32>
    %323 = vector.extract_strided_slice %284 {offsets = [9, 0], sizes = [16, 128], strides = [1, 1]} : vector<26x128xf32> to vector<16x128xf32>
    %324 = arith.truncf %323 : vector<16x128xf32> to vector<16x128xbf16>
    %c896_156 = arith.constant 896 : index
    %c0_157 = arith.constant 0 : index
    %325 = vector.load %arg15[%c896_156, %c0_157] : memref<1152x256xbf16, #tpu.memory_space<vmem>>, vector<128x256xbf16>
    %cst_158 = arith.constant dense<0.000000e+00> : vector<16x256xf32>
    %326 = tpu.matmul %324, %325, %cst_158 {dimension_numbers = #tpu.dot_dimension_numbers<[1], [0], [0], [1], [0, 0, 1, 1], [], []>} : vector<16x128xbf16>, vector<128x256xbf16>, vector<16x256xf32> -> vector<16x256xf32>
    %327 = arith.addf %322, %326 : vector<16x256xf32>
    %328 = vector.extract_strided_slice %285 {offsets = [10, 0], sizes = [16, 128], strides = [1, 1]} : vector<26x128xf32> to vector<16x128xf32>
    %329 = arith.truncf %328 : vector<16x128xf32> to vector<16x128xbf16>
    %c1024_159 = arith.constant 1024 : index
    %c0_160 = arith.constant 0 : index
    %330 = vector.load %arg15[%c1024_159, %c0_160] : memref<1152x256xbf16, #tpu.memory_space<vmem>>, vector<128x256xbf16>
    %cst_161 = arith.constant dense<0.000000e+00> : vector<16x256xf32>
    %331 = tpu.matmul %329, %330, %cst_161 {dimension_numbers = #tpu.dot_dimension_numbers<[1], [0], [0], [1], [0, 0, 1, 1], [], []>} : vector<16x128xbf16>, vector<128x256xbf16>, vector<16x256xf32> -> vector<16x256xf32>
    %332 = arith.addf %327, %331 : vector<16x256xf32>
    %c0_162 = arith.constant 0 : index
    %c0_163 = arith.constant 0 : index
    %333 = vector.load %arg16[%c0_162, %c0_163] : memref<1x256xf32, #tpu.memory_space<vmem>>, vector<1x256xf32>
    %334 = vector.broadcast %333 : vector<1x256xf32> to vector<16x256xf32>
    %335 = arith.addf %332, %334 : vector<16x256xf32>
    %c0_164 = arith.constant 0 : index
    %c0_165 = arith.constant 0 : index
    %336 = vector.load %arg20[%c0_164, %c0_165] : memref<16x256xf32, #tpu.memory_space<vmem>>, vector<16x256xf32>
    tpu.vector_store %arg20[%c0_164, %c0_165], %335 {strides = array<i32>} : memref<16x256xf32, #tpu.memory_space<vmem>>, vector<16x256xf32>,
    return
  }
}

</mosaic_0001>

<llo_original>
// kernel: vgg19_features.1
$region0: #{vgg19_features.1}
  #allocation0 [shape = 'u32[]', space=smem, size = 0x4, offset = 0x4, fixed_abs, tag = 'smem constant byte address 0x4 - core index']
  #allocation1 [shape = 'u32[144,128]{1,0:T(1,128)}', space=vmem, size = 0x12000, scoped, tag = 'internal scratch']
  %s0 = inlined_call_operand.vmem [shape: f32[256,8], index: 0, kind: input, shape index: {}]
  %s1 = inlined_call_operand.vmem [shape: f32[1,8], index: 1, kind: input, shape index: {}]
  %s2 = inlined_call_operand.vmem [shape: f32[256,2], index: 2, kind: input, shape index: {}]
  %s3 = inlined_call_operand.vmem [shape: f32[64,2], index: 3, kind: input, shape index: {}]
  %s4 = inlined_call_operand.vmem [shape: f32[16,2], index: 4, kind: input, shape index: {}]
  %s5 = inlined_call_operand.vmem [shape: bf16[64,256], index: 5, kind: input, shape index: {}]
  %s6 = inlined_call_operand.vmem [shape: bf16[16,64], index: 6, kind: input, shape index: {}]
  %s7 = inlined_call_operand.vmem [shape: bf16[72,64], index: 7, kind: input, shape index: {}]
  %s8 = inlined_call_operand.vmem [shape: f32[1,64], index: 8, kind: input, shape index: {}]
  %s9 = inlined_call_operand.vmem [shape: bf16[576,64], index: 9, kind: input, shape index: {}]
  %s10 = inlined_call_operand.vmem [shape: f32[1,64], index: 10, kind: input, shape index: {}]
  %s11 = inlined_call_operand.vmem [shape: bf16[576,128], index: 11, kind: input, shape index: {}]
  %s12 = inlined_call_operand.vmem [shape: f32[1,128], index: 12, kind: input, shape index: {}]
  %s13 = inlined_call_operand.vmem [shape: bf16[1152,128], index: 13, kind: input, shape index: {}]
  %s14 = inlined_call_operand.vmem [shape: f32[1,128], index: 14, kind: input, shape index: {}]
  %s15 = inlined_call_operand.vmem [shape: bf16[1152,256], index: 15, kind: input, shape index: {}]
  %s16 = inlined_call_operand.vmem [shape: f32[1,256], index: 16, kind: input, shape index: {}]
  %s17 = inlined_call_operand.vmem [shape: f32[256,128], index: 17, kind: output, shape index: {0}]
  %s18 = inlined_call_operand.hbm [shape: f32[64,128], index: 18, kind: output, shape index: {1}]
  %s19 = inlined_call_operand.hbm [shape: f32[64,128], index: 19, kind: output, shape index: {2}]
  %s20 = inlined_call_operand.vmem [shape: f32[16,256], index: 20, kind: output, shape index: {3}]
  %21 = xla_tuple %s17, %s18, %s19, %s20
  %s22 = sld [smem:[#allocation0]]
  $region102: #{vgg19_features.1} parent=0
    _
  %s24 = ssub.s32 1, %s22
  %s25 = scalar_select 0, %s24, %s22
  $region1: #{vgg19_features.1} parent=0
    #allocation2 [shape = 'u8[32768]{0}', space=vmem, size = 0x8000, scoped, tag = 'output window, operand 1, single buffered']
    #allocation3 [shape = 's32[1]{0}', space=sflag, size = 0x4, scoped, tag = 'scoped memory for vgg19_features.1']
    #allocation4 [shape = 'u8[32768]{0}', space=vmem, size = 0x8000, scoped, tag = 'output window, operand 2, single buffered']
    #allocation5 [shape = 's32[1]{0}', space=sflag, size = 0x4, scoped, tag = 'scoped memory for vgg19_features.1']
    %26 = vsyncpa [#allocation3], 0
    %27 = vsyncpa [#allocation5], 0
    // Predicated region
    $region2: #{vgg19_features.1} parent=1 // pred_check
      _
    $region3: #{vgg19_features.1} parent=1 // pred_check_branch
      %29 = sbr.rel (0) target = $region5
    $region4: #{vgg19_features.1} parent=1 // pred_region
      _
    $region5: #{vgg19_features.1} parent=1 // pred_fallthru
      _
    // Predicated region
    $region6: #{vgg19_features.1} parent=1 // pred_check
      _
    $region7: #{vgg19_features.1} parent=1 // pred_check_branch
      %31 = sbr.rel (0) target = $region9
    $region8: #{vgg19_features.1} parent=1 // pred_region
      _
    $region9: #{vgg19_features.1} parent=1 // pred_fallthru
      _
    // Predicated region
    $region10: #{vgg19_features.1} parent=1 // pred_check
      _
    $region11: #{vgg19_features.1} parent=1 // pred_check_branch
      %33 = sbr.rel (0) target = $region13
    $region12: #{vgg19_features.1} parent=1 // pred_region
      _
    $region13: #{vgg19_features.1} parent=1 // pred_fallthru
      _
    // Predicated region
    $region14: #{vgg19_features.1} parent=1 // pred_check
      _
    $region15: #{vgg19_features.1} parent=1 // pred_check_branch
      %35 = sbr.rel (0) target = $region17
    $region16: #{vgg19_features.1} parent=1 // pred_region
      _
    $region17: #{vgg19_features.1} parent=1 // pred_fallthru
      _
    // Predicated region
    $region18: #{vgg19_features.1} parent=1 // pred_check
      _
    $region19: #{vgg19_features.1} parent=1 // pred_check_branch
      %37 = sbr.rel (0) target = $region21
    $region20: #{vgg19_features.1} parent=1 // pred_region
      _
    $region21: #{vgg19_features.1} parent=1 // pred_fallthru
      _
    // Predicated region
    $region22: #{vgg19_features.1} parent=1 // pred_check
      _
    $region23: #{vgg19_features.1} parent=1 // pred_check_branch
      %39 = sbr.rel (0) target = $region25
    $region24: #{vgg19_features.1} parent=1 // pred_region
      _
    $region25: #{vgg19_features.1} parent=1 // pred_fallthru
      _
    // Predicated region
    $region26: #{vgg19_features.1} parent=1 // pred_check
      _
    $region27: #{vgg19_features.1} parent=1 // pred_check_branch
      %41 = sbr.rel (0) target = $region29
    $region28: #{vgg19_features.1} parent=1 // pred_region
      _
    $region29: #{vgg19_features.1} parent=1 // pred_fallthru
      _
    // Predicated region
    $region30: #{vgg19_features.1} parent=1 // pred_check
      _
    $region31: #{vgg19_features.1} parent=1 // pred_check_branch
      %43 = sbr.rel (0) target = $region33
    $region32: #{vgg19_features.1} parent=1 // pred_region
      _
    $region33: #{vgg19_features.1} parent=1 // pred_fallthru
      _
    // Predicated region
    $region34: #{vgg19_features.1} parent=1 // pred_check
      _
    $region35: #{vgg19_features.1} parent=1 // pred_check_branch
      %45 = sbr.rel (0) target = $region37
    $region36: #{vgg19_features.1} parent=1 // pred_region
      _
    $region37: #{vgg19_features.1} parent=1 // pred_fallthru
      _
    // Predicated region
    $region38: #{vgg19_features.1} parent=1 // pred_check
      _
    $region39: #{vgg19_features.1} parent=1 // pred_check_branch
      %47 = sbr.rel (0) target = $region41
    $region40: #{vgg19_features.1} parent=1 // pred_region
      _
    $region41: #{vgg19_features.1} parent=1 // pred_fallthru
      _
    // Predicated region
    $region42: #{vgg19_features.1} parent=1 // pred_check
      _
    $region43: #{vgg19_features.1} parent=1 // pred_check_branch
      %49 = sbr.rel (0) target = $region45
    $region44: #{vgg19_features.1} parent=1 // pred_region
      _
    $region45: #{vgg19_features.1} parent=1 // pred_fallthru
      _
    // Predicated region
    $region46: #{vgg19_features.1} parent=1 // pred_check
      _
    $region47: #{vgg19_features.1} parent=1 // pred_check_branch
      %51 = sbr.rel (0) target = $region49
    $region48: #{vgg19_features.1} parent=1 // pred_region
      _
    $region49: #{vgg19_features.1} parent=1 // pred_fallthru
      _
    // Predicated region
    $region50: #{vgg19_features.1} parent=1 // pred_check
      _
    $region51: #{vgg19_features.1} parent=1 // pred_check_branch
      %53 = sbr.rel (0) target = $region53
    $region52: #{vgg19_features.1} parent=1 // pred_region
      _
    $region53: #{vgg19_features.1} parent=1 // pred_fallthru
      _
    // Predicated region
    $region54: #{vgg19_features.1} parent=1 // pred_check
      _
    $region55: #{vgg19_features.1} parent=1 // pred_check_branch
      %55 = sbr.rel (0) target = $region57
    $region56: #{vgg19_features.1} parent=1 // pred_region
      _
    $region57: #{vgg19_features.1} parent=1 // pred_fallthru
      _
    // Predicated region
    $region58: #{vgg19_features.1} parent=1 // pred_check
      _
    $region59: #{vgg19_features.1} parent=1 // pred_check_branch
      %57 = sbr.rel (0) target = $region61
    $region60: #{vgg19_features.1} parent=1 // pred_region
      _
    $region61: #{vgg19_features.1} parent=1 // pred_fallthru
      _
    // Predicated region
    $region62: #{vgg19_features.1} parent=1 // pred_check
      _
    $region63: #{vgg19_features.1} parent=1 // pred_check_branch
      %59 = sbr.rel (0) target = $region65
    $region64: #{vgg19_features.1} parent=1 // pred_region
      _
    $region65: #{vgg19_features.1} parent=1 // pred_fallthru
      _
    // Predicated region
    $region66: #{vgg19_features.1} parent=1 // pred_check
      _
    $region67: #{vgg19_features.1} parent=1 // pred_check_branch
      %61 = sbr.rel (0) target = $region69
    $region68: #{vgg19_features.1} parent=1 // pred_region
      _
    $region69: #{vgg19_features.1} parent=1 // pred_fallthru
      _
    %v63 = vld [vmem:[%s0] sm:$0xff]
    %v64 = vld [vmem:[%s0 + $0x8] sm:$0xff]
    %v65 = vld [vmem:[%s0 + $0x10] sm:$0xff]
    %v66 = vld [vmem:[%s0 + $0x18] sm:$0xff]
    %v67 = vld [vmem:[%s0 + $0x20] sm:$0xff]
    %v68 = vld [vmem:[%s0 + $0x28] sm:$0xff]
    %v69 = vld [vmem:[%s0 + $0x30] sm:$0xff]
    %v70 = vld [vmem:[%s0 + $0x38] sm:$0xff]
    %v71 = vld [vmem:[%s0 + $0x40] sm:$0xff]
    %v72 = vld [vmem:[%s0 + $0x48] sm:$0xff]
    %v73 = vld [vmem:[%s0 + $0x50] sm:$0xff]
    %v74 = vld [vmem:[%s0 + $0x58] sm:$0xff]
    %v75 = vld [vmem:[%s0 + $0x60] sm:$0xff]
    %v76 = vld [vmem:[%s0 + $0x68] sm:$0xff]
    %v77 = vld [vmem:[%s0 + $0x70] sm:$0xff]
    %v78 = vld [vmem:[%s0 + $0x78] sm:$0xff]
    %v79 = vld [vmem:[%s0 + $0x80] sm:$0xff]
    %v80 = vld [vmem:[%s0 + $0x88] sm:$0xff]
    %v81 = vld [vmem:[%s0 + $0x90] sm:$0xff]
    %v82 = vld [vmem:[%s0 + $0x98] sm:$0xff]
    %v83 = vld [vmem:[%s0 + $0xa0] sm:$0xff]
    %v84 = vld [vmem:[%s0 + $0xa8] sm:$0xff]
    %v85 = vld [vmem:[%s0 + $0xb0] sm:$0xff]
    %v86 = vld [vmem:[%s0 + $0xb8] sm:$0xff]
    %v87 = vld [vmem:[%s0 + $0xc0] sm:$0xff]
    %v88 = vld [vmem:[%s0 + $0xc8] sm:$0xff]
    %v89 = vld [vmem:[%s0 + $0xd0] sm:$0xff]
    %v90 = vld [vmem:[%s0 + $0xd8] sm:$0xff]
    %v91 = vld [vmem:[%s0 + $0xe0] sm:$0xff]
    %v92 = vld [vmem:[%s0 + $0xe8] sm:$0xff]
    %v93 = vld [vmem:[%s0 + $0xf0] sm:$0xff]
    %v94 = vld [vmem:[%s0 + $0xf8] sm:$0xff]
    %v95 = vld [vmem:[%s1] sm:$0x1]
    %v97 = vlaneseq
    %v98 = vshrl.u32 %v97, 7
    %v99 = vsub.s32 0, %v98
    %v100 = vrot.slane %v95, %v99
    %v102 = vsub.f32 %v63, %v100
    %v103 = vsub.f32 %v64, %v100
    %v104 = vsub.f32 %v65, %v100
    %v105 = vsub.f32 %v66, %v100
    %v106 = vsub.f32 %v67, %v100
    %v107 = vsub.f32 %v68, %v100
    %v108 = vsub.f32 %v69, %v100
    %v109 = vsub.f32 %v70, %v100
    %v110 = vsub.f32 %v71, %v100
    %v111 = vsub.f32 %v72, %v100
    %v112 = vsub.f32 %v73, %v100
    %v113 = vsub.f32 %v74, %v100
    %v114 = vsub.f32 %v75, %v100
    %v115 = vsub.f32 %v76, %v100
    %v116 = vsub.f32 %v77, %v100
    %v117 = vsub.f32 %v78, %v100
    %v118 = vsub.f32 %v79, %v100
    %v119 = vsub.f32 %v80, %v100
    %v120 = vsub.f32 %v81, %v100
    %v121 = vsub.f32 %v82, %v100
    %v122 = vsub.f32 %v83, %v100
    %v123 = vsub.f32 %v84, %v100
    %v124 = vsub.f32 %v85, %v100
    %v125 = vsub.f32 %v86, %v100
    %v126 = vsub.f32 %v87, %v100
    %v127 = vsub.f32 %v88, %v100
    %v128 = vsub.f32 %v89, %v100
    %v129 = vsub.f32 %v90, %v100
    %v130 = vsub.f32 %v91, %v100
    %v131 = vsub.f32 %v92, %v100
    %v132 = vsub.f32 %v93, %v100
    %v133 = vsub.f32 %v94, %v100
    %v134 = vld [vmem:[%s2] sm:$0xff]
    %v135 = vld [vmem:[%s2 + $0x8] sm:$0xff]
    %v136 = vld [vmem:[%s2 + $0x10] sm:$0xff]
    %v137 = vld [vmem:[%s2 + $0x18] sm:$0xff]
    %v138 = vld [vmem:[%s2 + $0x20] sm:$0xff]
    %v139 = vld [vmem:[%s2 + $0x28] sm:$0xff]
    %v140 = vld [vmem:[%s2 + $0x30] sm:$0xff]
    %v141 = vld [vmem:[%s2 + $0x38] sm:$0xff]
    %v142 = vld [vmem:[%s2 + $0x40] sm:$0xff]
    %v143 = vld [vmem:[%s2 + $0x48] sm:$0xff]
    %v144 = vld [vmem:[%s2 + $0x50] sm:$0xff]
    %v145 = vld [vmem:[%s2 + $0x58] sm:$0xff]
    %v146 = vld [vmem:[%s2 + $0x60] sm:$0xff]
    %v147 = vld [vmem:[%s2 + $0x68] sm:$0xff]
    %v148 = vld [vmem:[%s2 + $0x70] sm:$0xff]
    %v149 = vld [vmem:[%s2 + $0x78] sm:$0xff]
    %v150 = vld [vmem:[%s2 + $0x80] sm:$0xff]
    %v151 = vld [vmem:[%s2 + $0x88] sm:$0xff]
    %v152 = vld [vmem:[%s2 + $0x90] sm:$0xff]
    %v153 = vld [vmem:[%s2 + $0x98] sm:$0xff]
    %v154 = vld [vmem:[%s2 + $0xa0] sm:$0xff]
    %v155 = vld [vmem:[%s2 + $0xa8] sm:$0xff]
    %v156 = vld [vmem:[%s2 + $0xb0] sm:$0xff]
    %v157 = vld [vmem:[%s2 + $0xb8] sm:$0xff]
    %v158 = vld [vmem:[%s2 + $0xc0] sm:$0xff]
    %v159 = vld [vmem:[%s2 + $0xc8] sm:$0xff]
    %v160 = vld [vmem:[%s2 + $0xd0] sm:$0xff]
    %v161 = vld [vmem:[%s2 + $0xd8] sm:$0xff]
    %v162 = vld [vmem:[%s2 + $0xe0] sm:$0xff]
    %v163 = vld [vmem:[%s2 + $0xe8] sm:$0xff]
    %v164 = vld [vmem:[%s2 + $0xf0] sm:$0xff]
    %v165 = vld [vmem:[%s2 + $0xf8] sm:$0xff]
    %v166 = vld [vmem:[%s3] sm:$0xff]
    %v167 = vld [vmem:[%s3 + $0x8] sm:$0xff]
    %v168 = vld [vmem:[%s3 + $0x10] sm:$0xff]
    %v169 = vld [vmem:[%s3 + $0x18] sm:$0xff]
    %v170 = vld [vmem:[%s3 + $0x20] sm:$0xff]
    %v171 = vld [vmem:[%s3 + $0x28] sm:$0xff]
    %v172 = vld [vmem:[%s3 + $0x30] sm:$0xff]
    %v173 = vld [vmem:[%s3 + $0x38] sm:$0xff]
    %v174 = vld [vmem:[%s4] sm:$0xff]
    %v175 = vld [vmem:[%s4 + $0x8] sm:$0xff]
    %177 = vset.pattern.permute.xlu0 0
    %178 = vperm.xlu0 %177, %v134
    %v179 = vpop.permute.xlu0 %178
    %182 = vset.pattern.permute.xlu0 0
    %183 = vperm.xlu0 %182, %v135
    %v184 = vpop.permute.xlu0 %183
    %187 = vset.pattern.permute.xlu0 0
    %188 = vperm.xlu0 %187, %v136
    %v189 = vpop.permute.xlu0 %188
    %192 = vset.pattern.permute.xlu0 0
    %193 = vperm.xlu0 %192, %v137
    %v194 = vpop.permute.xlu0 %193
    %197 = vset.pattern.permute.xlu0 0
    %198 = vperm.xlu0 %197, %v138
    %v199 = vpop.permute.xlu0 %198
    %202 = vset.pattern.permute.xlu0 0
    %203 = vperm.xlu0 %202, %v139
    %v204 = vpop.permute.xlu0 %203
    %207 = vset.pattern.permute.xlu0 0
    %208 = vperm.xlu0 %207, %v140
    %v209 = vpop.permute.xlu0 %208
    %212 = vset.pattern.permute.xlu0 0
    %213 = vperm.xlu0 %212, %v141
    %v214 = vpop.permute.xlu0 %213
    %217 = vset.pattern.permute.xlu0 0
    %218 = vperm.xlu0 %217, %v142
    %v219 = vpop.permute.xlu0 %218
    %222 = vset.pattern.permute.xlu0 0
    %223 = vperm.xlu0 %222, %v143
    %v224 = vpop.permute.xlu0 %223
    %227 = vset.pattern.permute.xlu0 0
    %228 = vperm.xlu0 %227, %v144
    %v229 = vpop.permute.xlu0 %228
    %232 = vset.pattern.permute.xlu0 0
    %233 = vperm.xlu0 %232, %v145
    %v234 = vpop.permute.xlu0 %233
    %237 = vset.pattern.permute.xlu0 0
    %238 = vperm.xlu0 %237, %v146
    %v239 = vpop.permute.xlu0 %238
    %242 = vset.pattern.permute.xlu0 0
    %243 = vperm.xlu0 %242, %v147
    %v244 = vpop.permute.xlu0 %243
    %247 = vset.pattern.permute.xlu0 0
    %248 = vperm.xlu0 %247, %v148
    %v249 = vpop.permute.xlu0 %248
    %252 = vset.pattern.permute.xlu0 0
    %253 = vperm.xlu0 %252, %v149
    %v254 = vpop.permute.xlu0 %253
    %257 = vset.pattern.permute.xlu0 0
    %258 = vperm.xlu0 %257, %v150
    %v259 = vpop.permute.xlu0 %258
    %262 = vset.pattern.permute.xlu0 0
    %263 = vperm.xlu0 %262, %v151
    %v264 = vpop.permute.xlu0 %263
    %267 = vset.pattern.permute.xlu0 0
    %268 = vperm.xlu0 %267, %v152
    %v269 = vpop.permute.xlu0 %268
    %272 = vset.pattern.permute.xlu0 0
    %273 = vperm.xlu0 %272, %v153
    %v274 = vpop.permute.xlu0 %273
    %277 = vset.pattern.permute.xlu0 0
    %278 = vperm.xlu0 %277, %v154
    %v279 = vpop.permute.xlu0 %278
    %282 = vset.pattern.permute.xlu0 0
    %283 = vperm.xlu0 %282, %v155
    %v284 = vpop.permute.xlu0 %283
    %287 = vset.pattern.permute.xlu0 0
    %288 = vperm.xlu0 %287, %v156
    %v289 = vpop.permute.xlu0 %288
    %292 = vset.pattern.permute.xlu0 0
    %293 = vperm.xlu0 %292, %v157
    %v294 = vpop.permute.xlu0 %293
    %297 = vset.pattern.permute.xlu0 0
    %298 = vperm.xlu0 %297, %v158
    %v299 = vpop.permute.xlu0 %298
    %302 = vset.pattern.permute.xlu0 0
    %303 = vperm.xlu0 %302, %v159
    %v304 = vpop.permute.xlu0 %303
    %307 = vset.pattern.permute.xlu0 0
    %308 = vperm.xlu0 %307, %v160
    %v309 = vpop.permute.xlu0 %308
    %312 = vset.pattern.permute.xlu0 0
    %313 = vperm.xlu0 %312, %v161
    %v314 = vpop.permute.xlu0 %313
    %317 = vset.pattern.permute.xlu0 0
    %318 = vperm.xlu0 %317, %v162
    %v319 = vpop.permute.xlu0 %318
    %322 = vset.pattern.permute.xlu0 0
    %323 = vperm.xlu0 %322, %v163
    %v324 = vpop.permute.xlu0 %323
    %327 = vset.pattern.permute.xlu0 0
    %328 = vperm.xlu0 %327, %v164
    %v329 = vpop.permute.xlu0 %328
    %332 = vset.pattern.permute.xlu0 0
    %333 = vperm.xlu0 %332, %v165
    %v334 = vpop.permute.xlu0 %333
    %v336 = vmul.f32 %v102, %v179
    %v337 = vmul.f32 %v103, %v184
    %v338 = vmul.f32 %v104, %v189
    %v339 = vmul.f32 %v105, %v194
    %v340 = vmul.f32 %v106, %v199
    %v341 = vmul.f32 %v107, %v204
    %v342 = vmul.f32 %v108, %v209
    %v343 = vmul.f32 %v109, %v214
    %v344 = vmul.f32 %v110, %v219
    %v345 = vmul.f32 %v111, %v224
    %v346 = vmul.f32 %v112, %v229
    %v347 = vmul.f32 %v113, %v234
    %v348 = vmul.f32 %v114, %v239
    %v349 = vmul.f32 %v115, %v244
    %v350 = vmul.f32 %v116, %v249
    %v351 = vmul.f32 %v117, %v254
    %v352 = vmul.f32 %v118, %v259
    %v353 = vmul.f32 %v119, %v264
    %v354 = vmul.f32 %v120, %v269
    %v355 = vmul.f32 %v121, %v274
    %v356 = vmul.f32 %v122, %v279
    %v357 = vmul.f32 %v123, %v284
    %v358 = vmul.f32 %v124, %v289
    %v359 = vmul.f32 %v125, %v294
    %v360 = vmul.f32 %v126, %v299
    %v361 = vmul.f32 %v127, %v304
    %v362 = vmul.f32 %v128, %v309
    %v363 = vmul.f32 %v129, %v314
    %v364 = vmul.f32 %v130, %v319
    %v365 = vmul.f32 %v131, %v324
    %v366 = vmul.f32 %v132, %v329
    %v367 = vmul.f32 %v133, %v334
    %368 = vset.pattern.permute.xlu0 1
    %369 = vperm.xlu0 %368, %v134
    %v370 = vpop.permute.xlu0 %369
    %372 = vset.pattern.permute.xlu0 1
    %373 = vperm.xlu0 %372, %v135
    %v374 = vpop.permute.xlu0 %373
    %376 = vset.pattern.permute.xlu0 1
    %377 = vperm.xlu0 %376, %v136
    %v378 = vpop.permute.xlu0 %377
    %380 = vset.pattern.permute.xlu0 1
    %381 = vperm.xlu0 %380, %v137
    %v382 = vpop.permute.xlu0 %381
    %384 = vset.pattern.permute.xlu0 1
    %385 = vperm.xlu0 %384, %v138
    %v386 = vpop.permute.xlu0 %385
    %388 = vset.pattern.permute.xlu0 1
    %389 = vperm.xlu0 %388, %v139
    %v390 = vpop.permute.xlu0 %389
    %392 = vset.pattern.permute.xlu0 1
    %393 = vperm.xlu0 %392, %v140
    %v394 = vpop.permute.xlu0 %393
    %396 = vset.pattern.permute.xlu0 1
    %397 = vperm.xlu0 %396, %v141
    %v398 = vpop.permute.xlu0 %397
    %400 = vset.pattern.permute.xlu0 1
    %401 = vperm.xlu0 %400, %v142
    %v402 = vpop.permute.xlu0 %401
    %404 = vset.pattern.permute.xlu0 1
    %405 = vperm.xlu0 %404, %v143
    %v406 = vpop.permute.xlu0 %405
    %408 = vset.pattern.permute.xlu0 1
    %409 = vperm.xlu0 %408, %v144
    %v410 = vpop.permute.xlu0 %409
    %412 = vset.pattern.permute.xlu0 1
    %413 = vperm.xlu0 %412, %v145
    %v414 = vpop.permute.xlu0 %413
    %416 = vset.pattern.permute.xlu0 1
    %417 = vperm.xlu0 %416, %v146
    %v418 = vpop.permute.xlu0 %417
    %420 = vset.pattern.permute.xlu0 1
    %421 = vperm.xlu0 %420, %v147
    %v422 = vpop.permute.xlu0 %421
    %424 = vset.pattern.permute.xlu0 1
    %425 = vperm.xlu0 %424, %v148
    %v426 = vpop.permute.xlu0 %425
    %428 = vset.pattern.permute.xlu0 1
    %429 = vperm.xlu0 %428, %v149
    %v430 = vpop.permute.xlu0 %429
    %432 = vset.pattern.permute.xlu0 1
    %433 = vperm.xlu0 %432, %v150
    %v434 = vpop.permute.xlu0 %433
    %436 = vset.pattern.permute.xlu0 1
    %437 = vperm.xlu0 %436, %v151
    %v438 = vpop.permute.xlu0 %437
    %440 = vset.pattern.permute.xlu0 1
    %441 = vperm.xlu0 %440, %v152
    %v442 = vpop.permute.xlu0 %441
    %444 = vset.pattern.permute.xlu0 1
    %445 = vperm.xlu0 %444, %v153
    %v446 = vpop.permute.xlu0 %445
    %448 = vset.pattern.permute.xlu0 1
    %449 = vperm.xlu0 %448, %v154
    %v450 = vpop.permute.xlu0 %449
    %452 = vset.pattern.permute.xlu0 1
    %453 = vperm.xlu0 %452, %v155
    %v454 = vpop.permute.xlu0 %453
    %456 = vset.pattern.permute.xlu0 1
    %457 = vperm.xlu0 %456, %v156
    %v458 = vpop.permute.xlu0 %457
    %460 = vset.pattern.permute.xlu0 1
    %461 = vperm.xlu0 %460, %v157
    %v462 = vpop.permute.xlu0 %461
    %464 = vset.pattern.permute.xlu0 1
    %465 = vperm.xlu0 %464, %v158
    %v466 = vpop.permute.xlu0 %465
    %468 = vset.pattern.permute.xlu0 1
    %469 = vperm.xlu0 %468, %v159
    %v470 = vpop.permute.xlu0 %469
    %472 = vset.pattern.permute.xlu0 1
    %473 = vperm.xlu0 %472, %v160
    %v474 = vpop.permute.xlu0 %473
    %476 = vset.pattern.permute.xlu0 1
    %477 = vperm.xlu0 %476, %v161
    %v478 = vpop.permute.xlu0 %477
    %480 = vset.pattern.permute.xlu0 1
    %481 = vperm.xlu0 %480, %v162
    %v482 = vpop.permute.xlu0 %481
    %484 = vset.pattern.permute.xlu0 1
    %485 = vperm.xlu0 %484, %v163
    %v486 = vpop.permute.xlu0 %485
    %488 = vset.pattern.permute.xlu0 1
    %489 = vperm.xlu0 %488, %v164
    %v490 = vpop.permute.xlu0 %489
    %492 = vset.pattern.permute.xlu0 1
    %493 = vperm.xlu0 %492, %v165
    %v494 = vpop.permute.xlu0 %493
    %v496 = vmul.f32 %v102, %v370
    %v497 = vmul.f32 %v103, %v374
    %v498 = vmul.f32 %v104, %v378
    %v499 = vmul.f32 %v105, %v382
    %v500 = vmul.f32 %v106, %v386
    %v501 = vmul.f32 %v107, %v390
    %v502 = vmul.f32 %v108, %v394
    %v503 = vmul.f32 %v109, %v398
    %v504 = vmul.f32 %v110, %v402
    %v505 = vmul.f32 %v111, %v406
    %v506 = vmul.f32 %v112, %v410
    %v507 = vmul.f32 %v113, %v414
    %v508 = vmul.f32 %v114, %v418
    %v509 = vmul.f32 %v115, %v422
    %v510 = vmul.f32 %v116, %v426
    %v511 = vmul.f32 %v117, %v430
    %v512 = vmul.f32 %v118, %v434
    %v513 = vmul.f32 %v119, %v438
    %v514 = vmul.f32 %v120, %v442
    %v515 = vmul.f32 %v121, %v446
    %v516 = vmul.f32 %v122, %v450
    %v517 = vmul.f32 %v123, %v454
    %v518 = vmul.f32 %v124, %v458
    %v519 = vmul.f32 %v125, %v462
    %v520 = vmul.f32 %v126, %v466
    %v521 = vmul.f32 %v127, %v470
    %v522 = vmul.f32 %v128, %v474
    %v523 = vmul.f32 %v129, %v478
    %v524 = vmul.f32 %v130, %v482
    %v525 = vmul.f32 %v131, %v486
    %v526 = vmul.f32 %v132, %v490
    %v527 = vmul.f32 %v133, %v494
    %vm560 = vcmask 1040384
    %v561 = vrot.slane %v102, 7
    %v562 = vrot.slane %v103, 7
    %v563 = vsel %vm560, %v561, %v562
    %v564 = vrot.slane %v104, 7
    %v565 = vsel %vm560, %v562, %v564
    %v566 = vrot.slane %v105, 7
    %v567 = vsel %vm560, %v564, %v566
    %v568 = vrot.slane %v106, 7
    %v569 = vsel %vm560, %v566, %v568
    %v570 = vrot.slane %v107, 7
    %v571 = vsel %vm560, %v568, %v570
    %v572 = vrot.slane %v108, 7
    %v573 = vsel %vm560, %v570, %v572
    %v574 = vrot.slane %v109, 7
    %v575 = vsel %vm560, %v572, %v574
    %v576 = vrot.slane %v110, 7
    %v577 = vsel %vm560, %v574, %v576
    %v578 = vrot.slane %v111, 7
    %v579 = vsel %vm560, %v576, %v578
    %v580 = vrot.slane %v112, 7
    %v581 = vsel %vm560, %v578, %v580
    %v582 = vrot.slane %v113, 7
    %v583 = vsel %vm560, %v580, %v582
    %v584 = vrot.slane %v114, 7
    %v585 = vsel %vm560, %v582, %v584
    %v586 = vrot.slane %v115, 7
    %v587 = vsel %vm560, %v584, %v586
    %v588 = vrot.slane %v116, 7
    %v589 = vsel %vm560, %v586, %v588
    %v590 = vrot.slane %v117, 7
    %v591 = vsel %vm560, %v588, %v590
    %v592 = vrot.slane %v118, 7
    %v593 = vsel %vm560, %v590, %v592
    %v594 = vrot.slane %v119, 7
    %v595 = vsel %vm560, %v592, %v594
    %v596 = vrot.slane %v120, 7
    %v597 = vsel %vm560, %v594, %v596
    %v598 = vrot.slane %v121, 7
    %v599 = vsel %vm560, %v596, %v598
    %v600 = vrot.slane %v122, 7
    %v601 = vsel %vm560, %v598, %v600
    %v602 = vrot.slane %v123, 7
    %v603 = vsel %vm560, %v600, %v602
    %v604 = vrot.slane %v124, 7
    %v605 = vsel %vm560, %v602, %v604
    %v606 = vrot.slane %v125, 7
    %v607 = vsel %vm560, %v604, %v606
    %v608 = vrot.slane %v126, 7
    %v609 = vsel %vm560, %v606, %v608
    %v610 = vrot.slane %v127, 7
    %v611 = vsel %vm560, %v608, %v610
    %v612 = vrot.slane %v128, 7
    %v613 = vsel %vm560, %v610, %v612
    %v614 = vrot.slane %v129, 7
    %v615 = vsel %vm560, %v612, %v614
    %v616 = vrot.slane %v130, 7
    %v617 = vsel %vm560, %v614, %v616
    %v618 = vrot.slane %v131, 7
    %v619 = vsel %vm560, %v616, %v618
    %v620 = vrot.slane %v132, 7
    %v621 = vsel %vm560, %v618, %v620
    %v622 = vrot.slane %v133, 7
    %v623 = vsel %vm560, %v620, %v622
    %v657 = vsel %vm560, 0.0, %v561
    %v658 = vsel %vm560, %v622, 0.0
    %v691 = vrot.slane %v336, 7
    %v692 = vrot.slane %v337, 7
    %v693 = vsel %vm560, %v691, %v692
    %v694 = vrot.slane %v338, 7
    %v695 = vsel %vm560, %v692, %v694
    %v696 = vrot.slane %v339, 7
    %v697 = vsel %vm560, %v694, %v696
    %v698 = vrot.slane %v340, 7
    %v699 = vsel %vm560, %v696, %v698
    %v700 = vrot.slane %v341, 7
    %v701 = vsel %vm560, %v698, %v700
    %v702 = vrot.slane %v342, 7
    %v703 = vsel %vm560, %v700, %v702
    %v704 = vrot.slane %v343, 7
    %v705 = vsel %vm560, %v702, %v704
    %v706 = vrot.slane %v344, 7
    %v707 = vsel %vm560, %v704, %v706
    %v708 = vrot.slane %v345, 7
    %v709 = vsel %vm560, %v706, %v708
    %v710 = vrot.slane %v346, 7
    %v711 = vsel %vm560, %v708, %v710
    %v712 = vrot.slane %v347, 7
    %v713 = vsel %vm560, %v710, %v712
    %v714 = vrot.slane %v348, 7
    %v715 = vsel %vm560, %v712, %v714
    %v716 = vrot.slane %v349, 7
    %v717 = vsel %vm560, %v714, %v716
    %v718 = vrot.slane %v350, 7
    %v719 = vsel %vm560, %v716, %v718
    %v720 = vrot.slane %v351, 7
    %v721 = vsel %vm560, %v718, %v720
    %v722 = vrot.slane %v352, 7
    %v723 = vsel %vm560, %v720, %v722
    %v724 = vrot.slane %v353, 7
    %v725 = vsel %vm560, %v722, %v724
    %v726 = vrot.slane %v354, 7
    %v727 = vsel %vm560, %v724, %v726
    %v728 = vrot.slane %v355, 7
    %v729 = vsel %vm560, %v726, %v728
    %v730 = vrot.slane %v356, 7
    %v731 = vsel %vm560, %v728, %v730
    %v732 = vrot.slane %v357, 7
    %v733 = vsel %vm560, %v730, %v732
    %v734 = vrot.slane %v358, 7
    %v735 = vsel %vm560, %v732, %v734
    %v736 = vrot.slane %v359, 7
    %v737 = vsel %vm560, %v734, %v736
    %v738 = vrot.slane %v360, 7
    %v739 = vsel %vm560, %v736, %v738
    %v740 = vrot.slane %v361, 7
    %v741 = vsel %vm560, %v738, %v740
    %v742 = vrot.slane %v362, 7
    %v743 = vsel %vm560, %v740, %v742
    %v744 = vrot.slane %v363, 7
    %v745 = vsel %vm560, %v742, %v744
    %v746 = vrot.slane %v364, 7
    %v747 = vsel %vm560, %v744, %v746
    %v748 = vrot.slane %v365, 7
    %v749 = vsel %vm560, %v746, %v748
    %v750 = vrot.slane %v366, 7
    %v751 = vsel %vm560, %v748, %v750
    %v752 = vrot.slane %v367, 7
    %v753 = vsel %vm560, %v750, %v752
    %v787 = vsel %vm560, 0.0, %v691
    %v788 = vsel %vm560, %v752, 0.0
    %v821 = vrot.slane %v496, 7
    %v822 = vrot.slane %v497, 7
    %v823 = vsel %vm560, %v821, %v822
    %v824 = vrot.slane %v498, 7
    %v825 = vsel %vm560, %v822, %v824
    %v826 = vrot.slane %v499, 7
    %v827 = vsel %vm560, %v824, %v826
    %v828 = vrot.slane %v500, 7
    %v829 = vsel %vm560, %v826, %v828
    %v830 = vrot.slane %v501, 7
    %v831 = vsel %vm560, %v828, %v830
    %v832 = vrot.slane %v502, 7
    %v833 = vsel %vm560, %v830, %v832
    %v834 = vrot.slane %v503, 7
    %v835 = vsel %vm560, %v832, %v834
    %v836 = vrot.slane %v504, 7
    %v837 = vsel %vm560, %v834, %v836
    %v838 = vrot.slane %v505, 7
    %v839 = vsel %vm560, %v836, %v838
    %v840 = vrot.slane %v506, 7
    %v841 = vsel %vm560, %v838, %v840
    %v842 = vrot.slane %v507, 7
    %v843 = vsel %vm560, %v840, %v842
    %v844 = vrot.slane %v508, 7
    %v845 = vsel %vm560, %v842, %v844
    %v846 = vrot.slane %v509, 7
    %v847 = vsel %vm560, %v844, %v846
    %v848 = vrot.slane %v510, 7
    %v849 = vsel %vm560, %v846, %v848
    %v850 = vrot.slane %v511, 7
    %v851 = vsel %vm560, %v848, %v850
    %v852 = vrot.slane %v512, 7
    %v853 = vsel %vm560, %v850, %v852
    %v854 = vrot.slane %v513, 7
    %v855 = vsel %vm560, %v852, %v854
    %v856 = vrot.slane %v514, 7
    %v857 = vsel %vm560, %v854, %v856
    %v858 = vrot.slane %v515, 7
    %v859 = vsel %vm560, %v856, %v858
    %v860 = vrot.slane %v516, 7
    %v861 = vsel %vm560, %v858, %v860
    %v862 = vrot.slane %v517, 7
    %v863 = vsel %vm560, %v860, %v862
    %v864 = vrot.slane %v518, 7
    %v865 = vsel %vm560, %v862, %v864
    %v866 = vrot.slane %v519, 7
    %v867 = vsel %vm560, %v864, %v866
    %v868 = vrot.slane %v520, 7
    %v869 = vsel %vm560, %v866, %v868
    %v870 = vrot.slane %v521, 7
    %v871 = vsel %vm560, %v868, %v870
    %v872 = vrot.slane %v522, 7
    %v873 = vsel %vm560, %v870, %v872
    %v874 = vrot.slane %v523, 7
    %v875 = vsel %vm560, %v872, %v874
    %v876 = vrot.slane %v524, 7
    %v877 = vsel %vm560, %v874, %v876
    %v878 = vrot.slane %v525, 7
    %v879 = vsel %vm560, %v876, %v878
    %v880 = vrot.slane %v526, 7
    %v881 = vsel %vm560, %v878, %v880
    %v882 = vrot.slane %v527, 7
    %v883 = vsel %vm560, %v880, %v882
    %v917 = vsel %vm560, 0.0, %v821
    %v918 = vsel %vm560, %v882, 0.0
    %v919 = vpack.c.bf16 0.0, 0.0
    %v920 = vpack.c.bf16 %v823, %v917
    %v921 = vpack.c.bf16 %v827, %v825
    %v922 = vpack.c.bf16 %v831, %v829
    %v923 = vpack.c.bf16 %v835, %v833
    %v924 = vpack.c.bf16 %v839, %v837
    %v925 = vpack.c.bf16 %v843, %v841
    %v926 = vpack.c.bf16 %v847, %v845
    %v927 = vpack.c.bf16 %v851, %v849
    %v928 = vpack.c.bf16 %v855, %v853
    %v929 = vpack.c.bf16 %v859, %v857
    %v930 = vpack.c.bf16 %v863, %v861
    %v931 = vpack.c.bf16 %v867, %v865
    %v932 = vpack.c.bf16 %v871, %v869
    %v933 = vpack.c.bf16 %v875, %v873
    %v934 = vpack.c.bf16 %v879, %v877
    %v935 = vld [vmem:[%s7] sm:$0xf]
    %v936 = vpack.c.bf16 %v563, %v657
    %v937 = vpack.c.bf16 %v567, %v565
    %v938 = vpack.c.bf16 %v571, %v569
    %v939 = vpack.c.bf16 %v575, %v573
    %v940 = vpack.c.bf16 %v579, %v577
    %v941 = vpack.c.bf16 %v583, %v581
    %v942 = vpack.c.bf16 %v587, %v585
    %v943 = vpack.c.bf16 %v591, %v589
    %v944 = vpack.c.bf16 %v595, %v593
    %v945 = vpack.c.bf16 %v599, %v597
    %v946 = vpack.c.bf16 %v603, %v601
    %v947 = vpack.c.bf16 %v607, %v605
    %v948 = vpack.c.bf16 %v611, %v609
    %v949 = vpack.c.bf16 %v615, %v613
    %v950 = vpack.c.bf16 %v619, %v617
    %v951 = vpack.c.bf16 %v621, %v621
    %v952 = vld [vmem:[%s7 + $0x4] sm:$0xf]
    %vm953 = vsmask.f32 7424
    %v955 = vshrl.u32 %v919, 16
    %v957 = vshll.u32 %v919, 16
    %v959 = vrot.slane %v957, 1
    %v960 = vor.u32 %v955, %v959
    %v962 = vshll.u32 %v936, 16
    %v964 = vrot.slane %v962, 1
    %v965 = vsel %vm953, %v960, %v964
    %v966 = vshrl.u32 %v936, 16
    %v968 = vor.u32 %v966, %v964
    %v970 = vshll.u32 %v937, 16
    %v972 = vrot.slane %v970, 1
    %v973 = vsel %vm953, %v968, %v972
    %v974 = vshrl.u32 %v937, 16
    %v976 = vor.u32 %v974, %v972
    %v978 = vshll.u32 %v938, 16
    %v980 = vrot.slane %v978, 1
    %v981 = vsel %vm953, %v976, %v980
    %v982 = vshrl.u32 %v938, 16
    %v984 = vor.u32 %v982, %v980
    %v986 = vshll.u32 %v939, 16
    %v988 = vrot.slane %v986, 1
    %v989 = vsel %vm953, %v984, %v988
    %v990 = vshrl.u32 %v939, 16
    %v992 = vor.u32 %v990, %v988
    %v994 = vshll.u32 %v940, 16
    %v996 = vrot.slane %v994, 1
    %v997 = vsel %vm953, %v992, %v996
    %v998 = vshrl.u32 %v940, 16
    %v1000 = vor.u32 %v998, %v996
    %v1002 = vshll.u32 %v941, 16
    %v1004 = vrot.slane %v1002, 1
    %v1005 = vsel %vm953, %v1000, %v1004
    %v1006 = vshrl.u32 %v941, 16
    %v1008 = vor.u32 %v1006, %v1004
    %v1010 = vshll.u32 %v942, 16
    %v1012 = vrot.slane %v1010, 1
    %v1013 = vsel %vm953, %v1008, %v1012
    %v1014 = vshrl.u32 %v942, 16
    %v1016 = vor.u32 %v1014, %v1012
    %v1018 = vshll.u32 %v943, 16
    %v1020 = vrot.slane %v1018, 1
    %v1021 = vsel %vm953, %v1016, %v1020
    %v1022 = vshrl.u32 %v943, 16
    %v1024 = vor.u32 %v1022, %v1020
    %v1026 = vshll.u32 %v944, 16
    %v1028 = vrot.slane %v1026, 1
    %v1029 = vsel %vm953, %v1024, %v1028
    %v1030 = vshrl.u32 %v944, 16
    %v1032 = vor.u32 %v1030, %v1028
    %v1034 = vshll.u32 %v945, 16
    %v1036 = vrot.slane %v1034, 1
    %v1037 = vsel %vm953, %v1032, %v1036
    %v1038 = vshrl.u32 %v945, 16
    %v1040 = vor.u32 %v1038, %v1036
    %v1042 = vshll.u32 %v946, 16
    %v1044 = vrot.slane %v1042, 1
    %v1045 = vsel %vm953, %v1040, %v1044
    %v1046 = vshrl.u32 %v946, 16
    %v1048 = vor.u32 %v1046, %v1044
    %v1050 = vshll.u32 %v947, 16
    %v1052 = vrot.slane %v1050, 1
    %v1053 = vsel %vm953, %v1048, %v1052
    %v1054 = vshrl.u32 %v947, 16
    %v1056 = vor.u32 %v1054, %v1052
    %v1058 = vshll.u32 %v948, 16
    %v1060 = vrot.slane %v1058, 1
    %v1061 = vsel %vm953, %v1056, %v1060
    %v1062 = vshrl.u32 %v948, 16
    %v1064 = vor.u32 %v1062, %v1060
    %v1066 = vshll.u32 %v949, 16
    %v1068 = vrot.slane %v1066, 1
    %v1069 = vsel %vm953, %v1064, %v1068
    %v1070 = vshrl.u32 %v949, 16
    %v1072 = vor.u32 %v1070, %v1068
    %v1074 = vshll.u32 %v950, 16
    %v1076 = vrot.slane %v1074, 1
    %v1077 = vsel %vm953, %v1072, %v1076
    %v1078 = vshrl.u32 %v950, 16
    %v1080 = vor.u32 %v1078, %v1076
    %v1082 = vshll.u32 %v951, 16
    %v1084 = vrot.slane %v1082, 1
    %v1085 = vsel %vm953, %v1080, %v1084
    %vm1086 = vcmask 64512
    %v1088 = vsel %vm1086, %v965, 0
    %v1091 = vsel %vm1086, %v973, 0
    %v1094 = vsel %vm1086, %v981, 0
    %v1097 = vsel %vm1086, %v989, 0
    %v1100 = vsel %vm1086, %v997, 0
    %v1103 = vsel %vm1086, %v1005, 0
    %v1106 = vsel %vm1086, %v1013, 0
    %v1109 = vsel %vm1086, %v1021, 0
    %v1112 = vsel %vm1086, %v1029, 0
    %v1115 = vsel %vm1086, %v1037, 0
    %v1118 = vsel %vm1086, %v1045, 0
    %v1121 = vsel %vm1086, %v1053, 0
    %v1124 = vsel %vm1086, %v1061, 0
    %v1127 = vsel %vm1086, %v1069, 0
    %v1130 = vsel %vm1086, %v1077, 0
    %v1133 = vsel %vm1086, %v1085, 0
    %vm1135 = vcmask 1043456
    %v1137 = vsel %vm1135, %v952, 0
    %1139 = vmatprep.subr.bf16.mxu0 0
    %1140 = vmatpush1.bf16.msra.mxu0 %v1137
    %1141 = vmatprep.subr.bf16.mxu0 0
    %1142 = vmatpush1.bf16.msra.mxu0 0
    %1143 = vmatprep.subr.bf16.mxu0 0
    %1144 = vmatpush1.bf16.msra.mxu0 0
    %1145 = vmatprep.subr.bf16.mxu0 0
    %1146 = vmatpush1.bf16.msra.mxu0 0
    %1147 = vmatprep.subr.bf16.mxu0 0
    %1148 = vmatpush1.bf16.msra.mxu0 0
    %1149 = vmatprep.subr.bf16.mxu0 0
    %1150 = vmatpush1.bf16.msra.mxu0 0
    %1151 = vmatprep.subr.bf16.mxu0 0
    %1152 = vmatpush1.bf16.msra.mxu0 0
    %1153 = vmatprep.subr.bf16.mxu0 0
    %1154 = vmatpush1.bf16.msra.mxu0 0
    %1155 = vmatprep.subr.bf16.mxu0 0
    %1156 = vmatpush1.bf16.msra.mxu0 0
    %1157 = vmatprep.subr.bf16.mxu0 0
    %1158 = vmatpush1.bf16.msra.mxu0 0
    %1159 = vmatprep.subr.bf16.mxu0 0
    %1160 = vmatpush1.bf16.msra.mxu0 0
    %1161 = vmatprep.subr.bf16.mxu0 0
    %1162 = vmatpush1.bf16.msra.mxu0 0
    %1163 = vmatprep.subr.bf16.mxu0 0
    %1164 = vmatpush1.bf16.msra.mxu0 0
    %1165 = vmatprep.subr.bf16.mxu0 0
    %1166 = vmatpush1.bf16.msra.mxu0 0
    %1167 = vmatprep.subr.bf16.mxu0 0
    %1168 = vmatpush1.bf16.msra.mxu0 0
    %1169 = vmatprep.subr.bf16.mxu0 0
    %1170 = vmatpush1.bf16.msra.mxu0 0
    %1171 = vmatprep.mubr.bf16.mxu0 0
    %1172 = vmatmul.mubr.bf16.gmra.mrb[0].mxu0 %v1088
    %v1173 = vpop.f32.mrb[0].mxu0
    %v1174 = vadd.f32 0.0, %v1173
    %v1175 = vpop.f32.mrb[0].mxu0
    %v1176 = vpop.f32.mrb[0].mxu0
    %v1177 = vadd.f32 0.0, %v1176
    %v1178 = vpop.f32.mrb[0].mxu0
    %1179 = vmatprep.mubr.bf16.mxu0 0
    %1180 = vmatmul.mubr.bf16.gmra.mrb[0].mxu0 %v1091
    %v1181 = vpop.f32.mrb[0].mxu0
    %v1182 = vadd.f32 0.0, %v1181
    %v1183 = vpop.f32.mrb[0].mxu0
    %v1184 = vpop.f32.mrb[0].mxu0
    %v1185 = vadd.f32 0.0, %v1184
    %v1186 = vpop.f32.mrb[0].mxu0
    %1187 = vmatprep.mubr.bf16.mxu0 0
    %1188 = vmatmul.mubr.bf16.gmra.mrb[0].mxu0 %v1094
    %v1189 = vpop.f32.mrb[0].mxu0
    %v1190 = vadd.f32 0.0, %v1189
    %v1191 = vpop.f32.mrb[0].mxu0
    %v1192 = vpop.f32.mrb[0].mxu0
    %v1193 = vadd.f32 0.0, %v1192
    %v1194 = vpop.f32.mrb[0].mxu0
    %1195 = vmatprep.mubr.bf16.mxu0 0
    %1196 = vmatmul.mubr.bf16.gmra.mrb[0].mxu0 %v1097
    %v1197 = vpop.f32.mrb[0].mxu0
    %v1198 = vadd.f32 0.0, %v1197
    %v1199 = vpop.f32.mrb[0].mxu0
    %v1200 = vpop.f32.mrb[0].mxu0
    %v1201 = vadd.f32 0.0, %v1200
    %v1202 = vpop.f32.mrb[0].mxu0
    %1203 = vmatprep.mubr.bf16.mxu0 0
    %1204 = vmatmul.mubr.bf16.gmra.mrb[0].mxu0 %v1100
    %v1205 = vpop.f32.mrb[0].mxu0
    %v1206 = vadd.f32 0.0, %v1205
    %v1207 = vpop.f32.mrb[0].mxu0
    %v1208 = vpop.f32.mrb[0].mxu0
    %v1209 = vadd.f32 0.0, %v1208
    %v1210 = vpop.f32.mrb[0].mxu0
    %1211 = vmatprep.mubr.bf16.mxu0 0
    %1212 = vmatmul.mubr.bf16.gmra.mrb[0].mxu0 %v1103
    %v1213 = vpop.f32.mrb[0].mxu0
    %v1214 = vadd.f32 0.0, %v1213
    %v1215 = vpop.f32.mrb[0].mxu0
    %v1216 = vpop.f32.mrb[0].mxu0
    %v1217 = vadd.f32 0.0, %v1216
    %v1218 = vpop.f32.mrb[0].mxu0
    %1219 = vmatprep.mubr.bf16.mxu0 0
    %1220 = vmatmul.mubr.bf16.gmra.mrb[0].mxu0 %v1106
    %v1221 = vpop.f32.mrb[0].mxu0
    %v1222 = vadd.f32 0.0, %v1221
    %v1223 = vpop.f32.mrb[0].mxu0
    %v1224 = vpop.f32.mrb[0].mxu0
    %v1225 = vadd.f32 0.0, %v1224
    %v1226 = vpop.f32.mrb[0].mxu0
    %1227 = vmatprep.mubr.bf16.mxu0 0
    %1228 = vmatmul.mubr.bf16.gmra.mrb[0].mxu0 %v1109
    %v1229 = vpop.f32.mrb[0].mxu0
    %v1230 = vadd.f32 0.0, %v1229
    %v1231 = vpop.f32.mrb[0].mxu0
    %v1232 = vpop.f32.mrb[0].mxu0
    %v1233 = vadd.f32 0.0, %v1232
    %v1234 = vpop.f32.mrb[0].mxu0
    %1235 = vmatprep.mubr.bf16.mxu0 0
    %1236 = vmatmul.mubr.bf16.gmra.mrb[0].mxu0 %v1112
    %v1237 = vpop.f32.mrb[0].mxu0
    %v1238 = vadd.f32 0.0, %v1237
    %v1239 = vpop.f32.mrb[0].mxu0
    %v1240 = vpop.f32.mrb[0].mxu0
    %v1241 = vadd.f32 0.0, %v1240
    %v1242 = vpop.f32.mrb[0].mxu0
    %1243 = vmatprep.mubr.bf16.mxu0 0
    %1244 = vmatmul.mubr.bf16.gmra.mrb[0].mxu0 %v1115
    %v1245 = vpop.f32.mrb[0].mxu0
    %v1246 = vadd.f32 0.0, %v1245
    %v1247 = vpop.f32.mrb[0].mxu0
    %v1248 = vpop.f32.mrb[0].mxu0
    %v1249 = vadd.f32 0.0, %v1248
    %v1250 = vpop.f32.mrb[0].mxu0
    %1251 = vmatprep.mubr.bf16.mxu0 0
    %1252 = vmatmul.mubr.bf16.gmra.mrb[0].mxu0 %v1118
    %v1253 = vpop.f32.mrb[0].mxu0
    %v1254 = vadd.f32 0.0, %v1253
    %v1255 = vpop.f32.mrb[0].mxu0
    %v1256 = vpop.f32.mrb[0].mxu0
    %v1257 = vadd.f32 0.0, %v1256
    %v1258 = vpop.f32.mrb[0].mxu0
    %1259 = vmatprep.mubr.bf16.mxu0 0
    %1260 = vmatmul.mubr.bf16.gmra.mrb[0].mxu0 %v1121
    %v1261 = vpop.f32.mrb[0].mxu0
    %v1262 = vadd.f32 0.0, %v1261
    %v1263 = vpop.f32.mrb[0].mxu0
    %v1264 = vpop.f32.mrb[0].mxu0
    %v1265 = vadd.f32 0.0, %v1264
    %v1266 = vpop.f32.mrb[0].mxu0
    %1267 = vmatprep.mubr.bf16.mxu0 0
    %1268 = vmatmul.mubr.bf16.gmra.mrb[0].mxu0 %v1124
    %v1269 = vpop.f32.mrb[0].mxu0
    %v1270 = vadd.f32 0.0, %v1269
    %v1271 = vpop.f32.mrb[0].mxu0
    %v1272 = vpop.f32.mrb[0].mxu0
    %v1273 = vadd.f32 0.0, %v1272
    %v1274 = vpop.f32.mrb[0].mxu0
    %1275 = vmatprep.mubr.bf16.mxu0 0
    %1276 = vmatmul.mubr.bf16.gmra.mrb[0].mxu0 %v1127
    %v1277 = vpop.f32.mrb[0].mxu0
    %v1278 = vadd.f32 0.0, %v1277
    %v1279 = vpop.f32.mrb[0].mxu0
    %v1280 = vpop.f32.mrb[0].mxu0
    %v1281 = vadd.f32 0.0, %v1280
    %v1282 = vpop.f32.mrb[0].mxu0
    %1283 = vmatprep.mubr.bf16.mxu0 0
    %1284 = vmatmul.mubr.bf16.gmra.mrb[0].mxu0 %v1130
    %v1285 = vpop.f32.mrb[0].mxu0
    %v1286 = vadd.f32 0.0, %v1285
    %v1287 = vpop.f32.mrb[0].mxu0
    %v1288 = vpop.f32.mrb[0].mxu0
    %v1289 = vadd.f32 0.0, %v1288
    %v1290 = vpop.f32.mrb[0].mxu0
    %1291 = vmatprep.mubr.bf16.mxu0 0
    %1292 = vmatmul.mubr.bf16.gmra.mrb[0].mxu0 %v1133
    %v1293 = vpop.f32.mrb[0].mxu0
    %v1294 = vadd.f32 0.0, %v1293
    %v1295 = vpop.f32.mrb[0].mxu0
    %v1296 = vpop.f32.mrb[0].mxu0
    %v1297 = vadd.f32 0.0, %v1296
    %v1298 = vpop.f32.mrb[0].mxu0
    %1299 = vdwg.mxu0
    %v1300 = vsel %vm1086, %v919, 0
    %v1303 = vsel %vm1086, %v920, 0
    %v1306 = vsel %vm1086, %v921, 0
    %v1309 = vsel %vm1086, %v922, 0
    %v1312 = vsel %vm1086, %v923, 0
    %v1315 = vsel %vm1086, %v924, 0
    %v1318 = vsel %vm1086, %v925, 0
    %v1321 = vsel %vm1086, %v926, 0
    %v1324 = vsel %vm1086, %v927, 0
    %v1327 = vsel %vm1086, %v928, 0
    %v1330 = vsel %vm1086, %v929, 0
    %v1333 = vsel %vm1086, %v930, 0
    %v1336 = vsel %vm1086, %v931, 0
    %v1339 = vsel %vm1086, %v932, 0
    %v1342 = vsel %vm1086, %v933, 0
    %v1345 = vsel %vm1086, %v934, 0
    %v1348 = vsel %vm1135, %v935, 0
    %1350 = vmatprep.subr.bf16.mxu0 0
    %1351 = vmatpush1.bf16.msra.mxu0 %v1348
    %1352 = vmatprep.subr.bf16.mxu0 0
    %1353 = vmatpush1.bf16.msra.mxu0 0
    %1354 = vmatprep.subr.bf16.mxu0 0
    %1355 = vmatpush1.bf16.msra.mxu0 0
    %1356 = vmatprep.subr.bf16.mxu0 0
    %1357 = vmatpush1.bf16.msra.mxu0 0
    %1358 = vmatprep.subr.bf16.mxu0 0
    %1359 = vmatpush1.bf16.msra.mxu0 0
    %1360 = vmatprep.subr.bf16.mxu0 0
    %1361 = vmatpush1.bf16.msra.mxu0 0
    %1362 = vmatprep.subr.bf16.mxu0 0
    %1363 = vmatpush1.bf16.msra.mxu0 0
    %1364 = vmatprep.subr.bf16.mxu0 0
    %1365 = vmatpush1.bf16.msra.mxu0 0
    %1366 = vmatprep.subr.bf16.mxu0 0
    %1367 = vmatpush1.bf16.msra.mxu0 0
    %1368 = vmatprep.subr.bf16.mxu0 0
    %1369 = vmatpush1.bf16.msra.mxu0 0
    %1370 = vmatprep.subr.bf16.mxu0 0
    %1371 = vmatpush1.bf16.msra.mxu0 0
    %1372 = vmatprep.subr.bf16.mxu0 0
    %1373 = vmatpush1.bf16.msra.mxu0 0
    %1374 = vmatprep.subr.bf16.mxu0 0
    %1375 = vmatpush1.bf16.msra.mxu0 0
    %1376 = vmatprep.subr.bf16.mxu0 0
    %1377 = vmatpush1.bf16.msra.mxu0 0
    %1378 = vmatprep.subr.bf16.mxu0 0
    %1379 = vmatpush1.bf16.msra.mxu0 0
    %1380 = vmatprep.subr.bf16.mxu0 0
    %1381 = vmatpush1.bf16.msra.mxu0 0
    %1382 = vmatprep.mubr.bf16.mxu0 0
    %1383 = vmatmul.mubr.bf16.gmra.mrb[0].mxu0 %v1300
    %v1384 = vpop.f32.mrb[0].mxu0
    %v1385 = vadd.f32 %v1174, %v1384
    %v1386 = vpop.f32.mrb[0].mxu0
    %v1387 = vpop.f32.mrb[0].mxu0
    %v1388 = vadd.f32 %v1177, %v1387
    %v1389 = vpop.f32.mrb[0].mxu0
    %1390 = vmatprep.mubr.bf16.mxu0 0
    %1391 = vmatmul.mubr.bf16.gmra.mrb[0].mxu0 %v1303
    %v1392 = vpop.f32.mrb[0].mxu0
    %v1393 = vadd.f32 %v1182, %v1392
    %v1394 = vpop.f32.mrb[0].mxu0
    %v1395 = vpop.f32.mrb[0].mxu0
    %v1396 = vadd.f32 %v1185, %v1395
    %v1397 = vpop.f32.mrb[0].mxu0
    %1398 = vmatprep.mubr.bf16.mxu0 0
    %1399 = vmatmul.mubr.bf16.gmra.mrb[0].mxu0 %v1306
    %v1400 = vpop.f32.mrb[0].mxu0
    %v1401 = vadd.f32 %v1190, %v1400
    %v1402 = vpop.f32.mrb[0].mxu0
    %v1403 = vpop.f32.mrb[0].mxu0
    %v1404 = vadd.f32 %v1193, %v1403
    %v1405 = vpop.f32.mrb[0].mxu0
    %1406 = vmatprep.mubr.bf16.mxu0 0
    %1407 = vmatmul.mubr.bf16.gmra.mrb[0].mxu0 %v1309
    %v1408 = vpop.f32.mrb[0].mxu0
    %v1409 = vadd.f32 %v1198, %v1408
    %v1410 = vpop.f32.mrb[0].mxu0
    %v1411 = vpop.f32.mrb[0].mxu0
    %v1412 = vadd.f32 %v1201, %v1411
    %v1413 = vpop.f32.mrb[0].mxu0
    %1414 = vmatprep.mubr.bf16.mxu0 0
    %1415 = vmatmul.mubr.bf16.gmra.mrb[0].mxu0 %v1312
    %v1416 = vpop.f32.mrb[0].mxu0
    %v1417 = vadd.f32 %v1206, %v1416
    %v1418 = vpop.f32.mrb[0].mxu0
    %v1419 = vpop.f32.mrb[0].mxu0
    %v1420 = vadd.f32 %v1209, %v1419
    %v1421 = vpop.f32.mrb[0].mxu0
    %1422 = vmatprep.mubr.bf16.mxu0 0
    %1423 = vmatmul.mubr.bf16.gmra.mrb[0].mxu0 %v1315
    %v1424 = vpop.f32.mrb[0].mxu0
    %v1425 = vadd.f32 %v1214, %v1424
    %v1426 = vpop.f32.mrb[0].mxu0
    %v1427 = vpop.f32.mrb[0].mxu0
    %v1428 = vadd.f32 %v1217, %v1427
    %v1429 = vpop.f32.mrb[0].mxu0
    %1430 = vmatprep.mubr.bf16.mxu0 0
    %1431 = vmatmul.mubr.bf16.gmra.mrb[0].mxu0 %v1318
    %v1432 = vpop.f32.mrb[0].mxu0
    %v1433 = vadd.f32 %v1222, %v1432
    %v1434 = vpop.f32.mrb[0].mxu0
    %v1435 = vpop.f32.mrb[0].mxu0
    %v1436 = vadd.f32 %v1225, %v1435
    %v1437 = vpop.f32.mrb[0].mxu0
    %1438 = vmatprep.mubr.bf16.mxu0 0
    %1439 = vmatmul.mubr.bf16.gmra.mrb[0].mxu0 %v1321
    %v1440 = vpop.f32.mrb[0].mxu0
    %v1441 = vadd.f32 %v1230, %v1440
    %v1442 = vpop.f32.mrb[0].mxu0
    %v1443 = vpop.f32.mrb[0].mxu0
    %v1444 = vadd.f32 %v1233, %v1443
    %v1445 = vpop.f32.mrb[0].mxu0
    %1446 = vmatprep.mubr.bf16.mxu0 0
    %1447 = vmatmul.mubr.bf16.gmra.mrb[0].mxu0 %v1324
    %v1448 = vpop.f32.mrb[0].mxu0
    %v1449 = vadd.f32 %v1238, %v1448
    %v1450 = vpop.f32.mrb[0].mxu0
    %v1451 = vpop.f32.mrb[0].mxu0
    %v1452 = vadd.f32 %v1241, %v1451
    %v1453 = vpop.f32.mrb[0].mxu0
    %1454 = vmatprep.mubr.bf16.mxu0 0
    %1455 = vmatmul.mubr.bf16.gmra.mrb[0].mxu0 %v1327
    %v1456 = vpop.f32.mrb[0].mxu0
    %v1457 = vadd.f32 %v1246, %v1456
    %v1458 = vpop.f32.mrb[0].mxu0
    %v1459 = vpop.f32.mrb[0].mxu0
    %v1460 = vadd.f32 %v1249, %v1459
    %v1461 = vpop.f32.mrb[0].mxu0
    %1462 = vmatprep.mubr.bf16.mxu0 0
    %1463 = vmatmul.mubr.bf16.gmra.mrb[0].mxu0 %v1330
    %v1464 = vpop.f32.mrb[0].mxu0
    %v1465 = vadd.f32 %v1254, %v1464
    %v1466 = vpop.f32.mrb[0].mxu0
    %v1467 = vpop.f32.mrb[0].mxu0
    %v1468 = vadd.f32 %v1257, %v1467
    %v1469 = vpop.f32.mrb[0].mxu0
    %1470 = vmatprep.mubr.bf16.mxu0 0
    %1471 = vmatmul.mubr.bf16.gmra.mrb[0].mxu0 %v1333
    %v1472 = vpop.f32.mrb[0].mxu0
    %v1473 = vadd.f32 %v1262, %v1472
    %v1474 = vpop.f32.mrb[0].mxu0
    %v1475 = vpop.f32.mrb[0].mxu0
    %v1476 = vadd.f32 %v1265, %v1475
    %v1477 = vpop.f32.mrb[0].mxu0
    %1478 = vmatprep.mubr.bf16.mxu0 0
    %1479 = vmatmul.mubr.bf16.gmra.mrb[0].mxu0 %v1336
    %v1480 = vpop.f32.mrb[0].mxu0
    %v1481 = vadd.f32 %v1270, %v1480
    %v1482 = vpop.f32.mrb[0].mxu0
    %v1483 = vpop.f32.mrb[0].mxu0
    %v1484 = vadd.f32 %v1273, %v1483
    %v1485 = vpop.f32.mrb[0].mxu0
    %1486 = vmatprep.mubr.bf16.mxu0 0
    %1487 = vmatmul.mubr.bf16.gmra.mrb[0].mxu0 %v1339
    %v1488 = vpop.f32.mrb[0].mxu0
    %v1489 = vadd.f32 %v1278, %v1488
    %v1490 = vpop.f32.mrb[0].mxu0
    %v1491 = vpop.f32.mrb[0].mxu0
    %v1492 = vadd.f32 %v1281, %v1491
    %v1493 = vpop.f32.mrb[0].mxu0
    %1494 = vmatprep.mubr.bf16.mxu0 0
    %1495 = vmatmul.mubr.bf16.gmra.mrb[0].mxu0 %v1342
    %v1496 = vpop.f32.mrb[0].mxu0
    %v1497 = vadd.f32 %v1286, %v1496
    %v1498 = vpop.f32.mrb[0].mxu0
    %v1499 = vpop.f32.mrb[0].mxu0
    %v1500 = vadd.f32 %v1289, %v1499
    %v1501 = vpop.f32.mrb[0].mxu0
    %1502 = vmatprep.mubr.bf16.mxu0 0
    %1503 = vmatmul.mubr.bf16.gmra.mrb[0].mxu0 %v1345
    %v1504 = vpop.f32.mrb[0].mxu0
    %v1505 = vadd.f32 %v1294, %v1504
    %v1506 = vpop.f32.mrb[0].mxu0
    %v1507 = vpop.f32.mrb[0].mxu0
    %v1508 = vadd.f32 %v1297, %v1507
    %v1509 = vpop.f32.mrb[0].mxu0
    %1510 = vdwg.mxu0
    %v1511 = vpack.c.bf16 %v693, %v787
    %v1512 = vpack.c.bf16 %v697, %v695
    %v1513 = vpack.c.bf16 %v701, %v699
    %v1514 = vpack.c.bf16 %v705, %v703
    %v1515 = vpack.c.bf16 %v709, %v707
    %v1516 = vpack.c.bf16 %v713, %v711
    %v1517 = vpack.c.bf16 %v717, %v715
    %v1518 = vpack.c.bf16 %v721, %v719
    %v1519 = vpack.c.bf16 %v725, %v723
    %v1520 = vpack.c.bf16 %v729, %v727
    %v1521 = vpack.c.bf16 %v733, %v731
    %v1522 = vpack.c.bf16 %v737, %v735
    %v1523 = vpack.c.bf16 %v741, %v739
    %v1524 = vpack.c.bf16 %v745, %v743
    %v1525 = vpack.c.bf16 %v749, %v747
    %v1526 = vpack.c.bf16 %v751, %v751
    %v1527 = vld [vmem:[%s7 + $0x8] sm:$0xf]
    %vm1545 = vcmask 1046528
    %v1546 = vrot.slane %v919, 1
    %v1547 = vrot.slane %v1511, 1
    %v1548 = vsel %vm1545, %v1546, %v1547
    %v1549 = vrot.slane %v1512, 1
    %v1550 = vsel %vm1545, %v1547, %v1549
    %v1551 = vrot.slane %v1513, 1
    %v1552 = vsel %vm1545, %v1549, %v1551
    %v1553 = vrot.slane %v1514, 1
    %v1554 = vsel %vm1545, %v1551, %v1553
    %v1555 = vrot.slane %v1515, 1
    %v1556 = vsel %vm1545, %v1553, %v1555
    %v1557 = vrot.slane %v1516, 1
    %v1558 = vsel %vm1545, %v1555, %v1557
    %v1559 = vrot.slane %v1517, 1
    %v1560 = vsel %vm1545, %v1557, %v1559
    %v1561 = vrot.slane %v1518, 1
    %v1562 = vsel %vm1545, %v1559, %v1561
    %v1563 = vrot.slane %v1519, 1
    %v1564 = vsel %vm1545, %v1561, %v1563
    %v1565 = vrot.slane %v1520, 1
    %v1566 = vsel %vm1545, %v1563, %v1565
    %v1567 = vrot.slane %v1521, 1
    %v1568 = vsel %vm1545, %v1565, %v1567
    %v1569 = vrot.slane %v1522, 1
    %v1570 = vsel %vm1545, %v1567, %v1569
    %v1571 = vrot.slane %v1523, 1
    %v1572 = vsel %vm1545, %v1569, %v1571
    %v1573 = vrot.slane %v1524, 1
    %v1574 = vsel %vm1545, %v1571, %v1573
    %v1575 = vrot.slane %v1525, 1
    %v1576 = vsel %vm1545, %v1573, %v1575
    %v1577 = vrot.slane %v1526, 1
    %v1578 = vsel %vm1545, %v1575, %v1577
    %v1580 = vsel %vm1086, %v1548, 0
    %v1583 = vsel %vm1086, %v1550, 0
    %v1586 = vsel %vm1086, %v1552, 0
    %v1589 = vsel %vm1086, %v1554, 0
    %v1592 = vsel %vm1086, %v1556, 0
    %v1595 = vsel %vm1086, %v1558, 0
    %v1598 = vsel %vm1086, %v1560, 0
    %v1601 = vsel %vm1086, %v1562, 0
    %v1604 = vsel %vm1086, %v1564, 0
    %v1607 = vsel %vm1086, %v1566, 0
    %v1610 = vsel %vm1086, %v1568, 0
    %v1613 = vsel %vm1086, %v1570, 0
    %v1616 = vsel %vm1086, %v1572, 0
    %v1619 = vsel %vm1086, %v1574, 0
    %v1622 = vsel %vm1086, %v1576, 0
    %v1625 = vsel %vm1086, %v1578, 0
    %v1628 = vsel %vm1135, %v1527, 0
    %1630 = vmatprep.subr.bf16.mxu0 0
    %1631 = vmatpush1.bf16.msra.mxu0 %v1628
    %1632 = vmatprep.subr.bf16.mxu0 0
    %1633 = vmatpush1.bf16.msra.mxu0 0
    %1634 = vmatprep.subr.bf16.mxu0 0
    %1635 = vmatpush1.bf16.msra.mxu0 0
    %1636 = vmatprep.subr.bf16.mxu0 0
    %1637 = vmatpush1.bf16.msra.mxu0 0
    %1638 = vmatprep.subr.bf16.mxu0 0
    %1639 = vmatpush1.bf16.msra.mxu0 0
    %1640 = vmatprep.subr.bf16.mxu0 0
    %1641 = vmatpush1.bf16.msra.mxu0 0
    %1642 = vmatprep.subr.bf16.mxu0 0
    %1643 = vmatpush1.bf16.msra.mxu0 0
    %1644 = vmatprep.subr.bf16.mxu0 0
    %1645 = vmatpush1.bf16.msra.mxu0 0
    %1646 = vmatprep.subr.bf16.mxu0 0
    %1647 = vmatpush1.bf16.msra.mxu0 0
    %1648 = vmatprep.subr.bf16.mxu0 0
    %1649 = vmatpush1.bf16.msra.mxu0 0
    %1650 = vmatprep.subr.bf16.mxu0 0
    %1651 = vmatpush1.bf16.msra.mxu0 0
    %1652 = vmatprep.subr.bf16.mxu0 0
    %1653 = vmatpush1.bf16.msra.mxu0 0
    %1654 = vmatprep.subr.bf16.mxu0 0
    %1655 = vmatpush1.bf16.msra.mxu0 0
    %1656 = vmatprep.subr.bf16.mxu0 0
    %1657 = vmatpush1.bf16.msra.mxu0 0
    %1658 = vmatprep.subr.bf16.mxu0 0
    %1659 = vmatpush1.bf16.msra.mxu0 0
    %1660 = vmatprep.subr.bf16.mxu0 0
    %1661 = vmatpush1.bf16.msra.mxu0 0
    %1662 = vmatprep.mubr.bf16.mxu0 0
    %1663 = vmatmul.mubr.bf16.gmra.mrb[0].mxu0 %v1580
    %v1664 = vpop.f32.mrb[0].mxu0
    %v1665 = vadd.f32 0.0, %v1664
    %v1666 = vpop.f32.mrb[0].mxu0
    %v1667 = vpop.f32.mrb[0].mxu0
    %v1668 = vadd.f32 0.0, %v1667
    %v1669 = vpop.f32.mrb[0].mxu0
    %1670 = vmatprep.mubr.bf16.mxu0 0
    %1671 = vmatmul.mubr.bf16.gmra.mrb[0].mxu0 %v1583
    %v1672 = vpop.f32.mrb[0].mxu0
    %v1673 = vadd.f32 0.0, %v1672
    %v1674 = vpop.f32.mrb[0].mxu0
    %v1675 = vpop.f32.mrb[0].mxu0
    %v1676 = vadd.f32 0.0, %v1675
    %v1677 = vpop.f32.mrb[0].mxu0
    %1678 = vmatprep.mubr.bf16.mxu0 0
    %1679 = vmatmul.mubr.bf16.gmra.mrb[0].mxu0 %v1586
    %v1680 = vpop.f32.mrb[0].mxu0
    %v1681 = vadd.f32 0.0, %v1680
    %v1682 = vpop.f32.mrb[0].mxu0
    %v1683 = vpop.f32.mrb[0].mxu0
    %v1684 = vadd.f32 0.0, %v1683
    %v1685 = vpop.f32.mrb[0].mxu0
    %1686 = vmatprep.mubr.bf16.mxu0 0
    %1687 = vmatmul.mubr.bf16.gmra.mrb[0].mxu0 %v1589
    %v1688 = vpop.f32.mrb[0].mxu0
    %v1689 = vadd.f32 0.0, %v1688
    %v1690 = vpop.f32.mrb[0].mxu0
    %v1691 = vpop.f32.mrb[0].mxu0
    %v1692 = vadd.f32 0.0, %v1691
    %v1693 = vpop.f32.mrb[0].mxu0
    %1694 = vmatprep.mubr.bf16.mxu0 0
    %1695 = vmatmul.mubr.bf16.gmra.mrb[0].mxu0 %v1592
    %v1696 = vpop.f32.mrb[0].mxu0
    %v1697 = vadd.f32 0.0, %v1696
    %v1698 = vpop.f32.mrb[0].mxu0
    %v1699 = vpop.f32.mrb[0].mxu0
    %v1700 = vadd.f32 0.0, %v1699
    %v1701 = vpop.f32.mrb[0].mxu0
    %1702 = vmatprep.mubr.bf16.mxu0 0
    %1703 = vmatmul.mubr.bf16.gmra.mrb[0].mxu0 %v1595
    %v1704 = vpop.f32.mrb[0].mxu0
    %v1705 = vadd.f32 0.0, %v1704
    %v1706 = vpop.f32.mrb[0].mxu0
    %v1707 = vpop.f32.mrb[0].mxu0
    %v1708 = vadd.f32 0.0, %v1707
    %v1709 = vpop.f32.mrb[0].mxu0
    %1710 = vmatprep.mubr.bf16.mxu0 0
    %1711 = vmatmul.mubr.bf16.gmra.mrb[0].mxu0 %v1598
    %v1712 = vpop.f32.mrb[0].mxu0
    %v1713 = vadd.f32 0.0, %v1712
    %v1714 = vpop.f32.mrb[0].mxu0
    %v1715 = vpop.f32.mrb[0].mxu0
    %v1716 = vadd.f32 0.0, %v1715
    %v1717 = vpop.f32.mrb[0].mxu0
    %1718 = vmatprep.mubr.bf16.mxu0 0
    %1719 = vmatmul.mubr.bf16.gmra.mrb[0].mxu0 %v1601
    %v1720 = vpop.f32.mrb[0].mxu0
    %v1721 = vadd.f32 0.0, %v1720
    %v1722 = vpop.f32.mrb[0].mxu0
    %v1723 = vpop.f32.mrb[0].mxu0
    %v1724 = vadd.f32 0.0, %v1723
    %v1725 = vpop.f32.mrb[0].mxu0
    %1726 = vmatprep.mubr.bf16.mxu0 0
    %1727 = vmatmul.mubr.bf16.gmra.mrb[0].mxu0 %v1604
    %v1728 = vpop.f32.mrb[0].mxu0
    %v1729 = vadd.f32 0.0, %v1728
    %v1730 = vpop.f32.mrb[0].mxu0
    %v1731 = vpop.f32.mrb[0].mxu0
    %v1732 = vadd.f32 0.0, %v1731
    %v1733 = vpop.f32.mrb[0].mxu0
    %1734 = vmatprep.mubr.bf16.mxu0 0
    %1735 = vmatmul.mubr.bf16.gmra.mrb[0].mxu0 %v1607
    %v1736 = vpop.f32.mrb[0].mxu0
    %v1737 = vadd.f32 0.0, %v1736
    %v1738 = vpop.f32.mrb[0].mxu0
    %v1739 = vpop.f32.mrb[0].mxu0
    %v1740 = vadd.f32 0.0, %v1739
    %v1741 = vpop.f32.mrb[0].mxu0
    %1742 = vmatprep.mubr.bf16.mxu0 0
    %1743 = vmatmul.mubr.bf16.gmra.mrb[0].mxu0 %v1610
    %v1744 = vpop.f32.mrb[0].mxu0
    %v1745 = vadd.f32 0.0, %v1744
    %v1746 = vpop.f32.mrb[0].mxu0
    %v1747 = vpop.f32.mrb[0].mxu0
    %v1748 = vadd.f32 0.0, %v1747
    %v1749 = vpop.f32.mrb[0].mxu0
    %1750 = vmatprep.mubr.bf16.mxu0 0
    %1751 = vmatmul.mubr.bf16.gmra.mrb[0].mxu0 %v1613
    %v1752 = vpop.f32.mrb[0].mxu0
    %v1753 = vadd.f32 0.0, %v1752
    %v1754 = vpop.f32.mrb[0].mxu0
    %v1755 = vpop.f32.mrb[0].mxu0
    %v1756 = vadd.f32 0.0, %v1755
    %v1757 = vpop.f32.mrb[0].mxu0
    %1758 = vmatprep.mubr.bf16.mxu0 0
    %1759 = vmatmul.mubr.bf16.gmra.mrb[0].mxu0 %v1616
    %v1760 = vpop.f32.mrb[0].mxu0
    %v1761 = vadd.f32 0.0, %v1760
    %v1762 = vpop.f32.mrb[0].mxu0
    %v1763 = vpop.f32.mrb[0].mxu0
    %v1764 = vadd.f32 0.0, %v1763
    %v1765 = vpop.f32.mrb[0].mxu0
    %1766 = vmatprep.mubr.bf16.mxu0 0
    %1767 = vmatmul.mubr.bf16.gmra.mrb[0].mxu0 %v1619
    %v1768 = vpop.f32.mrb[0].mxu0
    %v1769 = vadd.f32 0.0, %v1768
    %v1770 = vpop.f32.mrb[0].mxu0
    %v1771 = vpop.f32.mrb[0].mxu0
    %v1772 = vadd.f32 0.0, %v1771
    %v1773 = vpop.f32.mrb[0].mxu0
    %1774 = vmatprep.mubr.bf16.mxu0 0
    %1775 = vmatmul.mubr.bf16.gmra.mrb[0].mxu0 %v1622
    %v1776 = vpop.f32.mrb[0].mxu0
    %v1777 = vadd.f32 0.0, %v1776
    %v1778 = vpop.f32.mrb[0].mxu0
    %v1779 = vpop.f32.mrb[0].mxu0
    %v1780 = vadd.f32 0.0, %v1779
    %v1781 = vpop.f32.mrb[0].mxu0
    %1782 = vmatprep.mubr.bf16.mxu0 0
    %1783 = vmatmul.mubr.bf16.gmra.mrb[0].mxu0 %v1625
    %v1784 = vpop.f32.mrb[0].mxu0
    %v1785 = vadd.f32 0.0, %v1784
    %v1786 = vpop.f32.mrb[0].mxu0
    %v1787 = vpop.f32.mrb[0].mxu0
    %v1788 = vadd.f32 0.0, %v1787
    %v1789 = vpop.f32.mrb[0].mxu0
    %1790 = vdwg.mxu0
    %v1791 = vadd.f32 %v1385, %v1665
    %v1792 = vadd.f32 %v1388, %v1668
    %v1793 = vadd.f32 %v1393, %v1673
    %v1794 = vadd.f32 %v1396, %v1676
    %v1795 = vadd.f32 %v1401, %v1681
    %v1796 = vadd.f32 %v1404, %v1684
    %v1797 = vadd.f32 %v1409, %v1689
    %v1798 = vadd.f32 %v1412, %v1692
    %v1799 = vadd.f32 %v1417, %v1697
    %v1800 = vadd.f32 %v1420, %v1700
    %v1801 = vadd.f32 %v1425, %v1705
    %v1802 = vadd.f32 %v1428, %v1708
    %v1803 = vadd.f32 %v1433, %v1713
    %v1804 = vadd.f32 %v1436, %v1716
    %v1805 = vadd.f32 %v1441, %v1721
    %v1806 = vadd.f32 %v1444, %v1724
    %v1807 = vadd.f32 %v1449, %v1729
    %v1808 = vadd.f32 %v1452, %v1732
    %v1809 = vadd.f32 %v1457, %v1737
    %v1810 = vadd.f32 %v1460, %v1740
    %v1811 = vadd.f32 %v1465, %v1745
    %v1812 = vadd.f32 %v1468, %v1748
    %v1813 = vadd.f32 %v1473, %v1753
    %v1814 = vadd.f32 %v1476, %v1756
    %v1815 = vadd.f32 %v1481, %v1761
    %v1816 = vadd.f32 %v1484, %v1764
    %v1817 = vadd.f32 %v1489, %v1769
    %v1818 = vadd.f32 %v1492, %v1772
    %v1819 = vadd.f32 %v1497, %v1777
    %v1820 = vadd.f32 %v1500, %v1780
    %v1821 = vadd.f32 %v1505, %v1785
    %v1822 = vadd.f32 %v1508, %v1788
    %v1823 = vpack.c.bf16 %v883, %v881
    %v1824 = vld [vmem:[%s7 + $0xc] sm:$0xf]
    %v1826 = vsel %vm1086, %v1823, 0
    %v1829 = vsel %vm1135, %v1824, 0
    %1831 = vmatprep.subr.bf16.mxu0 0
    %1832 = vmatpush1.bf16.msra.mxu0 %v1829
    %1833 = vmatprep.subr.bf16.mxu0 0
    %1834 = vmatpush1.bf16.msra.mxu0 0
    %1835 = vmatprep.subr.bf16.mxu0 0
    %1836 = vmatpush1.bf16.msra.mxu0 0
    %1837 = vmatprep.subr.bf16.mxu0 0
    %1838 = vmatpush1.bf16.msra.mxu0 0
    %1839 = vmatprep.subr.bf16.mxu0 0
    %1840 = vmatpush1.bf16.msra.mxu0 0
    %1841 = vmatprep.subr.bf16.mxu0 0
    %1842 = vmatpush1.bf16.msra.mxu0 0
    %1843 = vmatprep.subr.bf16.mxu0 0
    %1844 = vmatpush1.bf16.msra.mxu0 0
    %1845 = vmatprep.subr.bf16.mxu0 0
    %1846 = vmatpush1.bf16.msra.mxu0 0
    %1847 = vmatprep.subr.bf16.mxu0 0
    %1848 = vmatpush1.bf16.msra.mxu0 0
    %1849 = vmatprep.subr.bf16.mxu0 0
    %1850 = vmatpush1.bf16.msra.mxu0 0
    %1851 = vmatprep.subr.bf16.mxu0 0
    %1852 = vmatpush1.bf16.msra.mxu0 0
    %1853 = vmatprep.subr.bf16.mxu0 0
    %1854 = vmatpush1.bf16.msra.mxu0 0
    %1855 = vmatprep.subr.bf16.mxu0 0
    %1856 = vmatpush1.bf16.msra.mxu0 0
    %1857 = vmatprep.subr.bf16.mxu0 0
    %1858 = vmatpush1.bf16.msra.mxu0 0
    %1859 = vmatprep.subr.bf16.mxu0 0
    %1860 = vmatpush1.bf16.msra.mxu0 0
    %1861 = vmatprep.subr.bf16.mxu0 0
    %1862 = vmatpush1.bf16.msra.mxu0 0
    %1863 = vmatprep.mubr.bf16.mxu0 0
    %1864 = vmatmul.mubr.bf16.gmra.mrb[0].mxu0 %v1303
    %v1865 = vpop.f32.mrb[0].mxu0
    %v1866 = vadd.f32 0.0, %v1865
    %v1867 = vpop.f32.mrb[0].mxu0
    %v1868 = vpop.f32.mrb[0].mxu0
    %v1869 = vadd.f32 0.0, %v1868
    %v1870 = vpop.f32.mrb[0].mxu0
    %1871 = vmatprep.mubr.bf16.mxu0 0
    %1872 = vmatmul.mubr.bf16.gmra.mrb[0].mxu0 %v1306
    %v1873 = vpop.f32.mrb[0].mxu0
    %v1874 = vadd.f32 0.0, %v1873
    %v1875 = vpop.f32.mrb[0].mxu0
    %v1876 = vpop.f32.mrb[0].mxu0
    %v1877 = vadd.f32 0.0, %v1876
    %v1878 = vpop.f32.mrb[0].mxu0
    %1879 = vmatprep.mubr.bf16.mxu0 0
    %1880 = vmatmul.mubr.bf16.gmra.mrb[0].mxu0 %v1309
    %v1881 = vpop.f32.mrb[0].mxu0
    %v1882 = vadd.f32 0.0, %v1881
    %v1883 = vpop.f32.mrb[0].mxu0
    %v1884 = vpop.f32.mrb[0].mxu0
    %v1885 = vadd.f32 0.0, %v1884
    %v1886 = vpop.f32.mrb[0].mxu0
    %1887 = vmatprep.mubr.bf16.mxu0 0
    %1888 = vmatmul.mubr.bf16.gmra.mrb[0].mxu0 %v1312
    %v1889 = vpop.f32.mrb[0].mxu0
    %v1890 = vadd.f32 0.0, %v1889
    %v1891 = vpop.f32.mrb[0].mxu0
    %v1892 = vpop.f32.mrb[0].mxu0
    %v1893 = vadd.f32 0.0, %v1892
    %v1894 = vpop.f32.mrb[0].mxu0
    %1895 = vmatprep.mubr.bf16.mxu0 0
    %1896 = vmatmul.mubr.bf16.gmra.mrb[0].mxu0 %v1315
    %v1897 = vpop.f32.mrb[0].mxu0
    %v1898 = vadd.f32 0.0, %v1897
    %v1899 = vpop.f32.mrb[0].mxu0
    %v1900 = vpop.f32.mrb[0].mxu0
    %v1901 = vadd.f32 0.0, %v1900
    %v1902 = vpop.f32.mrb[0].mxu0
    %1903 = vmatprep.mubr.bf16.mxu0 0
    %1904 = vmatmul.mubr.bf16.gmra.mrb[0].mxu0 %v1318
    %v1905 = vpop.f32.mrb[0].mxu0
    %v1906 = vadd.f32 0.0, %v1905
    %v1907 = vpop.f32.mrb[0].mxu0
    %v1908 = vpop.f32.mrb[0].mxu0
    %v1909 = vadd.f32 0.0, %v1908
    %v1910 = vpop.f32.mrb[0].mxu0
    %1911 = vmatprep.mubr.bf16.mxu0 0
    %1912 = vmatmul.mubr.bf16.gmra.mrb[0].mxu0 %v1321
    %v1913 = vpop.f32.mrb[0].mxu0
    %v1914 = vadd.f32 0.0, %v1913
    %v1915 = vpop.f32.mrb[0].mxu0
    %v1916 = vpop.f32.mrb[0].mxu0
    %v1917 = vadd.f32 0.0, %v1916
    %v1918 = vpop.f32.mrb[0].mxu0
    %1919 = vmatprep.mubr.bf16.mxu0 0
    %1920 = vmatmul.mubr.bf16.gmra.mrb[0].mxu0 %v1324
    %v1921 = vpop.f32.mrb[0].mxu0
    %v1922 = vadd.f32 0.0, %v1921
    %v1923 = vpop.f32.mrb[0].mxu0
    %v1924 = vpop.f32.mrb[0].mxu0
    %v1925 = vadd.f32 0.0, %v1924
    %v1926 = vpop.f32.mrb[0].mxu0
    %1927 = vmatprep.mubr.bf16.mxu0 0
    %1928 = vmatmul.mubr.bf16.gmra.mrb[0].mxu0 %v1327
    %v1929 = vpop.f32.mrb[0].mxu0
    %v1930 = vadd.f32 0.0, %v1929
    %v1931 = vpop.f32.mrb[0].mxu0
    %v1932 = vpop.f32.mrb[0].mxu0
    %v1933 = vadd.f32 0.0, %v1932
    %v1934 = vpop.f32.mrb[0].mxu0
    %1935 = vmatprep.mubr.bf16.mxu0 0
    %1936 = vmatmul.mubr.bf16.gmra.mrb[0].mxu0 %v1330
    %v1937 = vpop.f32.mrb[0].mxu0
    %v1938 = vadd.f32 0.0, %v1937
    %v1939 = vpop.f32.mrb[0].mxu0
    %v1940 = vpop.f32.mrb[0].mxu0
    %v1941 = vadd.f32 0.0, %v1940
    %v1942 = vpop.f32.mrb[0].mxu0
    %1943 = vmatprep.mubr.bf16.mxu0 0
    %1944 = vmatmul.mubr.bf16.gmra.mrb[0].mxu0 %v1333
    %v1945 = vpop.f32.mrb[0].mxu0
    %v1946 = vadd.f32 0.0, %v1945
    %v1947 = vpop.f32.mrb[0].mxu0
    %v1948 = vpop.f32.mrb[0].mxu0
    %v1949 = vadd.f32 0.0, %v1948
    %v1950 = vpop.f32.mrb[0].mxu0
    %1951 = vmatprep.mubr.bf16.mxu0 0
    %1952 = vmatmul.mubr.bf16.gmra.mrb[0].mxu0 %v1336
    %v1953 = vpop.f32.mrb[0].mxu0
    %v1954 = vadd.f32 0.0, %v1953
    %v1955 = vpop.f32.mrb[0].mxu0
    %v1956 = vpop.f32.mrb[0].mxu0
    %v1957 = vadd.f32 0.0, %v1956
    %v1958 = vpop.f32.mrb[0].mxu0
    %1959 = vmatprep.mubr.bf16.mxu0 0
    %1960 = vmatmul.mubr.bf16.gmra.mrb[0].mxu0 %v1339
    %v1961 = vpop.f32.mrb[0].mxu0
    %v1962 = vadd.f32 0.0, %v1961
    %v1963 = vpop.f32.mrb[0].mxu0
    %v1964 = vpop.f32.mrb[0].mxu0
    %v1965 = vadd.f32 0.0, %v1964
    %v1966 = vpop.f32.mrb[0].mxu0
    %1967 = vmatprep.mubr.bf16.mxu0 0
    %1968 = vmatmul.mubr.bf16.gmra.mrb[0].mxu0 %v1342
    %v1969 = vpop.f32.mrb[0].mxu0
    %v1970 = vadd.f32 0.0, %v1969
    %v1971 = vpop.f32.mrb[0].mxu0
    %v1972 = vpop.f32.mrb[0].mxu0
    %v1973 = vadd.f32 0.0, %v1972
    %v1974 = vpop.f32.mrb[0].mxu0
    %1975 = vmatprep.mubr.bf16.mxu0 0
    %1976 = vmatmul.mubr.bf16.gmra.mrb[0].mxu0 %v1345
    %v1977 = vpop.f32.mrb[0].mxu0
    %v1978 = vadd.f32 0.0, %v1977
    %v1979 = vpop.f32.mrb[0].mxu0
    %v1980 = vpop.f32.mrb[0].mxu0
    %v1981 = vadd.f32 0.0, %v1980
    %v1982 = vpop.f32.mrb[0].mxu0
    %1983 = vmatprep.mubr.bf16.mxu0 0
    %1984 = vmatmul.mubr.bf16.gmra.mrb[0].mxu0 %v1826
    %v1985 = vpop.f32.mrb[0].mxu0
    %v1986 = vadd.f32 0.0, %v1985
    %v1987 = vpop.f32.mrb[0].mxu0
    %v1988 = vpop.f32.mrb[0].mxu0
    %v1989 = vadd.f32 0.0, %v1988
    %v1990 = vpop.f32.mrb[0].mxu0
    %1991 = vdwg.mxu0
    %v1992 = vadd.f32 %v1791, %v1866
    %v1993 = vadd.f32 %v1792, %v1869
    %v1994 = vadd.f32 %v1793, %v1874
    %v1995 = vadd.f32 %v1794, %v1877
    %v1996 = vadd.f32 %v1795, %v1882
    %v1997 = vadd.f32 %v1796, %v1885
    %v1998 = vadd.f32 %v1797, %v1890
    %v1999 = vadd.f32 %v1798, %v1893
    %v2000 = vadd.f32 %v1799, %v1898
    %v2001 = vadd.f32 %v1800, %v1901
    %v2002 = vadd.f32 %v1801, %v1906
    %v2003 = vadd.f32 %v1802, %v1909
    %v2004 = vadd.f32 %v1803, %v1914
    %v2005 = vadd.f32 %v1804, %v1917
    %v2006 = vadd.f32 %v1805, %v1922
    %v2007 = vadd.f32 %v1806, %v1925
    %v2008 = vadd.f32 %v1807, %v1930
    %v2009 = vadd.f32 %v1808, %v1933
    %v2010 = vadd.f32 %v1809, %v1938
    %v2011 = vadd.f32 %v1810, %v1941
    %v2012 = vadd.f32 %v1811, %v1946
    %v2013 = vadd.f32 %v1812, %v1949
    %v2014 = vadd.f32 %v1813, %v1954
    %v2015 = vadd.f32 %v1814, %v1957
    %v2016 = vadd.f32 %v1815, %v1962
    %v2017 = vadd.f32 %v1816, %v1965
    %v2018 = vadd.f32 %v1817, %v1970
    %v2019 = vadd.f32 %v1818, %v1973
    %v2020 = vadd.f32 %v1819, %v1978
    %v2021 = vadd.f32 %v1820, %v1981
    %v2022 = vadd.f32 %v1821, %v1986
    %v2023 = vadd.f32 %v1822, %v1989
    %v2024 = vpack.c.bf16 %v623, %v621
    %v2025 = vpack.c.bf16 %v658, %v658
    %v2026 = vld [vmem:[%s7 + $0x10] sm:$0xf]
    %v2028 = vshll.u32 %v2024, 16
    %v2030 = vrot.slane %v2028, 1
    %v2031 = vsel %vm953, %v1080, %v2030
    %v2032 = vshrl.u32 %v2024, 16
    %v2034 = vor.u32 %v2032, %v2030
    %v2036 = vshll.u32 %v2025, 16
    %v2038 = vrot.slane %v2036, 1
    %v2039 = vsel %vm953, %v2034, %v2038
    %v2041 = vsel %vm1086, %v2031, 0
    %v2044 = vsel %vm1086, %v2039, 0
    %v2047 = vsel %vm1135, %v2026, 0
    %2049 = vmatprep.subr.bf16.mxu0 0
    %2050 = vmatpush1.bf16.msra.mxu0 %v2047
    %2051 = vmatprep.subr.bf16.mxu0 0
    %2052 = vmatpush1.bf16.msra.mxu0 0
    %2053 = vmatprep.subr.bf16.mxu0 0
    %2054 = vmatpush1.bf16.msra.mxu0 0
    %2055 = vmatprep.subr.bf16.mxu0 0
    %2056 = vmatpush1.bf16.msra.mxu0 0
    %2057 = vmatprep.subr.bf16.mxu0 0
    %2058 = vmatpush1.bf16.msra.mxu0 0
    %2059 = vmatprep.subr.bf16.mxu0 0
    %2060 = vmatpush1.bf16.msra.mxu0 0
    %2061 = vmatprep.subr.bf16.mxu0 0
    %2062 = vmatpush1.bf16.msra.mxu0 0
    %2063 = vmatprep.subr.bf16.mxu0 0
    %2064 = vmatpush1.bf16.msra.mxu0 0
    %2065 = vmatprep.subr.bf16.mxu0 0
    %2066 = vmatpush1.bf16.msra.mxu0 0
    %2067 = vmatprep.subr.bf16.mxu0 0
    %2068 = vmatpush1.bf16.msra.mxu0 0
    %2069 = vmatprep.subr.bf16.mxu0 0
    %2070 = vmatpush1.bf16.msra.mxu0 0
    %2071 = vmatprep.subr.bf16.mxu0 0
    %2072 = vmatpush1.bf16.msra.mxu0 0
    %2073 = vmatprep.subr.bf16.mxu0 0
    %2074 = vmatpush1.bf16.msra.mxu0 0
    %2075 = vmatprep.subr.bf16.mxu0 0
    %2076 = vmatpush1.bf16.msra.mxu0 0
    %2077 = vmatprep.subr.bf16.mxu0 0
    %2078 = vmatpush1.bf16.msra.mxu0 0
    %2079 = vmatprep.subr.bf16.mxu0 0
    %2080 = vmatpush1.bf16.msra.mxu0 0
    %2081 = vmatprep.mubr.bf16.mxu0 0
    %2082 = vmatmul.mubr.bf16.gmra.mrb[0].mxu0 %v1091
    %v2083 = vpop.f32.mrb[0].mxu0
    %v2084 = vadd.f32 0.0, %v2083
    %v2085 = vpop.f32.mrb[0].mxu0
    %v2086 = vpop.f32.mrb[0].mxu0
    %v2087 = vadd.f32 0.0, %v2086
    %v2088 = vpop.f32.mrb[0].mxu0
    %2089 = vmatprep.mubr.bf16.mxu0 0
    %2090 = vmatmul.mubr.bf16.gmra.mrb[0].mxu0 %v1094
    %v2091 = vpop.f32.mrb[0].mxu0
    %v2092 = vadd.f32 0.0, %v2091
    %v2093 = vpop.f32.mrb[0].mxu0
    %v2094 = vpop.f32.mrb[0].mxu0
    %v2095 = vadd.f32 0.0, %v2094
    %v2096 = vpop.f32.mrb[0].mxu0
    %2097 = vmatprep.mubr.bf16.mxu0 0
    %2098 = vmatmul.mubr.bf16.gmra.mrb[0].mxu0 %v1097
    %v2099 = vpop.f32.mrb[0].mxu0
    %v2100 = vadd.f32 0.0, %v2099
    %v2101 = vpop.f32.mrb[0].mxu0
    %v2102 = vpop.f32.mrb[0].mxu0
    %v2103 = vadd.f32 0.0, %v2102
    %v2104 = vpop.f32.mrb[0].mxu0
    %2105 = vmatprep.mubr.bf16.mxu0 0
    %2106 = vmatmul.mubr.bf16.gmra.mrb[0].mxu0 %v1100
    %v2107 = vpop.f32.mrb[0].mxu0
    %v2108 = vadd.f32 0.0, %v2107
    %v2109 = vpop.f32.mrb[0].mxu0
    %v2110 = vpop.f32.mrb[0].mxu0
    %v2111 = vadd.f32 0.0, %v2110
    %v2112 = vpop.f32.mrb[0].mxu0
    %2113 = vmatprep.mubr.bf16.mxu0 0
    %2114 = vmatmul.mubr.bf16.gmra.mrb[0].mxu0 %v1103
    %v2115 = vpop.f32.mrb[0].mxu0
    %v2116 = vadd.f32 0.0, %v2115
    %v2117 = vpop.f32.mrb[0].mxu0
    %v2118 = vpop.f32.mrb[0].mxu0
    %v2119 = vadd.f32 0.0, %v2118
    %v2120 = vpop.f32.mrb[0].mxu0
    %2121 = vmatprep.mubr.bf16.mxu0 0
    %2122 = vmatmul.mubr.bf16.gmra.mrb[0].mxu0 %v1106
    %v2123 = vpop.f32.mrb[0].mxu0
    %v2124 = vadd.f32 0.0, %v2123
    %v2125 = vpop.f32.mrb[0].mxu0
    %v2126 = vpop.f32.mrb[0].mxu0
    %v2127 = vadd.f32 0.0, %v2126
    %v2128 = vpop.f32.mrb[0].mxu0
    %2129 = vmatprep.mubr.bf16.mxu0 0
    %2130 = vmatmul.mubr.bf16.gmra.mrb[0].mxu0 %v1109
    %v2131 = vpop.f32.mrb[0].mxu0
    %v2132 = vadd.f32 0.0, %v2131
    %v2133 = vpop.f32.mrb[0].mxu0
    %v2134 = vpop.f32.mrb[0].mxu0
    %v2135 = vadd.f32 0.0, %v2134
    %v2136 = vpop.f32.mrb[0].mxu0
    %2137 = vmatprep.mubr.bf16.mxu0 0
    %2138 = vmatmul.mubr.bf16.gmra.mrb[0].mxu0 %v1112
    %v2139 = vpop.f32.mrb[0].mxu0
    %v2140 = vadd.f32 0.0, %v2139
    %v2141 = vpop.f32.mrb[0].mxu0
    %v2142 = vpop.f32.mrb[0].mxu0
    %v2143 = vadd.f32 0.0, %v2142
    %v2144 = vpop.f32.mrb[0].mxu0
    %2145 = vmatprep.mubr.bf16.mxu0 0
    %2146 = vmatmul.mubr.bf16.gmra.mrb[0].mxu0 %v1115
    %v2147 = vpop.f32.mrb[0].mxu0
    %v2148 = vadd.f32 0.0, %v2147
    %v2149 = vpop.f32.mrb[0].mxu0
    %v2150 = vpop.f32.mrb[0].mxu0
    %v2151 = vadd.f32 0.0, %v2150
    %v2152 = vpop.f32.mrb[0].mxu0
    %2153 = vmatprep.mubr.bf16.mxu0 0
    %2154 = vmatmul.mubr.bf16.gmra.mrb[0].mxu0 %v1118
    %v2155 = vpop.f32.mrb[0].mxu0
    %v2156 = vadd.f32 0.0, %v2155
    %v2157 = vpop.f32.mrb[0].mxu0
    %v2158 = vpop.f32.mrb[0].mxu0
    %v2159 = vadd.f32 0.0, %v2158
    %v2160 = vpop.f32.mrb[0].mxu0
    %2161 = vmatprep.mubr.bf16.mxu0 0
    %2162 = vmatmul.mubr.bf16.gmra.mrb[0].mxu0 %v1121
    %v2163 = vpop.f32.mrb[0].mxu0
    %v2164 = vadd.f32 0.0, %v2163
    %v2165 = vpop.f32.mrb[0].mxu0
    %v2166 = vpop.f32.mrb[0].mxu0
    %v2167 = vadd.f32 0.0, %v2166
    %v2168 = vpop.f32.mrb[0].mxu0
    %2169 = vmatprep.mubr.bf16.mxu0 0
    %2170 = vmatmul.mubr.bf16.gmra.mrb[0].mxu0 %v1124
    %v2171 = vpop.f32.mrb[0].mxu0
    %v2172 = vadd.f32 0.0, %v2171
    %v2173 = vpop.f32.mrb[0].mxu0
    %v2174 = vpop.f32.mrb[0].mxu0
    %v2175 = vadd.f32 0.0, %v2174
    %v2176 = vpop.f32.mrb[0].mxu0
    %2177 = vmatprep.mubr.bf16.mxu0 0
    %2178 = vmatmul.mubr.bf16.gmra.mrb[0].mxu0 %v1127
    %v2179 = vpop.f32.mrb[0].mxu0
    %v2180 = vadd.f32 0.0, %v2179
    %v2181 = vpop.f32.mrb[0].mxu0
    %v2182 = vpop.f32.mrb[0].mxu0
    %v2183 = vadd.f32 0.0, %v2182
    %v2184 = vpop.f32.mrb[0].mxu0
    %2185 = vmatprep.mubr.bf16.mxu0 0
    %2186 = vmatmul.mubr.bf16.gmra.mrb[0].mxu0 %v1130
    %v2187 = vpop.f32.mrb[0].mxu0
    %v2188 = vadd.f32 0.0, %v2187
    %v2189 = vpop.f32.mrb[0].mxu0
    %v2190 = vpop.f32.mrb[0].mxu0
    %v2191 = vadd.f32 0.0, %v2190
    %v2192 = vpop.f32.mrb[0].mxu0
    %2193 = vmatprep.mubr.bf16.mxu0 0
    %2194 = vmatmul.mubr.bf16.gmra.mrb[0].mxu0 %v2041
    %v2195 = vpop.f32.mrb[0].mxu0
    %v2196 = vadd.f32 0.0, %v2195
    %v2197 = vpop.f32.mrb[0].mxu0
    %v2198 = vpop.f32.mrb[0].mxu0
    %v2199 = vadd.f32 0.0, %v2198
    %v2200 = vpop.f32.mrb[0].mxu0
    %2201 = vmatprep.mubr.bf16.mxu0 0
    %2202 = vmatmul.mubr.bf16.gmra.mrb[0].mxu0 %v2044
    %v2203 = vpop.f32.mrb[0].mxu0
    %v2204 = vadd.f32 0.0, %v2203
    %v2205 = vpop.f32.mrb[0].mxu0
    %v2206 = vpop.f32.mrb[0].mxu0
    %v2207 = vadd.f32 0.0, %v2206
    %v2208 = vpop.f32.mrb[0].mxu0
    %2209 = vdwg.mxu0
    %v2210 = vadd.f32 %v1992, %v2084
    %v2211 = vadd.f32 %v1993, %v2087
    %v2212 = vadd.f32 %v1994, %v2092
    %v2213 = vadd.f32 %v1995, %v2095
    %v2214 = vadd.f32 %v1996, %v2100
    %v2215 = vadd.f32 %v1997, %v2103
    %v2216 = vadd.f32 %v1998, %v2108
    %v2217 = vadd.f32 %v1999, %v2111
    %v2218 = vadd.f32 %v2000, %v2116
    %v2219 = vadd.f32 %v2001, %v2119
    %v2220 = vadd.f32 %v2002, %v2124
    %v2221 = vadd.f32 %v2003, %v2127
    %v2222 = vadd.f32 %v2004, %v2132
    %v2223 = vadd.f32 %v2005, %v2135
    %v2224 = vadd.f32 %v2006, %v2140
    %v2225 = vadd.f32 %v2007, %v2143
    %v2226 = vadd.f32 %v2008, %v2148
    %v2227 = vadd.f32 %v2009, %v2151
    %v2228 = vadd.f32 %v2010, %v2156
    %v2229 = vadd.f32 %v2011, %v2159
    %v2230 = vadd.f32 %v2012, %v2164
    %v2231 = vadd.f32 %v2013, %v2167
    %v2232 = vadd.f32 %v2014, %v2172
    %v2233 = vadd.f32 %v2015, %v2175
    %v2234 = vadd.f32 %v2016, %v2180
    %v2235 = vadd.f32 %v2017, %v2183
    %v2236 = vadd.f32 %v2018, %v2188
    %v2237 = vadd.f32 %v2019, %v2191
    %v2238 = vadd.f32 %v2020, %v2196
    %v2239 = vadd.f32 %v2021, %v2199
    %v2240 = vadd.f32 %v2022, %v2204
    %v2241 = vadd.f32 %v2023, %v2207
    %v2242 = vpack.c.bf16 %v753, %v751
    %v2243 = vpack.c.bf16 %v788, %v788
    %v2244 = vld [vmem:[%s7 + $0x14] sm:$0xf]
    %v2247 = vrot.slane %v2242, 1
    %v2248 = vsel %vm1545, %v1575, %v2247
    %v2249 = vrot.slane %v2243, 1
    %v2250 = vsel %vm1545, %v2247, %v2249
    %v2252 = vsel %vm1086, %v2248, 0
    %v2255 = vsel %vm1086, %v2250, 0
    %v2258 = vsel %vm1135, %v2244, 0
    %2260 = vmatprep.subr.bf16.mxu0 0
    %2261 = vmatpush1.bf16.msra.mxu0 %v2258
    %2262 = vmatprep.subr.bf16.mxu0 0
    %2263 = vmatpush1.bf16.msra.mxu0 0
    %2264 = vmatprep.subr.bf16.mxu0 0
    %2265 = vmatpush1.bf16.msra.mxu0 0
    %2266 = vmatprep.subr.bf16.mxu0 0
    %2267 = vmatpush1.bf16.msra.mxu0 0
    %2268 = vmatprep.subr.bf16.mxu0 0
    %2269 = vmatpush1.bf16.msra.mxu0 0
    %2270 = vmatprep.subr.bf16.mxu0 0
    %2271 = vmatpush1.bf16.msra.mxu0 0
    %2272 = vmatprep.subr.bf16.mxu0 0
    %2273 = vmatpush1.bf16.msra.mxu0 0
    %2274 = vmatprep.subr.bf16.mxu0 0
    %2275 = vmatpush1.bf16.msra.mxu0 0
    %2276 = vmatprep.subr.bf16.mxu0 0
    %2277 = vmatpush1.bf16.msra.mxu0 0
    %2278 = vmatprep.subr.bf16.mxu0 0
    %2279 = vmatpush1.bf16.msra.mxu0 0
    %2280 = vmatprep.subr.bf16.mxu0 0
    %2281 = vmatpush1.bf16.msra.mxu0 0
    %2282 = vmatprep.subr.bf16.mxu0 0
    %2283 = vmatpush1.bf16.msra.mxu0 0
    %2284 = vmatprep.subr.bf16.mxu0 0
    %2285 = vmatpush1.bf16.msra.mxu0 0
    %2286 = vmatprep.subr.bf16.mxu0 0
    %2287 = vmatpush1.bf16.msra.mxu0 0
    %2288 = vmatprep.subr.bf16.mxu0 0
    %2289 = vmatpush1.bf16.msra.mxu0 0
    %2290 = vmatprep.subr.bf16.mxu0 0
    %2291 = vmatpush1.bf16.msra.mxu0 0
    %2292 = vmatprep.mubr.bf16.mxu0 0
    %2293 = vmatmul.mubr.bf16.gmra.mrb[0].mxu0 %v1583
    %v2294 = vpop.f32.mrb[0].mxu0
    %v2295 = vadd.f32 0.0, %v2294
    %v2296 = vpop.f32.mrb[0].mxu0
    %v2297 = vpop.f32.mrb[0].mxu0
    %v2298 = vadd.f32 0.0, %v2297
    %v2299 = vpop.f32.mrb[0].mxu0
    %2300 = vmatprep.mubr.bf16.mxu0 0
    %2301 = vmatmul.mubr.bf16.gmra.mrb[0].mxu0 %v1586
    %v2302 = vpop.f32.mrb[0].mxu0
    %v2303 = vadd.f32 0.0, %v2302
    %v2304 = vpop.f32.mrb[0].mxu0
    %v2305 = vpop.f32.mrb[0].mxu0
    %v2306 = vadd.f32 0.0, %v2305
    %v2307 = vpop.f32.mrb[0].mxu0
    %2308 = vmatprep.mubr.bf16.mxu0 0
    %2309 = vmatmul.mubr.bf16.gmra.mrb[0].mxu0 %v1589
    %v2310 = vpop.f32.mrb[0].mxu0
    %v2311 = vadd.f32 0.0, %v2310
    %v2312 = vpop.f32.mrb[0].mxu0
    %v2313 = vpop.f32.mrb[0].mxu0
    %v2314 = vadd.f32 0.0, %v2313
    %v2315 = vpop.f32.mrb[0].mxu0
    %2316 = vmatprep.mubr.bf16.mxu0 0
    %2317 = vmatmul.mubr.bf16.gmra.mrb[0].mxu0 %v1592
    %v2318 = vpop.f32.mrb[0].mxu0
    %v2319 = vadd.f32 0.0, %v2318
    %v2320 = vpop.f32.mrb[0].mxu0
    %v2321 = vpop.f32.mrb[0].mxu0
    %v2322 = vadd.f32 0.0, %v2321
    %v2323 = vpop.f32.mrb[0].mxu0
    %2324 = vmatprep.mubr.bf16.mxu0 0
    %2325 = vmatmul.mubr.bf16.gmra.mrb[0].mxu0 %v1595
    %v2326 = vpop.f32.mrb[0].mxu0
    %v2327 = vadd.f32 0.0, %v2326
    %v2328 = vpop.f32.mrb[0].mxu0
    %v2329 = vpop.f32.mrb[0].mxu0
    %v2330 = vadd.f32 0.0, %v2329
    %v2331 = vpop.f32.mrb[0].mxu0
    %2332 = vmatprep.mubr.bf16.mxu0 0
    %2333 = vmatmul.mubr.bf16.gmra.mrb[0].mxu0 %v1598
    %v2334 = vpop.f32.mrb[0].mxu0
    %v2335 = vadd.f32 0.0, %v2334
    %v2336 = vpop.f32.mrb[0].mxu0
    %v2337 = vpop.f32.mrb[0].mxu0
    %v2338 = vadd.f32 0.0, %v2337
    %v2339 = vpop.f32.mrb[0].mxu0
    %2340 = vmatprep.mubr.bf16.mxu0 0
    %2341 = vmatmul.mubr.bf16.gmra.mrb[0].mxu0 %v1601
    %v2342 = vpop.f32.mrb[0].mxu0
    %v2343 = vadd.f32 0.0, %v2342
    %v2344 = vpop.f32.mrb[0].mxu0
    %v2345 = vpop.f32.mrb[0].mxu0
    %v2346 = vadd.f32 0.0, %v2345
    %v2347 = vpop.f32.mrb[0].mxu0
    %2348 = vmatprep.mubr.bf16.mxu0 0
    %2349 = vmatmul.mubr.bf16.gmra.mrb[0].mxu0 %v1604
    %v2350 = vpop.f32.mrb[0].mxu0
    %v2351 = vadd.f32 0.0, %v2350
    %v2352 = vpop.f32.mrb[0].mxu0
    %v2353 = vpop.f32.mrb[0].mxu0
    %v2354 = vadd.f32 0.0, %v2353
    %v2355 = vpop.f32.mrb[0].mxu0
    %2356 = vmatprep.mubr.bf16.mxu0 0
    %2357 = vmatmul.mubr.bf16.gmra.mrb[0].mxu0 %v1607
    %v2358 = vpop.f32.mrb[0].mxu0
    %v2359 = vadd.f32 0.0, %v2358
    %v2360 = vpop.f32.mrb[0].mxu0
    %v2361 = vpop.f32.mrb[0].mxu0
    %v2362 = vadd.f32 0.0, %v2361
    %v2363 = vpop.f32.mrb[0].mxu0
    %2364 = vmatprep.mubr.bf16.mxu0 0
    %2365 = vmatmul.mubr.bf16.gmra.mrb[0].mxu0 %v1610
    %v2366 = vpop.f32.mrb[0].mxu0
    %v2367 = vadd.f32 0.0, %v2366
    %v2368 = vpop.f32.mrb[0].mxu0
    %v2369 = vpop.f32.mrb[0].mxu0
    %v2370 = vadd.f32 0.0, %v2369
    %v2371 = vpop.f32.mrb[0].mxu0
    %2372 = vmatprep.mubr.bf16.mxu0 0
    %2373 = vmatmul.mubr.bf16.gmra.mrb[0].mxu0 %v1613
    %v2374 = vpop.f32.mrb[0].mxu0
    %v2375 = vadd.f32 0.0, %v2374
    %v2376 = vpop.f32.mrb[0].mxu0
    %v2377 = vpop.f32.mrb[0].mxu0
    %v2378 = vadd.f32 0.0, %v2377
    %v2379 = vpop.f32.mrb[0].mxu0
    %2380 = vmatprep.mubr.bf16.mxu0 0
    %2381 = vmatmul.mubr.bf16.gmra.mrb[0].mxu0 %v1616
    %v2382 = vpop.f32.mrb[0].mxu0
    %v2383 = vadd.f32 0.0, %v2382
    %v2384 = vpop.f32.mrb[0].mxu0
    %v2385 = vpop.f32.mrb[0].mxu0
    %v2386 = vadd.f32 0.0, %v2385
    %v2387 = vpop.f32.mrb[0].mxu0
    %2388 = vmatprep.mubr.bf16.mxu0 0
    %2389 = vmatmul.mubr.bf16.gmra.mrb[0].mxu0 %v1619
    %v2390 = vpop.f32.mrb[0].mxu0
    %v2391 = vadd.f32 0.0, %v2390
    %v2392 = vpop.f32.mrb[0].mxu0
    %v2393 = vpop.f32.mrb[0].mxu0
    %v2394 = vadd.f32 0.0, %v2393
    %v2395 = vpop.f32.mrb[0].mxu0
    %2396 = vmatprep.mubr.bf16.mxu0 0
    %2397 = vmatmul.mubr.bf16.gmra.mrb[0].mxu0 %v1622
    %v2398 = vpop.f32.mrb[0].mxu0
    %v2399 = vadd.f32 0.0, %v2398
    %v2400 = vpop.f32.mrb[0].mxu0
    %v2401 = vpop.f32.mrb[0].mxu0
    %v2402 = vadd.f32 0.0, %v2401
    %v2403 = vpop.f32.mrb[0].mxu0
    %2404 = vmatprep.mubr.bf16.mxu0 0
    %2405 = vmatmul.mubr.bf16.gmra.mrb[0].mxu0 %v2252
    %v2406 = vpop.f32.mrb[0].mxu0
    %v2407 = vadd.f32 0.0, %v2406
    %v2408 = vpop.f32.mrb[0].mxu0
    %v2409 = vpop.f32.mrb[0].mxu0
    %v2410 = vadd.f32 0.0, %v2409
    %v2411 = vpop.f32.mrb[0].mxu0
    %2412 = vmatprep.mubr.bf16.mxu0 0
    %2413 = vmatmul.mubr.bf16.gmra.mrb[0].mxu0 %v2255
    %v2414 = vpop.f32.mrb[0].mxu0
    %v2415 = vadd.f32 0.0, %v2414
    %v2416 = vpop.f32.mrb[0].mxu0
    %v2417 = vpop.f32.mrb[0].mxu0
    %v2418 = vadd.f32 0.0, %v2417
    %v2419 = vpop.f32.mrb[0].mxu0
    %2420 = vdwg.mxu0
    %v2421 = vadd.f32 %v2210, %v2295
    %v2422 = vadd.f32 %v2211, %v2298
    %v2423 = vadd.f32 %v2212, %v2303
    %v2424 = vadd.f32 %v2213, %v2306
    %v2425 = vadd.f32 %v2214, %v2311
    %v2426 = vadd.f32 %v2215, %v2314
    %v2427 = vadd.f32 %v2216, %v2319
    %v2428 = vadd.f32 %v2217, %v2322
    %v2429 = vadd.f32 %v2218, %v2327
    %v2430 = vadd.f32 %v2219, %v2330
    %v2431 = vadd.f32 %v2220, %v2335
    %v2432 = vadd.f32 %v2221, %v2338
    %v2433 = vadd.f32 %v2222, %v2343
    %v2434 = vadd.f32 %v2223, %v2346
    %v2435 = vadd.f32 %v2224, %v2351
    %v2436 = vadd.f32 %v2225, %v2354
    %v2437 = vadd.f32 %v2226, %v2359
    %v2438 = vadd.f32 %v2227, %v2362
    %v2439 = vadd.f32 %v2228, %v2367
    %v2440 = vadd.f32 %v2229, %v2370
    %v2441 = vadd.f32 %v2230, %v2375
    %v2442 = vadd.f32 %v2231, %v2378
    %v2443 = vadd.f32 %v2232, %v2383
    %v2444 = vadd.f32 %v2233, %v2386
    %v2445 = vadd.f32 %v2234, %v2391
    %v2446 = vadd.f32 %v2235, %v2394
    %v2447 = vadd.f32 %v2236, %v2399
    %v2448 = vadd.f32 %v2237, %v2402
    %v2449 = vadd.f32 %v2238, %v2407
    %v2450 = vadd.f32 %v2239, %v2410
    %v2451 = vadd.f32 %v2240, %v2415
    %v2452 = vadd.f32 %v2241, %v2418
    %v2453 = vpack.c.bf16 0.0, %v918
    %v2454 = vld [vmem:[%s7 + $0x18] sm:$0xf]
    %v2456 = vsel %vm1086, %v2453, 0
    %v2459 = vsel %vm1135, %v2454, 0
    %2461 = vmatprep.subr.bf16.mxu0 0
    %2462 = vmatpush1.bf16.msra.mxu0 %v2459
    %2463 = vmatprep.subr.bf16.mxu0 0
    %2464 = vmatpush1.bf16.msra.mxu0 0
    %2465 = vmatprep.subr.bf16.mxu0 0
    %2466 = vmatpush1.bf16.msra.mxu0 0
    %2467 = vmatprep.subr.bf16.mxu0 0
    %2468 = vmatpush1.bf16.msra.mxu0 0
    %2469 = vmatprep.subr.bf16.mxu0 0
    %2470 = vmatpush1.bf16.msra.mxu0 0
    %2471 = vmatprep.subr.bf16.mxu0 0
    %2472 = vmatpush1.bf16.msra.mxu0 0
    %2473 = vmatprep.subr.bf16.mxu0 0
    %2474 = vmatpush1.bf16.msra.mxu0 0
    %2475 = vmatprep.subr.bf16.mxu0 0
    %2476 = vmatpush1.bf16.msra.mxu0 0
    %2477 = vmatprep.subr.bf16.mxu0 0
    %2478 = vmatpush1.bf16.msra.mxu0 0
    %2479 = vmatprep.subr.bf16.mxu0 0
    %2480 = vmatpush1.bf16.msra.mxu0 0
    %2481 = vmatprep.subr.bf16.mxu0 0
    %2482 = vmatpush1.bf16.msra.mxu0 0
    %2483 = vmatprep.subr.bf16.mxu0 0
    %2484 = vmatpush1.bf16.msra.mxu0 0
    %2485 = vmatprep.subr.bf16.mxu0 0
    %2486 = vmatpush1.bf16.msra.mxu0 0
    %2487 = vmatprep.subr.bf16.mxu0 0
    %2488 = vmatpush1.bf16.msra.mxu0 0
    %2489 = vmatprep.subr.bf16.mxu0 0
    %2490 = vmatpush1.bf16.msra.mxu0 0
    %2491 = vmatprep.subr.bf16.mxu0 0
    %2492 = vmatpush1.bf16.msra.mxu0 0
    %2493 = vmatprep.mubr.bf16.mxu0 0
    %2494 = vmatmul.mubr.bf16.gmra.mrb[0].mxu0 %v1306
    %v2495 = vpop.f32.mrb[0].mxu0
    %v2496 = vadd.f32 0.0, %v2495
    %v2497 = vpop.f32.mrb[0].mxu0
    %v2498 = vpop.f32.mrb[0].mxu0
    %v2499 = vadd.f32 0.0, %v2498
    %v2500 = vpop.f32.mrb[0].mxu0
    %2501 = vmatprep.mubr.bf16.mxu0 0
    %2502 = vmatmul.mubr.bf16.gmra.mrb[0].mxu0 %v1309
    %v2503 = vpop.f32.mrb[0].mxu0
    %v2504 = vadd.f32 0.0, %v2503
    %v2505 = vpop.f32.mrb[0].mxu0
    %v2506 = vpop.f32.mrb[0].mxu0
    %v2507 = vadd.f32 0.0, %v2506
    %v2508 = vpop.f32.mrb[0].mxu0
    %2509 = vmatprep.mubr.bf16.mxu0 0
    %2510 = vmatmul.mubr.bf16.gmra.mrb[0].mxu0 %v1312
    %v2511 = vpop.f32.mrb[0].mxu0
    %v2512 = vadd.f32 0.0, %v2511
    %v2513 = vpop.f32.mrb[0].mxu0
    %v2514 = vpop.f32.mrb[0].mxu0
    %v2515 = vadd.f32 0.0, %v2514
    %v2516 = vpop.f32.mrb[0].mxu0
    %2517 = vmatprep.mubr.bf16.mxu0 0
    %2518 = vmatmul.mubr.bf16.gmra.mrb[0].mxu0 %v1315
    %v2519 = vpop.f32.mrb[0].mxu0
    %v2520 = vadd.f32 0.0, %v2519
    %v2521 = vpop.f32.mrb[0].mxu0
    %v2522 = vpop.f32.mrb[0].mxu0
    %v2523 = vadd.f32 0.0, %v2522
    %v2524 = vpop.f32.mrb[0].mxu0
    %2525 = vmatprep.mubr.bf16.mxu0 0
    %2526 = vmatmul.mubr.bf16.gmra.mrb[0].mxu0 %v1318
    %v2527 = vpop.f32.mrb[0].mxu0
    %v2528 = vadd.f32 0.0, %v2527
    %v2529 = vpop.f32.mrb[0].mxu0
    %v2530 = vpop.f32.mrb[0].mxu0
    %v2531 = vadd.f32 0.0, %v2530
    %v2532 = vpop.f32.mrb[0].mxu0
    %2533 = vmatprep.mubr.bf16.mxu0 0
    %2534 = vmatmul.mubr.bf16.gmra.mrb[0].mxu0 %v1321
    %v2535 = vpop.f32.mrb[0].mxu0
    %v2536 = vadd.f32 0.0, %v2535
    %v2537 = vpop.f32.mrb[0].mxu0
    %v2538 = vpop.f32.mrb[0].mxu0
    %v2539 = vadd.f32 0.0, %v2538
    %v2540 = vpop.f32.mrb[0].mxu0
    %2541 = vmatprep.mubr.bf16.mxu0 0
    %2542 = vmatmul.mubr.bf16.gmra.mrb[0].mxu0 %v1324
    %v2543 = vpop.f32.mrb[0].mxu0
    %v2544 = vadd.f32 0.0, %v2543
    %v2545 = vpop.f32.mrb[0].mxu0
    %v2546 = vpop.f32.mrb[0].mxu0
    %v2547 = vadd.f32 0.0, %v2546
    %v2548 = vpop.f32.mrb[0].mxu0
    %2549 = vmatprep.mubr.bf16.mxu0 0
    %2550 = vmatmul.mubr.bf16.gmra.mrb[0].mxu0 %v1327
    %v2551 = vpop.f32.mrb[0].mxu0
    %v2552 = vadd.f32 0.0, %v2551
    %v2553 = vpop.f32.mrb[0].mxu0
    %v2554 = vpop.f32.mrb[0].mxu0
    %v2555 = vadd.f32 0.0, %v2554
    %v2556 = vpop.f32.mrb[0].mxu0
    %2557 = vmatprep.mubr.bf16.mxu0 0
    %2558 = vmatmul.mubr.bf16.gmra.mrb[0].mxu0 %v1330
    %v2559 = vpop.f32.mrb[0].mxu0
    %v2560 = vadd.f32 0.0, %v2559
    %v2561 = vpop.f32.mrb[0].mxu0
    %v2562 = vpop.f32.mrb[0].mxu0
    %v2563 = vadd.f32 0.0, %v2562
    %v2564 = vpop.f32.mrb[0].mxu0
    %2565 = vmatprep.mubr.bf16.mxu0 0
    %2566 = vmatmul.mubr.bf16.gmra.mrb[0].mxu0 %v1333
    %v2567 = vpop.f32.mrb[0].mxu0
    %v2568 = vadd.f32 0.0, %v2567
    %v2569 = vpop.f32.mrb[0].mxu0
    %v2570 = vpop.f32.mrb[0].mxu0
    %v2571 = vadd.f32 0.0, %v2570
    %v2572 = vpop.f32.mrb[0].mxu0
    %2573 = vmatprep.mubr.bf16.mxu0 0
    %2574 = vmatmul.mubr.bf16.gmra.mrb[0].mxu0 %v1336
    %v2575 = vpop.f32.mrb[0].mxu0
    %v2576 = vadd.f32 0.0, %v2575
    %v2577 = vpop.f32.mrb[0].mxu0
    %v2578 = vpop.f32.mrb[0].mxu0
    %v2579 = vadd.f32 0.0, %v2578
    %v2580 = vpop.f32.mrb[0].mxu0
    %2581 = vmatprep.mubr.bf16.mxu0 0
    %2582 = vmatmul.mubr.bf16.gmra.mrb[0].mxu0 %v1339
    %v2583 = vpop.f32.mrb[0].mxu0
    %v2584 = vadd.f32 0.0, %v2583
    %v2585 = vpop.f32.mrb[0].mxu0
    %v2586 = vpop.f32.mrb[0].mxu0
    %v2587 = vadd.f32 0.0, %v2586
    %v2588 = vpop.f32.mrb[0].mxu0
    %2589 = vmatprep.mubr.bf16.mxu0 0
    %2590 = vmatmul.mubr.bf16.gmra.mrb[0].mxu0 %v1342
    %v2591 = vpop.f32.mrb[0].mxu0
    %v2592 = vadd.f32 0.0, %v2591
    %v2593 = vpop.f32.mrb[0].mxu0
    %v2594 = vpop.f32.mrb[0].mxu0
    %v2595 = vadd.f32 0.0, %v2594
    %v2596 = vpop.f32.mrb[0].mxu0
    %2597 = vmatprep.mubr.bf16.mxu0 0
    %2598 = vmatmul.mubr.bf16.gmra.mrb[0].mxu0 %v1345
    %v2599 = vpop.f32.mrb[0].mxu0
    %v2600 = vadd.f32 0.0, %v2599
    %v2601 = vpop.f32.mrb[0].mxu0
    %v2602 = vpop.f32.mrb[0].mxu0
    %v2603 = vadd.f32 0.0, %v2602
    %v2604 = vpop.f32.mrb[0].mxu0
    %2605 = vmatprep.mubr.bf16.mxu0 0
    %2606 = vmatmul.mubr.bf16.gmra.mrb[0].mxu0 %v1826
    %v2607 = vpop.f32.mrb[0].mxu0
    %v2608 = vadd.f32 0.0, %v2607
    %v2609 = vpop.f32.mrb[0].mxu0
    %v2610 = vpop.f32.mrb[0].mxu0
    %v2611 = vadd.f32 0.0, %v2610
    %v2612 = vpop.f32.mrb[0].mxu0
    %2613 = vmatprep.mubr.bf16.mxu0 0
    %2614 = vmatmul.mubr.bf16.gmra.mrb[0].mxu0 %v2456
    %v2615 = vpop.f32.mrb[0].mxu0
    %v2616 = vadd.f32 0.0, %v2615
    %v2617 = vpop.f32.mrb[0].mxu0
    %v2618 = vpop.f32.mrb[0].mxu0
    %v2619 = vadd.f32 0.0, %v2618
    %v2620 = vpop.f32.mrb[0].mxu0
    %2621 = vdwg.mxu0
    %v2622 = vadd.f32 %v2421, %v2496
    %v2623 = vadd.f32 %v2422, %v2499
    %v2624 = vadd.f32 %v2423, %v2504
    %v2625 = vadd.f32 %v2424, %v2507
    %v2626 = vadd.f32 %v2425, %v2512
    %v2627 = vadd.f32 %v2426, %v2515
    %v2628 = vadd.f32 %v2427, %v2520
    %v2629 = vadd.f32 %v2428, %v2523
    %v2630 = vadd.f32 %v2429, %v2528
    %v2631 = vadd.f32 %v2430, %v2531
    %v2632 = vadd.f32 %v2431, %v2536
    %v2633 = vadd.f32 %v2432, %v2539
    %v2634 = vadd.f32 %v2433, %v2544
    %v2635 = vadd.f32 %v2434, %v2547
    %v2636 = vadd.f32 %v2435, %v2552
    %v2637 = vadd.f32 %v2436, %v2555
    %v2638 = vadd.f32 %v2437, %v2560
    %v2639 = vadd.f32 %v2438, %v2563
    %v2640 = vadd.f32 %v2439, %v2568
    %v2641 = vadd.f32 %v2440, %v2571
    %v2642 = vadd.f32 %v2441, %v2576
    %v2643 = vadd.f32 %v2442, %v2579
    %v2644 = vadd.f32 %v2443, %v2584
    %v2645 = vadd.f32 %v2444, %v2587
    %v2646 = vadd.f32 %v2445, %v2592
    %v2647 = vadd.f32 %v2446, %v2595
    %v2648 = vadd.f32 %v2447, %v2600
    %v2649 = vadd.f32 %v2448, %v2603
    %v2650 = vadd.f32 %v2449, %v2608
    %v2651 = vadd.f32 %v2450, %v2611
    %v2652 = vadd.f32 %v2451, %v2616
    %v2653 = vadd.f32 %v2452, %v2619
    %v2654 = vpack.c.bf16 0.0, %v658
    %v2655 = vld [vmem:[%s7 + $0x1c] sm:$0xf]
    %v2657 = vshll.u32 %v2654, 16
    %v2659 = vrot.slane %v2657, 1
    %v2660 = vsel %vm953, %v2034, %v2659
    %v2661 = vshrl.u32 %v2654, 16
    %v2663 = vor.u32 %v2661, %v2659
    %v2664 = vsel %vm953, %v2663, %v959
    %v2666 = vsel %vm1086, %v2660, 0
    %v2669 = vsel %vm1086, %v2664, 0
    %v2672 = vsel %vm1135, %v2655, 0
    %2674 = vmatprep.subr.bf16.mxu0 0
    %2675 = vmatpush1.bf16.msra.mxu0 %v2672
    %2676 = vmatprep.subr.bf16.mxu0 0
    %2677 = vmatpush1.bf16.msra.mxu0 0
    %2678 = vmatprep.subr.bf16.mxu0 0
    %2679 = vmatpush1.bf16.msra.mxu0 0
    %2680 = vmatprep.subr.bf16.mxu0 0
    %2681 = vmatpush1.bf16.msra.mxu0 0
    %2682 = vmatprep.subr.bf16.mxu0 0
    %2683 = vmatpush1.bf16.msra.mxu0 0
    %2684 = vmatprep.subr.bf16.mxu0 0
    %2685 = vmatpush1.bf16.msra.mxu0 0
    %2686 = vmatprep.subr.bf16.mxu0 0
    %2687 = vmatpush1.bf16.msra.mxu0 0
    %2688 = vmatprep.subr.bf16.mxu0 0
    %2689 = vmatpush1.bf16.msra.mxu0 0
    %2690 = vmatprep.subr.bf16.mxu0 0
    %2691 = vmatpush1.bf16.msra.mxu0 0
    %2692 = vmatprep.subr.bf16.mxu0 0
    %2693 = vmatpush1.bf16.msra.mxu0 0
    %2694 = vmatprep.subr.bf16.mxu0 0
    %2695 = vmatpush1.bf16.msra.mxu0 0
    %2696 = vmatprep.subr.bf16.mxu0 0
    %2697 = vmatpush1.bf16.msra.mxu0 0
    %2698 = vmatprep.subr.bf16.mxu0 0
    %2699 = vmatpush1.bf16.msra.mxu0 0
    %2700 = vmatprep.subr.bf16.mxu0 0
    %2701 = vmatpush1.bf16.msra.mxu0 0
    %2702 = vmatprep.subr.bf16.mxu0 0
    %2703 = vmatpush1.bf16.msra.mxu0 0
    %2704 = vmatprep.subr.bf16.mxu0 0
    %2705 = vmatpush1.bf16.msra.mxu0 0
    %2706 = vmatprep.mubr.bf16.mxu0 0
    %2707 = vmatmul.mubr.bf16.gmra.mrb[0].mxu0 %v1094
    %v2708 = vpop.f32.mrb[0].mxu0
    %v2709 = vadd.f32 0.0, %v2708
    %v2710 = vpop.f32.mrb[0].mxu0
    %v2711 = vpop.f32.mrb[0].mxu0
    %v2712 = vadd.f32 0.0, %v2711
    %v2713 = vpop.f32.mrb[0].mxu0
    %2714 = vmatprep.mubr.bf16.mxu0 0
    %2715 = vmatmul.mubr.bf16.gmra.mrb[0].mxu0 %v1097
    %v2716 = vpop.f32.mrb[0].mxu0
    %v2717 = vadd.f32 0.0, %v2716
    %v2718 = vpop.f32.mrb[0].mxu0
    %v2719 = vpop.f32.mrb[0].mxu0
    %v2720 = vadd.f32 0.0, %v2719
    %v2721 = vpop.f32.mrb[0].mxu0
    %2722 = vmatprep.mubr.bf16.mxu0 0
    %2723 = vmatmul.mubr.bf16.gmra.mrb[0].mxu0 %v1100
    %v2724 = vpop.f32.mrb[0].mxu0
    %v2725 = vadd.f32 0.0, %v2724
    %v2726 = vpop.f32.mrb[0].mxu0
    %v2727 = vpop.f32.mrb[0].mxu0
    %v2728 = vadd.f32 0.0, %v2727
    %v2729 = vpop.f32.mrb[0].mxu0
    %2730 = vmatprep.mubr.bf16.mxu0 0
    %2731 = vmatmul.mubr.bf16.gmra.mrb[0].mxu0 %v1103
    %v2732 = vpop.f32.mrb[0].mxu0
    %v2733 = vadd.f32 0.0, %v2732
    %v2734 = vpop.f32.mrb[0].mxu0
    %v2735 = vpop.f32.mrb[0].mxu0
    %v2736 = vadd.f32 0.0, %v2735
    %v2737 = vpop.f32.mrb[0].mxu0
    %2738 = vmatprep.mubr.bf16.mxu0 0
    %2739 = vmatmul.mubr.bf16.gmra.mrb[0].mxu0 %v1106
    %v2740 = vpop.f32.mrb[0].mxu0
    %v2741 = vadd.f32 0.0, %v2740
    %v2742 = vpop.f32.mrb[0].mxu0
    %v2743 = vpop.f32.mrb[0].mxu0
    %v2744 = vadd.f32 0.0, %v2743
    %v2745 = vpop.f32.mrb[0].mxu0
    %2746 = vmatprep.mubr.bf16.mxu0 0
    %2747 = vmatmul.mubr.bf16.gmra.mrb[0].mxu0 %v1109
    %v2748 = vpop.f32.mrb[0].mxu0
    %v2749 = vadd.f32 0.0, %v2748
    %v2750 = vpop.f32.mrb[0].mxu0
    %v2751 = vpop.f32.mrb[0].mxu0
    %v2752 = vadd.f32 0.0, %v2751
    %v2753 = vpop.f32.mrb[0].mxu0
    %2754 = vmatprep.mubr.bf16.mxu0 0
    %2755 = vmatmul.mubr.bf16.gmra.mrb[0].mxu0 %v1112
    %v2756 = vpop.f32.mrb[0].mxu0
    %v2757 = vadd.f32 0.0, %v2756
    %v2758 = vpop.f32.mrb[0].mxu0
    %v2759 = vpop.f32.mrb[0].mxu0
    %v2760 = vadd.f32 0.0, %v2759
    %v2761 = vpop.f32.mrb[0].mxu0
    %2762 = vmatprep.mubr.bf16.mxu0 0
    %2763 = vmatmul.mubr.bf16.gmra.mrb[0].mxu0 %v1115
    %v2764 = vpop.f32.mrb[0].mxu0
    %v2765 = vadd.f32 0.0, %v2764
    %v2766 = vpop.f32.mrb[0].mxu0
    %v2767 = vpop.f32.mrb[0].mxu0
    %v2768 = vadd.f32 0.0, %v2767
    %v2769 = vpop.f32.mrb[0].mxu0
    %2770 = vmatprep.mubr.bf16.mxu0 0
    %2771 = vmatmul.mubr.bf16.gmra.mrb[0].mxu0 %v1118
    %v2772 = vpop.f32.mrb[0].mxu0
    %v2773 = vadd.f32 0.0, %v2772
    %v2774 = vpop.f32.mrb[0].mxu0
    %v2775 = vpop.f32.mrb[0].mxu0
    %v2776 = vadd.f32 0.0, %v2775
    %v2777 = vpop.f32.mrb[0].mxu0
    %2778 = vmatprep.mubr.bf16.mxu0 0
    %2779 = vmatmul.mubr.bf16.gmra.mrb[0].mxu0 %v1121
    %v2780 = vpop.f32.mrb[0].mxu0
    %v2781 = vadd.f32 0.0, %v2780
    %v2782 = vpop.f32.mrb[0].mxu0
    %v2783 = vpop.f32.mrb[0].mxu0
    %v2784 = vadd.f32 0.0, %v2783
    %v2785 = vpop.f32.mrb[0].mxu0
    %2786 = vmatprep.mubr.bf16.mxu0 0
    %2787 = vmatmul.mubr.bf16.gmra.mrb[0].mxu0 %v1124
    %v2788 = vpop.f32.mrb[0].mxu0
    %v2789 = vadd.f32 0.0, %v2788
    %v2790 = vpop.f32.mrb[0].mxu0
    %v2791 = vpop.f32.mrb[0].mxu0
    %v2792 = vadd.f32 0.0, %v2791
    %v2793 = vpop.f32.mrb[0].mxu0
    %2794 = vmatprep.mubr.bf16.mxu0 0
    %2795 = vmatmul.mubr.bf16.gmra.mrb[0].mxu0 %v1127
    %v2796 = vpop.f32.mrb[0].mxu0
    %v2797 = vadd.f32 0.0, %v2796
    %v2798 = vpop.f32.mrb[0].mxu0
    %v2799 = vpop.f32.mrb[0].mxu0
    %v2800 = vadd.f32 0.0, %v2799
    %v2801 = vpop.f32.mrb[0].mxu0
    %2802 = vmatprep.mubr.bf16.mxu0 0
    %2803 = vmatmul.mubr.bf16.gmra.mrb[0].mxu0 %v1130
    %v2804 = vpop.f32.mrb[0].mxu0
    %v2805 = vadd.f32 0.0, %v2804
    %v2806 = vpop.f32.mrb[0].mxu0
    %v2807 = vpop.f32.mrb[0].mxu0
    %v2808 = vadd.f32 0.0, %v2807
    %v2809 = vpop.f32.mrb[0].mxu0
    %2810 = vmatprep.mubr.bf16.mxu0 0
    %2811 = vmatmul.mubr.bf16.gmra.mrb[0].mxu0 %v2041
    %v2812 = vpop.f32.mrb[0].mxu0
    %v2813 = vadd.f32 0.0, %v2812
    %v2814 = vpop.f32.mrb[0].mxu0
    %v2815 = vpop.f32.mrb[0].mxu0
    %v2816 = vadd.f32 0.0, %v2815
    %v2817 = vpop.f32.mrb[0].mxu0
    %2818 = vmatprep.mubr.bf16.mxu0 0
    %2819 = vmatmul.mubr.bf16.gmra.mrb[0].mxu0 %v2666
    %v2820 = vpop.f32.mrb[0].mxu0
    %v2821 = vadd.f32 0.0, %v2820
    %v2822 = vpop.f32.mrb[0].mxu0
    %v2823 = vpop.f32.mrb[0].mxu0
    %v2824 = vadd.f32 0.0, %v2823
    %v2825 = vpop.f32.mrb[0].mxu0
    %2826 = vmatprep.mubr.bf16.mxu0 0
    %2827 = vmatmul.mubr.bf16.gmra.mrb[0].mxu0 %v2669
    %v2828 = vpop.f32.mrb[0].mxu0
    %v2829 = vadd.f32 0.0, %v2828
    %v2830 = vpop.f32.mrb[0].mxu0
    %v2831 = vpop.f32.mrb[0].mxu0
    %v2832 = vadd.f32 0.0, %v2831
    %v2833 = vpop.f32.mrb[0].mxu0
    %2834 = vdwg.mxu0
    %v2835 = vadd.f32 %v2622, %v2709
    %v2836 = vadd.f32 %v2623, %v2712
    %v2837 = vadd.f32 %v2624, %v2717
    %v2838 = vadd.f32 %v2625, %v2720
    %v2839 = vadd.f32 %v2626, %v2725
    %v2840 = vadd.f32 %v2627, %v2728
    %v2841 = vadd.f32 %v2628, %v2733
    %v2842 = vadd.f32 %v2629, %v2736
    %v2843 = vadd.f32 %v2630, %v2741
    %v2844 = vadd.f32 %v2631, %v2744
    %v2845 = vadd.f32 %v2632, %v2749
    %v2846 = vadd.f32 %v2633, %v2752
    %v2847 = vadd.f32 %v2634, %v2757
    %v2848 = vadd.f32 %v2635, %v2760
    %v2849 = vadd.f32 %v2636, %v2765
    %v2850 = vadd.f32 %v2637, %v2768
    %v2851 = vadd.f32 %v2638, %v2773
    %v2852 = vadd.f32 %v2639, %v2776
    %v2853 = vadd.f32 %v2640, %v2781
    %v2854 = vadd.f32 %v2641, %v2784
    %v2855 = vadd.f32 %v2642, %v2789
    %v2856 = vadd.f32 %v2643, %v2792
    %v2857 = vadd.f32 %v2644, %v2797
    %v2858 = vadd.f32 %v2645, %v2800
    %v2859 = vadd.f32 %v2646, %v2805
    %v2860 = vadd.f32 %v2647, %v2808
    %v2861 = vadd.f32 %v2648, %v2813
    %v2862 = vadd.f32 %v2649, %v2816
    %v2863 = vadd.f32 %v2650, %v2821
    %v2864 = vadd.f32 %v2651, %v2824
    %v2865 = vadd.f32 %v2652, %v2829
    %v2866 = vadd.f32 %v2653, %v2832
    %v2867 = vpack.c.bf16 0.0, %v788
    %v2868 = vld [vmem:[%s7 + $0x20] sm:$0xf]
    %v2870 = vrot.slane %v2867, 1
    %v2871 = vsel %vm1545, %v2247, %v2870
    %v2872 = vsel %vm1545, %v2870, %v1546
    %v2874 = vsel %vm1086, %v2871, 0
    %v2877 = vsel %vm1086, %v2872, 0
    %v2880 = vsel %vm1135, %v2868, 0
    %2882 = vmatprep.subr.bf16.mxu0 0
    %2883 = vmatpush1.bf16.msra.mxu0 %v2880
    %2884 = vmatprep.subr.bf16.mxu0 0
    %2885 = vmatpush1.bf16.msra.mxu0 0
    %2886 = vmatprep.subr.bf16.mxu0 0
    %2887 = vmatpush1.bf16.msra.mxu0 0
    %2888 = vmatprep.subr.bf16.mxu0 0
    %2889 = vmatpush1.bf16.msra.mxu0 0
    %2890 = vmatprep.subr.bf16.mxu0 0
    %2891 = vmatpush1.bf16.msra.mxu0 0
    %2892 = vmatprep.subr.bf16.mxu0 0
    %2893 = vmatpush1.bf16.msra.mxu0 0
    %2894 = vmatprep.subr.bf16.mxu0 0
    %2895 = vmatpush1.bf16.msra.mxu0 0
    %2896 = vmatprep.subr.bf16.mxu0 0
    %2897 = vmatpush1.bf16.msra.mxu0 0
    %2898 = vmatprep.subr.bf16.mxu0 0
    %2899 = vmatpush1.bf16.msra.mxu0 0
    %2900 = vmatprep.subr.bf16.mxu0 0
    %2901 = vmatpush1.bf16.msra.mxu0 0
    %2902 = vmatprep.subr.bf16.mxu0 0
    %2903 = vmatpush1.bf16.msra.mxu0 0
    %2904 = vmatprep.subr.bf16.mxu0 0
    %2905 = vmatpush1.bf16.msra.mxu0 0
    %2906 = vmatprep.subr.bf16.mxu0 0
    %2907 = vmatpush1.bf16.msra.mxu0 0
    %2908 = vmatprep.subr.bf16.mxu0 0
    %2909 = vmatpush1.bf16.msra.mxu0 0
    %2910 = vmatprep.subr.bf16.mxu0 0
    %2911 = vmatpush1.bf16.msra.mxu0 0
    %2912 = vmatprep.subr.bf16.mxu0 0
    %2913 = vmatpush1.bf16.msra.mxu0 0
    %2914 = vmatprep.mubr.bf16.mxu0 0
    %2915 = vmatmul.mubr.bf16.gmra.mrb[0].mxu0 %v1586
    %v2916 = vpop.f32.mrb[0].mxu0
    %v2917 = vadd.f32 0.0, %v2916
    %v2918 = vpop.f32.mrb[0].mxu0
    %v2919 = vpop.f32.mrb[0].mxu0
    %v2920 = vadd.f32 0.0, %v2919
    %v2921 = vpop.f32.mrb[0].mxu0
    %2922 = vmatprep.mubr.bf16.mxu0 0
    %2923 = vmatmul.mubr.bf16.gmra.mrb[0].mxu0 %v1589
    %v2924 = vpop.f32.mrb[0].mxu0
    %v2925 = vadd.f32 0.0, %v2924
    %v2926 = vpop.f32.mrb[0].mxu0
    %v2927 = vpop.f32.mrb[0].mxu0
    %v2928 = vadd.f32 0.0, %v2927
    %v2929 = vpop.f32.mrb[0].mxu0
    %2930 = vmatprep.mubr.bf16.mxu0 0
    %2931 = vmatmul.mubr.bf16.gmra.mrb[0].mxu0 %v1592
    %v2932 = vpop.f32.mrb[0].mxu0
    %v2933 = vadd.f32 0.0, %v2932
    %v2934 = vpop.f32.mrb[0].mxu0
    %v2935 = vpop.f32.mrb[0].mxu0
    %v2936 = vadd.f32 0.0, %v2935
    %v2937 = vpop.f32.mrb[0].mxu0
    %2938 = vmatprep.mubr.bf16.mxu0 0
    %2939 = vmatmul.mubr.bf16.gmra.mrb[0].mxu0 %v1595
    %v2940 = vpop.f32.mrb[0].mxu0
    %v2941 = vadd.f32 0.0, %v2940
    %v2942 = vpop.f32.mrb[0].mxu0
    %v2943 = vpop.f32.mrb[0].mxu0
    %v2944 = vadd.f32 0.0, %v2943
    %v2945 = vpop.f32.mrb[0].mxu0
    %2946 = vmatprep.mubr.bf16.mxu0 0
    %2947 = vmatmul.mubr.bf16.gmra.mrb[0].mxu0 %v1598
    %v2948 = vpop.f32.mrb[0].mxu0
    %v2949 = vadd.f32 0.0, %v2948
    %v2950 = vpop.f32.mrb[0].mxu0
    %v2951 = vpop.f32.mrb[0].mxu0
    %v2952 = vadd.f32 0.0, %v2951
    %v2953 = vpop.f32.mrb[0].mxu0
    %2954 = vmatprep.mubr.bf16.mxu0 0
    %2955 = vmatmul.mubr.bf16.gmra.mrb[0].mxu0 %v1601
    %v2956 = vpop.f32.mrb[0].mxu0
    %v2957 = vadd.f32 0.0, %v2956
    %v2958 = vpop.f32.mrb[0].mxu0
    %v2959 = vpop.f32.mrb[0].mxu0
    %v2960 = vadd.f32 0.0, %v2959
    %v2961 = vpop.f32.mrb[0].mxu0
    %2962 = vmatprep.mubr.bf16.mxu0 0
    %2963 = vmatmul.mubr.bf16.gmra.mrb[0].mxu0 %v1604
    %v2964 = vpop.f32.mrb[0].mxu0
    %v2965 = vadd.f32 0.0, %v2964
    %v2966 = vpop.f32.mrb[0].mxu0
    %v2967 = vpop.f32.mrb[0].mxu0
    %v2968 = vadd.f32 0.0, %v2967
    %v2969 = vpop.f32.mrb[0].mxu0
    %2970 = vmatprep.mubr.bf16.mxu0 0
    %2971 = vmatmul.mubr.bf16.gmra.mrb[0].mxu0 %v1607
    %v2972 = vpop.f32.mrb[0].mxu0
    %v2973 = vadd.f32 0.0, %v2972
    %v2974 = vpop.f32.mrb[0].mxu0
    %v2975 = vpop.f32.mrb[0].mxu0
    %v2976 = vadd.f32 0.0, %v2975
    %v2977 = vpop.f32.mrb[0].mxu0
    %2978 = vmatprep.mubr.bf16.mxu0 0
    %2979 = vmatmul.mubr.bf16.gmra.mrb[0].mxu0 %v1610
    %v2980 = vpop.f32.mrb[0].mxu0
    %v2981 = vadd.f32 0.0, %v2980
    %v2982 = vpop.f32.mrb[0].mxu0
    %v2983 = vpop.f32.mrb[0].mxu0
    %v2984 = vadd.f32 0.0, %v2983
    %v2985 = vpop.f32.mrb[0].mxu0
    %2986 = vmatprep.mubr.bf16.mxu0 0
    %2987 = vmatmul.mubr.bf16.gmra.mrb[0].mxu0 %v1613
    %v2988 = vpop.f32.mrb[0].mxu0
    %v2989 = vadd.f32 0.0, %v2988
    %v2990 = vpop.f32.mrb[0].mxu0
    %v2991 = vpop.f32.mrb[0].mxu0
    %v2992 = vadd.f32 0.0, %v2991
    %v2993 = vpop.f32.mrb[0].mxu0
    %2994 = vmatprep.mubr.bf16.mxu0 0
    %2995 = vmatmul.mubr.bf16.gmra.mrb[0].mxu0 %v1616
    %v2996 = vpop.f32.mrb[0].mxu0
    %v2997 = vadd.f32 0.0, %v2996
    %v2998 = vpop.f32.mrb[0].mxu0
    %v2999 = vpop.f32.mrb[0].mxu0
    %v3000 = vadd.f32 0.0, %v2999
    %v3001 = vpop.f32.mrb[0].mxu0
    %3002 = vmatprep.mubr.bf16.mxu0 0
    %3003 = vmatmul.mubr.bf16.gmra.mrb[0].mxu0 %v1619
    %v3004 = vpop.f32.mrb[0].mxu0
    %v3005 = vadd.f32 0.0, %v3004
    %v3006 = vpop.f32.mrb[0].mxu0
    %v3007 = vpop.f32.mrb[0].mxu0
    %v3008 = vadd.f32 0.0, %v3007
    %v3009 = vpop.f32.mrb[0].mxu0
    %3010 = vmatprep.mubr.bf16.mxu0 0
    %3011 = vmatmul.mubr.bf16.gmra.mrb[0].mxu0 %v1622
    %v3012 = vpop.f32.mrb[0].mxu0
    %v3013 = vadd.f32 0.0, %v3012
    %v3014 = vpop.f32.mrb[0].mxu0
    %v3015 = vpop.f32.mrb[0].mxu0
    %v3016 = vadd.f32 0.0, %v3015
    %v3017 = vpop.f32.mrb[0].mxu0
    %3018 = vmatprep.mubr.bf16.mxu0 0
    %3019 = vmatmul.mubr.bf16.gmra.mrb[0].mxu0 %v2252
    %v3020 = vpop.f32.mrb[0].mxu0
    %v3021 = vadd.f32 0.0, %v3020
    %v3022 = vpop.f32.mrb[0].mxu0
    %v3023 = vpop.f32.mrb[0].mxu0
    %v3024 = vadd.f32 0.0, %v3023
    %v3025 = vpop.f32.mrb[0].mxu0
    %3026 = vmatprep.mubr.bf16.mxu0 0
    %3027 = vmatmul.mubr.bf16.gmra.mrb[0].mxu0 %v2874
    %v3028 = vpop.f32.mrb[0].mxu0
    %v3029 = vadd.f32 0.0, %v3028
    %v3030 = vpop.f32.mrb[0].mxu0
    %v3031 = vpop.f32.mrb[0].mxu0
    %v3032 = vadd.f32 0.0, %v3031
    %v3033 = vpop.f32.mrb[0].mxu0
    %3034 = vmatprep.mubr.bf16.mxu0 0
    %3035 = vmatmul.mubr.bf16.gmra.mrb[0].mxu0 %v2877
    %v3036 = vpop.f32.mrb[0].mxu0
    %v3037 = vadd.f32 0.0, %v3036
    %v3038 = vpop.f32.mrb[0].mxu0
    %v3039 = vpop.f32.mrb[0].mxu0
    %v3040 = vadd.f32 0.0, %v3039
    %v3041 = vpop.f32.mrb[0].mxu0
    %3042 = vdwg.mxu0
    %v3043 = vadd.f32 %v2835, %v2917
    %v3044 = vadd.f32 %v2836, %v2920
    %v3045 = vadd.f32 %v2837, %v2925
    %v3046 = vadd.f32 %v2838, %v2928
    %v3047 = vadd.f32 %v2839, %v2933
    %v3048 = vadd.f32 %v2840, %v2936
    %v3049 = vadd.f32 %v2841, %v2941
    %v3050 = vadd.f32 %v2842, %v2944
    %v3051 = vadd.f32 %v2843, %v2949
    %v3052 = vadd.f32 %v2844, %v2952
    %v3053 = vadd.f32 %v2845, %v2957
    %v3054 = vadd.f32 %v2846, %v2960
    %v3055 = vadd.f32 %v2847, %v2965
    %v3056 = vadd.f32 %v2848, %v2968
    %v3057 = vadd.f32 %v2849, %v2973
    %v3058 = vadd.f32 %v2850, %v2976
    %v3059 = vadd.f32 %v2851, %v2981
    %v3060 = vadd.f32 %v2852, %v2984
    %v3061 = vadd.f32 %v2853, %v2989
    %v3062 = vadd.f32 %v2854, %v2992
    %v3063 = vadd.f32 %v2855, %v2997
    %v3064 = vadd.f32 %v2856, %v3000
    %v3065 = vadd.f32 %v2857, %v3005
    %v3066 = vadd.f32 %v2858, %v3008
    %v3067 = vadd.f32 %v2859, %v3013
    %v3068 = vadd.f32 %v2860, %v3016
    %v3069 = vadd.f32 %v2861, %v3021
    %v3070 = vadd.f32 %v2862, %v3024
    %v3071 = vadd.f32 %v2863, %v3029
    %v3072 = vadd.f32 %v2864, %v3032
    %v3073 = vadd.f32 %v2865, %v3037
    %v3074 = vadd.f32 %v2866, %v3040
    %v3075 = vld [vmem:[%s8] sm:$0x1]
    %v3077 = vlaneseq
    %v3078 = vshrl.u32 %v3077, 7
    %v3079 = vsub.s32 0, %v3078
    %v3080 = vrot.slane %v3075, %v3079
    %v3082 = vadd.f32 %v3043, %v3080
    %v3083 = vadd.f32 %v3044, %v3080
    %v3084 = vadd.f32 %v3045, %v3080
    %v3085 = vadd.f32 %v3046, %v3080
    %v3086 = vadd.f32 %v3047, %v3080
    %v3087 = vadd.f32 %v3048, %v3080
    %v3088 = vadd.f32 %v3049, %v3080
    %v3089 = vadd.f32 %v3050, %v3080
    %v3090 = vadd.f32 %v3051, %v3080
    %v3091 = vadd.f32 %v3052, %v3080
    %v3092 = vadd.f32 %v3053, %v3080
    %v3093 = vadd.f32 %v3054, %v3080
    %v3094 = vadd.f32 %v3055, %v3080
    %v3095 = vadd.f32 %v3056, %v3080
    %v3096 = vadd.f32 %v3057, %v3080
    %v3097 = vadd.f32 %v3058, %v3080
    %v3098 = vadd.f32 %v3059, %v3080
    %v3099 = vadd.f32 %v3060, %v3080
    %v3100 = vadd.f32 %v3061, %v3080
    %v3101 = vadd.f32 %v3062, %v3080
    %v3102 = vadd.f32 %v3063, %v3080
    %v3103 = vadd.f32 %v3064, %v3080
    %v3104 = vadd.f32 %v3065, %v3080
    %v3105 = vadd.f32 %v3066, %v3080
    %v3106 = vadd.f32 %v3067, %v3080
    %v3107 = vadd.f32 %v3068, %v3080
    %v3108 = vadd.f32 %v3069, %v3080
    %v3109 = vadd.f32 %v3070, %v3080
    %v3110 = vadd.f32 %v3071, %v3080
    %v3111 = vadd.f32 %v3072, %v3080
    %v3112 = vadd.f32 %v3073, %v3080
    %v3113 = vadd.f32 %v3074, %v3080
    %v3114 = vmax.f32 %v3082, 0.0
    %v3115 = vmax.f32 %v3083, 0.0
    %v3116 = vmax.f32 %v3084, 0.0
    %v3117 = vmax.f32 %v3085, 0.0
    %v3118 = vmax.f32 %v3086, 0.0
    %v3119 = vmax.f32 %v3087, 0.0
    %v3120 = vmax.f32 %v3088, 0.0
    %v3121 = vmax.f32 %v3089, 0.0
    %v3122 = vmax.f32 %v3090, 0.0
    %v3123 = vmax.f32 %v3091, 0.0
    %v3124 = vmax.f32 %v3092, 0.0
    %v3125 = vmax.f32 %v3093, 0.0
    %v3126 = vmax.f32 %v3094, 0.0
    %v3127 = vmax.f32 %v3095, 0.0
    %v3128 = vmax.f32 %v3096, 0.0
    %v3129 = vmax.f32 %v3097, 0.0
    %v3130 = vmax.f32 %v3098, 0.0
    %v3131 = vmax.f32 %v3099, 0.0
    %v3132 = vmax.f32 %v3100, 0.0
    %v3133 = vmax.f32 %v3101, 0.0
    %v3134 = vmax.f32 %v3102, 0.0
    %v3135 = vmax.f32 %v3103, 0.0
    %v3136 = vmax.f32 %v3104, 0.0
    %v3137 = vmax.f32 %v3105, 0.0
    %v3138 = vmax.f32 %v3106, 0.0
    %v3139 = vmax.f32 %v3107, 0.0
    %v3140 = vmax.f32 %v3108, 0.0
    %v3141 = vmax.f32 %v3109, 0.0
    %v3142 = vmax.f32 %v3110, 0.0
    %v3143 = vmax.f32 %v3111, 0.0
    %v3144 = vmax.f32 %v3112, 0.0
    %v3145 = vmax.f32 %v3113, 0.0
    %v3146 = vmul.f32 %v3114, %v179
    %v3147 = vmul.f32 %v3115, %v184
    %v3148 = vmul.f32 %v3116, %v189
    %v3149 = vmul.f32 %v3117, %v194
    %v3150 = vmul.f32 %v3118, %v199
    %v3151 = vmul.f32 %v3119, %v204
    %v3152 = vmul.f32 %v3120, %v209
    %v3153 = vmul.f32 %v3121, %v214
    %v3154 = vmul.f32 %v3122, %v219
    %v3155 = vmul.f32 %v3123, %v224
    %v3156 = vmul.f32 %v3124, %v229
    %v3157 = vmul.f32 %v3125, %v234
    %v3158 = vmul.f32 %v3126, %v239
    %v3159 = vmul.f32 %v3127, %v244
    %v3160 = vmul.f32 %v3128, %v249
    %v3161 = vmul.f32 %v3129, %v254
    %v3162 = vmul.f32 %v3130, %v259
    %v3163 = vmul.f32 %v3131, %v264
    %v3164 = vmul.f32 %v3132, %v269
    %v3165 = vmul.f32 %v3133, %v274
    %v3166 = vmul.f32 %v3134, %v279
    %v3167 = vmul.f32 %v3135, %v284
    %v3168 = vmul.f32 %v3136, %v289
    %v3169 = vmul.f32 %v3137, %v294
    %v3170 = vmul.f32 %v3138, %v299
    %v3171 = vmul.f32 %v3139, %v304
    %v3172 = vmul.f32 %v3140, %v309
    %v3173 = vmul.f32 %v3141, %v314
    %v3174 = vmul.f32 %v3142, %v319
    %v3175 = vmul.f32 %v3143, %v324
    %v3176 = vmul.f32 %v3144, %v329
    %v3177 = vmul.f32 %v3145, %v334
    %v3178 = vmul.f32 %v3114, %v370
    %v3179 = vmul.f32 %v3115, %v374
    %v3180 = vmul.f32 %v3116, %v378
    %v3181 = vmul.f32 %v3117, %v382
    %v3182 = vmul.f32 %v3118, %v386
    %v3183 = vmul.f32 %v3119, %v390
    %v3184 = vmul.f32 %v3120, %v394
    %v3185 = vmul.f32 %v3121, %v398
    %v3186 = vmul.f32 %v3122, %v402
    %v3187 = vmul.f32 %v3123, %v406
    %v3188 = vmul.f32 %v3124, %v410
    %v3189 = vmul.f32 %v3125, %v414
    %v3190 = vmul.f32 %v3126, %v418
    %v3191 = vmul.f32 %v3127, %v422
    %v3192 = vmul.f32 %v3128, %v426
    %v3193 = vmul.f32 %v3129, %v430
    %v3194 = vmul.f32 %v3130, %v434
    %v3195 = vmul.f32 %v3131, %v438
    %v3196 = vmul.f32 %v3132, %v442
    %v3197 = vmul.f32 %v3133, %v446
    %v3198 = vmul.f32 %v3134, %v450
    %v3199 = vmul.f32 %v3135, %v454
    %v3200 = vmul.f32 %v3136, %v458
    %v3201 = vmul.f32 %v3137, %v462
    %v3202 = vmul.f32 %v3138, %v466
    %v3203 = vmul.f32 %v3139, %v470
    %v3204 = vmul.f32 %v3140, %v474
    %v3205 = vmul.f32 %v3141, %v478
    %v3206 = vmul.f32 %v3142, %v482
    %v3207 = vmul.f32 %v3143, %v486
    %v3208 = vmul.f32 %v3144, %v490
    %v3209 = vmul.f32 %v3145, %v494
    %v3242 = vrot.slane %v3114, 7
    %v3243 = vrot.slane %v3115, 7
    %v3244 = vsel %vm560, %v3242, %v3243
    %v3245 = vrot.slane %v3116, 7
    %v3246 = vsel %vm560, %v3243, %v3245
    %v3247 = vrot.slane %v3117, 7
    %v3248 = vsel %vm560, %v3245, %v3247
    %v3249 = vrot.slane %v3118, 7
    %v3250 = vsel %vm560, %v3247, %v3249
    %v3251 = vrot.slane %v3119, 7
    %v3252 = vsel %vm560, %v3249, %v3251
    %v3253 = vrot.slane %v3120, 7
    %v3254 = vsel %vm560, %v3251, %v3253
    %v3255 = vrot.slane %v3121, 7
    %v3256 = vsel %vm560, %v3253, %v3255
    %v3257 = vrot.slane %v3122, 7
    %v3258 = vsel %vm560, %v3255, %v3257
    %v3259 = vrot.slane %v3123, 7
    %v3260 = vsel %vm560, %v3257, %v3259
    %v3261 = vrot.slane %v3124, 7
    %v3262 = vsel %vm560, %v3259, %v3261
    %v3263 = vrot.slane %v3125, 7
    %v3264 = vsel %vm560, %v3261, %v3263
    %v3265 = vrot.slane %v3126, 7
    %v3266 = vsel %vm560, %v3263, %v3265
    %v3267 = vrot.slane %v3127, 7
    %v3268 = vsel %vm560, %v3265, %v3267
    %v3269 = vrot.slane %v3128, 7
    %v3270 = vsel %vm560, %v3267, %v3269
    %v3271 = vrot.slane %v3129, 7
    %v3272 = vsel %vm560, %v3269, %v3271
    %v3273 = vrot.slane %v3130, 7
    %v3274 = vsel %vm560, %v3271, %v3273
    %v3275 = vrot.slane %v3131, 7
    %v3276 = vsel %vm560, %v3273, %v3275
    %v3277 = vrot.slane %v3132, 7
    %v3278 = vsel %vm560, %v3275, %v3277
    %v3279 = vrot.slane %v3133, 7
    %v3280 = vsel %vm560, %v3277, %v3279
    %v3281 = vrot.slane %v3134, 7
    %v3282 = vsel %vm560, %v3279, %v3281
    %v3283 = vrot.slane %v3135, 7
    %v3284 = vsel %vm560, %v3281, %v3283
    %v3285 = vrot.slane %v3136, 7
    %v3286 = vsel %vm560, %v3283, %v3285
    %v3287 = vrot.slane %v3137, 7
    %v3288 = vsel %vm560, %v3285, %v3287
    %v3289 = vrot.slane %v3138, 7
    %v3290 = vsel %vm560, %v3287, %v3289
    %v3291 = vrot.slane %v3139, 7
    %v3292 = vsel %vm560, %v3289, %v3291
    %v3293 = vrot.slane %v3140, 7
    %v3294 = vsel %vm560, %v3291, %v3293
    %v3295 = vrot.slane %v3141, 7
    %v3296 = vsel %vm560, %v3293, %v3295
    %v3297 = vrot.slane %v3142, 7
    %v3298 = vsel %vm560, %v3295, %v3297
    %v3299 = vrot.slane %v3143, 7
    %v3300 = vsel %vm560, %v3297, %v3299
    %v3301 = vrot.slane %v3144, 7
    %v3302 = vsel %vm560, %v3299, %v3301
    %v3303 = vrot.slane %v3145, 7
    %v3304 = vsel %vm560, %v3301, %v3303
    %v3338 = vsel %vm560, 0.0, %v3242
    %v3339 = vsel %vm560, %v3303, 0.0
    %v3372 = vrot.slane %v3146, 7
    %v3373 = vrot.slane %v3147, 7
    %v3374 = vsel %vm560, %v3372, %v3373
    %v3375 = vrot.slane %v3148, 7
    %v3376 = vsel %vm560, %v3373, %v3375
    %v3377 = vrot.slane %v3149, 7
    %v3378 = vsel %vm560, %v3375, %v3377
    %v3379 = vrot.slane %v3150, 7
    %v3380 = vsel %vm560, %v3377, %v3379
    %v3381 = vrot.slane %v3151, 7
    %v3382 = vsel %vm560, %v3379, %v3381
    %v3383 = vrot.slane %v3152, 7
    %v3384 = vsel %vm560, %v3381, %v3383
    %v3385 = vrot.slane %v3153, 7
    %v3386 = vsel %vm560, %v3383, %v3385
    %v3387 = vrot.slane %v3154, 7
    %v3388 = vsel %vm560, %v3385, %v3387
    %v3389 = vrot.slane %v3155, 7
    %v3390 = vsel %vm560, %v3387, %v3389
    %v3391 = vrot.slane %v3156, 7
    %v3392 = vsel %vm560, %v3389, %v3391
    %v3393 = vrot.slane %v3157, 7
    %v3394 = vsel %vm560, %v3391, %v3393
    %v3395 = vrot.slane %v3158, 7
    %v3396 = vsel %vm560, %v3393, %v3395
    %v3397 = vrot.slane %v3159, 7
    %v3398 = vsel %vm560, %v3395, %v3397
    %v3399 = vrot.slane %v3160, 7
    %v3400 = vsel %vm560, %v3397, %v3399
    %v3401 = vrot.slane %v3161, 7
    %v3402 = vsel %vm560, %v3399, %v3401
    %v3403 = vrot.slane %v3162, 7
    %v3404 = vsel %vm560, %v3401, %v3403
    %v3405 = vrot.slane %v3163, 7
    %v3406 = vsel %vm560, %v3403, %v3405
    %v3407 = vrot.slane %v3164, 7
    %v3408 = vsel %vm560, %v3405, %v3407
    %v3409 = vrot.slane %v3165, 7
    %v3410 = vsel %vm560, %v3407, %v3409
    %v3411 = vrot.slane %v3166, 7
    %v3412 = vsel %vm560, %v3409, %v3411
    %v3413 = vrot.slane %v3167, 7
    %v3414 = vsel %vm560, %v3411, %v3413
    %v3415 = vrot.slane %v3168, 7
    %v3416 = vsel %vm560, %v3413, %v3415
    %v3417 = vrot.slane %v3169, 7
    %v3418 = vsel %vm560, %v3415, %v3417
    %v3419 = vrot.slane %v3170, 7
    %v3420 = vsel %vm560, %v3417, %v3419
    %v3421 = vrot.slane %v3171, 7
    %v3422 = vsel %vm560, %v3419, %v3421
    %v3423 = vrot.slane %v3172, 7
    %v3424 = vsel %vm560, %v3421, %v3423
    %v3425 = vrot.slane %v3173, 7
    %v3426 = vsel %vm560, %v3423, %v3425
    %v3427 = vrot.slane %v3174, 7
    %v3428 = vsel %vm560, %v3425, %v3427
    %v3429 = vrot.slane %v3175, 7
    %v3430 = vsel %vm560, %v3427, %v3429
    %v3431 = vrot.slane %v3176, 7
    %v3432 = vsel %vm560, %v3429, %v3431
    %v3433 = vrot.slane %v3177, 7
    %v3434 = vsel %vm560, %v3431, %v3433
    %v3468 = vsel %vm560, 0.0, %v3372
    %v3469 = vsel %vm560, %v3433, 0.0
    %v3502 = vrot.slane %v3178, 7
    %v3503 = vrot.slane %v3179, 7
    %v3504 = vsel %vm560, %v3502, %v3503
    %v3505 = vrot.slane %v3180, 7
    %v3506 = vsel %vm560, %v3503, %v3505
    %v3507 = vrot.slane %v3181, 7
    %v3508 = vsel %vm560, %v3505, %v3507
    %v3509 = vrot.slane %v3182, 7
    %v3510 = vsel %vm560, %v3507, %v3509
    %v3511 = vrot.slane %v3183, 7
    %v3512 = vsel %vm560, %v3509, %v3511
    %v3513 = vrot.slane %v3184, 7
    %v3514 = vsel %vm560, %v3511, %v3513
    %v3515 = vrot.slane %v3185, 7
    %v3516 = vsel %vm560, %v3513, %v3515
    %v3517 = vrot.slane %v3186, 7
    %v3518 = vsel %vm560, %v3515, %v3517
    %v3519 = vrot.slane %v3187, 7
    %v3520 = vsel %vm560, %v3517, %v3519
    %v3521 = vrot.slane %v3188, 7
    %v3522 = vsel %vm560, %v3519, %v3521
    %v3523 = vrot.slane %v3189, 7
    %v3524 = vsel %vm560, %v3521, %v3523
    %v3525 = vrot.slane %v3190, 7
    %v3526 = vsel %vm560, %v3523, %v3525
    %v3527 = vrot.slane %v3191, 7
    %v3528 = vsel %vm560, %v3525, %v3527
    %v3529 = vrot.slane %v3192, 7
    %v3530 = vsel %vm560, %v3527, %v3529
    %v3531 = vrot.slane %v3193, 7
    %v3532 = vsel %vm560, %v3529, %v3531
    %v3533 = vrot.slane %v3194, 7
    %v3534 = vsel %vm560, %v3531, %v3533
    %v3535 = vrot.slane %v3195, 7
    %v3536 = vsel %vm560, %v3533, %v3535
    %v3537 = vrot.slane %v3196, 7
    %v3538 = vsel %vm560, %v3535, %v3537
    %v3539 = vrot.slane %v3197, 7
    %v3540 = vsel %vm560, %v3537, %v3539
    %v3541 = vrot.slane %v3198, 7
    %v3542 = vsel %vm560, %v3539, %v3541
    %v3543 = vrot.slane %v3199, 7
    %v3544 = vsel %vm560, %v3541, %v3543
    %v3545 = vrot.slane %v3200, 7
    %v3546 = vsel %vm560, %v3543, %v3545
    %v3547 = vrot.slane %v3201, 7
    %v3548 = vsel %vm560, %v3545, %v3547
    %v3549 = vrot.slane %v3202, 7
    %v3550 = vsel %vm560, %v3547, %v3549
    %v3551 = vrot.slane %v3203, 7
    %v3552 = vsel %vm560, %v3549, %v3551
    %v3553 = vrot.slane %v3204, 7
    %v3554 = vsel %vm560, %v3551, %v3553
    %v3555 = vrot.slane %v3205, 7
    %v3556 = vsel %vm560, %v3553, %v3555
    %v3557 = vrot.slane %v3206, 7
    %v3558 = vsel %vm560, %v3555, %v3557
    %v3559 = vrot.slane %v3207, 7
    %v3560 = vsel %vm560, %v3557, %v3559
    %v3561 = vrot.slane %v3208, 7
    %v3562 = vsel %vm560, %v3559, %v3561
    %v3563 = vrot.slane %v3209, 7
    %v3564 = vsel %vm560, %v3561, %v3563
    %v3598 = vsel %vm560, 0.0, %v3502
    %v3599 = vsel %vm560, %v3563, 0.0
    %v3600 = vpack.c.bf16 %v3504, %v3598
    %v3601 = vpack.c.bf16 %v3508, %v3506
    %v3602 = vpack.c.bf16 %v3512, %v3510
    %v3603 = vpack.c.bf16 %v3516, %v3514
    %v3604 = vpack.c.bf16 %v3520, %v3518
    %v3605 = vpack.c.bf16 %v3524, %v3522
    %v3606 = vpack.c.bf16 %v3528, %v3526
    %v3607 = vpack.c.bf16 %v3532, %v3530
    %v3608 = vpack.c.bf16 %v3536, %v3534
    %v3609 = vpack.c.bf16 %v3540, %v3538
    %v3610 = vpack.c.bf16 %v3544, %v3542
    %v3611 = vpack.c.bf16 %v3548, %v3546
    %v3612 = vpack.c.bf16 %v3552, %v3550
    %v3613 = vpack.c.bf16 %v3556, %v3554
    %v3614 = vpack.c.bf16 %v3560, %v3558
    %v3615 = vld [vmem:[%s9] sm:$0xf]
    %v3616 = vld [vmem:[%s9 + $0x4] sm:$0xf]
    %v3617 = vld [vmem:[%s9 + $0x8] sm:$0xf]
    %v3618 = vld [vmem:[%s9 + $0xc] sm:$0xf]
    %v3619 = vld [vmem:[%s9 + $0x10] sm:$0xf]
    %v3620 = vld [vmem:[%s9 + $0x14] sm:$0xf]
    %v3621 = vld [vmem:[%s9 + $0x18] sm:$0xf]
    %v3622 = vld [vmem:[%s9 + $0x1c] sm:$0xf]
    %v3623 = vpack.c.bf16 %v3244, %v3338
    %v3624 = vpack.c.bf16 %v3248, %v3246
    %v3625 = vpack.c.bf16 %v3252, %v3250
    %v3626 = vpack.c.bf16 %v3256, %v3254
    %v3627 = vpack.c.bf16 %v3260, %v3258
    %v3628 = vpack.c.bf16 %v3264, %v3262
    %v3629 = vpack.c.bf16 %v3268, %v3266
    %v3630 = vpack.c.bf16 %v3272, %v3270
    %v3631 = vpack.c.bf16 %v3276, %v3274
    %v3632 = vpack.c.bf16 %v3280, %v3278
    %v3633 = vpack.c.bf16 %v3284, %v3282
    %v3634 = vpack.c.bf16 %v3288, %v3286
    %v3635 = vpack.c.bf16 %v3292, %v3290
    %v3636 = vpack.c.bf16 %v3296, %v3294
    %v3637 = vpack.c.bf16 %v3300, %v3298
    %v3638 = vpack.c.bf16 %v3302, %v3302
    %v3639 = vld [vmem:[%s9 + $0x20] sm:$0xf]
    %v3640 = vld [vmem:[%s9 + $0x24] sm:$0xf]
    %v3641 = vld [vmem:[%s9 + $0x28] sm:$0xf]
    %v3642 = vld [vmem:[%s9 + $0x2c] sm:$0xf]
    %v3643 = vld [vmem:[%s9 + $0x30] sm:$0xf]
    %v3644 = vld [vmem:[%s9 + $0x34] sm:$0xf]
    %v3645 = vld [vmem:[%s9 + $0x38] sm:$0xf]
    %v3646 = vld [vmem:[%s9 + $0x3c] sm:$0xf]
    %v3648 = vshll.u32 %v3623, 16
    %v3650 = vrot.slane %v3648, 1
    %v3651 = vsel %vm953, %v960, %v3650
    %v3652 = vshrl.u32 %v3623, 16
    %v3654 = vor.u32 %v3652, %v3650
    %v3656 = vshll.u32 %v3624, 16
    %v3658 = vrot.slane %v3656, 1
    %v3659 = vsel %vm953, %v3654, %v3658
    %v3660 = vshrl.u32 %v3624, 16
    %v3662 = vor.u32 %v3660, %v3658
    %v3664 = vshll.u32 %v3625, 16
    %v3666 = vrot.slane %v3664, 1
    %v3667 = vsel %vm953, %v3662, %v3666
    %v3668 = vshrl.u32 %v3625, 16
    %v3670 = vor.u32 %v3668, %v3666
    %v3672 = vshll.u32 %v3626, 16
    %v3674 = vrot.slane %v3672, 1
    %v3675 = vsel %vm953, %v3670, %v3674
    %v3676 = vshrl.u32 %v3626, 16
    %v3678 = vor.u32 %v3676, %v3674
    %v3680 = vshll.u32 %v3627, 16
    %v3682 = vrot.slane %v3680, 1
    %v3683 = vsel %vm953, %v3678, %v3682
    %v3684 = vshrl.u32 %v3627, 16
    %v3686 = vor.u32 %v3684, %v3682
    %v3688 = vshll.u32 %v3628, 16
    %v3690 = vrot.slane %v3688, 1
    %v3691 = vsel %vm953, %v3686, %v3690
    %v3692 = vshrl.u32 %v3628, 16
    %v3694 = vor.u32 %v3692, %v3690
    %v3696 = vshll.u32 %v3629, 16
    %v3698 = vrot.slane %v3696, 1
    %v3699 = vsel %vm953, %v3694, %v3698
    %v3700 = vshrl.u32 %v3629, 16
    %v3702 = vor.u32 %v3700, %v3698
    %v3704 = vshll.u32 %v3630, 16
    %v3706 = vrot.slane %v3704, 1
    %v3707 = vsel %vm953, %v3702, %v3706
    %v3708 = vshrl.u32 %v3630, 16
    %v3710 = vor.u32 %v3708, %v3706
    %v3712 = vshll.u32 %v3631, 16
    %v3714 = vrot.slane %v3712, 1
    %v3715 = vsel %vm953, %v3710, %v3714
    %v3716 = vshrl.u32 %v3631, 16
    %v3718 = vor.u32 %v3716, %v3714
    %v3720 = vshll.u32 %v3632, 16
    %v3722 = vrot.slane %v3720, 1
    %v3723 = vsel %vm953, %v3718, %v3722
    %v3724 = vshrl.u32 %v3632, 16
    %v3726 = vor.u32 %v3724, %v3722
    %v3728 = vshll.u32 %v3633, 16
    %v3730 = vrot.slane %v3728, 1
    %v3731 = vsel %vm953, %v3726, %v3730
    %v3732 = vshrl.u32 %v3633, 16
    %v3734 = vor.u32 %v3732, %v3730
    %v3736 = vshll.u32 %v3634, 16
    %v3738 = vrot.slane %v3736, 1
    %v3739 = vsel %vm953, %v3734, %v3738
    %v3740 = vshrl.u32 %v3634, 16
    %v3742 = vor.u32 %v3740, %v3738
    %v3744 = vshll.u32 %v3635, 16
    %v3746 = vrot.slane %v3744, 1
    %v3747 = vsel %vm953, %v3742, %v3746
    %v3748 = vshrl.u32 %v3635, 16
    %v3750 = vor.u32 %v3748, %v3746
    %v3752 = vshll.u32 %v3636, 16
    %v3754 = vrot.slane %v3752, 1
    %v3755 = vsel %vm953, %v3750, %v3754
    %v3756 = vshrl.u32 %v3636, 16
    %v3758 = vor.u32 %v3756, %v3754
    %v3760 = vshll.u32 %v3637, 16
    %v3762 = vrot.slane %v3760, 1
    %v3763 = vsel %vm953, %v3758, %v3762
    %v3764 = vshrl.u32 %v3637, 16
    %v3766 = vor.u32 %v3764, %v3762
    %v3768 = vshll.u32 %v3638, 16
    %v3770 = vrot.slane %v3768, 1
    %v3771 = vsel %vm953, %v3766, %v3770
    %v3780 = vunpack.c.l.b16 %v3639
    %v3781 = vunpack.c.l.b16 %v3640
    %v3782 = vunpack.c.l.b16 %v3641
    %v3783 = vunpack.c.l.b16 %v3642
    %v3784 = vunpack.c.l.b16 %v3643
    %v3785 = vunpack.c.l.b16 %v3644
    %v3786 = vunpack.c.l.b16 %v3645
    %v3787 = vunpack.c.l.b16 %v3646
    %v3788 = vpack.c.b16 %v3781, %v3780
    %v3789 = vpack.c.b16 %v3783, %v3782
    %v3790 = vpack.c.b16 %v3785, %v3784
    %v3791 = vpack.c.b16 %v3787, %v3786
    %vm3796 = vcmask 523264
    %v3798 = vsel %vm3796, %v3651, 0
    %v3801 = vsel %vm3796, %v3659, 0
    %v3804 = vsel %vm3796, %v3667, 0
    %v3807 = vsel %vm3796, %v3675, 0
    %v3810 = vsel %vm3796, %v3683, 0
    %v3813 = vsel %vm3796, %v3691, 0
    %v3816 = vsel %vm3796, %v3699, 0
    %v3819 = vsel %vm3796, %v3707, 0
    %v3822 = vsel %vm3796, %v3715, 0
    %v3825 = vsel %vm3796, %v3723, 0
    %v3828 = vsel %vm3796, %v3731, 0
    %v3831 = vsel %vm3796, %v3739, 0
    %v3834 = vsel %vm3796, %v3747, 0
    %v3837 = vsel %vm3796, %v3755, 0
    %v3840 = vsel %vm3796, %v3763, 0
    %v3843 = vsel %vm3796, %v3771, 0
    %3845 = vmatprep.subr.bf16.mxu0 0
    %3846 = vmatpush1.bf16.msra.mxu0 %v3788
    %3847 = vmatprep.subr.bf16.mxu0 0
    %3848 = vmatpush1.bf16.msra.mxu0 %v3789
    %3849 = vmatprep.subr.bf16.mxu0 0
    %3850 = vmatpush1.bf16.msra.mxu0 %v3790
    %3851 = vmatprep.subr.bf16.mxu0 0
    %3852 = vmatpush1.bf16.msra.mxu0 %v3791
    %3853 = vmatprep.subr.bf16.mxu0 0
    %3854 = vmatpush1.bf16.msra.mxu0 0
    %3855 = vmatprep.subr.bf16.mxu0 0
    %3856 = vmatpush1.bf16.msra.mxu0 0
    %3857 = vmatprep.subr.bf16.mxu0 0
    %3858 = vmatpush1.bf16.msra.mxu0 0
    %3859 = vmatprep.subr.bf16.mxu0 0
    %3860 = vmatpush1.bf16.msra.mxu0 0
    %3861 = vmatprep.subr.bf16.mxu0 0
    %3862 = vmatpush1.bf16.msra.mxu0 0
    %3863 = vmatprep.subr.bf16.mxu0 0
    %3864 = vmatpush1.bf16.msra.mxu0 0
    %3865 = vmatprep.subr.bf16.mxu0 0
    %3866 = vmatpush1.bf16.msra.mxu0 0
    %3867 = vmatprep.subr.bf16.mxu0 0
    %3868 = vmatpush1.bf16.msra.mxu0 0
    %3869 = vmatprep.subr.bf16.mxu0 0
    %3870 = vmatpush1.bf16.msra.mxu0 0
    %3871 = vmatprep.subr.bf16.mxu0 0
    %3872 = vmatpush1.bf16.msra.mxu0 0
    %3873 = vmatprep.subr.bf16.mxu0 0
    %3874 = vmatpush1.bf16.msra.mxu0 0
    %3875 = vmatprep.subr.bf16.mxu0 0
    %3876 = vmatpush1.bf16.msra.mxu0 0
    %3877 = vmatprep.mubr.bf16.mxu0 0
    %3878 = vmatmul.mubr.bf16.gmra.mrb[0].mxu0 %v3798
    %v3879 = vpop.f32.mrb[0].mxu0
    %v3880 = vadd.f32 0.0, %v3879
    %v3881 = vpop.f32.mrb[0].mxu0
    %v3882 = vpop.f32.mrb[0].mxu0
    %v3883 = vadd.f32 0.0, %v3882
    %v3884 = vpop.f32.mrb[0].mxu0
    %3885 = vmatprep.mubr.bf16.mxu0 0
    %3886 = vmatmul.mubr.bf16.gmra.mrb[0].mxu0 %v3801
    %v3887 = vpop.f32.mrb[0].mxu0
    %v3888 = vadd.f32 0.0, %v3887
    %v3889 = vpop.f32.mrb[0].mxu0
    %v3890 = vpop.f32.mrb[0].mxu0
    %v3891 = vadd.f32 0.0, %v3890
    %v3892 = vpop.f32.mrb[0].mxu0
    %3893 = vmatprep.mubr.bf16.mxu0 0
    %3894 = vmatmul.mubr.bf16.gmra.mrb[0].mxu0 %v3804
    %v3895 = vpop.f32.mrb[0].mxu0
    %v3896 = vadd.f32 0.0, %v3895
    %v3897 = vpop.f32.mrb[0].mxu0
    %v3898 = vpop.f32.mrb[0].mxu0
    %v3899 = vadd.f32 0.0, %v3898
    %v3900 = vpop.f32.mrb[0].mxu0
    %3901 = vmatprep.mubr.bf16.mxu0 0
    %3902 = vmatmul.mubr.bf16.gmra.mrb[0].mxu0 %v3807
    %v3903 = vpop.f32.mrb[0].mxu0
    %v3904 = vadd.f32 0.0, %v3903
    %v3905 = vpop.f32.mrb[0].mxu0
    %v3906 = vpop.f32.mrb[0].mxu0
    %v3907 = vadd.f32 0.0, %v3906
    %v3908 = vpop.f32.mrb[0].mxu0
    %3909 = vmatprep.mubr.bf16.mxu0 0
    %3910 = vmatmul.mubr.bf16.gmra.mrb[0].mxu0 %v3810
    %v3911 = vpop.f32.mrb[0].mxu0
    %v3912 = vadd.f32 0.0, %v3911
    %v3913 = vpop.f32.mrb[0].mxu0
    %v3914 = vpop.f32.mrb[0].mxu0
    %v3915 = vadd.f32 0.0, %v3914
    %v3916 = vpop.f32.mrb[0].mxu0
    %3917 = vmatprep.mubr.bf16.mxu0 0
    %3918 = vmatmul.mubr.bf16.gmra.mrb[0].mxu0 %v3813
    %v3919 = vpop.f32.mrb[0].mxu0
    %v3920 = vadd.f32 0.0, %v3919
    %v3921 = vpop.f32.mrb[0].mxu0
    %v3922 = vpop.f32.mrb[0].mxu0
    %v3923 = vadd.f32 0.0, %v3922
    %v3924 = vpop.f32.mrb[0].mxu0
    %3925 = vmatprep.mubr.bf16.mxu0 0
    %3926 = vmatmul.mubr.bf16.gmra.mrb[0].mxu0 %v3816
    %v3927 = vpop.f32.mrb[0].mxu0
    %v3928 = vadd.f32 0.0, %v3927
    %v3929 = vpop.f32.mrb[0].mxu0
    %v3930 = vpop.f32.mrb[0].mxu0
    %v3931 = vadd.f32 0.0, %v3930
    %v3932 = vpop.f32.mrb[0].mxu0
    %3933 = vmatprep.mubr.bf16.mxu0 0
    %3934 = vmatmul.mubr.bf16.gmra.mrb[0].mxu0 %v3819
    %v3935 = vpop.f32.mrb[0].mxu0
    %v3936 = vadd.f32 0.0, %v3935
    %v3937 = vpop.f32.mrb[0].mxu0
    %v3938 = vpop.f32.mrb[0].mxu0
    %v3939 = vadd.f32 0.0, %v3938
    %v3940 = vpop.f32.mrb[0].mxu0
    %3941 = vmatprep.mubr.bf16.mxu0 0
    %3942 = vmatmul.mubr.bf16.gmra.mrb[0].mxu0 %v3822
    %v3943 = vpop.f32.mrb[0].mxu0
    %v3944 = vadd.f32 0.0, %v3943
    %v3945 = vpop.f32.mrb[0].mxu0
    %v3946 = vpop.f32.mrb[0].mxu0
    %v3947 = vadd.f32 0.0, %v3946
    %v3948 = vpop.f32.mrb[0].mxu0
    %3949 = vmatprep.mubr.bf16.mxu0 0
    %3950 = vmatmul.mubr.bf16.gmra.mrb[0].mxu0 %v3825
    %v3951 = vpop.f32.mrb[0].mxu0
    %v3952 = vadd.f32 0.0, %v3951
    %v3953 = vpop.f32.mrb[0].mxu0
    %v3954 = vpop.f32.mrb[0].mxu0
    %v3955 = vadd.f32 0.0, %v3954
    %v3956 = vpop.f32.mrb[0].mxu0
    %3957 = vmatprep.mubr.bf16.mxu0 0
    %3958 = vmatmul.mubr.bf16.gmra.mrb[0].mxu0 %v3828
    %v3959 = vpop.f32.mrb[0].mxu0
    %v3960 = vadd.f32 0.0, %v3959
    %v3961 = vpop.f32.mrb[0].mxu0
    %v3962 = vpop.f32.mrb[0].mxu0
    %v3963 = vadd.f32 0.0, %v3962
    %v3964 = vpop.f32.mrb[0].mxu0
    %3965 = vmatprep.mubr.bf16.mxu0 0
    %3966 = vmatmul.mubr.bf16.gmra.mrb[0].mxu0 %v3831
    %v3967 = vpop.f32.mrb[0].mxu0
    %v3968 = vadd.f32 0.0, %v3967
    %v3969 = vpop.f32.mrb[0].mxu0
    %v3970 = vpop.f32.mrb[0].mxu0
    %v3971 = vadd.f32 0.0, %v3970
    %v3972 = vpop.f32.mrb[0].mxu0
    %3973 = vmatprep.mubr.bf16.mxu0 0
    %3974 = vmatmul.mubr.bf16.gmra.mrb[0].mxu0 %v3834
    %v3975 = vpop.f32.mrb[0].mxu0
    %v3976 = vadd.f32 0.0, %v3975
    %v3977 = vpop.f32.mrb[0].mxu0
    %v3978 = vpop.f32.mrb[0].mxu0
    %v3979 = vadd.f32 0.0, %v3978
    %v3980 = vpop.f32.mrb[0].mxu0
    %3981 = vmatprep.mubr.bf16.mxu0 0
    %3982 = vmatmul.mubr.bf16.gmra.mrb[0].mxu0 %v3837
    %v3983 = vpop.f32.mrb[0].mxu0
    %v3984 = vadd.f32 0.0, %v3983
    %v3985 = vpop.f32.mrb[0].mxu0
    %v3986 = vpop.f32.mrb[0].mxu0
    %v3987 = vadd.f32 0.0, %v3986
    %v3988 = vpop.f32.mrb[0].mxu0
    %3989 = vmatprep.mubr.bf16.mxu0 0
    %3990 = vmatmul.mubr.bf16.gmra.mrb[0].mxu0 %v3840
    %v3991 = vpop.f32.mrb[0].mxu0
    %v3992 = vadd.f32 0.0, %v3991
    %v3993 = vpop.f32.mrb[0].mxu0
    %v3994 = vpop.f32.mrb[0].mxu0
    %v3995 = vadd.f32 0.0, %v3994
    %v3996 = vpop.f32.mrb[0].mxu0
    %3997 = vmatprep.mubr.bf16.mxu0 0
    %3998 = vmatmul.mubr.bf16.gmra.mrb[0].mxu0 %v3843
    %v3999 = vpop.f32.mrb[0].mxu0
    %v4000 = vadd.f32 0.0, %v3999
    %v4001 = vpop.f32.mrb[0].mxu0
    %v4002 = vpop.f32.mrb[0].mxu0
    %v4003 = vadd.f32 0.0, %v4002
    %v4004 = vpop.f32.mrb[0].mxu0
    %4005 = vdwg.mxu0
    %v4014 = vunpack.c.l.b16 %v3615
    %v4015 = vunpack.c.l.b16 %v3616
    %v4016 = vunpack.c.l.b16 %v3617
    %v4017 = vunpack.c.l.b16 %v3618
    %v4018 = vunpack.c.l.b16 %v3619
    %v4019 = vunpack.c.l.b16 %v3620
    %v4020 = vunpack.c.l.b16 %v3621
    %v4021 = vunpack.c.l.b16 %v3622
    %v4022 = vpack.c.b16 %v4015, %v4014
    %v4023 = vpack.c.b16 %v4017, %v4016
    %v4024 = vpack.c.b16 %v4019, %v4018
    %v4025 = vpack.c.b16 %v4021, %v4020
    %v4030 = vsel %vm3796, %v919, 0
    %v4033 = vsel %vm3796, %v3600, 0
    %v4036 = vsel %vm3796, %v3601, 0
    %v4039 = vsel %vm3796, %v3602, 0
    %v4042 = vsel %vm3796, %v3603, 0
    %v4045 = vsel %vm3796, %v3604, 0
    %v4048 = vsel %vm3796, %v3605, 0
    %v4051 = vsel %vm3796, %v3606, 0
    %v4054 = vsel %vm3796, %v3607, 0
    %v4057 = vsel %vm3796, %v3608, 0
    %v4060 = vsel %vm3796, %v3609, 0
    %v4063 = vsel %vm3796, %v3610, 0
    %v4066 = vsel %vm3796, %v3611, 0
    %v4069 = vsel %vm3796, %v3612, 0
    %v4072 = vsel %vm3796, %v3613, 0
    %v4075 = vsel %vm3796, %v3614, 0
    %4077 = vmatprep.subr.bf16.mxu0 0
    %4078 = vmatpush1.bf16.msra.mxu0 %v4022
    %4079 = vmatprep.subr.bf16.mxu0 0
    %4080 = vmatpush1.bf16.msra.mxu0 %v4023
    %4081 = vmatprep.subr.bf16.mxu0 0
    %4082 = vmatpush1.bf16.msra.mxu0 %v4024
    %4083 = vmatprep.subr.bf16.mxu0 0
    %4084 = vmatpush1.bf16.msra.mxu0 %v4025
    %4085 = vmatprep.subr.bf16.mxu0 0
    %4086 = vmatpush1.bf16.msra.mxu0 0
    %4087 = vmatprep.subr.bf16.mxu0 0
    %4088 = vmatpush1.bf16.msra.mxu0 0
    %4089 = vmatprep.subr.bf16.mxu0 0
    %4090 = vmatpush1.bf16.msra.mxu0 0
    %4091 = vmatprep.subr.bf16.mxu0 0
    %4092 = vmatpush1.bf16.msra.mxu0 0
    %4093 = vmatprep.subr.bf16.mxu0 0
    %4094 = vmatpush1.bf16.msra.mxu0 0
    %4095 = vmatprep.subr.bf16.mxu0 0
    %4096 = vmatpush1.bf16.msra.mxu0 0
    %4097 = vmatprep.subr.bf16.mxu0 0
    %4098 = vmatpush1.bf16.msra.mxu0 0
    %4099 = vmatprep.subr.bf16.mxu0 0
    %4100 = vmatpush1.bf16.msra.mxu0 0
    %4101 = vmatprep.subr.bf16.mxu0 0
    %4102 = vmatpush1.bf16.msra.mxu0 0
    %4103 = vmatprep.subr.bf16.mxu0 0
    %4104 = vmatpush1.bf16.msra.mxu0 0
    %4105 = vmatprep.subr.bf16.mxu0 0
    %4106 = vmatpush1.bf16.msra.mxu0 0
    %4107 = vmatprep.subr.bf16.mxu0 0
    %4108 = vmatpush1.bf16.msra.mxu0 0
    %4109 = vmatprep.mubr.bf16.mxu0 0
    %4110 = vmatmul.mubr.bf16.gmra.mrb[0].mxu0 %v4030
    %v4111 = vpop.f32.mrb[0].mxu0
    %v4112 = vadd.f32 %v3880, %v4111
    %v4113 = vpop.f32.mrb[0].mxu0
    %v4114 = vpop.f32.mrb[0].mxu0
    %v4115 = vadd.f32 %v3883, %v4114
    %v4116 = vpop.f32.mrb[0].mxu0
    %4117 = vmatprep.mubr.bf16.mxu0 0
    %4118 = vmatmul.mubr.bf16.gmra.mrb[0].mxu0 %v4033
    %v4119 = vpop.f32.mrb[0].mxu0
    %v4120 = vadd.f32 %v3888, %v4119
    %v4121 = vpop.f32.mrb[0].mxu0
    %v4122 = vpop.f32.mrb[0].mxu0
    %v4123 = vadd.f32 %v3891, %v4122
    %v4124 = vpop.f32.mrb[0].mxu0
    %4125 = vmatprep.mubr.bf16.mxu0 0
    %4126 = vmatmul.mubr.bf16.gmra.mrb[0].mxu0 %v4036
    %v4127 = vpop.f32.mrb[0].mxu0
    %v4128 = vadd.f32 %v3896, %v4127
    %v4129 = vpop.f32.mrb[0].mxu0
    %v4130 = vpop.f32.mrb[0].mxu0
    %v4131 = vadd.f32 %v3899, %v4130
    %v4132 = vpop.f32.mrb[0].mxu0
    %4133 = vmatprep.mubr.bf16.mxu0 0
    %4134 = vmatmul.mubr.bf16.gmra.mrb[0].mxu0 %v4039
    %v4135 = vpop.f32.mrb[0].mxu0
    %v4136 = vadd.f32 %v3904, %v4135
    %v4137 = vpop.f32.mrb[0].mxu0
    %v4138 = vpop.f32.mrb[0].mxu0
    %v4139 = vadd.f32 %v3907, %v4138
    %v4140 = vpop.f32.mrb[0].mxu0
    %4141 = vmatprep.mubr.bf16.mxu0 0
    %4142 = vmatmul.mubr.bf16.gmra.mrb[0].mxu0 %v4042
    %v4143 = vpop.f32.mrb[0].mxu0
    %v4144 = vadd.f32 %v3912, %v4143
    %v4145 = vpop.f32.mrb[0].mxu0
    %v4146 = vpop.f32.mrb[0].mxu0
    %v4147 = vadd.f32 %v3915, %v4146
    %v4148 = vpop.f32.mrb[0].mxu0
    %4149 = vmatprep.mubr.bf16.mxu0 0
    %4150 = vmatmul.mubr.bf16.gmra.mrb[0].mxu0 %v4045
    %v4151 = vpop.f32.mrb[0].mxu0
    %v4152 = vadd.f32 %v3920, %v4151
    %v4153 = vpop.f32.mrb[0].mxu0
    %v4154 = vpop.f32.mrb[0].mxu0
    %v4155 = vadd.f32 %v3923, %v4154
    %v4156 = vpop.f32.mrb[0].mxu0
    %4157 = vmatprep.mubr.bf16.mxu0 0
    %4158 = vmatmul.mubr.bf16.gmra.mrb[0].mxu0 %v4048
    %v4159 = vpop.f32.mrb[0].mxu0
    %v4160 = vadd.f32 %v3928, %v4159
    %v4161 = vpop.f32.mrb[0].mxu0
    %v4162 = vpop.f32.mrb[0].mxu0
    %v4163 = vadd.f32 %v3931, %v4162
    %v4164 = vpop.f32.mrb[0].mxu0
    %4165 = vmatprep.mubr.bf16.mxu0 0
    %4166 = vmatmul.mubr.bf16.gmra.mrb[0].mxu0 %v4051
    %v4167 = vpop.f32.mrb[0].mxu0
    %v4168 = vadd.f32 %v3936, %v4167
    %v4169 = vpop.f32.mrb[0].mxu0
    %v4170 = vpop.f32.mrb[0].mxu0
    %v4171 = vadd.f32 %v3939, %v4170
    %v4172 = vpop.f32.mrb[0].mxu0
    %4173 = vmatprep.mubr.bf16.mxu0 0
    %4174 = vmatmul.mubr.bf16.gmra.mrb[0].mxu0 %v4054
    %v4175 = vpop.f32.mrb[0].mxu0
    %v4176 = vadd.f32 %v3944, %v4175
    %v4177 = vpop.f32.mrb[0].mxu0
    %v4178 = vpop.f32.mrb[0].mxu0
    %v4179 = vadd.f32 %v3947, %v4178
    %v4180 = vpop.f32.mrb[0].mxu0
    %4181 = vmatprep.mubr.bf16.mxu0 0
    %4182 = vmatmul.mubr.bf16.gmra.mrb[0].mxu0 %v4057
    %v4183 = vpop.f32.mrb[0].mxu0
    %v4184 = vadd.f32 %v3952, %v4183
    %v4185 = vpop.f32.mrb[0].mxu0
    %v4186 = vpop.f32.mrb[0].mxu0
    %v4187 = vadd.f32 %v3955, %v4186
    %v4188 = vpop.f32.mrb[0].mxu0
    %4189 = vmatprep.mubr.bf16.mxu0 0
    %4190 = vmatmul.mubr.bf16.gmra.mrb[0].mxu0 %v4060
    %v4191 = vpop.f32.mrb[0].mxu0
    %v4192 = vadd.f32 %v3960, %v4191
    %v4193 = vpop.f32.mrb[0].mxu0
    %v4194 = vpop.f32.mrb[0].mxu0
    %v4195 = vadd.f32 %v3963, %v4194
    %v4196 = vpop.f32.mrb[0].mxu0
    %4197 = vmatprep.mubr.bf16.mxu0 0
    %4198 = vmatmul.mubr.bf16.gmra.mrb[0].mxu0 %v4063
    %v4199 = vpop.f32.mrb[0].mxu0
    %v4200 = vadd.f32 %v3968, %v4199
    %v4201 = vpop.f32.mrb[0].mxu0
    %v4202 = vpop.f32.mrb[0].mxu0
    %v4203 = vadd.f32 %v3971, %v4202
    %v4204 = vpop.f32.mrb[0].mxu0
    %4205 = vmatprep.mubr.bf16.mxu0 0
    %4206 = vmatmul.mubr.bf16.gmra.mrb[0].mxu0 %v4066
    %v4207 = vpop.f32.mrb[0].mxu0
    %v4208 = vadd.f32 %v3976, %v4207
    %v4209 = vpop.f32.mrb[0].mxu0
    %v4210 = vpop.f32.mrb[0].mxu0
    %v4211 = vadd.f32 %v3979, %v4210
    %v4212 = vpop.f32.mrb[0].mxu0
    %4213 = vmatprep.mubr.bf16.mxu0 0
    %4214 = vmatmul.mubr.bf16.gmra.mrb[0].mxu0 %v4069
    %v4215 = vpop.f32.mrb[0].mxu0
    %v4216 = vadd.f32 %v3984, %v4215
    %v4217 = vpop.f32.mrb[0].mxu0
    %v4218 = vpop.f32.mrb[0].mxu0
    %v4219 = vadd.f32 %v3987, %v4218
    %v4220 = vpop.f32.mrb[0].mxu0
    %4221 = vmatprep.mubr.bf16.mxu0 0
    %4222 = vmatmul.mubr.bf16.gmra.mrb[0].mxu0 %v4072
    %v4223 = vpop.f32.mrb[0].mxu0
    %v4224 = vadd.f32 %v3992, %v4223
    %v4225 = vpop.f32.mrb[0].mxu0
    %v4226 = vpop.f32.mrb[0].mxu0
    %v4227 = vadd.f32 %v3995, %v4226
    %v4228 = vpop.f32.mrb[0].mxu0
    %4229 = vmatprep.mubr.bf16.mxu0 0
    %4230 = vmatmul.mubr.bf16.gmra.mrb[0].mxu0 %v4075
    %v4231 = vpop.f32.mrb[0].mxu0
    %v4232 = vadd.f32 %v4000, %v4231
    %v4233 = vpop.f32.mrb[0].mxu0
    %v4234 = vpop.f32.mrb[0].mxu0
    %v4235 = vadd.f32 %v4003, %v4234
    %v4236 = vpop.f32.mrb[0].mxu0
    %4237 = vdwg.mxu0
    %v4238 = vpack.c.bf16 %v3374, %v3468
    %v4239 = vpack.c.bf16 %v3378, %v3376
    %v4240 = vpack.c.bf16 %v3382, %v3380
    %v4241 = vpack.c.bf16 %v3386, %v3384
    %v4242 = vpack.c.bf16 %v3390, %v3388
    %v4243 = vpack.c.bf16 %v3394, %v3392
    %v4244 = vpack.c.bf16 %v3398, %v3396
    %v4245 = vpack.c.bf16 %v3402, %v3400
    %v4246 = vpack.c.bf16 %v3406, %v3404
    %v4247 = vpack.c.bf16 %v3410, %v3408
    %v4248 = vpack.c.bf16 %v3414, %v3412
    %v4249 = vpack.c.bf16 %v3418, %v3416
    %v4250 = vpack.c.bf16 %v3422, %v3420
    %v4251 = vpack.c.bf16 %v3426, %v3424
    %v4252 = vpack.c.bf16 %v3430, %v3428
    %v4253 = vpack.c.bf16 %v3432, %v3432
    %v4254 = vld [vmem:[%s9 + $0x40] sm:$0xf]
    %v4255 = vld [vmem:[%s9 + $0x44] sm:$0xf]
    %v4256 = vld [vmem:[%s9 + $0x48] sm:$0xf]
    %v4257 = vld [vmem:[%s9 + $0x4c] sm:$0xf]
    %v4258 = vld [vmem:[%s9 + $0x50] sm:$0xf]
    %v4259 = vld [vmem:[%s9 + $0x54] sm:$0xf]
    %v4260 = vld [vmem:[%s9 + $0x58] sm:$0xf]
    %v4261 = vld [vmem:[%s9 + $0x5c] sm:$0xf]
    %v4278 = vrot.slane %v4238, 1
    %v4279 = vsel %vm1545, %v1546, %v4278
    %v4280 = vrot.slane %v4239, 1
    %v4281 = vsel %vm1545, %v4278, %v4280
    %v4282 = vrot.slane %v4240, 1
    %v4283 = vsel %vm1545, %v4280, %v4282
    %v4284 = vrot.slane %v4241, 1
    %v4285 = vsel %vm1545, %v4282, %v4284
    %v4286 = vrot.slane %v4242, 1
    %v4287 = vsel %vm1545, %v4284, %v4286
    %v4288 = vrot.slane %v4243, 1
    %v4289 = vsel %vm1545, %v4286, %v4288
    %v4290 = vrot.slane %v4244, 1
    %v4291 = vsel %vm1545, %v4288, %v4290
    %v4292 = vrot.slane %v4245, 1
    %v4293 = vsel %vm1545, %v4290, %v4292
    %v4294 = vrot.slane %v4246, 1
    %v4295 = vsel %vm1545, %v4292, %v4294
    %v4296 = vrot.slane %v4247, 1
    %v4297 = vsel %vm1545, %v4294, %v4296
    %v4298 = vrot.slane %v4248, 1
    %v4299 = vsel %vm1545, %v4296, %v4298
    %v4300 = vrot.slane %v4249, 1
    %v4301 = vsel %vm1545, %v4298, %v4300
    %v4302 = vrot.slane %v4250, 1
    %v4303 = vsel %vm1545, %v4300, %v4302
    %v4304 = vrot.slane %v4251, 1
    %v4305 = vsel %vm1545, %v4302, %v4304
    %v4306 = vrot.slane %v4252, 1
    %v4307 = vsel %vm1545, %v4304, %v4306
    %v4308 = vrot.slane %v4253, 1
    %v4309 = vsel %vm1545, %v4306, %v4308
    %v4318 = vunpack.c.l.b16 %v4254
    %v4319 = vunpack.c.l.b16 %v4255
    %v4320 = vunpack.c.l.b16 %v4256
    %v4321 = vunpack.c.l.b16 %v4257
    %v4322 = vunpack.c.l.b16 %v4258
    %v4323 = vunpack.c.l.b16 %v4259
    %v4324 = vunpack.c.l.b16 %v4260
    %v4325 = vunpack.c.l.b16 %v4261
    %v4326 = vpack.c.b16 %v4319, %v4318
    %v4327 = vpack.c.b16 %v4321, %v4320
    %v4328 = vpack.c.b16 %v4323, %v4322
    %v4329 = vpack.c.b16 %v4325, %v4324
    %v4335 = vsel %vm3796, %v4279, 0
    %v4338 = vsel %vm3796, %v4281, 0
    %v4341 = vsel %vm3796, %v4283, 0
    %v4344 = vsel %vm3796, %v4285, 0
    %v4347 = vsel %vm3796, %v4287, 0
    %v4350 = vsel %vm3796, %v4289, 0
    %v4353 = vsel %vm3796, %v4291, 0
    %v4356 = vsel %vm3796, %v4293, 0
    %v4359 = vsel %vm3796, %v4295, 0
    %v4362 = vsel %vm3796, %v4297, 0
    %v4365 = vsel %vm3796, %v4299, 0
    %v4368 = vsel %vm3796, %v4301, 0
    %v4371 = vsel %vm3796, %v4303, 0
    %v4374 = vsel %vm3796, %v4305, 0
    %v4377 = vsel %vm3796, %v4307, 0
    %v4380 = vsel %vm3796, %v4309, 0
    %4382 = vmatprep.subr.bf16.mxu0 0
    %4383 = vmatpush1.bf16.msra.mxu0 %v4326
    %4384 = vmatprep.subr.bf16.mxu0 0
    %4385 = vmatpush1.bf16.msra.mxu0 %v4327
    %4386 = vmatprep.subr.bf16.mxu0 0
    %4387 = vmatpush1.bf16.msra.mxu0 %v4328
    %4388 = vmatprep.subr.bf16.mxu0 0
    %4389 = vmatpush1.bf16.msra.mxu0 %v4329
    %4390 = vmatprep.subr.bf16.mxu0 0
    %4391 = vmatpush1.bf16.msra.mxu0 0
    %4392 = vmatprep.subr.bf16.mxu0 0
    %4393 = vmatpush1.bf16.msra.mxu0 0
    %4394 = vmatprep.subr.bf16.mxu0 0
    %4395 = vmatpush1.bf16.msra.mxu0 0
    %4396 = vmatprep.subr.bf16.mxu0 0
    %4397 = vmatpush1.bf16.msra.mxu0 0
    %4398 = vmatprep.subr.bf16.mxu0 0
    %4399 = vmatpush1.bf16.msra.mxu0 0
    %4400 = vmatprep.subr.bf16.mxu0 0
    %4401 = vmatpush1.bf16.msra.mxu0 0
    %4402 = vmatprep.subr.bf16.mxu0 0
    %4403 = vmatpush1.bf16.msra.mxu0 0
    %4404 = vmatprep.subr.bf16.mxu0 0
    %4405 = vmatpush1.bf16.msra.mxu0 0
    %4406 = vmatprep.subr.bf16.mxu0 0
    %4407 = vmatpush1.bf16.msra.mxu0 0
    %4408 = vmatprep.subr.bf16.mxu0 0
    %4409 = vmatpush1.bf16.msra.mxu0 0
    %4410 = vmatprep.subr.bf16.mxu0 0
    %4411 = vmatpush1.bf16.msra.mxu0 0
    %4412 = vmatprep.subr.bf16.mxu0 0
    %4413 = vmatpush1.bf16.msra.mxu0 0
    %4414 = vmatprep.mubr.bf16.mxu0 0
    %4415 = vmatmul.mubr.bf16.gmra.mrb[0].mxu0 %v4335
    %v4416 = vpop.f32.mrb[0].mxu0
    %v4417 = vadd.f32 0.0, %v4416
    %v4418 = vpop.f32.mrb[0].mxu0
    %v4419 = vpop.f32.mrb[0].mxu0
    %v4420 = vadd.f32 0.0, %v4419
    %v4421 = vpop.f32.mrb[0].mxu0
    %4422 = vmatprep.mubr.bf16.mxu0 0
    %4423 = vmatmul.mubr.bf16.gmra.mrb[0].mxu0 %v4338
    %v4424 = vpop.f32.mrb[0].mxu0
    %v4425 = vadd.f32 0.0, %v4424
    %v4426 = vpop.f32.mrb[0].mxu0
    %v4427 = vpop.f32.mrb[0].mxu0
    %v4428 = vadd.f32 0.0, %v4427
    %v4429 = vpop.f32.mrb[0].mxu0
    %4430 = vmatprep.mubr.bf16.mxu0 0
    %4431 = vmatmul.mubr.bf16.gmra.mrb[0].mxu0 %v4341
    %v4432 = vpop.f32.mrb[0].mxu0
    %v4433 = vadd.f32 0.0, %v4432
    %v4434 = vpop.f32.mrb[0].mxu0
    %v4435 = vpop.f32.mrb[0].mxu0
    %v4436 = vadd.f32 0.0, %v4435
    %v4437 = vpop.f32.mrb[0].mxu0
    %4438 = vmatprep.mubr.bf16.mxu0 0
    %4439 = vmatmul.mubr.bf16.gmra.mrb[0].mxu0 %v4344
    %v4440 = vpop.f32.mrb[0].mxu0
    %v4441 = vadd.f32 0.0, %v4440
    %v4442 = vpop.f32.mrb[0].mxu0
    %v4443 = vpop.f32.mrb[0].mxu0
    %v4444 = vadd.f32 0.0, %v4443
    %v4445 = vpop.f32.mrb[0].mxu0
    %4446 = vmatprep.mubr.bf16.mxu0 0
    %4447 = vmatmul.mubr.bf16.gmra.mrb[0].mxu0 %v4347
    %v4448 = vpop.f32.mrb[0].mxu0
    %v4449 = vadd.f32 0.0, %v4448
    %v4450 = vpop.f32.mrb[0].mxu0
    %v4451 = vpop.f32.mrb[0].mxu0
    %v4452 = vadd.f32 0.0, %v4451
    %v4453 = vpop.f32.mrb[0].mxu0
    %4454 = vmatprep.mubr.bf16.mxu0 0
    %4455 = vmatmul.mubr.bf16.gmra.mrb[0].mxu0 %v4350
    %v4456 = vpop.f32.mrb[0].mxu0
    %v4457 = vadd.f32 0.0, %v4456
    %v4458 = vpop.f32.mrb[0].mxu0
    %v4459 = vpop.f32.mrb[0].mxu0
    %v4460 = vadd.f32 0.0, %v4459
    %v4461 = vpop.f32.mrb[0].mxu0
    %4462 = vmatprep.mubr.bf16.mxu0 0
    %4463 = vmatmul.mubr.bf16.gmra.mrb[0].mxu0 %v4353
    %v4464 = vpop.f32.mrb[0].mxu0
    %v4465 = vadd.f32 0.0, %v4464
    %v4466 = vpop.f32.mrb[0].mxu0
    %v4467 = vpop.f32.mrb[0].mxu0
    %v4468 = vadd.f32 0.0, %v4467
    %v4469 = vpop.f32.mrb[0].mxu0
    %4470 = vmatprep.mubr.bf16.mxu0 0
    %4471 = vmatmul.mubr.bf16.gmra.mrb[0].mxu0 %v4356
    %v4472 = vpop.f32.mrb[0].mxu0
    %v4473 = vadd.f32 0.0, %v4472
    %v4474 = vpop.f32.mrb[0].mxu0
    %v4475 = vpop.f32.mrb[0].mxu0
    %v4476 = vadd.f32 0.0, %v4475
    %v4477 = vpop.f32.mrb[0].mxu0
    %4478 = vmatprep.mubr.bf16.mxu0 0
    %4479 = vmatmul.mubr.bf16.gmra.mrb[0].mxu0 %v4359
    %v4480 = vpop.f32.mrb[0].mxu0
    %v4481 = vadd.f32 0.0, %v4480
    %v4482 = vpop.f32.mrb[0].mxu0
    %v4483 = vpop.f32.mrb[0].mxu0
    %v4484 = vadd.f32 0.0, %v4483
    %v4485 = vpop.f32.mrb[0].mxu0
    %4486 = vmatprep.mubr.bf16.mxu0 0
    %4487 = vmatmul.mubr.bf16.gmra.mrb[0].mxu0 %v4362
    %v4488 = vpop.f32.mrb[0].mxu0
    %v4489 = vadd.f32 0.0, %v4488
    %v4490 = vpop.f32.mrb[0].mxu0
    %v4491 = vpop.f32.mrb[0].mxu0
    %v4492 = vadd.f32 0.0, %v4491
    %v4493 = vpop.f32.mrb[0].mxu0
    %4494 = vmatprep.mubr.bf16.mxu0 0
    %4495 = vmatmul.mubr.bf16.gmra.mrb[0].mxu0 %v4365
    %v4496 = vpop.f32.mrb[0].mxu0
    %v4497 = vadd.f32 0.0, %v4496
    %v4498 = vpop.f32.mrb[0].mxu0
    %v4499 = vpop.f32.mrb[0].mxu0
    %v4500 = vadd.f32 0.0, %v4499
    %v4501 = vpop.f32.mrb[0].mxu0
    %4502 = vmatprep.mubr.bf16.mxu0 0
    %4503 = vmatmul.mubr.bf16.gmra.mrb[0].mxu0 %v4368
    %v4504 = vpop.f32.mrb[0].mxu0
    %v4505 = vadd.f32 0.0, %v4504
    %v4506 = vpop.f32.mrb[0].mxu0
    %v4507 = vpop.f32.mrb[0].mxu0
    %v4508 = vadd.f32 0.0, %v4507
    %v4509 = vpop.f32.mrb[0].mxu0
    %4510 = vmatprep.mubr.bf16.mxu0 0
    %4511 = vmatmul.mubr.bf16.gmra.mrb[0].mxu0 %v4371
    %v4512 = vpop.f32.mrb[0].mxu0
    %v4513 = vadd.f32 0.0, %v4512
    %v4514 = vpop.f32.mrb[0].mxu0
    %v4515 = vpop.f32.mrb[0].mxu0
    %v4516 = vadd.f32 0.0, %v4515
    %v4517 = vpop.f32.mrb[0].mxu0
    %4518 = vmatprep.mubr.bf16.mxu0 0
    %4519 = vmatmul.mubr.bf16.gmra.mrb[0].mxu0 %v4374
    %v4520 = vpop.f32.mrb[0].mxu0
    %v4521 = vadd.f32 0.0, %v4520
    %v4522 = vpop.f32.mrb[0].mxu0
    %v4523 = vpop.f32.mrb[0].mxu0
    %v4524 = vadd.f32 0.0, %v4523
    %v4525 = vpop.f32.mrb[0].mxu0
    %4526 = vmatprep.mubr.bf16.mxu0 0
    %4527 = vmatmul.mubr.bf16.gmra.mrb[0].mxu0 %v4377
    %v4528 = vpop.f32.mrb[0].mxu0
    %v4529 = vadd.f32 0.0, %v4528
    %v4530 = vpop.f32.mrb[0].mxu0
    %v4531 = vpop.f32.mrb[0].mxu0
    %v4532 = vadd.f32 0.0, %v4531
    %v4533 = vpop.f32.mrb[0].mxu0
    %4534 = vmatprep.mubr.bf16.mxu0 0
    %4535 = vmatmul.mubr.bf16.gmra.mrb[0].mxu0 %v4380
    %v4536 = vpop.f32.mrb[0].mxu0
    %v4537 = vadd.f32 0.0, %v4536
    %v4538 = vpop.f32.mrb[0].mxu0
    %v4539 = vpop.f32.mrb[0].mxu0
    %v4540 = vadd.f32 0.0, %v4539
    %v4541 = vpop.f32.mrb[0].mxu0
    %4542 = vdwg.mxu0
    %v4543 = vadd.f32 %v4112, %v4417
    %v4544 = vadd.f32 %v4115, %v4420
    %v4545 = vadd.f32 %v4120, %v4425
    %v4546 = vadd.f32 %v4123, %v4428
    %v4547 = vadd.f32 %v4128, %v4433
    %v4548 = vadd.f32 %v4131, %v4436
    %v4549 = vadd.f32 %v4136, %v4441
    %v4550 = vadd.f32 %v4139, %v4444
    %v4551 = vadd.f32 %v4144, %v4449
    %v4552 = vadd.f32 %v4147, %v4452
    %v4553 = vadd.f32 %v4152, %v4457
    %v4554 = vadd.f32 %v4155, %v4460
    %v4555 = vadd.f32 %v4160, %v4465
    %v4556 = vadd.f32 %v4163, %v4468
    %v4557 = vadd.f32 %v4168, %v4473
    %v4558 = vadd.f32 %v4171, %v4476
    %v4559 = vadd.f32 %v4176, %v4481
    %v4560 = vadd.f32 %v4179, %v4484
    %v4561 = vadd.f32 %v4184, %v4489
    %v4562 = vadd.f32 %v4187, %v4492
    %v4563 = vadd.f32 %v4192, %v4497
    %v4564 = vadd.f32 %v4195, %v4500
    %v4565 = vadd.f32 %v4200, %v4505
    %v4566 = vadd.f32 %v4203, %v4508
    %v4567 = vadd.f32 %v4208, %v4513
    %v4568 = vadd.f32 %v4211, %v4516
    %v4569 = vadd.f32 %v4216, %v4521
    %v4570 = vadd.f32 %v4219, %v4524
    %v4571 = vadd.f32 %v4224, %v4529
    %v4572 = vadd.f32 %v4227, %v4532
    %v4573 = vadd.f32 %v4232, %v4537
    %v4574 = vadd.f32 %v4235, %v4540
    %v4575 = vpack.c.bf16 %v3564, %v3562
    %v4576 = vld [vmem:[%s9 + $0x60] sm:$0xf]
    %v4577 = vld [vmem:[%s9 + $0x64] sm:$0xf]
    %v4578 = vld [vmem:[%s9 + $0x68] sm:$0xf]
    %v4579 = vld [vmem:[%s9 + $0x6c] sm:$0xf]
    %v4580 = vld [vmem:[%s9 + $0x70] sm:$0xf]
    %v4581 = vld [vmem:[%s9 + $0x74] sm:$0xf]
    %v4582 = vld [vmem:[%s9 + $0x78] sm:$0xf]
    %v4583 = vld [vmem:[%s9 + $0x7c] sm:$0xf]
    %v4592 = vunpack.c.l.b16 %v4576
    %v4593 = vunpack.c.l.b16 %v4577
    %v4594 = vunpack.c.l.b16 %v4578
    %v4595 = vunpack.c.l.b16 %v4579
    %v4596 = vunpack.c.l.b16 %v4580
    %v4597 = vunpack.c.l.b16 %v4581
    %v4598 = vunpack.c.l.b16 %v4582
    %v4599 = vunpack.c.l.b16 %v4583
    %v4600 = vpack.c.b16 %v4593, %v4592
    %v4601 = vpack.c.b16 %v4595, %v4594
    %v4602 = vpack.c.b16 %v4597, %v4596
    %v4603 = vpack.c.b16 %v4599, %v4598
    %v4609 = vsel %vm3796, %v4575, 0
    %4611 = vmatprep.subr.bf16.mxu0 0
    %4612 = vmatpush1.bf16.msra.mxu0 %v4600
    %4613 = vmatprep.subr.bf16.mxu0 0
    %4614 = vmatpush1.bf16.msra.mxu0 %v4601
    %4615 = vmatprep.subr.bf16.mxu0 0
    %4616 = vmatpush1.bf16.msra.mxu0 %v4602
    %4617 = vmatprep.subr.bf16.mxu0 0
    %4618 = vmatpush1.bf16.msra.mxu0 %v4603
    %4619 = vmatprep.subr.bf16.mxu0 0
    %4620 = vmatpush1.bf16.msra.mxu0 0
    %4621 = vmatprep.subr.bf16.mxu0 0
    %4622 = vmatpush1.bf16.msra.mxu0 0
    %4623 = vmatprep.subr.bf16.mxu0 0
    %4624 = vmatpush1.bf16.msra.mxu0 0
    %4625 = vmatprep.subr.bf16.mxu0 0
    %4626 = vmatpush1.bf16.msra.mxu0 0
    %4627 = vmatprep.subr.bf16.mxu0 0
    %4628 = vmatpush1.bf16.msra.mxu0 0
    %4629 = vmatprep.subr.bf16.mxu0 0
    %4630 = vmatpush1.bf16.msra.mxu0 0
    %4631 = vmatprep.subr.bf16.mxu0 0
    %4632 = vmatpush1.bf16.msra.mxu0 0
    %4633 = vmatprep.subr.bf16.mxu0 0
    %4634 = vmatpush1.bf16.msra.mxu0 0
    %4635 = vmatprep.subr.bf16.mxu0 0
    %4636 = vmatpush1.bf16.msra.mxu0 0
    %4637 = vmatprep.subr.bf16.mxu0 0
    %4638 = vmatpush1.bf16.msra.mxu0 0
    %4639 = vmatprep.subr.bf16.mxu0 0
    %4640 = vmatpush1.bf16.msra.mxu0 0
    %4641 = vmatprep.subr.bf16.mxu0 0
    %4642 = vmatpush1.bf16.msra.mxu0 0
    %4643 = vmatprep.mubr.bf16.mxu0 0
    %4644 = vmatmul.mubr.bf16.gmra.mrb[0].mxu0 %v4033
    %v4645 = vpop.f32.mrb[0].mxu0
    %v4646 = vadd.f32 0.0, %v4645
    %v4647 = vpop.f32.mrb[0].mxu0
    %v4648 = vpop.f32.mrb[0].mxu0
    %v4649 = vadd.f32 0.0, %v4648
    %v4650 = vpop.f32.mrb[0].mxu0
    %4651 = vmatprep.mubr.bf16.mxu0 0
    %4652 = vmatmul.mubr.bf16.gmra.mrb[0].mxu0 %v4036
    %v4653 = vpop.f32.mrb[0].mxu0
    %v4654 = vadd.f32 0.0, %v4653
    %v4655 = vpop.f32.mrb[0].mxu0
    %v4656 = vpop.f32.mrb[0].mxu0
    %v4657 = vadd.f32 0.0, %v4656
    %v4658 = vpop.f32.mrb[0].mxu0
    %4659 = vmatprep.mubr.bf16.mxu0 0
    %4660 = vmatmul.mubr.bf16.gmra.mrb[0].mxu0 %v4039
    %v4661 = vpop.f32.mrb[0].mxu0
    %v4662 = vadd.f32 0.0, %v4661
    %v4663 = vpop.f32.mrb[0].mxu0
    %v4664 = vpop.f32.mrb[0].mxu0
    %v4665 = vadd.f32 0.0, %v4664
    %v4666 = vpop.f32.mrb[0].mxu0
    %4667 = vmatprep.mubr.bf16.mxu0 0
    %4668 = vmatmul.mubr.bf16.gmra.mrb[0].mxu0 %v4042
    %v4669 = vpop.f32.mrb[0].mxu0
    %v4670 = vadd.f32 0.0, %v4669
    %v4671 = vpop.f32.mrb[0].mxu0
    %v4672 = vpop.f32.mrb[0].mxu0
    %v4673 = vadd.f32 0.0, %v4672
    %v4674 = vpop.f32.mrb[0].mxu0
    %4675 = vmatprep.mubr.bf16.mxu0 0
    %4676 = vmatmul.mubr.bf16.gmra.mrb[0].mxu0 %v4045
    %v4677 = vpop.f32.mrb[0].mxu0
    %v4678 = vadd.f32 0.0, %v4677
    %v4679 = vpop.f32.mrb[0].mxu0
    %v4680 = vpop.f32.mrb[0].mxu0
    %v4681 = vadd.f32 0.0, %v4680
    %v4682 = vpop.f32.mrb[0].mxu0
    %4683 = vmatprep.mubr.bf16.mxu0 0
    %4684 = vmatmul.mubr.bf16.gmra.mrb[0].mxu0 %v4048
    %v4685 = vpop.f32.mrb[0].mxu0
    %v4686 = vadd.f32 0.0, %v4685
    %v4687 = vpop.f32.mrb[0].mxu0
    %v4688 = vpop.f32.mrb[0].mxu0
    %v4689 = vadd.f32 0.0, %v4688
    %v4690 = vpop.f32.mrb[0].mxu0
    %4691 = vmatprep.mubr.bf16.mxu0 0
    %4692 = vmatmul.mubr.bf16.gmra.mrb[0].mxu0 %v4051
    %v4693 = vpop.f32.mrb[0].mxu0
    %v4694 = vadd.f32 0.0, %v4693
    %v4695 = vpop.f32.mrb[0].mxu0
    %v4696 = vpop.f32.mrb[0].mxu0
    %v4697 = vadd.f32 0.0, %v4696
    %v4698 = vpop.f32.mrb[0].mxu0
    %4699 = vmatprep.mubr.bf16.mxu0 0
    %4700 = vmatmul.mubr.bf16.gmra.mrb[0].mxu0 %v4054
    %v4701 = vpop.f32.mrb[0].mxu0
    %v4702 = vadd.f32 0.0, %v4701
    %v4703 = vpop.f32.mrb[0].mxu0
    %v4704 = vpop.f32.mrb[0].mxu0
    %v4705 = vadd.f32 0.0, %v4704
    %v4706 = vpop.f32.mrb[0].mxu0
    %4707 = vmatprep.mubr.bf16.mxu0 0
    %4708 = vmatmul.mubr.bf16.gmra.mrb[0].mxu0 %v4057
    %v4709 = vpop.f32.mrb[0].mxu0
    %v4710 = vadd.f32 0.0, %v4709
    %v4711 = vpop.f32.mrb[0].mxu0
    %v4712 = vpop.f32.mrb[0].mxu0
    %v4713 = vadd.f32 0.0, %v4712
    %v4714 = vpop.f32.mrb[0].mxu0
    %4715 = vmatprep.mubr.bf16.mxu0 0
    %4716 = vmatmul.mubr.bf16.gmra.mrb[0].mxu0 %v4060
    %v4717 = vpop.f32.mrb[0].mxu0
    %v4718 = vadd.f32 0.0, %v4717
    %v4719 = vpop.f32.mrb[0].mxu0
    %v4720 = vpop.f32.mrb[0].mxu0
    %v4721 = vadd.f32 0.0, %v4720
    %v4722 = vpop.f32.mrb[0].mxu0
    %4723 = vmatprep.mubr.bf16.mxu0 0
    %4724 = vmatmul.mubr.bf16.gmra.mrb[0].mxu0 %v4063
    %v4725 = vpop.f32.mrb[0].mxu0
    %v4726 = vadd.f32 0.0, %v4725
    %v4727 = vpop.f32.mrb[0].mxu0
    %v4728 = vpop.f32.mrb[0].mxu0
    %v4729 = vadd.f32 0.0, %v4728
    %v4730 = vpop.f32.mrb[0].mxu0
    %4731 = vmatprep.mubr.bf16.mxu0 0
    %4732 = vmatmul.mubr.bf16.gmra.mrb[0].mxu0 %v4066
    %v4733 = vpop.f32.mrb[0].mxu0
    %v4734 = vadd.f32 0.0, %v4733
    %v4735 = vpop.f32.mrb[0].mxu0
    %v4736 = vpop.f32.mrb[0].mxu0
    %v4737 = vadd.f32 0.0, %v4736
    %v4738 = vpop.f32.mrb[0].mxu0
    %4739 = vmatprep.mubr.bf16.mxu0 0
    %4740 = vmatmul.mubr.bf16.gmra.mrb[0].mxu0 %v4069
    %v4741 = vpop.f32.mrb[0].mxu0
    %v4742 = vadd.f32 0.0, %v4741
    %v4743 = vpop.f32.mrb[0].mxu0
    %v4744 = vpop.f32.mrb[0].mxu0
    %v4745 = vadd.f32 0.0, %v4744
    %v4746 = vpop.f32.mrb[0].mxu0
    %4747 = vmatprep.mubr.bf16.mxu0 0
    %4748 = vmatmul.mubr.bf16.gmra.mrb[0].mxu0 %v4072
    %v4749 = vpop.f32.mrb[0].mxu0
    %v4750 = vadd.f32 0.0, %v4749
    %v4751 = vpop.f32.mrb[0].mxu0
    %v4752 = vpop.f32.mrb[0].mxu0
    %v4753 = vadd.f32 0.0, %v4752
    %v4754 = vpop.f32.mrb[0].mxu0
    %4755 = vmatprep.mubr.bf16.mxu0 0
    %4756 = vmatmul.mubr.bf16.gmra.mrb[0].mxu0 %v4075
    %v4757 = vpop.f32.mrb[0].mxu0
    %v4758 = vadd.f32 0.0, %v4757
    %v4759 = vpop.f32.mrb[0].mxu0
    %v4760 = vpop.f32.mrb[0].mxu0
    %v4761 = vadd.f32 0.0, %v4760
    %v4762 = vpop.f32.mrb[0].mxu0
    %4763 = vmatprep.mubr.bf16.mxu0 0
    %4764 = vmatmul.mubr.bf16.gmra.mrb[0].mxu0 %v4609
    %v4765 = vpop.f32.mrb[0].mxu0
    %v4766 = vadd.f32 0.0, %v4765
    %v4767 = vpop.f32.mrb[0].mxu0
    %v4768 = vpop.f32.mrb[0].mxu0
    %v4769 = vadd.f32 0.0, %v4768
    %v4770 = vpop.f32.mrb[0].mxu0
    %4771 = vdwg.mxu0
    %v4772 = vadd.f32 %v4543, %v4646
    %v4773 = vadd.f32 %v4544, %v4649
    %v4774 = vadd.f32 %v4545, %v4654
    %v4775 = vadd.f32 %v4546, %v4657
    %v4776 = vadd.f32 %v4547, %v4662
    %v4777 = vadd.f32 %v4548, %v4665
    %v4778 = vadd.f32 %v4549, %v4670
    %v4779 = vadd.f32 %v4550, %v4673
    %v4780 = vadd.f32 %v4551, %v4678
    %v4781 = vadd.f32 %v4552, %v4681
    %v4782 = vadd.f32 %v4553, %v4686
    %v4783 = vadd.f32 %v4554, %v4689
    %v4784 = vadd.f32 %v4555, %v4694
    %v4785 = vadd.f32 %v4556, %v4697
    %v4786 = vadd.f32 %v4557, %v4702
    %v4787 = vadd.f32 %v4558, %v4705
    %v4788 = vadd.f32 %v4559, %v4710
    %v4789 = vadd.f32 %v4560, %v4713
    %v4790 = vadd.f32 %v4561, %v4718
    %v4791 = vadd.f32 %v4562, %v4721
    %v4792 = vadd.f32 %v4563, %v4726
    %v4793 = vadd.f32 %v4564, %v4729
    %v4794 = vadd.f32 %v4565, %v4734
    %v4795 = vadd.f32 %v4566, %v4737
    %v4796 = vadd.f32 %v4567, %v4742
    %v4797 = vadd.f32 %v4568, %v4745
    %v4798 = vadd.f32 %v4569, %v4750
    %v4799 = vadd.f32 %v4570, %v4753
    %v4800 = vadd.f32 %v4571, %v4758
    %v4801 = vadd.f32 %v4572, %v4761
    %v4802 = vadd.f32 %v4573, %v4766
    %v4803 = vadd.f32 %v4574, %v4769
    %v4804 = vpack.c.bf16 %v3304, %v3302
    %v4805 = vpack.c.bf16 %v3339, %v3339
    %v4806 = vld [vmem:[%s9 + $0x80] sm:$0xf]
    %v4807 = vld [vmem:[%s9 + $0x84] sm:$0xf]
    %v4808 = vld [vmem:[%s9 + $0x88] sm:$0xf]
    %v4809 = vld [vmem:[%s9 + $0x8c] sm:$0xf]
    %v4810 = vld [vmem:[%s9 + $0x90] sm:$0xf]
    %v4811 = vld [vmem:[%s9 + $0x94] sm:$0xf]
    %v4812 = vld [vmem:[%s9 + $0x98] sm:$0xf]
    %v4813 = vld [vmem:[%s9 + $0x9c] sm:$0xf]
    %v4815 = vshll.u32 %v4804, 16
    %v4817 = vrot.slane %v4815, 1
    %v4818 = vsel %vm953, %v3766, %v4817
    %v4819 = vshrl.u32 %v4804, 16
    %v4821 = vor.u32 %v4819, %v4817
    %v4823 = vshll.u32 %v4805, 16
    %v4825 = vrot.slane %v4823, 1
    %v4826 = vsel %vm953, %v4821, %v4825
    %v4835 = vunpack.c.l.b16 %v4806
    %v4836 = vunpack.c.l.b16 %v4807
    %v4837 = vunpack.c.l.b16 %v4808
    %v4838 = vunpack.c.l.b16 %v4809
    %v4839 = vunpack.c.l.b16 %v4810
    %v4840 = vunpack.c.l.b16 %v4811
    %v4841 = vunpack.c.l.b16 %v4812
    %v4842 = vunpack.c.l.b16 %v4813
    %v4843 = vpack.c.b16 %v4836, %v4835
    %v4844 = vpack.c.b16 %v4838, %v4837
    %v4845 = vpack.c.b16 %v4840, %v4839
    %v4846 = vpack.c.b16 %v4842, %v4841
    %v4852 = vsel %vm3796, %v4818, 0
    %v4855 = vsel %vm3796, %v4826, 0
    %4857 = vmatprep.subr.bf16.mxu0 0
    %4858 = vmatpush1.bf16.msra.mxu0 %v4843
    %4859 = vmatprep.subr.bf16.mxu0 0
    %4860 = vmatpush1.bf16.msra.mxu0 %v4844
    %4861 = vmatprep.subr.bf16.mxu0 0
    %4862 = vmatpush1.bf16.msra.mxu0 %v4845
    %4863 = vmatprep.subr.bf16.mxu0 0
    %4864 = vmatpush1.bf16.msra.mxu0 %v4846
    %4865 = vmatprep.subr.bf16.mxu0 0
    %4866 = vmatpush1.bf16.msra.mxu0 0
    %4867 = vmatprep.subr.bf16.mxu0 0
    %4868 = vmatpush1.bf16.msra.mxu0 0
    %4869 = vmatprep.subr.bf16.mxu0 0
    %4870 = vmatpush1.bf16.msra.mxu0 0
    %4871 = vmatprep.subr.bf16.mxu0 0
    %4872 = vmatpush1.bf16.msra.mxu0 0
    %4873 = vmatprep.subr.bf16.mxu0 0
    %4874 = vmatpush1.bf16.msra.mxu0 0
    %4875 = vmatprep.subr.bf16.mxu0 0
    %4876 = vmatpush1.bf16.msra.mxu0 0
    %4877 = vmatprep.subr.bf16.mxu0 0
    %4878 = vmatpush1.bf16.msra.mxu0 0
    %4879 = vmatprep.subr.bf16.mxu0 0
    %4880 = vmatpush1.bf16.msra.mxu0 0
    %4881 = vmatprep.subr.bf16.mxu0 0
    %4882 = vmatpush1.bf16.msra.mxu0 0
    %4883 = vmatprep.subr.bf16.mxu0 0
    %4884 = vmatpush1.bf16.msra.mxu0 0
    %4885 = vmatprep.subr.bf16.mxu0 0
    %4886 = vmatpush1.bf16.msra.mxu0 0
    %4887 = vmatprep.subr.bf16.mxu0 0
    %4888 = vmatpush1.bf16.msra.mxu0 0
    %4889 = vmatprep.mubr.bf16.mxu0 0
    %4890 = vmatmul.mubr.bf16.gmra.mrb[0].mxu0 %v3801
    %v4891 = vpop.f32.mrb[0].mxu0
    %v4892 = vadd.f32 0.0, %v4891
    %v4893 = vpop.f32.mrb[0].mxu0
    %v4894 = vpop.f32.mrb[0].mxu0
    %v4895 = vadd.f32 0.0, %v4894
    %v4896 = vpop.f32.mrb[0].mxu0
    %4897 = vmatprep.mubr.bf16.mxu0 0
    %4898 = vmatmul.mubr.bf16.gmra.mrb[0].mxu0 %v3804
    %v4899 = vpop.f32.mrb[0].mxu0
    %v4900 = vadd.f32 0.0, %v4899
    %v4901 = vpop.f32.mrb[0].mxu0
    %v4902 = vpop.f32.mrb[0].mxu0
    %v4903 = vadd.f32 0.0, %v4902
    %v4904 = vpop.f32.mrb[0].mxu0
    %4905 = vmatprep.mubr.bf16.mxu0 0
    %4906 = vmatmul.mubr.bf16.gmra.mrb[0].mxu0 %v3807
    %v4907 = vpop.f32.mrb[0].mxu0
    %v4908 = vadd.f32 0.0, %v4907
    %v4909 = vpop.f32.mrb[0].mxu0
    %v4910 = vpop.f32.mrb[0].mxu0
    %v4911 = vadd.f32 0.0, %v4910
    %v4912 = vpop.f32.mrb[0].mxu0
    %4913 = vmatprep.mubr.bf16.mxu0 0
    %4914 = vmatmul.mubr.bf16.gmra.mrb[0].mxu0 %v3810
    %v4915 = vpop.f32.mrb[0].mxu0
    %v4916 = vadd.f32 0.0, %v4915
    %v4917 = vpop.f32.mrb[0].mxu0
    %v4918 = vpop.f32.mrb[0].mxu0
    %v4919 = vadd.f32 0.0, %v4918
    %v4920 = vpop.f32.mrb[0].mxu0
    %4921 = vmatprep.mubr.bf16.mxu0 0
    %4922 = vmatmul.mubr.bf16.gmra.mrb[0].mxu0 %v3813
    %v4923 = vpop.f32.mrb[0].mxu0
    %v4924 = vadd.f32 0.0, %v4923
    %v4925 = vpop.f32.mrb[0].mxu0
    %v4926 = vpop.f32.mrb[0].mxu0
    %v4927 = vadd.f32 0.0, %v4926
    %v4928 = vpop.f32.mrb[0].mxu0
    %4929 = vmatprep.mubr.bf16.mxu0 0
    %4930 = vmatmul.mubr.bf16.gmra.mrb[0].mxu0 %v3816
    %v4931 = vpop.f32.mrb[0].mxu0
    %v4932 = vadd.f32 0.0, %v4931
    %v4933 = vpop.f32.mrb[0].mxu0
    %v4934 = vpop.f32.mrb[0].mxu0
    %v4935 = vadd.f32 0.0, %v4934
    %v4936 = vpop.f32.mrb[0].mxu0
    %4937 = vmatprep.mubr.bf16.mxu0 0
    %4938 = vmatmul.mubr.bf16.gmra.mrb[0].mxu0 %v3819
    %v4939 = vpop.f32.mrb[0].mxu0
    %v4940 = vadd.f32 0.0, %v4939
    %v4941 = vpop.f32.mrb[0].mxu0
    %v4942 = vpop.f32.mrb[0].mxu0
    %v4943 = vadd.f32 0.0, %v4942
    %v4944 = vpop.f32.mrb[0].mxu0
    %4945 = vmatprep.mubr.bf16.mxu0 0
    %4946 = vmatmul.mubr.bf16.gmra.mrb[0].mxu0 %v3822
    %v4947 = vpop.f32.mrb[0].mxu0
    %v4948 = vadd.f32 0.0, %v4947
    %v4949 = vpop.f32.mrb[0].mxu0
    %v4950 = vpop.f32.mrb[0].mxu0
    %v4951 = vadd.f32 0.0, %v4950
    %v4952 = vpop.f32.mrb[0].mxu0
    %4953 = vmatprep.mubr.bf16.mxu0 0
    %4954 = vmatmul.mubr.bf16.gmra.mrb[0].mxu0 %v3825
    %v4955 = vpop.f32.mrb[0].mxu0
    %v4956 = vadd.f32 0.0, %v4955
    %v4957 = vpop.f32.mrb[0].mxu0
    %v4958 = vpop.f32.mrb[0].mxu0
    %v4959 = vadd.f32 0.0, %v4958
    %v4960 = vpop.f32.mrb[0].mxu0
    %4961 = vmatprep.mubr.bf16.mxu0 0
    %4962 = vmatmul.mubr.bf16.gmra.mrb[0].mxu0 %v3828
    %v4963 = vpop.f32.mrb[0].mxu0
    %v4964 = vadd.f32 0.0, %v4963
    %v4965 = vpop.f32.mrb[0].mxu0
    %v4966 = vpop.f32.mrb[0].mxu0
    %v4967 = vadd.f32 0.0, %v4966
    %v4968 = vpop.f32.mrb[0].mxu0
    %4969 = vmatprep.mubr.bf16.mxu0 0
    %4970 = vmatmul.mubr.bf16.gmra.mrb[0].mxu0 %v3831
    %v4971 = vpop.f32.mrb[0].mxu0
    %v4972 = vadd.f32 0.0, %v4971
    %v4973 = vpop.f32.mrb[0].mxu0
    %v4974 = vpop.f32.mrb[0].mxu0
    %v4975 = vadd.f32 0.0, %v4974
    %v4976 = vpop.f32.mrb[0].mxu0
    %4977 = vmatprep.mubr.bf16.mxu0 0
    %4978 = vmatmul.mubr.bf16.gmra.mrb[0].mxu0 %v3834
    %v4979 = vpop.f32.mrb[0].mxu0
    %v4980 = vadd.f32 0.0, %v4979
    %v4981 = vpop.f32.mrb[0].mxu0
    %v4982 = vpop.f32.mrb[0].mxu0
    %v4983 = vadd.f32 0.0, %v4982
    %v4984 = vpop.f32.mrb[0].mxu0
    %4985 = vmatprep.mubr.bf16.mxu0 0
    %4986 = vmatmul.mubr.bf16.gmra.mrb[0].mxu0 %v3837
    %v4987 = vpop.f32.mrb[0].mxu0
    %v4988 = vadd.f32 0.0, %v4987
    %v4989 = vpop.f32.mrb[0].mxu0
    %v4990 = vpop.f32.mrb[0].mxu0
    %v4991 = vadd.f32 0.0, %v4990
    %v4992 = vpop.f32.mrb[0].mxu0
    %4993 = vmatprep.mubr.bf16.mxu0 0
    %4994 = vmatmul.mubr.bf16.gmra.mrb[0].mxu0 %v3840
    %v4995 = vpop.f32.mrb[0].mxu0
    %v4996 = vadd.f32 0.0, %v4995
    %v4997 = vpop.f32.mrb[0].mxu0
    %v4998 = vpop.f32.mrb[0].mxu0
    %v4999 = vadd.f32 0.0, %v4998
    %v5000 = vpop.f32.mrb[0].mxu0
    %5001 = vmatprep.mubr.bf16.mxu0 0
    %5002 = vmatmul.mubr.bf16.gmra.mrb[0].mxu0 %v4852
    %v5003 = vpop.f32.mrb[0].mxu0
    %v5004 = vadd.f32 0.0, %v5003
    %v5005 = vpop.f32.mrb[0].mxu0
    %v5006 = vpop.f32.mrb[0].mxu0
    %v5007 = vadd.f32 0.0, %v5006
    %v5008 = vpop.f32.mrb[0].mxu0
    %5009 = vmatprep.mubr.bf16.mxu0 0
    %5010 = vmatmul.mubr.bf16.gmra.mrb[0].mxu0 %v4855
    %v5011 = vpop.f32.mrb[0].mxu0
    %v5012 = vadd.f32 0.0, %v5011
    %v5013 = vpop.f32.mrb[0].mxu0
    %v5014 = vpop.f32.mrb[0].mxu0
    %v5015 = vadd.f32 0.0, %v5014
    %v5016 = vpop.f32.mrb[0].mxu0
    %5017 = vdwg.mxu0
    %v5018 = vadd.f32 %v4772, %v4892
    %v5019 = vadd.f32 %v4773, %v4895
    %v5020 = vadd.f32 %v4774, %v4900
    %v5021 = vadd.f32 %v4775, %v4903
    %v5022 = vadd.f32 %v4776, %v4908
    %v5023 = vadd.f32 %v4777, %v4911
    %v5024 = vadd.f32 %v4778, %v4916
    %v5025 = vadd.f32 %v4779, %v4919
    %v5026 = vadd.f32 %v4780, %v4924
    %v5027 = vadd.f32 %v4781, %v4927
    %v5028 = vadd.f32 %v4782, %v4932
    %v5029 = vadd.f32 %v4783, %v4935
    %v5030 = vadd.f32 %v4784, %v4940
    %v5031 = vadd.f32 %v4785, %v4943
    %v5032 = vadd.f32 %v4786, %v4948
    %v5033 = vadd.f32 %v4787, %v4951
    %v5034 = vadd.f32 %v4788, %v4956
    %v5035 = vadd.f32 %v4789, %v4959
    %v5036 = vadd.f32 %v4790, %v4964
    %v5037 = vadd.f32 %v4791, %v4967
    %v5038 = vadd.f32 %v4792, %v4972
    %v5039 = vadd.f32 %v4793, %v4975
    %v5040 = vadd.f32 %v4794, %v4980
    %v5041 = vadd.f32 %v4795, %v4983
    %v5042 = vadd.f32 %v4796, %v4988
    %v5043 = vadd.f32 %v4797, %v4991
    %v5044 = vadd.f32 %v4798, %v4996
    %v5045 = vadd.f32 %v4799, %v4999
    %v5046 = vadd.f32 %v4800, %v5004
    %v5047 = vadd.f32 %v4801, %v5007
    %v5048 = vadd.f32 %v4802, %v5012
    %v5049 = vadd.f32 %v4803, %v5015
    %v5050 = vpack.c.bf16 %v3434, %v3432
    %v5051 = vpack.c.bf16 %v3469, %v3469
    %v5052 = vld [vmem:[%s9 + $0xa0] sm:$0xf]
    %v5053 = vld [vmem:[%s9 + $0xa4] sm:$0xf]
    %v5054 = vld [vmem:[%s9 + $0xa8] sm:$0xf]
    %v5055 = vld [vmem:[%s9 + $0xac] sm:$0xf]
    %v5056 = vld [vmem:[%s9 + $0xb0] sm:$0xf]
    %v5057 = vld [vmem:[%s9 + $0xb4] sm:$0xf]
    %v5058 = vld [vmem:[%s9 + $0xb8] sm:$0xf]
    %v5059 = vld [vmem:[%s9 + $0xbc] sm:$0xf]
    %v5062 = vrot.slane %v5050, 1
    %v5063 = vsel %vm1545, %v4306, %v5062
    %v5064 = vrot.slane %v5051, 1
    %v5065 = vsel %vm1545, %v5062, %v5064
    %v5074 = vunpack.c.l.b16 %v5052
    %v5075 = vunpack.c.l.b16 %v5053
    %v5076 = vunpack.c.l.b16 %v5054
    %v5077 = vunpack.c.l.b16 %v5055
    %v5078 = vunpack.c.l.b16 %v5056
    %v5079 = vunpack.c.l.b16 %v5057
    %v5080 = vunpack.c.l.b16 %v5058
    %v5081 = vunpack.c.l.b16 %v5059
    %v5082 = vpack.c.b16 %v5075, %v5074
    %v5083 = vpack.c.b16 %v5077, %v5076
    %v5084 = vpack.c.b16 %v5079, %v5078
    %v5085 = vpack.c.b16 %v5081, %v5080
    %v5091 = vsel %vm3796, %v5063, 0
    %v5094 = vsel %vm3796, %v5065, 0
    %5096 = vmatprep.subr.bf16.mxu0 0
    %5097 = vmatpush1.bf16.msra.mxu0 %v5082
    %5098 = vmatprep.subr.bf16.mxu0 0
    %5099 = vmatpush1.bf16.msra.mxu0 %v5083
    %5100 = vmatprep.subr.bf16.mxu0 0
    %5101 = vmatpush1.bf16.msra.mxu0 %v5084
    %5102 = vmatprep.subr.bf16.mxu0 0
    %5103 = vmatpush1.bf16.msra.mxu0 %v5085
    %5104 = vmatprep.subr.bf16.mxu0 0
    %5105 = vmatpush1.bf16.msra.mxu0 0
    %5106 = vmatprep.subr.bf16.mxu0 0
    %5107 = vmatpush1.bf16.msra.mxu0 0
    %5108 = vmatprep.subr.bf16.mxu0 0
    %5109 = vmatpush1.bf16.msra.mxu0 0
    %5110 = vmatprep.subr.bf16.mxu0 0
    %5111 = vmatpush1.bf16.msra.mxu0 0
    %5112 = vmatprep.subr.bf16.mxu0 0
    %5113 = vmatpush1.bf16.msra.mxu0 0
    %5114 = vmatprep.subr.bf16.mxu0 0
    %5115 = vmatpush1.bf16.msra.mxu0 0
    %5116 = vmatprep.subr.bf16.mxu0 0
    %5117 = vmatpush1.bf16.msra.mxu0 0
    %5118 = vmatprep.subr.bf16.mxu0 0
    %5119 = vmatpush1.bf16.msra.mxu0 0
    %5120 = vmatprep.subr.bf16.mxu0 0
    %5121 = vmatpush1.bf16.msra.mxu0 0
    %5122 = vmatprep.subr.bf16.mxu0 0
    %5123 = vmatpush1.bf16.msra.mxu0 0
    %5124 = vmatprep.subr.bf16.mxu0 0
    %5125 = vmatpush1.bf16.msra.mxu0 0
    %5126 = vmatprep.subr.bf16.mxu0 0
    %5127 = vmatpush1.bf16.msra.mxu0 0
    %5128 = vmatprep.mubr.bf16.mxu0 0
    %5129 = vmatmul.mubr.bf16.gmra.mrb[0].mxu0 %v4338
    %v5130 = vpop.f32.mrb[0].mxu0
    %v5131 = vadd.f32 0.0, %v5130
    %v5132 = vpop.f32.mrb[0].mxu0
    %v5133 = vpop.f32.mrb[0].mxu0
    %v5134 = vadd.f32 0.0, %v5133
    %v5135 = vpop.f32.mrb[0].mxu0
    %5136 = vmatprep.mubr.bf16.mxu0 0
    %5137 = vmatmul.mubr.bf16.gmra.mrb[0].mxu0 %v4341
    %v5138 = vpop.f32.mrb[0].mxu0
    %v5139 = vadd.f32 0.0, %v5138
    %v5140 = vpop.f32.mrb[0].mxu0
    %v5141 = vpop.f32.mrb[0].mxu0
    %v5142 = vadd.f32 0.0, %v5141
    %v5143 = vpop.f32.mrb[0].mxu0
    %5144 = vmatprep.mubr.bf16.mxu0 0
    %5145 = vmatmul.mubr.bf16.gmra.mrb[0].mxu0 %v4344
    %v5146 = vpop.f32.mrb[0].mxu0
    %v5147 = vadd.f32 0.0, %v5146
    %v5148 = vpop.f32.mrb[0].mxu0
    %v5149 = vpop.f32.mrb[0].mxu0
    %v5150 = vadd.f32 0.0, %v5149
    %v5151 = vpop.f32.mrb[0].mxu0
    %5152 = vmatprep.mubr.bf16.mxu0 0
    %5153 = vmatmul.mubr.bf16.gmra.mrb[0].mxu0 %v4347
    %v5154 = vpop.f32.mrb[0].mxu0
    %v5155 = vadd.f32 0.0, %v5154
    %v5156 = vpop.f32.mrb[0].mxu0
    %v5157 = vpop.f32.mrb[0].mxu0
    %v5158 = vadd.f32 0.0, %v5157
    %v5159 = vpop.f32.mrb[0].mxu0
    %5160 = vmatprep.mubr.bf16.mxu0 0
    %5161 = vmatmul.mubr.bf16.gmra.mrb[0].mxu0 %v4350
    %v5162 = vpop.f32.mrb[0].mxu0
    %v5163 = vadd.f32 0.0, %v5162
    %v5164 = vpop.f32.mrb[0].mxu0
    %v5165 = vpop.f32.mrb[0].mxu0
    %v5166 = vadd.f32 0.0, %v5165
    %v5167 = vpop.f32.mrb[0].mxu0
    %5168 = vmatprep.mubr.bf16.mxu0 0
    %5169 = vmatmul.mubr.bf16.gmra.mrb[0].mxu0 %v4353
    %v5170 = vpop.f32.mrb[0].mxu0
    %v5171 = vadd.f32 0.0, %v5170
    %v5172 = vpop.f32.mrb[0].mxu0
    %v5173 = vpop.f32.mrb[0].mxu0
    %v5174 = vadd.f32 0.0, %v5173
    %v5175 = vpop.f32.mrb[0].mxu0
    %5176 = vmatprep.mubr.bf16.mxu0 0
    %5177 = vmatmul.mubr.bf16.gmra.mrb[0].mxu0 %v4356
    %v5178 = vpop.f32.mrb[0].mxu0
    %v5179 = vadd.f32 0.0, %v5178
    %v5180 = vpop.f32.mrb[0].mxu0
    %v5181 = vpop.f32.mrb[0].mxu0
    %v5182 = vadd.f32 0.0, %v5181
    %v5183 = vpop.f32.mrb[0].mxu0
    %5184 = vmatprep.mubr.bf16.mxu0 0
    %5185 = vmatmul.mubr.bf16.gmra.mrb[0].mxu0 %v4359
    %v5186 = vpop.f32.mrb[0].mxu0
    %v5187 = vadd.f32 0.0, %v5186
    %v5188 = vpop.f32.mrb[0].mxu0
    %v5189 = vpop.f32.mrb[0].mxu0
    %v5190 = vadd.f32 0.0, %v5189
    %v5191 = vpop.f32.mrb[0].mxu0
    %5192 = vmatprep.mubr.bf16.mxu0 0
    %5193 = vmatmul.mubr.bf16.gmra.mrb[0].mxu0 %v4362
    %v5194 = vpop.f32.mrb[0].mxu0
    %v5195 = vadd.f32 0.0, %v5194
    %v5196 = vpop.f32.mrb[0].mxu0
    %v5197 = vpop.f32.mrb[0].mxu0
    %v5198 = vadd.f32 0.0, %v5197
    %v5199 = vpop.f32.mrb[0].mxu0
    %5200 = vmatprep.mubr.bf16.mxu0 0
    %5201 = vmatmul.mubr.bf16.gmra.mrb[0].mxu0 %v4365
    %v5202 = vpop.f32.mrb[0].mxu0
    %v5203 = vadd.f32 0.0, %v5202
    %v5204 = vpop.f32.mrb[0].mxu0
    %v5205 = vpop.f32.mrb[0].mxu0
    %v5206 = vadd.f32 0.0, %v5205
    %v5207 = vpop.f32.mrb[0].mxu0
    %5208 = vmatprep.mubr.bf16.mxu0 0
    %5209 = vmatmul.mubr.bf16.gmra.mrb[0].mxu0 %v4368
    %v5210 = vpop.f32.mrb[0].mxu0
    %v5211 = vadd.f32 0.0, %v5210
    %v5212 = vpop.f32.mrb[0].mxu0
    %v5213 = vpop.f32.mrb[0].mxu0
    %v5214 = vadd.f32 0.0, %v5213
    %v5215 = vpop.f32.mrb[0].mxu0
    %5216 = vmatprep.mubr.bf16.mxu0 0
    %5217 = vmatmul.mubr.bf16.gmra.mrb[0].mxu0 %v4371
    %v5218 = vpop.f32.mrb[0].mxu0
    %v5219 = vadd.f32 0.0, %v5218
    %v5220 = vpop.f32.mrb[0].mxu0
    %v5221 = vpop.f32.mrb[0].mxu0
    %v5222 = vadd.f32 0.0, %v5221
    %v5223 = vpop.f32.mrb[0].mxu0
    %5224 = vmatprep.mubr.bf16.mxu0 0
    %5225 = vmatmul.mubr.bf16.gmra.mrb[0].mxu0 %v4374
    %v5226 = vpop.f32.mrb[0].mxu0
    %v5227 = vadd.f32 0.0, %v5226
    %v5228 = vpop.f32.mrb[0].mxu0
    %v5229 = vpop.f32.mrb[0].mxu0
    %v5230 = vadd.f32 0.0, %v5229
    %v5231 = vpop.f32.mrb[0].mxu0
    %5232 = vmatprep.mubr.bf16.mxu0 0
    %5233 = vmatmul.mubr.bf16.gmra.mrb[0].mxu0 %v4377
    %v5234 = vpop.f32.mrb[0].mxu0
    %v5235 = vadd.f32 0.0, %v5234
    %v5236 = vpop.f32.mrb[0].mxu0
    %v5237 = vpop.f32.mrb[0].mxu0
    %v5238 = vadd.f32 0.0, %v5237
    %v5239 = vpop.f32.mrb[0].mxu0
    %5240 = vmatprep.mubr.bf16.mxu0 0
    %5241 = vmatmul.mubr.bf16.gmra.mrb[0].mxu0 %v5091
    %v5242 = vpop.f32.mrb[0].mxu0
    %v5243 = vadd.f32 0.0, %v5242
    %v5244 = vpop.f32.mrb[0].mxu0
    %v5245 = vpop.f32.mrb[0].mxu0
    %v5246 = vadd.f32 0.0, %v5245
    %v5247 = vpop.f32.mrb[0].mxu0
    %5248 = vmatprep.mubr.bf16.mxu0 0
    %5249 = vmatmul.mubr.bf16.gmra.mrb[0].mxu0 %v5094
    %v5250 = vpop.f32.mrb[0].mxu0
    %v5251 = vadd.f32 0.0, %v5250
    %v5252 = vpop.f32.mrb[0].mxu0
    %v5253 = vpop.f32.mrb[0].mxu0
    %v5254 = vadd.f32 0.0, %v5253
    %v5255 = vpop.f32.mrb[0].mxu0
    %5256 = vdwg.mxu0
    %v5257 = vadd.f32 %v5018, %v5131
    %v5258 = vadd.f32 %v5019, %v5134
    %v5259 = vadd.f32 %v5020, %v5139
    %v5260 = vadd.f32 %v5021, %v5142
    %v5261 = vadd.f32 %v5022, %v5147
    %v5262 = vadd.f32 %v5023, %v5150
    %v5263 = vadd.f32 %v5024, %v5155
    %v5264 = vadd.f32 %v5025, %v5158
    %v5265 = vadd.f32 %v5026, %v5163
    %v5266 = vadd.f32 %v5027, %v5166
    %v5267 = vadd.f32 %v5028, %v5171
    %v5268 = vadd.f32 %v5029, %v5174
    %v5269 = vadd.f32 %v5030, %v5179
    %v5270 = vadd.f32 %v5031, %v5182
    %v5271 = vadd.f32 %v5032, %v5187
    %v5272 = vadd.f32 %v5033, %v5190
    %v5273 = vadd.f32 %v5034, %v5195
    %v5274 = vadd.f32 %v5035, %v5198
    %v5275 = vadd.f32 %v5036, %v5203
    %v5276 = vadd.f32 %v5037, %v5206
    %v5277 = vadd.f32 %v5038, %v5211
    %v5278 = vadd.f32 %v5039, %v5214
    %v5279 = vadd.f32 %v5040, %v5219
    %v5280 = vadd.f32 %v5041, %v5222
    %v5281 = vadd.f32 %v5042, %v5227
    %v5282 = vadd.f32 %v5043, %v5230
    %v5283 = vadd.f32 %v5044, %v5235
    %v5284 = vadd.f32 %v5045, %v5238
    %v5285 = vadd.f32 %v5046, %v5243
    %v5286 = vadd.f32 %v5047, %v5246
    %v5287 = vadd.f32 %v5048, %v5251
    %v5288 = vadd.f32 %v5049, %v5254
    %v5289 = vpack.c.bf16 0.0, %v3599
    %v5290 = vld [vmem:[%s9 + $0xc0] sm:$0xf]
    %v5291 = vld [vmem:[%s9 + $0xc4] sm:$0xf]
    %v5292 = vld [vmem:[%s9 + $0xc8] sm:$0xf]
    %v5293 = vld [vmem:[%s9 + $0xcc] sm:$0xf]
    %v5294 = vld [vmem:[%s9 + $0xd0] sm:$0xf]
    %v5295 = vld [vmem:[%s9 + $0xd4] sm:$0xf]
    %v5296 = vld [vmem:[%s9 + $0xd8] sm:$0xf]
    %v5297 = vld [vmem:[%s9 + $0xdc] sm:$0xf]
    %v5306 = vunpack.c.l.b16 %v5290
    %v5307 = vunpack.c.l.b16 %v5291
    %v5308 = vunpack.c.l.b16 %v5292
    %v5309 = vunpack.c.l.b16 %v5293
    %v5310 = vunpack.c.l.b16 %v5294
    %v5311 = vunpack.c.l.b16 %v5295
    %v5312 = vunpack.c.l.b16 %v5296
    %v5313 = vunpack.c.l.b16 %v5297
    %v5314 = vpack.c.b16 %v5307, %v5306
    %v5315 = vpack.c.b16 %v5309, %v5308
    %v5316 = vpack.c.b16 %v5311, %v5310
    %v5317 = vpack.c.b16 %v5313, %v5312
    %v5323 = vsel %vm3796, %v5289, 0
    %5325 = vmatprep.subr.bf16.mxu0 0
    %5326 = vmatpush1.bf16.msra.mxu0 %v5314
    %5327 = vmatprep.subr.bf16.mxu0 0
    %5328 = vmatpush1.bf16.msra.mxu0 %v5315
    %5329 = vmatprep.subr.bf16.mxu0 0
    %5330 = vmatpush1.bf16.msra.mxu0 %v5316
    %5331 = vmatprep.subr.bf16.mxu0 0
    %5332 = vmatpush1.bf16.msra.mxu0 %v5317
    %5333 = vmatprep.subr.bf16.mxu0 0
    %5334 = vmatpush1.bf16.msra.mxu0 0
    %5335 = vmatprep.subr.bf16.mxu0 0
    %5336 = vmatpush1.bf16.msra.mxu0 0
    %5337 = vmatprep.subr.bf16.mxu0 0
    %5338 = vmatpush1.bf16.msra.mxu0 0
    %5339 = vmatprep.subr.bf16.mxu0 0
    %5340 = vmatpush1.bf16.msra.mxu0 0
    %5341 = vmatprep.subr.bf16.mxu0 0
    %5342 = vmatpush1.bf16.msra.mxu0 0
    %5343 = vmatprep.subr.bf16.mxu0 0
    %5344 = vmatpush1.bf16.msra.mxu0 0
    %5345 = vmatprep.subr.bf16.mxu0 0
    %5346 = vmatpush1.bf16.msra.mxu0 0
    %5347 = vmatprep.subr.bf16.mxu0 0
    %5348 = vmatpush1.bf16.msra.mxu0 0
    %5349 = vmatprep.subr.bf16.mxu0 0
    %5350 = vmatpush1.bf16.msra.mxu0 0
    %5351 = vmatprep.subr.bf16.mxu0 0
    %5352 = vmatpush1.bf16.msra.mxu0 0
    %5353 = vmatprep.subr.bf16.mxu0 0
    %5354 = vmatpush1.bf16.msra.mxu0 0
    %5355 = vmatprep.subr.bf16.mxu0 0
    %5356 = vmatpush1.bf16.msra.mxu0 0
    %5357 = vmatprep.mubr.bf16.mxu0 0
    %5358 = vmatmul.mubr.bf16.gmra.mrb[0].mxu0 %v4036
    %v5359 = vpop.f32.mrb[0].mxu0
    %v5360 = vadd.f32 0.0, %v5359
    %v5361 = vpop.f32.mrb[0].mxu0
    %v5362 = vpop.f32.mrb[0].mxu0
    %v5363 = vadd.f32 0.0, %v5362
    %v5364 = vpop.f32.mrb[0].mxu0
    %5365 = vmatprep.mubr.bf16.mxu0 0
    %5366 = vmatmul.mubr.bf16.gmra.mrb[0].mxu0 %v4039
    %v5367 = vpop.f32.mrb[0].mxu0
    %v5368 = vadd.f32 0.0, %v5367
    %v5369 = vpop.f32.mrb[0].mxu0
    %v5370 = vpop.f32.mrb[0].mxu0
    %v5371 = vadd.f32 0.0, %v5370
    %v5372 = vpop.f32.mrb[0].mxu0
    %5373 = vmatprep.mubr.bf16.mxu0 0
    %5374 = vmatmul.mubr.bf16.gmra.mrb[0].mxu0 %v4042
    %v5375 = vpop.f32.mrb[0].mxu0
    %v5376 = vadd.f32 0.0, %v5375
    %v5377 = vpop.f32.mrb[0].mxu0
    %v5378 = vpop.f32.mrb[0].mxu0
    %v5379 = vadd.f32 0.0, %v5378
    %v5380 = vpop.f32.mrb[0].mxu0
    %5381 = vmatprep.mubr.bf16.mxu0 0
    %5382 = vmatmul.mubr.bf16.gmra.mrb[0].mxu0 %v4045
    %v5383 = vpop.f32.mrb[0].mxu0
    %v5384 = vadd.f32 0.0, %v5383
    %v5385 = vpop.f32.mrb[0].mxu0
    %v5386 = vpop.f32.mrb[0].mxu0
    %v5387 = vadd.f32 0.0, %v5386
    %v5388 = vpop.f32.mrb[0].mxu0
    %5389 = vmatprep.mubr.bf16.mxu0 0
    %5390 = vmatmul.mubr.bf16.gmra.mrb[0].mxu0 %v4048
    %v5391 = vpop.f32.mrb[0].mxu0
    %v5392 = vadd.f32 0.0, %v5391
    %v5393 = vpop.f32.mrb[0].mxu0
    %v5394 = vpop.f32.mrb[0].mxu0
    %v5395 = vadd.f32 0.0, %v5394
    %v5396 = vpop.f32.mrb[0].mxu0
    %5397 = vmatprep.mubr.bf16.mxu0 0
    %5398 = vmatmul.mubr.bf16.gmra.mrb[0].mxu0 %v4051
    %v5399 = vpop.f32.mrb[0].mxu0
    %v5400 = vadd.f32 0.0, %v5399
    %v5401 = vpop.f32.mrb[0].mxu0
    %v5402 = vpop.f32.mrb[0].mxu0
    %v5403 = vadd.f32 0.0, %v5402
    %v5404 = vpop.f32.mrb[0].mxu0
    %5405 = vmatprep.mubr.bf16.mxu0 0
    %5406 = vmatmul.mubr.bf16.gmra.mrb[0].mxu0 %v4054
    %v5407 = vpop.f32.mrb[0].mxu0
    %v5408 = vadd.f32 0.0, %v5407
    %v5409 = vpop.f32.mrb[0].mxu0
    %v5410 = vpop.f32.mrb[0].mxu0
    %v5411 = vadd.f32 0.0, %v5410
    %v5412 = vpop.f32.mrb[0].mxu0
    %5413 = vmatprep.mubr.bf16.mxu0 0
    %5414 = vmatmul.mubr.bf16.gmra.mrb[0].mxu0 %v4057
    %v5415 = vpop.f32.mrb[0].mxu0
    %v5416 = vadd.f32 0.0, %v5415
    %v5417 = vpop.f32.mrb[0].mxu0
    %v5418 = vpop.f32.mrb[0].mxu0
    %v5419 = vadd.f32 0.0, %v5418
    %v5420 = vpop.f32.mrb[0].mxu0
    %5421 = vmatprep.mubr.bf16.mxu0 0
    %5422 = vmatmul.mubr.bf16.gmra.mrb[0].mxu0 %v4060
    %v5423 = vpop.f32.mrb[0].mxu0
    %v5424 = vadd.f32 0.0, %v5423
    %v5425 = vpop.f32.mrb[0].mxu0
    %v5426 = vpop.f32.mrb[0].mxu0
    %v5427 = vadd.f32 0.0, %v5426
    %v5428 = vpop.f32.mrb[0].mxu0
    %5429 = vmatprep.mubr.bf16.mxu0 0
    %5430 = vmatmul.mubr.bf16.gmra.mrb[0].mxu0 %v4063
    %v5431 = vpop.f32.mrb[0].mxu0
    %v5432 = vadd.f32 0.0, %v5431
    %v5433 = vpop.f32.mrb[0].mxu0
    %v5434 = vpop.f32.mrb[0].mxu0
    %v5435 = vadd.f32 0.0, %v5434
    %v5436 = vpop.f32.mrb[0].mxu0
    %5437 = vmatprep.mubr.bf16.mxu0 0
    %5438 = vmatmul.mubr.bf16.gmra.mrb[0].mxu0 %v4066
    %v5439 = vpop.f32.mrb[0].mxu0
    %v5440 = vadd.f32 0.0, %v5439
    %v5441 = vpop.f32.mrb[0].mxu0
    %v5442 = vpop.f32.mrb[0].mxu0
    %v5443 = vadd.f32 0.0, %v5442
    %v5444 = vpop.f32.mrb[0].mxu0
    %5445 = vmatprep.mubr.bf16.mxu0 0
    %5446 = vmatmul.mubr.bf16.gmra.mrb[0].mxu0 %v4069
    %v5447 = vpop.f32.mrb[0].mxu0
    %v5448 = vadd.f32 0.0, %v5447
    %v5449 = vpop.f32.mrb[0].mxu0
    %v5450 = vpop.f32.mrb[0].mxu0
    %v5451 = vadd.f32 0.0, %v5450
    %v5452 = vpop.f32.mrb[0].mxu0
    %5453 = vmatprep.mubr.bf16.mxu0 0
    %5454 = vmatmul.mubr.bf16.gmra.mrb[0].mxu0 %v4072
    %v5455 = vpop.f32.mrb[0].mxu0
    %v5456 = vadd.f32 0.0, %v5455
    %v5457 = vpop.f32.mrb[0].mxu0
    %v5458 = vpop.f32.mrb[0].mxu0
    %v5459 = vadd.f32 0.0, %v5458
    %v5460 = vpop.f32.mrb[0].mxu0
    %5461 = vmatprep.mubr.bf16.mxu0 0
    %5462 = vmatmul.mubr.bf16.gmra.mrb[0].mxu0 %v4075
    %v5463 = vpop.f32.mrb[0].mxu0
    %v5464 = vadd.f32 0.0, %v5463
    %v5465 = vpop.f32.mrb[0].mxu0
    %v5466 = vpop.f32.mrb[0].mxu0
    %v5467 = vadd.f32 0.0, %v5466
    %v5468 = vpop.f32.mrb[0].mxu0
    %5469 = vmatprep.mubr.bf16.mxu0 0
    %5470 = vmatmul.mubr.bf16.gmra.mrb[0].mxu0 %v4609
    %v5471 = vpop.f32.mrb[0].mxu0
    %v5472 = vadd.f32 0.0, %v5471
    %v5473 = vpop.f32.mrb[0].mxu0
    %v5474 = vpop.f32.mrb[0].mxu0
    %v5475 = vadd.f32 0.0, %v5474
    %v5476 = vpop.f32.mrb[0].mxu0
    %5477 = vmatprep.mubr.bf16.mxu0 0
    %5478 = vmatmul.mubr.bf16.gmra.mrb[0].mxu0 %v5323
    %v5479 = vpop.f32.mrb[0].mxu0
    %v5480 = vadd.f32 0.0, %v5479
    %v5481 = vpop.f32.mrb[0].mxu0
    %v5482 = vpop.f32.mrb[0].mxu0
    %v5483 = vadd.f32 0.0, %v5482
    %v5484 = vpop.f32.mrb[0].mxu0
    %5485 = vdwg.mxu0
    %v5486 = vadd.f32 %v5257, %v5360
    %v5487 = vadd.f32 %v5258, %v5363
    %v5488 = vadd.f32 %v5259, %v5368
    %v5489 = vadd.f32 %v5260, %v5371
    %v5490 = vadd.f32 %v5261, %v5376
    %v5491 = vadd.f32 %v5262, %v5379
    %v5492 = vadd.f32 %v5263, %v5384
    %v5493 = vadd.f32 %v5264, %v5387
    %v5494 = vadd.f32 %v5265, %v5392
    %v5495 = vadd.f32 %v5266, %v5395
    %v5496 = vadd.f32 %v5267, %v5400
    %v5497 = vadd.f32 %v5268, %v5403
    %v5498 = vadd.f32 %v5269, %v5408
    %v5499 = vadd.f32 %v5270, %v5411
    %v5500 = vadd.f32 %v5271, %v5416
    %v5501 = vadd.f32 %v5272, %v5419
    %v5502 = vadd.f32 %v5273, %v5424
    %v5503 = vadd.f32 %v5274, %v5427
    %v5504 = vadd.f32 %v5275, %v5432
    %v5505 = vadd.f32 %v5276, %v5435
    %v5506 = vadd.f32 %v5277, %v5440
    %v5507 = vadd.f32 %v5278, %v5443
    %v5508 = vadd.f32 %v5279, %v5448
    %v5509 = vadd.f32 %v5280, %v5451
    %v5510 = vadd.f32 %v5281, %v5456
    %v5511 = vadd.f32 %v5282, %v5459
    %v5512 = vadd.f32 %v5283, %v5464
    %v5513 = vadd.f32 %v5284, %v5467
    %v5514 = vadd.f32 %v5285, %v5472
    %v5515 = vadd.f32 %v5286, %v5475
    %v5516 = vadd.f32 %v5287, %v5480
    %v5517 = vadd.f32 %v5288, %v5483
    %v5518 = vpack.c.bf16 0.0, %v3339
    %v5519 = vld [vmem:[%s9 + $0xe0] sm:$0xf]
    %v5520 = vld [vmem:[%s9 + $0xe4] sm:$0xf]
    %v5521 = vld [vmem:[%s9 + $0xe8] sm:$0xf]
    %v5522 = vld [vmem:[%s9 + $0xec] sm:$0xf]
    %v5523 = vld [vmem:[%s9 + $0xf0] sm:$0xf]
    %v5524 = vld [vmem:[%s9 + $0xf4] sm:$0xf]
    %v5525 = vld [vmem:[%s9 + $0xf8] sm:$0xf]
    %v5526 = vld [vmem:[%s9 + $0xfc] sm:$0xf]
    %v5528 = vshll.u32 %v5518, 16
    %v5530 = vrot.slane %v5528, 1
    %v5531 = vsel %vm953, %v4821, %v5530
    %v5532 = vshrl.u32 %v5518, 16
    %v5534 = vor.u32 %v5532, %v5530
    %v5535 = vsel %vm953, %v5534, %v959
    %v5544 = vunpack.c.l.b16 %v5519
    %v5545 = vunpack.c.l.b16 %v5520
    %v5546 = vunpack.c.l.b16 %v5521
    %v5547 = vunpack.c.l.b16 %v5522
    %v5548 = vunpack.c.l.b16 %v5523
    %v5549 = vunpack.c.l.b16 %v5524
    %v5550 = vunpack.c.l.b16 %v5525
    %v5551 = vunpack.c.l.b16 %v5526
    %v5552 = vpack.c.b16 %v5545, %v5544
    %v5553 = vpack.c.b16 %v5547, %v5546
    %v5554 = vpack.c.b16 %v5549, %v5548
    %v5555 = vpack.c.b16 %v5551, %v5550
    %v5561 = vsel %vm3796, %v5531, 0
    %v5564 = vsel %vm3796, %v5535, 0
    %5566 = vmatprep.subr.bf16.mxu0 0
    %5567 = vmatpush1.bf16.msra.mxu0 %v5552
    %5568 = vmatprep.subr.bf16.mxu0 0
    %5569 = vmatpush1.bf16.msra.mxu0 %v5553
    %5570 = vmatprep.subr.bf16.mxu0 0
    %5571 = vmatpush1.bf16.msra.mxu0 %v5554
    %5572 = vmatprep.subr.bf16.mxu0 0
    %5573 = vmatpush1.bf16.msra.mxu0 %v5555
    %5574 = vmatprep.subr.bf16.mxu0 0
    %5575 = vmatpush1.bf16.msra.mxu0 0
    %5576 = vmatprep.subr.bf16.mxu0 0
    %5577 = vmatpush1.bf16.msra.mxu0 0
    %5578 = vmatprep.subr.bf16.mxu0 0
    %5579 = vmatpush1.bf16.msra.mxu0 0
    %5580 = vmatprep.subr.bf16.mxu0 0
    %5581 = vmatpush1.bf16.msra.mxu0 0
    %5582 = vmatprep.subr.bf16.mxu0 0
    %5583 = vmatpush1.bf16.msra.mxu0 0
    %5584 = vmatprep.subr.bf16.mxu0 0
    %5585 = vmatpush1.bf16.msra.mxu0 0
    %5586 = vmatprep.subr.bf16.mxu0 0
    %5587 = vmatpush1.bf16.msra.mxu0 0
    %5588 = vmatprep.subr.bf16.mxu0 0
    %5589 = vmatpush1.bf16.msra.mxu0 0
    %5590 = vmatprep.subr.bf16.mxu0 0
    %5591 = vmatpush1.bf16.msra.mxu0 0
    %5592 = vmatprep.subr.bf16.mxu0 0
    %5593 = vmatpush1.bf16.msra.mxu0 0
    %5594 = vmatprep.subr.bf16.mxu0 0
    %5595 = vmatpush1.bf16.msra.mxu0 0
    %5596 = vmatprep.subr.bf16.mxu0 0
    %5597 = vmatpush1.bf16.msra.mxu0 0
    %5598 = vmatprep.mubr.bf16.mxu0 0
    %5599 = vmatmul.mubr.bf16.gmra.mrb[0].mxu0 %v3804
    %v5600 = vpop.f32.mrb[0].mxu0
    %v5601 = vadd.f32 0.0, %v5600
    %v5602 = vpop.f32.mrb[0].mxu0
    %v5603 = vpop.f32.mrb[0].mxu0
    %v5604 = vadd.f32 0.0, %v5603
    %v5605 = vpop.f32.mrb[0].mxu0
    %5606 = vmatprep.mubr.bf16.mxu0 0
    %5607 = vmatmul.mubr.bf16.gmra.mrb[0].mxu0 %v3807
    %v5608 = vpop.f32.mrb[0].mxu0
    %v5609 = vadd.f32 0.0, %v5608
    %v5610 = vpop.f32.mrb[0].mxu0
    %v5611 = vpop.f32.mrb[0].mxu0
    %v5612 = vadd.f32 0.0, %v5611
    %v5613 = vpop.f32.mrb[0].mxu0
    %5614 = vmatprep.mubr.bf16.mxu0 0
    %5615 = vmatmul.mubr.bf16.gmra.mrb[0].mxu0 %v3810
    %v5616 = vpop.f32.mrb[0].mxu0
    %v5617 = vadd.f32 0.0, %v5616
    %v5618 = vpop.f32.mrb[0].mxu0
    %v5619 = vpop.f32.mrb[0].mxu0
    %v5620 = vadd.f32 0.0, %v5619
    %v5621 = vpop.f32.mrb[0].mxu0
    %5622 = vmatprep.mubr.bf16.mxu0 0
    %5623 = vmatmul.mubr.bf16.gmra.mrb[0].mxu0 %v3813
    %v5624 = vpop.f32.mrb[0].mxu0
    %v5625 = vadd.f32 0.0, %v5624
    %v5626 = vpop.f32.mrb[0].mxu0
    %v5627 = vpop.f32.mrb[0].mxu0
    %v5628 = vadd.f32 0.0, %v5627
    %v5629 = vpop.f32.mrb[0].mxu0
    %5630 = vmatprep.mubr.bf16.mxu0 0
    %5631 = vmatmul.mubr.bf16.gmra.mrb[0].mxu0 %v3816
    %v5632 = vpop.f32.mrb[0].mxu0
    %v5633 = vadd.f32 0.0, %v5632
    %v5634 = vpop.f32.mrb[0].mxu0
    %v5635 = vpop.f32.mrb[0].mxu0
    %v5636 = vadd.f32 0.0, %v5635
    %v5637 = vpop.f32.mrb[0].mxu0
    %5638 = vmatprep.mubr.bf16.mxu0 0
    %5639 = vmatmul.mubr.bf16.gmra.mrb[0].mxu0 %v3819
    %v5640 = vpop.f32.mrb[0].mxu0
    %v5641 = vadd.f32 0.0, %v5640
    %v5642 = vpop.f32.mrb[0].mxu0
    %v5643 = vpop.f32.mrb[0].mxu0
    %v5644 = vadd.f32 0.0, %v5643
    %v5645 = vpop.f32.mrb[0].mxu0
    %5646 = vmatprep.mubr.bf16.mxu0 0
    %5647 = vmatmul.mubr.bf16.gmra.mrb[0].mxu0 %v3822
    %v5648 = vpop.f32.mrb[0].mxu0
    %v5649 = vadd.f32 0.0, %v5648
    %v5650 = vpop.f32.mrb[0].mxu0
    %v5651 = vpop.f32.mrb[0].mxu0
    %v5652 = vadd.f32 0.0, %v5651
    %v5653 = vpop.f32.mrb[0].mxu0
    %5654 = vmatprep.mubr.bf16.mxu0 0
    %5655 = vmatmul.mubr.bf16.gmra.mrb[0].mxu0 %v3825
    %v5656 = vpop.f32.mrb[0].mxu0
    %v5657 = vadd.f32 0.0, %v5656
    %v5658 = vpop.f32.mrb[0].mxu0
    %v5659 = vpop.f32.mrb[0].mxu0
    %v5660 = vadd.f32 0.0, %v5659
    %v5661 = vpop.f32.mrb[0].mxu0
    %5662 = vmatprep.mubr.bf16.mxu0 0
    %5663 = vmatmul.mubr.bf16.gmra.mrb[0].mxu0 %v3828
    %v5664 = vpop.f32.mrb[0].mxu0
    %v5665 = vadd.f32 0.0, %v5664
    %v5666 = vpop.f32.mrb[0].mxu0
    %v5667 = vpop.f32.mrb[0].mxu0
    %v5668 = vadd.f32 0.0, %v5667
    %v5669 = vpop.f32.mrb[0].mxu0
    %5670 = vmatprep.mubr.bf16.mxu0 0
    %5671 = vmatmul.mubr.bf16.gmra.mrb[0].mxu0 %v3831
    %v5672 = vpop.f32.mrb[0].mxu0
    %v5673 = vadd.f32 0.0, %v5672
    %v5674 = vpop.f32.mrb[0].mxu0
    %v5675 = vpop.f32.mrb[0].mxu0
    %v5676 = vadd.f32 0.0, %v5675
    %v5677 = vpop.f32.mrb[0].mxu0
    %5678 = vmatprep.mubr.bf16.mxu0 0
    %5679 = vmatmul.mubr.bf16.gmra.mrb[0].mxu0 %v3834
    %v5680 = vpop.f32.mrb[0].mxu0
    %v5681 = vadd.f32 0.0, %v5680
    %v5682 = vpop.f32.mrb[0].mxu0
    %v5683 = vpop.f32.mrb[0].mxu0
    %v5684 = vadd.f32 0.0, %v5683
    %v5685 = vpop.f32.mrb[0].mxu0
    %5686 = vmatprep.mubr.bf16.mxu0 0
    %5687 = vmatmul.mubr.bf16.gmra.mrb[0].mxu0 %v3837
    %v5688 = vpop.f32.mrb[0].mxu0
    %v5689 = vadd.f32 0.0, %v5688
    %v5690 = vpop.f32.mrb[0].mxu0
    %v5691 = vpop.f32.mrb[0].mxu0
    %v5692 = vadd.f32 0.0, %v5691
    %v5693 = vpop.f32.mrb[0].mxu0
    %5694 = vmatprep.mubr.bf16.mxu0 0
    %5695 = vmatmul.mubr.bf16.gmra.mrb[0].mxu0 %v3840
    %v5696 = vpop.f32.mrb[0].mxu0
    %v5697 = vadd.f32 0.0, %v5696
    %v5698 = vpop.f32.mrb[0].mxu0
    %v5699 = vpop.f32.mrb[0].mxu0
    %v5700 = vadd.f32 0.0, %v5699
    %v5701 = vpop.f32.mrb[0].mxu0
    %5702 = vmatprep.mubr.bf16.mxu0 0
    %5703 = vmatmul.mubr.bf16.gmra.mrb[0].mxu0 %v4852
    %v5704 = vpop.f32.mrb[0].mxu0
    %v5705 = vadd.f32 0.0, %v5704
    %v5706 = vpop.f32.mrb[0].mxu0
    %v5707 = vpop.f32.mrb[0].mxu0
    %v5708 = vadd.f32 0.0, %v5707
    %v5709 = vpop.f32.mrb[0].mxu0
    %5710 = vmatprep.mubr.bf16.mxu0 0
    %5711 = vmatmul.mubr.bf16.gmra.mrb[0].mxu0 %v5561
    %v5712 = vpop.f32.mrb[0].mxu0
    %v5713 = vadd.f32 0.0, %v5712
    %v5714 = vpop.f32.mrb[0].mxu0
    %v5715 = vpop.f32.mrb[0].mxu0
    %v5716 = vadd.f32 0.0, %v5715
    %v5717 = vpop.f32.mrb[0].mxu0
    %5718 = vmatprep.mubr.bf16.mxu0 0
    %5719 = vmatmul.mubr.bf16.gmra.mrb[0].mxu0 %v5564
    %v5720 = vpop.f32.mrb[0].mxu0
    %v5721 = vadd.f32 0.0, %v5720
    %v5722 = vpop.f32.mrb[0].mxu0
    %v5723 = vpop.f32.mrb[0].mxu0
    %v5724 = vadd.f32 0.0, %v5723
    %v5725 = vpop.f32.mrb[0].mxu0
    %5726 = vdwg.mxu0
    %v5727 = vadd.f32 %v5486, %v5601
    %v5728 = vadd.f32 %v5487, %v5604
    %v5729 = vadd.f32 %v5488, %v5609
    %v5730 = vadd.f32 %v5489, %v5612
    %v5731 = vadd.f32 %v5490, %v5617
    %v5732 = vadd.f32 %v5491, %v5620
    %v5733 = vadd.f32 %v5492, %v5625
    %v5734 = vadd.f32 %v5493, %v5628
    %v5735 = vadd.f32 %v5494, %v5633
    %v5736 = vadd.f32 %v5495, %v5636
    %v5737 = vadd.f32 %v5496, %v5641
    %v5738 = vadd.f32 %v5497, %v5644
    %v5739 = vadd.f32 %v5498, %v5649
    %v5740 = vadd.f32 %v5499, %v5652
    %v5741 = vadd.f32 %v5500, %v5657
    %v5742 = vadd.f32 %v5501, %v5660
    %v5743 = vadd.f32 %v5502, %v5665
    %v5744 = vadd.f32 %v5503, %v5668
    %v5745 = vadd.f32 %v5504, %v5673
    %v5746 = vadd.f32 %v5505, %v5676
    %v5747 = vadd.f32 %v5506, %v5681
    %v5748 = vadd.f32 %v5507, %v5684
    %v5749 = vadd.f32 %v5508, %v5689
    %v5750 = vadd.f32 %v5509, %v5692
    %v5751 = vadd.f32 %v5510, %v5697
    %v5752 = vadd.f32 %v5511, %v5700
    %v5753 = vadd.f32 %v5512, %v5705
    %v5754 = vadd.f32 %v5513, %v5708
    %v5755 = vadd.f32 %v5514, %v5713
    %v5756 = vadd.f32 %v5515, %v5716
    %v5757 = vadd.f32 %v5516, %v5721
    %v5758 = vadd.f32 %v5517, %v5724
    %v5759 = vpack.c.bf16 0.0, %v3469
    %v5760 = vld [vmem:[%s9 + $0x100] sm:$0xf]
    %v5761 = vld [vmem:[%s9 + $0x104] sm:$0xf]
    %v5762 = vld [vmem:[%s9 + $0x108] sm:$0xf]
    %v5763 = vld [vmem:[%s9 + $0x10c] sm:$0xf]
    %v5764 = vld [vmem:[%s9 + $0x110] sm:$0xf]
    %v5765 = vld [vmem:[%s9 + $0x114] sm:$0xf]
    %v5766 = vld [vmem:[%s9 + $0x118] sm:$0xf]
    %v5767 = vld [vmem:[%s9 + $0x11c] sm:$0xf]
    %v5769 = vrot.slane %v5759, 1
    %v5770 = vsel %vm1545, %v5062, %v5769
    %v5771 = vsel %vm1545, %v5769, %v1546
    %v5780 = vunpack.c.l.b16 %v5760
    %v5781 = vunpack.c.l.b16 %v5761
    %v5782 = vunpack.c.l.b16 %v5762
    %v5783 = vunpack.c.l.b16 %v5763
    %v5784 = vunpack.c.l.b16 %v5764
    %v5785 = vunpack.c.l.b16 %v5765
    %v5786 = vunpack.c.l.b16 %v5766
    %v5787 = vunpack.c.l.b16 %v5767
    %v5788 = vpack.c.b16 %v5781, %v5780
    %v5789 = vpack.c.b16 %v5783, %v5782
    %v5790 = vpack.c.b16 %v5785, %v5784
    %v5791 = vpack.c.b16 %v5787, %v5786
    %v5797 = vsel %vm3796, %v5770, 0
    %v5800 = vsel %vm3796, %v5771, 0
    %5802 = vmatprep.subr.bf16.mxu0 0
    %5803 = vmatpush1.bf16.msra.mxu0 %v5788
    %5804 = vmatprep.subr.bf16.mxu0 0
    %5805 = vmatpush1.bf16.msra.mxu0 %v5789
    %5806 = vmatprep.subr.bf16.mxu0 0
    %5807 = vmatpush1.bf16.msra.mxu0 %v5790
    %5808 = vmatprep.subr.bf16.mxu0 0
    %5809 = vmatpush1.bf16.msra.mxu0 %v5791
    %5810 = vmatprep.subr.bf16.mxu0 0
    %5811 = vmatpush1.bf16.msra.mxu0 0
    %5812 = vmatprep.subr.bf16.mxu0 0
    %5813 = vmatpush1.bf16.msra.mxu0 0
    %5814 = vmatprep.subr.bf16.mxu0 0
    %5815 = vmatpush1.bf16.msra.mxu0 0
    %5816 = vmatprep.subr.bf16.mxu0 0
    %5817 = vmatpush1.bf16.msra.mxu0 0
    %5818 = vmatprep.subr.bf16.mxu0 0
    %5819 = vmatpush1.bf16.msra.mxu0 0
    %5820 = vmatprep.subr.bf16.mxu0 0
    %5821 = vmatpush1.bf16.msra.mxu0 0
    %5822 = vmatprep.subr.bf16.mxu0 0
    %5823 = vmatpush1.bf16.msra.mxu0 0
    %5824 = vmatprep.subr.bf16.mxu0 0
    %5825 = vmatpush1.bf16.msra.mxu0 0
    %5826 = vmatprep.subr.bf16.mxu0 0
    %5827 = vmatpush1.bf16.msra.mxu0 0
    %5828 = vmatprep.subr.bf16.mxu0 0
    %5829 = vmatpush1.bf16.msra.mxu0 0
    %5830 = vmatprep.subr.bf16.mxu0 0
    %5831 = vmatpush1.bf16.msra.mxu0 0
    %5832 = vmatprep.subr.bf16.mxu0 0
    %5833 = vmatpush1.bf16.msra.mxu0 0
    %5834 = vmatprep.mubr.bf16.mxu0 0
    %5835 = vmatmul.mubr.bf16.gmra.mrb[0].mxu0 %v4341
    %v5836 = vpop.f32.mrb[0].mxu0
    %v5837 = vadd.f32 0.0, %v5836
    %v5838 = vpop.f32.mrb[0].mxu0
    %v5839 = vpop.f32.mrb[0].mxu0
    %v5840 = vadd.f32 0.0, %v5839
    %v5841 = vpop.f32.mrb[0].mxu0
    %5842 = vmatprep.mubr.bf16.mxu0 0
    %5843 = vmatmul.mubr.bf16.gmra.mrb[0].mxu0 %v4344
    %v5844 = vpop.f32.mrb[0].mxu0
    %v5845 = vadd.f32 0.0, %v5844
    %v5846 = vpop.f32.mrb[0].mxu0
    %v5847 = vpop.f32.mrb[0].mxu0
    %v5848 = vadd.f32 0.0, %v5847
    %v5849 = vpop.f32.mrb[0].mxu0
    %5850 = vmatprep.mubr.bf16.mxu0 0
    %5851 = vmatmul.mubr.bf16.gmra.mrb[0].mxu0 %v4347
    %v5852 = vpop.f32.mrb[0].mxu0
    %v5853 = vadd.f32 0.0, %v5852
    %v5854 = vpop.f32.mrb[0].mxu0
    %v5855 = vpop.f32.mrb[0].mxu0
    %v5856 = vadd.f32 0.0, %v5855
    %v5857 = vpop.f32.mrb[0].mxu0
    %5858 = vmatprep.mubr.bf16.mxu0 0
    %5859 = vmatmul.mubr.bf16.gmra.mrb[0].mxu0 %v4350
    %v5860 = vpop.f32.mrb[0].mxu0
    %v5861 = vadd.f32 0.0, %v5860
    %v5862 = vpop.f32.mrb[0].mxu0
    %v5863 = vpop.f32.mrb[0].mxu0
    %v5864 = vadd.f32 0.0, %v5863
    %v5865 = vpop.f32.mrb[0].mxu0
    %5866 = vmatprep.mubr.bf16.mxu0 0
    %5867 = vmatmul.mubr.bf16.gmra.mrb[0].mxu0 %v4353
    %v5868 = vpop.f32.mrb[0].mxu0
    %v5869 = vadd.f32 0.0, %v5868
    %v5870 = vpop.f32.mrb[0].mxu0
    %v5871 = vpop.f32.mrb[0].mxu0
    %v5872 = vadd.f32 0.0, %v5871
    %v5873 = vpop.f32.mrb[0].mxu0
    %5874 = vmatprep.mubr.bf16.mxu0 0
    %5875 = vmatmul.mubr.bf16.gmra.mrb[0].mxu0 %v4356
    %v5876 = vpop.f32.mrb[0].mxu0
    %v5877 = vadd.f32 0.0, %v5876
    %v5878 = vpop.f32.mrb[0].mxu0
    %v5879 = vpop.f32.mrb[0].mxu0
    %v5880 = vadd.f32 0.0, %v5879
    %v5881 = vpop.f32.mrb[0].mxu0
    %5882 = vmatprep.mubr.bf16.mxu0 0
    %5883 = vmatmul.mubr.bf16.gmra.mrb[0].mxu0 %v4359
    %v5884 = vpop.f32.mrb[0].mxu0
    %v5885 = vadd.f32 0.0, %v5884
    %v5886 = vpop.f32.mrb[0].mxu0
    %v5887 = vpop.f32.mrb[0].mxu0
    %v5888 = vadd.f32 0.0, %v5887
    %v5889 = vpop.f32.mrb[0].mxu0
    %5890 = vmatprep.mubr.bf16.mxu0 0
    %5891 = vmatmul.mubr.bf16.gmra.mrb[0].mxu0 %v4362
    %v5892 = vpop.f32.mrb[0].mxu0
    %v5893 = vadd.f32 0.0, %v5892
    %v5894 = vpop.f32.mrb[0].mxu0
    %v5895 = vpop.f32.mrb[0].mxu0
    %v5896 = vadd.f32 0.0, %v5895
    %v5897 = vpop.f32.mrb[0].mxu0
    %5898 = vmatprep.mubr.bf16.mxu0 0
    %5899 = vmatmul.mubr.bf16.gmra.mrb[0].mxu0 %v4365
    %v5900 = vpop.f32.mrb[0].mxu0
    %v5901 = vadd.f32 0.0, %v5900
    %v5902 = vpop.f32.mrb[0].mxu0
    %v5903 = vpop.f32.mrb[0].mxu0
    %v5904 = vadd.f32 0.0, %v5903
    %v5905 = vpop.f32.mrb[0].mxu0
    %5906 = vmatprep.mubr.bf16.mxu0 0
    %5907 = vmatmul.mubr.bf16.gmra.mrb[0].mxu0 %v4368
    %v5908 = vpop.f32.mrb[0].mxu0
    %v5909 = vadd.f32 0.0, %v5908
    %v5910 = vpop.f32.mrb[0].mxu0
    %v5911 = vpop.f32.mrb[0].mxu0
    %v5912 = vadd.f32 0.0, %v5911
    %v5913 = vpop.f32.mrb[0].mxu0
    %5914 = vmatprep.mubr.bf16.mxu0 0
    %5915 = vmatmul.mubr.bf16.gmra.mrb[0].mxu0 %v4371
    %v5916 = vpop.f32.mrb[0].mxu0
    %v5917 = vadd.f32 0.0, %v5916
    %v5918 = vpop.f32.mrb[0].mxu0
    %v5919 = vpop.f32.mrb[0].mxu0
    %v5920 = vadd.f32 0.0, %v5919
    %v5921 = vpop.f32.mrb[0].mxu0
    %5922 = vmatprep.mubr.bf16.mxu0 0
    %5923 = vmatmul.mubr.bf16.gmra.mrb[0].mxu0 %v4374
    %v5924 = vpop.f32.mrb[0].mxu0
    %v5925 = vadd.f32 0.0, %v5924
    %v5926 = vpop.f32.mrb[0].mxu0
    %v5927 = vpop.f32.mrb[0].mxu0
    %v5928 = vadd.f32 0.0, %v5927
    %v5929 = vpop.f32.mrb[0].mxu0
    %5930 = vmatprep.mubr.bf16.mxu0 0
    %5931 = vmatmul.mubr.bf16.gmra.mrb[0].mxu0 %v4377
    %v5932 = vpop.f32.mrb[0].mxu0
    %v5933 = vadd.f32 0.0, %v5932
    %v5934 = vpop.f32.mrb[0].mxu0
    %v5935 = vpop.f32.mrb[0].mxu0
    %v5936 = vadd.f32 0.0, %v5935
    %v5937 = vpop.f32.mrb[0].mxu0
    %5938 = vmatprep.mubr.bf16.mxu0 0
    %5939 = vmatmul.mubr.bf16.gmra.mrb[0].mxu0 %v5091
    %v5940 = vpop.f32.mrb[0].mxu0
    %v5941 = vadd.f32 0.0, %v5940
    %v5942 = vpop.f32.mrb[0].mxu0
    %v5943 = vpop.f32.mrb[0].mxu0
    %v5944 = vadd.f32 0.0, %v5943
    %v5945 = vpop.f32.mrb[0].mxu0
    %5946 = vmatprep.mubr.bf16.mxu0 0
    %5947 = vmatmul.mubr.bf16.gmra.mrb[0].mxu0 %v5797
    %v5948 = vpop.f32.mrb[0].mxu0
    %v5949 = vadd.f32 0.0, %v5948
    %v5950 = vpop.f32.mrb[0].mxu0
    %v5951 = vpop.f32.mrb[0].mxu0
    %v5952 = vadd.f32 0.0, %v5951
    %v5953 = vpop.f32.mrb[0].mxu0
    %5954 = vmatprep.mubr.bf16.mxu0 0
    %5955 = vmatmul.mubr.bf16.gmra.mrb[0].mxu0 %v5800
    %v5956 = vpop.f32.mrb[0].mxu0
    %v5957 = vadd.f32 0.0, %v5956
    %v5958 = vpop.f32.mrb[0].mxu0
    %v5959 = vpop.f32.mrb[0].mxu0
    %v5960 = vadd.f32 0.0, %v5959
    %v5961 = vpop.f32.mrb[0].mxu0
    %5962 = vdwg.mxu0
    %v5963 = vadd.f32 %v5727, %v5837
    %v5964 = vadd.f32 %v5728, %v5840
    %v5965 = vadd.f32 %v5729, %v5845
    %v5966 = vadd.f32 %v5730, %v5848
    %v5967 = vadd.f32 %v5731, %v5853
    %v5968 = vadd.f32 %v5732, %v5856
    %v5969 = vadd.f32 %v5733, %v5861
    %v5970 = vadd.f32 %v5734, %v5864
    %v5971 = vadd.f32 %v5735, %v5869
    %v5972 = vadd.f32 %v5736, %v5872
    %v5973 = vadd.f32 %v5737, %v5877
    %v5974 = vadd.f32 %v5738, %v5880
    %v5975 = vadd.f32 %v5739, %v5885
    %v5976 = vadd.f32 %v5740, %v5888
    %v5977 = vadd.f32 %v5741, %v5893
    %v5978 = vadd.f32 %v5742, %v5896
    %v5979 = vadd.f32 %v5743, %v5901
    %v5980 = vadd.f32 %v5744, %v5904
    %v5981 = vadd.f32 %v5745, %v5909
    %v5982 = vadd.f32 %v5746, %v5912
    %v5983 = vadd.f32 %v5747, %v5917
    %v5984 = vadd.f32 %v5748, %v5920
    %v5985 = vadd.f32 %v5749, %v5925
    %v5986 = vadd.f32 %v5750, %v5928
    %v5987 = vadd.f32 %v5751, %v5933
    %v5988 = vadd.f32 %v5752, %v5936
    %v5989 = vadd.f32 %v5753, %v5941
    %v5990 = vadd.f32 %v5754, %v5944
    %v5991 = vadd.f32 %v5755, %v5949
    %v5992 = vadd.f32 %v5756, %v5952
    %v5993 = vadd.f32 %v5757, %v5957
    %v5994 = vadd.f32 %v5758, %v5960
    %v5995 = vld [vmem:[%s10] sm:$0x1]
    %v5997 = vlaneseq
    %v5998 = vshrl.u32 %v5997, 7
    %v5999 = vsub.s32 0, %v5998
    %v6000 = vrot.slane %v5995, %v5999
    %v6002 = vadd.f32 %v5963, %v6000
    %v6003 = vadd.f32 %v5964, %v6000
    %v6004 = vadd.f32 %v5965, %v6000
    %v6005 = vadd.f32 %v5966, %v6000
    %v6006 = vadd.f32 %v5967, %v6000
    %v6007 = vadd.f32 %v5968, %v6000
    %v6008 = vadd.f32 %v5969, %v6000
    %v6009 = vadd.f32 %v5970, %v6000
    %v6010 = vadd.f32 %v5971, %v6000
    %v6011 = vadd.f32 %v5972, %v6000
    %v6012 = vadd.f32 %v5973, %v6000
    %v6013 = vadd.f32 %v5974, %v6000
    %v6014 = vadd.f32 %v5975, %v6000
    %v6015 = vadd.f32 %v5976, %v6000
    %v6016 = vadd.f32 %v5977, %v6000
    %v6017 = vadd.f32 %v5978, %v6000
    %v6018 = vadd.f32 %v5979, %v6000
    %v6019 = vadd.f32 %v5980, %v6000
    %v6020 = vadd.f32 %v5981, %v6000
    %v6021 = vadd.f32 %v5982, %v6000
    %v6022 = vadd.f32 %v5983, %v6000
    %v6023 = vadd.f32 %v5984, %v6000
    %v6024 = vadd.f32 %v5985, %v6000
    %v6025 = vadd.f32 %v5986, %v6000
    %v6026 = vadd.f32 %v5987, %v6000
    %v6027 = vadd.f32 %v5988, %v6000
    %v6028 = vadd.f32 %v5989, %v6000
    %v6029 = vadd.f32 %v5990, %v6000
    %v6030 = vadd.f32 %v5991, %v6000
    %v6031 = vadd.f32 %v5992, %v6000
    %v6032 = vadd.f32 %v5993, %v6000
    %v6033 = vadd.f32 %v5994, %v6000
    %v6034 = vmax.f32 %v6002, 0.0
    %v6035 = vmax.f32 %v6003, 0.0
    %v6036 = vmax.f32 %v6004, 0.0
    %v6037 = vmax.f32 %v6005, 0.0
    %v6038 = vmax.f32 %v6006, 0.0
    %v6039 = vmax.f32 %v6007, 0.0
    %v6040 = vmax.f32 %v6008, 0.0
    %v6041 = vmax.f32 %v6009, 0.0
    %v6042 = vmax.f32 %v6010, 0.0
    %v6043 = vmax.f32 %v6011, 0.0
    %v6044 = vmax.f32 %v6012, 0.0
    %v6045 = vmax.f32 %v6013, 0.0
    %v6046 = vmax.f32 %v6014, 0.0
    %v6047 = vmax.f32 %v6015, 0.0
    %v6048 = vmax.f32 %v6016, 0.0
    %v6049 = vmax.f32 %v6017, 0.0
    %v6050 = vmax.f32 %v6018, 0.0
    %v6051 = vmax.f32 %v6019, 0.0
    %v6052 = vmax.f32 %v6020, 0.0
    %v6053 = vmax.f32 %v6021, 0.0
    %v6054 = vmax.f32 %v6022, 0.0
    %v6055 = vmax.f32 %v6023, 0.0
    %v6056 = vmax.f32 %v6024, 0.0
    %v6057 = vmax.f32 %v6025, 0.0
    %v6058 = vmax.f32 %v6026, 0.0
    %v6059 = vmax.f32 %v6027, 0.0
    %v6060 = vmax.f32 %v6028, 0.0
    %v6061 = vmax.f32 %v6029, 0.0
    %v6062 = vmax.f32 %v6030, 0.0
    %v6063 = vmax.f32 %v6031, 0.0
    %v6064 = vmax.f32 %v6032, 0.0
    %v6065 = vmax.f32 %v6033, 0.0
    %6098 = vrot.lane.b32.xlu0 %v6002, 64
    %v6099 = vpop.permute.xlu0 %6098
    %6100 = vrot.lane.b32.xlu0 %v6003, 64
    %v6101 = vpop.permute.xlu0 %6100
    %6102 = vrot.lane.b32.xlu0 %v6004, 64
    %v6103 = vpop.permute.xlu0 %6102
    %6104 = vrot.lane.b32.xlu0 %v6005, 64
    %v6105 = vpop.permute.xlu0 %6104
    %6106 = vrot.lane.b32.xlu0 %v6006, 64
    %v6107 = vpop.permute.xlu0 %6106
    %6108 = vrot.lane.b32.xlu0 %v6007, 64
    %v6109 = vpop.permute.xlu0 %6108
    %6110 = vrot.lane.b32.xlu0 %v6008, 64
    %v6111 = vpop.permute.xlu0 %6110
    %6112 = vrot.lane.b32.xlu0 %v6009, 64
    %v6113 = vpop.permute.xlu0 %6112
    %6114 = vrot.lane.b32.xlu0 %v6010, 64
    %v6115 = vpop.permute.xlu0 %6114
    %6116 = vrot.lane.b32.xlu0 %v6011, 64
    %v6117 = vpop.permute.xlu0 %6116
    %6118 = vrot.lane.b32.xlu0 %v6012, 64
    %v6119 = vpop.permute.xlu0 %6118
    %6120 = vrot.lane.b32.xlu0 %v6013, 64
    %v6121 = vpop.permute.xlu0 %6120
    %6122 = vrot.lane.b32.xlu0 %v6014, 64
    %v6123 = vpop.permute.xlu0 %6122
    %6124 = vrot.lane.b32.xlu0 %v6015, 64
    %v6125 = vpop.permute.xlu0 %6124
    %6126 = vrot.lane.b32.xlu0 %v6016, 64
    %v6127 = vpop.permute.xlu0 %6126
    %6128 = vrot.lane.b32.xlu0 %v6017, 64
    %v6129 = vpop.permute.xlu0 %6128
    %6130 = vrot.lane.b32.xlu0 %v6018, 64
    %v6131 = vpop.permute.xlu0 %6130
    %6132 = vrot.lane.b32.xlu0 %v6019, 64
    %v6133 = vpop.permute.xlu0 %6132
    %6134 = vrot.lane.b32.xlu0 %v6020, 64
    %v6135 = vpop.permute.xlu0 %6134
    %6136 = vrot.lane.b32.xlu0 %v6021, 64
    %v6137 = vpop.permute.xlu0 %6136
    %6138 = vrot.lane.b32.xlu0 %v6022, 64
    %v6139 = vpop.permute.xlu0 %6138
    %6140 = vrot.lane.b32.xlu0 %v6023, 64
    %v6141 = vpop.permute.xlu0 %6140
    %6142 = vrot.lane.b32.xlu0 %v6024, 64
    %v6143 = vpop.permute.xlu0 %6142
    %6144 = vrot.lane.b32.xlu0 %v6025, 64
    %v6145 = vpop.permute.xlu0 %6144
    %6146 = vrot.lane.b32.xlu0 %v6026, 64
    %v6147 = vpop.permute.xlu0 %6146
    %6148 = vrot.lane.b32.xlu0 %v6027, 64
    %v6149 = vpop.permute.xlu0 %6148
    %6150 = vrot.lane.b32.xlu0 %v6028, 64
    %v6151 = vpop.permute.xlu0 %6150
    %6152 = vrot.lane.b32.xlu0 %v6029, 64
    %v6153 = vpop.permute.xlu0 %6152
    %6154 = vrot.lane.b32.xlu0 %v6030, 64
    %v6155 = vpop.permute.xlu0 %6154
    %6156 = vrot.lane.b32.xlu0 %v6031, 64
    %v6157 = vpop.permute.xlu0 %6156
    %6158 = vrot.lane.b32.xlu0 %v6032, 64
    %v6159 = vpop.permute.xlu0 %6158
    %6160 = vrot.lane.b32.xlu0 %v6033, 64
    %v6161 = vpop.permute.xlu0 %6160
    %v6194 = vsel %vm3796, %v3082, %v6099
    %v6195 = vsel %vm3796, %v3083, %v6101
    %v6196 = vsel %vm3796, %v3084, %v6103
    %v6197 = vsel %vm3796, %v3085, %v6105
    %v6198 = vsel %vm3796, %v3086, %v6107
    %v6199 = vsel %vm3796, %v3087, %v6109
    %v6200 = vsel %vm3796, %v3088, %v6111
    %v6201 = vsel %vm3796, %v3089, %v6113
    %v6202 = vsel %vm3796, %v3090, %v6115
    %v6203 = vsel %vm3796, %v3091, %v6117
    %v6204 = vsel %vm3796, %v3092, %v6119
    %v6205 = vsel %vm3796, %v3093, %v6121
    %v6206 = vsel %vm3796, %v3094, %v6123
    %v6207 = vsel %vm3796, %v3095, %v6125
    %v6208 = vsel %vm3796, %v3096, %v6127
    %v6209 = vsel %vm3796, %v3097, %v6129
    %v6210 = vsel %vm3796, %v3098, %v6131
    %v6211 = vsel %vm3796, %v3099, %v6133
    %v6212 = vsel %vm3796, %v3100, %v6135
    %v6213 = vsel %vm3796, %v3101, %v6137
    %v6214 = vsel %vm3796, %v3102, %v6139
    %v6215 = vsel %vm3796, %v3103, %v6141
    %v6216 = vsel %vm3796, %v3104, %v6143
    %v6217 = vsel %vm3796, %v3105, %v6145
    %v6218 = vsel %vm3796, %v3106, %v6147
    %v6219 = vsel %vm3796, %v3107, %v6149
    %v6220 = vsel %vm3796, %v3108, %v6151
    %v6221 = vsel %vm3796, %v3109, %v6153
    %v6222 = vsel %vm3796, %v3110, %v6155
    %v6223 = vsel %vm3796, %v3111, %v6157
    %v6224 = vsel %vm3796, %v3112, %v6159
    %v6225 = vsel %vm3796, %v3113, %v6161
    %6226 = vst [vmem:[%s17] sm:$0xff] %v6194
    %6227 = vst [vmem:[%s17 + $0x8] sm:$0xff] %v6195
    %6228 = vst [vmem:[%s17 + $0x10] sm:$0xff] %v6196
    %6229 = vst [vmem:[%s17 + $0x18] sm:$0xff] %v6197
    %6230 = vst [vmem:[%s17 + $0x20] sm:$0xff] %v6198
    %6231 = vst [vmem:[%s17 + $0x28] sm:$0xff] %v6199
    %6232 = vst [vmem:[%s17 + $0x30] sm:$0xff] %v6200
    %6233 = vst [vmem:[%s17 + $0x38] sm:$0xff] %v6201
    %6234 = vst [vmem:[%s17 + $0x40] sm:$0xff] %v6202
    %6235 = vst [vmem:[%s17 + $0x48] sm:$0xff] %v6203
    %6236 = vst [vmem:[%s17 + $0x50] sm:$0xff] %v6204
    %6237 = vst [vmem:[%s17 + $0x58] sm:$0xff] %v6205
    %6238 = vst [vmem:[%s17 + $0x60] sm:$0xff] %v6206
    %6239 = vst [vmem:[%s17 + $0x68] sm:$0xff] %v6207
    %6240 = vst [vmem:[%s17 + $0x70] sm:$0xff] %v6208
    %6241 = vst [vmem:[%s17 + $0x78] sm:$0xff] %v6209
    %6242 = vst [vmem:[%s17 + $0x80] sm:$0xff] %v6210
    %6243 = vst [vmem:[%s17 + $0x88] sm:$0xff] %v6211
    %6244 = vst [vmem:[%s17 + $0x90] sm:$0xff] %v6212
    %6245 = vst [vmem:[%s17 + $0x98] sm:$0xff] %v6213
    %6246 = vst [vmem:[%s17 + $0xa0] sm:$0xff] %v6214
    %6247 = vst [vmem:[%s17 + $0xa8] sm:$0xff] %v6215
    %6248 = vst [vmem:[%s17 + $0xb0] sm:$0xff] %v6216
    %6249 = vst [vmem:[%s17 + $0xb8] sm:$0xff] %v6217
    %6250 = vst [vmem:[%s17 + $0xc0] sm:$0xff] %v6218
    %6251 = vst [vmem:[%s17 + $0xc8] sm:$0xff] %v6219
    %6252 = vst [vmem:[%s17 + $0xd0] sm:$0xff] %v6220
    %6253 = vst [vmem:[%s17 + $0xd8] sm:$0xff] %v6221
    %6254 = vst [vmem:[%s17 + $0xe0] sm:$0xff] %v6222
    %6255 = vst [vmem:[%s17 + $0xe8] sm:$0xff] %v6223
    %6256 = vst [vmem:[%s17 + $0xf0] sm:$0xff] %v6224
    %6257 = vst [vmem:[%s17 + $0xf8] sm:$0xff] %v6225
    %vm6290 = vcmask 1046528
    %v6291 = vrot.slane %v6034, 1
    %v6292 = vrot.slane %v6035, 1
    %v6293 = vsel %vm6290, %v6291, %v6292
    %v6294 = vrot.slane %v6036, 1
    %v6295 = vsel %vm6290, %v6292, %v6294
    %v6296 = vrot.slane %v6037, 1
    %v6297 = vsel %vm6290, %v6294, %v6296
    %v6298 = vrot.slane %v6038, 1
    %v6299 = vsel %vm6290, %v6296, %v6298
    %v6300 = vrot.slane %v6039, 1
    %v6301 = vsel %vm6290, %v6298, %v6300
    %v6302 = vrot.slane %v6040, 1
    %v6303 = vsel %vm6290, %v6300, %v6302
    %v6304 = vrot.slane %v6041, 1
    %v6305 = vsel %vm6290, %v6302, %v6304
    %v6306 = vrot.slane %v6042, 1
    %v6307 = vsel %vm6290, %v6304, %v6306
    %v6308 = vrot.slane %v6043, 1
    %v6309 = vsel %vm6290, %v6306, %v6308
    %v6310 = vrot.slane %v6044, 1
    %v6311 = vsel %vm6290, %v6308, %v6310
    %v6312 = vrot.slane %v6045, 1
    %v6313 = vsel %vm6290, %v6310, %v6312
    %v6314 = vrot.slane %v6046, 1
    %v6315 = vsel %vm6290, %v6312, %v6314
    %v6316 = vrot.slane %v6047, 1
    %v6317 = vsel %vm6290, %v6314, %v6316
    %v6318 = vrot.slane %v6048, 1
    %v6319 = vsel %vm6290, %v6316, %v6318
    %v6320 = vrot.slane %v6049, 1
    %v6321 = vsel %vm6290, %v6318, %v6320
    %v6322 = vrot.slane %v6050, 1
    %v6323 = vsel %vm6290, %v6320, %v6322
    %v6324 = vrot.slane %v6051, 1
    %v6325 = vsel %vm6290, %v6322, %v6324
    %v6326 = vrot.slane %v6052, 1
    %v6327 = vsel %vm6290, %v6324, %v6326
    %v6328 = vrot.slane %v6053, 1
    %v6329 = vsel %vm6290, %v6326, %v6328
    %v6330 = vrot.slane %v6054, 1
    %v6331 = vsel %vm6290, %v6328, %v6330
    %v6332 = vrot.slane %v6055, 1
    %v6333 = vsel %vm6290, %v6330, %v6332
    %v6334 = vrot.slane %v6056, 1
    %v6335 = vsel %vm6290, %v6332, %v6334
    %v6336 = vrot.slane %v6057, 1
    %v6337 = vsel %vm6290, %v6334, %v6336
    %v6338 = vrot.slane %v6058, 1
    %v6339 = vsel %vm6290, %v6336, %v6338
    %v6340 = vrot.slane %v6059, 1
    %v6341 = vsel %vm6290, %v6338, %v6340
    %v6342 = vrot.slane %v6060, 1
    %v6343 = vsel %vm6290, %v6340, %v6342
    %v6344 = vrot.slane %v6061, 1
    %v6345 = vsel %vm6290, %v6342, %v6344
    %v6346 = vrot.slane %v6062, 1
    %v6347 = vsel %vm6290, %v6344, %v6346
    %v6348 = vrot.slane %v6063, 1
    %v6349 = vsel %vm6290, %v6346, %v6348
    %v6350 = vrot.slane %v6064, 1
    %v6351 = vsel %vm6290, %v6348, %v6350
    %v6352 = vrot.slane %v6065, 1
    %v6353 = vsel %vm6290, %v6350, %v6352
    %v6386 = vsel %vm6290, %v6352, 0.0
    %v6387 = vmax.f32 %v6034, %v6293
    %v6388 = vmax.f32 %v6035, %v6295
    %v6389 = vmax.f32 %v6036, %v6297
    %v6390 = vmax.f32 %v6037, %v6299
    %v6391 = vmax.f32 %v6038, %v6301
    %v6392 = vmax.f32 %v6039, %v6303
    %v6393 = vmax.f32 %v6040, %v6305
    %v6394 = vmax.f32 %v6041, %v6307
    %v6395 = vmax.f32 %v6042, %v6309
    %v6396 = vmax.f32 %v6043, %v6311
    %v6397 = vmax.f32 %v6044, %v6313
    %v6398 = vmax.f32 %v6045, %v6315
    %v6399 = vmax.f32 %v6046, %v6317
    %v6400 = vmax.f32 %v6047, %v6319
    %v6401 = vmax.f32 %v6048, %v6321
    %v6402 = vmax.f32 %v6049, %v6323
    %v6403 = vmax.f32 %v6050, %v6325
    %v6404 = vmax.f32 %v6051, %v6327
    %v6405 = vmax.f32 %v6052, %v6329
    %v6406 = vmax.f32 %v6053, %v6331
    %v6407 = vmax.f32 %v6054, %v6333
    %v6408 = vmax.f32 %v6055, %v6335
    %v6409 = vmax.f32 %v6056, %v6337
    %v6410 = vmax.f32 %v6057, %v6339
    %v6411 = vmax.f32 %v6058, %v6341
    %v6412 = vmax.f32 %v6059, %v6343
    %v6413 = vmax.f32 %v6060, %v6345
    %v6414 = vmax.f32 %v6061, %v6347
    %v6415 = vmax.f32 %v6062, %v6349
    %v6416 = vmax.f32 %v6063, %v6351
    %v6417 = vmax.f32 %v6064, %v6353
    %v6418 = vmax.f32 %v6065, %v6386
    %v6419 = vmax.f32 %v6387, %v6389
    %v6420 = vmax.f32 %v6388, %v6390
    %v6421 = vmax.f32 %v6389, %v6391
    %v6422 = vmax.f32 %v6390, %v6392
    %v6423 = vmax.f32 %v6391, %v6393
    %v6424 = vmax.f32 %v6392, %v6394
    %v6425 = vmax.f32 %v6393, %v6395
    %v6426 = vmax.f32 %v6394, %v6396
    %v6427 = vmax.f32 %v6395, %v6397
    %v6428 = vmax.f32 %v6396, %v6398
    %v6429 = vmax.f32 %v6397, %v6399
    %v6430 = vmax.f32 %v6398, %v6400
    %v6431 = vmax.f32 %v6399, %v6401
    %v6432 = vmax.f32 %v6400, %v6402
    %v6433 = vmax.f32 %v6401, %v6403
    %v6434 = vmax.f32 %v6402, %v6404
    %v6435 = vmax.f32 %v6403, %v6405
    %v6436 = vmax.f32 %v6404, %v6406
    %v6437 = vmax.f32 %v6405, %v6407
    %v6438 = vmax.f32 %v6406, %v6408
    %v6439 = vmax.f32 %v6407, %v6409
    %v6440 = vmax.f32 %v6408, %v6410
    %v6441 = vmax.f32 %v6409, %v6411
    %v6442 = vmax.f32 %v6410, %v6412
    %v6443 = vmax.f32 %v6411, %v6413
    %v6444 = vmax.f32 %v6412, %v6414
    %v6445 = vmax.f32 %v6413, %v6415
    %v6446 = vmax.f32 %v6414, %v6416
    %v6447 = vmax.f32 %v6415, %v6417
    %v6448 = vmax.f32 %v6416, %v6418
    %v6449 = vmax.f32 %v6417, 0.0
    %v6450 = vmax.f32 %v6418, 0.0
    %v6451 = vld [vmem:[%s5] sm:$0xff]
    %v6452 = vld [vmem:[%s5 + $0x8] sm:$0xff]
    %v6453 = vld [vmem:[%s5 + $0x10] sm:$0xff]
    %v6454 = vld [vmem:[%s5 + $0x18] sm:$0xff]
    %v6455 = vld [vmem:[%s5 + $0x20] sm:$0xff]
    %v6456 = vld [vmem:[%s5 + $0x28] sm:$0xff]
    %v6457 = vld [vmem:[%s5 + $0x30] sm:$0xff]
    %v6458 = vld [vmem:[%s5 + $0x38] sm:$0xff]
    %v6459 = vpack.c.bf16 %v6420, %v6419
    %v6460 = vpack.c.bf16 %v6422, %v6421
    %v6461 = vpack.c.bf16 %v6424, %v6423
    %v6462 = vpack.c.bf16 %v6426, %v6425
    %v6463 = vpack.c.bf16 %v6428, %v6427
    %v6464 = vpack.c.bf16 %v6430, %v6429
    %v6465 = vpack.c.bf16 %v6432, %v6431
    %v6466 = vpack.c.bf16 %v6434, %v6433
    %v6467 = vpack.c.bf16 %v6436, %v6435
    %v6468 = vpack.c.bf16 %v6438, %v6437
    %v6469 = vpack.c.bf16 %v6440, %v6439
    %v6470 = vpack.c.bf16 %v6442, %v6441
    %v6471 = vpack.c.bf16 %v6444, %v6443
    %v6472 = vpack.c.bf16 %v6446, %v6445
    %v6473 = vpack.c.bf16 %v6448, %v6447
    %v6474 = vpack.c.bf16 %v6450, %v6449
    %v6483 = vunpack.c.l.b16 %v6451
    %v6484 = vunpack.c.h.b16 %v6451
    %v6485 = vunpack.c.l.b16 %v6452
    %v6486 = vunpack.c.h.b16 %v6452
    %v6487 = vunpack.c.l.b16 %v6453
    %v6488 = vunpack.c.h.b16 %v6453
    %v6489 = vunpack.c.l.b16 %v6454
    %v6490 = vunpack.c.h.b16 %v6454
    %v6491 = vunpack.c.l.b16 %v6455
    %v6492 = vunpack.c.h.b16 %v6455
    %v6493 = vunpack.c.l.b16 %v6456
    %v6494 = vunpack.c.h.b16 %v6456
    %v6495 = vunpack.c.l.b16 %v6457
    %v6496 = vunpack.c.h.b16 %v6457
    %v6497 = vunpack.c.l.b16 %v6458
    %v6498 = vunpack.c.h.b16 %v6458
    %v6499 = vpack.c.b16 %v6485, %v6483
    %v6500 = vpack.c.b16 %v6486, %v6484
    %v6501 = vpack.c.b16 %v6489, %v6487
    %v6502 = vpack.c.b16 %v6490, %v6488
    %v6503 = vpack.c.b16 %v6493, %v6491
    %v6504 = vpack.c.b16 %v6494, %v6492
    %v6505 = vpack.c.b16 %v6497, %v6495
    %v6506 = vpack.c.b16 %v6498, %v6496
    %6515 = vmatprep.subr.bf16.mxu0 0
    %6516 = vmatpush1.bf16.msra.mxu0 %v6459
    %6517 = vmatprep.subr.bf16.mxu0 0
    %6518 = vmatpush1.bf16.msra.mxu0 %v6460
    %6519 = vmatprep.subr.bf16.mxu0 0
    %6520 = vmatpush1.bf16.msra.mxu0 %v6461
    %6521 = vmatprep.subr.bf16.mxu0 0
    %6522 = vmatpush1.bf16.msra.mxu0 %v6462
    %6523 = vmatprep.subr.bf16.mxu0 0
    %6524 = vmatpush1.bf16.msra.mxu0 %v6463
    %6525 = vmatprep.subr.bf16.mxu0 0
    %6526 = vmatpush1.bf16.msra.mxu0 %v6464
    %6527 = vmatprep.subr.bf16.mxu0 0
    %6528 = vmatpush1.bf16.msra.mxu0 %v6465
    %6529 = vmatprep.subr.bf16.mxu0 0
    %6530 = vmatpush1.bf16.msra.mxu0 %v6466
    %6531 = vmatprep.subr.bf16.mxu0 0
    %6532 = vmatpush1.bf16.msra.mxu0 %v6467
    %6533 = vmatprep.subr.bf16.mxu0 0
    %6534 = vmatpush1.bf16.msra.mxu0 %v6468
    %6535 = vmatprep.subr.bf16.mxu0 0
    %6536 = vmatpush1.bf16.msra.mxu0 %v6469
    %6537 = vmatprep.subr.bf16.mxu0 0
    %6538 = vmatpush1.bf16.msra.mxu0 %v6470
    %6539 = vmatprep.subr.bf16.mxu0 0
    %6540 = vmatpush1.bf16.msra.mxu0 %v6471
    %6541 = vmatprep.subr.bf16.mxu0 0
    %6542 = vmatpush1.bf16.msra.mxu0 %v6472
    %6543 = vmatprep.subr.bf16.mxu0 0
    %6544 = vmatpush1.bf16.msra.mxu0 %v6473
    %6545 = vmatprep.subr.bf16.mxu0 0
    %6546 = vmatpush1.bf16.msra.mxu0 %v6474
    %6547 = vmatprep.mubr.bf16.mxu0 %v6500
    %6548 = vmatmul.mubr.bf16.gmra.mrb[0].mxu0 %v6499
    %v6549 = vpop.f32.mrb[0].mxu0
    %v6550 = vadd.f32 0.0, %v6549
    %v6551 = vpop.f32.mrb[0].mxu0
    %v6552 = vpop.f32.mrb[0].mxu0
    %v6553 = vadd.f32 0.0, %v6552
    %v6554 = vpop.f32.mrb[0].mxu0
    %6555 = vmatprep.mubr.bf16.mxu0 %v6502
    %6556 = vmatmul.mubr.bf16.gmra.mrb[0].mxu0 %v6501
    %v6557 = vpop.f32.mrb[0].mxu0
    %v6558 = vadd.f32 0.0, %v6557
    %v6559 = vpop.f32.mrb[0].mxu0
    %v6560 = vpop.f32.mrb[0].mxu0
    %v6561 = vadd.f32 0.0, %v6560
    %v6562 = vpop.f32.mrb[0].mxu0
    %6563 = vmatprep.mubr.bf16.mxu0 %v6504
    %6564 = vmatmul.mubr.bf16.gmra.mrb[0].mxu0 %v6503
    %v6565 = vpop.f32.mrb[0].mxu0
    %v6566 = vadd.f32 0.0, %v6565
    %v6567 = vpop.f32.mrb[0].mxu0
    %v6568 = vpop.f32.mrb[0].mxu0
    %v6569 = vadd.f32 0.0, %v6568
    %v6570 = vpop.f32.mrb[0].mxu0
    %6571 = vmatprep.mubr.bf16.mxu0 %v6506
    %6572 = vmatmul.mubr.bf16.gmra.mrb[0].mxu0 %v6505
    %v6573 = vpop.f32.mrb[0].mxu0
    %v6574 = vadd.f32 0.0, %v6573
    %v6575 = vpop.f32.mrb[0].mxu0
    %v6576 = vpop.f32.mrb[0].mxu0
    %v6577 = vadd.f32 0.0, %v6576
    %v6578 = vpop.f32.mrb[0].mxu0
    %6579 = vdwg.mxu0
    %6581 = vset.pattern.permute.xlu0 0
    %6582 = vperm.xlu0 %6581, %v166
    %v6583 = vpop.permute.xlu0 %6582
    %6586 = vset.pattern.permute.xlu0 0
    %6587 = vperm.xlu0 %6586, %v167
    %v6588 = vpop.permute.xlu0 %6587
    %6591 = vset.pattern.permute.xlu0 0
    %6592 = vperm.xlu0 %6591, %v168
    %v6593 = vpop.permute.xlu0 %6592
    %6596 = vset.pattern.permute.xlu0 0
    %6597 = vperm.xlu0 %6596, %v169
    %v6598 = vpop.permute.xlu0 %6597
    %6601 = vset.pattern.permute.xlu0 0
    %6602 = vperm.xlu0 %6601, %v170
    %v6603 = vpop.permute.xlu0 %6602
    %6606 = vset.pattern.permute.xlu0 0
    %6607 = vperm.xlu0 %6606, %v171
    %v6608 = vpop.permute.xlu0 %6607
    %6611 = vset.pattern.permute.xlu0 0
    %6612 = vperm.xlu0 %6611, %v172
    %v6613 = vpop.permute.xlu0 %6612
    %6616 = vset.pattern.permute.xlu0 0
    %6617 = vperm.xlu0 %6616, %v173
    %v6618 = vpop.permute.xlu0 %6617
    %v6620 = vmul.f32 %v6550, %v6583
    %v6621 = vmul.f32 %v6553, %v6588
    %v6622 = vmul.f32 %v6558, %v6593
    %v6623 = vmul.f32 %v6561, %v6598
    %v6624 = vmul.f32 %v6566, %v6603
    %v6625 = vmul.f32 %v6569, %v6608
    %v6626 = vmul.f32 %v6574, %v6613
    %v6627 = vmul.f32 %v6577, %v6618
    %6628 = vset.pattern.permute.xlu0 1
    %6629 = vperm.xlu0 %6628, %v166
    %v6630 = vpop.permute.xlu0 %6629
    %6632 = vset.pattern.permute.xlu0 1
    %6633 = vperm.xlu0 %6632, %v167
    %v6634 = vpop.permute.xlu0 %6633
    %6636 = vset.pattern.permute.xlu0 1
    %6637 = vperm.xlu0 %6636, %v168
    %v6638 = vpop.permute.xlu0 %6637
    %6640 = vset.pattern.permute.xlu0 1
    %6641 = vperm.xlu0 %6640, %v169
    %v6642 = vpop.permute.xlu0 %6641
    %6644 = vset.pattern.permute.xlu0 1
    %6645 = vperm.xlu0 %6644, %v170
    %v6646 = vpop.permute.xlu0 %6645
    %6648 = vset.pattern.permute.xlu0 1
    %6649 = vperm.xlu0 %6648, %v171
    %v6650 = vpop.permute.xlu0 %6649
    %6652 = vset.pattern.permute.xlu0 1
    %6653 = vperm.xlu0 %6652, %v172
    %v6654 = vpop.permute.xlu0 %6653
    %6656 = vset.pattern.permute.xlu0 1
    %6657 = vperm.xlu0 %6656, %v173
    %v6658 = vpop.permute.xlu0 %6657
    %v6660 = vmul.f32 %v6550, %v6630
    %v6661 = vmul.f32 %v6553, %v6634
    %v6662 = vmul.f32 %v6558, %v6638
    %v6663 = vmul.f32 %v6561, %v6642
    %v6664 = vmul.f32 %v6566, %v6646
    %v6665 = vmul.f32 %v6569, %v6650
    %v6666 = vmul.f32 %v6574, %v6654
    %v6667 = vmul.f32 %v6577, %v6658
    %v6676 = vrot.slane %v6550, 7
    %v6677 = vrot.slane %v6553, 7
    %v6678 = vsel %vm560, %v6676, %v6677
    %v6679 = vrot.slane %v6558, 7
    %v6680 = vsel %vm560, %v6677, %v6679
    %v6681 = vrot.slane %v6561, 7
    %v6682 = vsel %vm560, %v6679, %v6681
    %v6683 = vrot.slane %v6566, 7
    %v6684 = vsel %vm560, %v6681, %v6683
    %v6685 = vrot.slane %v6569, 7
    %v6686 = vsel %vm560, %v6683, %v6685
    %v6687 = vrot.slane %v6574, 7
    %v6688 = vsel %vm560, %v6685, %v6687
    %v6689 = vrot.slane %v6577, 7
    %v6690 = vsel %vm560, %v6687, %v6689
    %v6700 = vsel %vm560, 0.0, %v6676
    %v6701 = vsel %vm560, %v6689, 0.0
    %v6710 = vrot.slane %v6620, 7
    %v6711 = vrot.slane %v6621, 7
    %v6712 = vsel %vm560, %v6710, %v6711
    %v6713 = vrot.slane %v6622, 7
    %v6714 = vsel %vm560, %v6711, %v6713
    %v6715 = vrot.slane %v6623, 7
    %v6716 = vsel %vm560, %v6713, %v6715
    %v6717 = vrot.slane %v6624, 7
    %v6718 = vsel %vm560, %v6715, %v6717
    %v6719 = vrot.slane %v6625, 7
    %v6720 = vsel %vm560, %v6717, %v6719
    %v6721 = vrot.slane %v6626, 7
    %v6722 = vsel %vm560, %v6719, %v6721
    %v6723 = vrot.slane %v6627, 7
    %v6724 = vsel %vm560, %v6721, %v6723
    %v6734 = vsel %vm560, 0.0, %v6710
    %v6735 = vsel %vm560, %v6723, 0.0
    %v6744 = vrot.slane %v6660, 7
    %v6745 = vrot.slane %v6661, 7
    %v6746 = vsel %vm560, %v6744, %v6745
    %v6747 = vrot.slane %v6662, 7
    %v6748 = vsel %vm560, %v6745, %v6747
    %v6749 = vrot.slane %v6663, 7
    %v6750 = vsel %vm560, %v6747, %v6749
    %v6751 = vrot.slane %v6664, 7
    %v6752 = vsel %vm560, %v6749, %v6751
    %v6753 = vrot.slane %v6665, 7
    %v6754 = vsel %vm560, %v6751, %v6753
    %v6755 = vrot.slane %v6666, 7
    %v6756 = vsel %vm560, %v6753, %v6755
    %v6757 = vrot.slane %v6667, 7
    %v6758 = vsel %vm560, %v6755, %v6757
    %v6768 = vsel %vm560, 0.0, %v6744
    %v6769 = vsel %vm560, %v6757, 0.0
    %v6770 = vpack.c.bf16 %v6768, 0.0
    %v6771 = vpack.c.bf16 %v6748, %v6746
    %v6772 = vpack.c.bf16 %v6752, %v6750
    %v6773 = vpack.c.bf16 %v6756, %v6754
    %v6774 = vld [vmem:[%s11] sm:$0xf]
    %v6775 = vld [vmem:[%s11 + $0x4] sm:$0xf]
    %v6776 = vld [vmem:[%s11 + $0x8] sm:$0xf]
    %v6777 = vld [vmem:[%s11 + $0xc] sm:$0xf]
    %v6778 = vld [vmem:[%s11 + $0x10] sm:$0xf]
    %v6779 = vld [vmem:[%s11 + $0x14] sm:$0xf]
    %v6780 = vld [vmem:[%s11 + $0x18] sm:$0xf]
    %v6781 = vld [vmem:[%s11 + $0x1c] sm:$0xf]
    %v6782 = vpack.c.bf16 %v6700, 0.0
    %v6783 = vpack.c.bf16 %v6680, %v6678
    %v6784 = vpack.c.bf16 %v6684, %v6682
    %v6785 = vpack.c.bf16 %v6688, %v6686
    %v6786 = vpack.c.bf16 %v6690, %v6690
    %v6787 = vld [vmem:[%s11 + $0x20] sm:$0xf]
    %v6788 = vld [vmem:[%s11 + $0x24] sm:$0xf]
    %v6789 = vld [vmem:[%s11 + $0x28] sm:$0xf]
    %v6790 = vld [vmem:[%s11 + $0x2c] sm:$0xf]
    %v6791 = vld [vmem:[%s11 + $0x30] sm:$0xf]
    %v6792 = vld [vmem:[%s11 + $0x34] sm:$0xf]
    %v6793 = vld [vmem:[%s11 + $0x38] sm:$0xf]
    %v6794 = vld [vmem:[%s11 + $0x3c] sm:$0xf]
    %v6796 = vshrl.u32 %v6782, 16
    %v6798 = vshll.u32 %v6782, 16
    %v6800 = vrot.slane %v6798, 1
    %v6801 = vor.u32 %v6796, %v6800
    %v6803 = vshll.u32 %v6783, 16
    %v6805 = vrot.slane %v6803, 1
    %v6806 = vsel %vm953, %v6801, %v6805
    %v6807 = vshrl.u32 %v6783, 16
    %v6809 = vor.u32 %v6807, %v6805
    %v6811 = vshll.u32 %v6784, 16
    %v6813 = vrot.slane %v6811, 1
    %v6814 = vsel %vm953, %v6809, %v6813
    %v6815 = vshrl.u32 %v6784, 16
    %v6817 = vor.u32 %v6815, %v6813
    %v6819 = vshll.u32 %v6785, 16
    %v6821 = vrot.slane %v6819, 1
    %v6822 = vsel %vm953, %v6817, %v6821
    %v6823 = vshrl.u32 %v6785, 16
    %v6825 = vor.u32 %v6823, %v6821
    %v6827 = vshll.u32 %v6786, 16
    %v6829 = vrot.slane %v6827, 1
    %v6830 = vsel %vm953, %v6825, %v6829
    %v6839 = vunpack.c.l.b16 %v6787
    %v6840 = vunpack.c.l.b16 %v6788
    %v6841 = vunpack.c.l.b16 %v6789
    %v6842 = vunpack.c.l.b16 %v6790
    %v6843 = vunpack.c.l.b16 %v6791
    %v6844 = vunpack.c.l.b16 %v6792
    %v6845 = vunpack.c.l.b16 %v6793
    %v6846 = vunpack.c.l.b16 %v6794
    %v6847 = vpack.c.b16 %v6840, %v6839
    %v6848 = vpack.c.b16 %v6842, %v6841
    %v6849 = vpack.c.b16 %v6844, %v6843
    %v6850 = vpack.c.b16 %v6846, %v6845
    %v6856 = vsel %vm3796, %v6806, 0
    %v6859 = vsel %vm3796, %v6814, 0
    %v6862 = vsel %vm3796, %v6822, 0
    %v6865 = vsel %vm3796, %v6830, 0
    %6867 = vmatprep.subr.bf16.mxu0 0
    %6868 = vmatpush1.bf16.msra.mxu0 %v6847
    %6869 = vmatprep.subr.bf16.mxu0 0
    %6870 = vmatpush1.bf16.msra.mxu0 %v6848
    %6871 = vmatprep.subr.bf16.mxu0 0
    %6872 = vmatpush1.bf16.msra.mxu0 %v6849
    %6873 = vmatprep.subr.bf16.mxu0 0
    %6874 = vmatpush1.bf16.msra.mxu0 %v6850
    %6875 = vmatprep.subr.bf16.mxu0 0
    %6876 = vmatpush1.bf16.msra.mxu0 0
    %6877 = vmatprep.subr.bf16.mxu0 0
    %6878 = vmatpush1.bf16.msra.mxu0 0
    %6879 = vmatprep.subr.bf16.mxu0 0
    %6880 = vmatpush1.bf16.msra.mxu0 0
    %6881 = vmatprep.subr.bf16.mxu0 0
    %6882 = vmatpush1.bf16.msra.mxu0 0
    %6883 = vmatprep.subr.bf16.mxu0 0
    %6884 = vmatpush1.bf16.msra.mxu0 0
    %6885 = vmatprep.subr.bf16.mxu0 0
    %6886 = vmatpush1.bf16.msra.mxu0 0
    %6887 = vmatprep.subr.bf16.mxu0 0
    %6888 = vmatpush1.bf16.msra.mxu0 0
    %6889 = vmatprep.subr.bf16.mxu0 0
    %6890 = vmatpush1.bf16.msra.mxu0 0
    %6891 = vmatprep.subr.bf16.mxu0 0
    %6892 = vmatpush1.bf16.msra.mxu0 0
    %6893 = vmatprep.subr.bf16.mxu0 0
    %6894 = vmatpush1.bf16.msra.mxu0 0
    %6895 = vmatprep.subr.bf16.mxu0 0
    %6896 = vmatpush1.bf16.msra.mxu0 0
    %6897 = vmatprep.subr.bf16.mxu0 0
    %6898 = vmatpush1.bf16.msra.mxu0 0
    %6899 = vmatprep.mubr.bf16.mxu0 0
    %6900 = vmatmul.mubr.bf16.gmra.mrb[0].mxu0 %v6856
    %v6901 = vpop.f32.mrb[0].mxu0
    %v6902 = vadd.f32 0.0, %v6901
    %v6903 = vpop.f32.mrb[0].mxu0
    %v6904 = vpop.f32.mrb[0].mxu0
    %v6905 = vadd.f32 0.0, %v6904
    %v6906 = vpop.f32.mrb[0].mxu0
    %6907 = vmatprep.mubr.bf16.mxu0 0
    %6908 = vmatmul.mubr.bf16.gmra.mrb[0].mxu0 %v6859
    %v6909 = vpop.f32.mrb[0].mxu0
    %v6910 = vadd.f32 0.0, %v6909
    %v6911 = vpop.f32.mrb[0].mxu0
    %v6912 = vpop.f32.mrb[0].mxu0
    %v6913 = vadd.f32 0.0, %v6912
    %v6914 = vpop.f32.mrb[0].mxu0
    %6915 = vmatprep.mubr.bf16.mxu0 0
    %6916 = vmatmul.mubr.bf16.gmra.mrb[0].mxu0 %v6862
    %v6917 = vpop.f32.mrb[0].mxu0
    %v6918 = vadd.f32 0.0, %v6917
    %v6919 = vpop.f32.mrb[0].mxu0
    %v6920 = vpop.f32.mrb[0].mxu0
    %v6921 = vadd.f32 0.0, %v6920
    %v6922 = vpop.f32.mrb[0].mxu0
    %6923 = vmatprep.mubr.bf16.mxu0 0
    %6924 = vmatmul.mubr.bf16.gmra.mrb[0].mxu0 %v6865
    %v6925 = vpop.f32.mrb[0].mxu0
    %v6926 = vadd.f32 0.0, %v6925
    %v6927 = vpop.f32.mrb[0].mxu0
    %v6928 = vpop.f32.mrb[0].mxu0
    %v6929 = vadd.f32 0.0, %v6928
    %v6930 = vpop.f32.mrb[0].mxu0
    %6931 = vdwg.mxu0
    %v6940 = vunpack.c.l.b16 %v6774
    %v6941 = vunpack.c.l.b16 %v6775
    %v6942 = vunpack.c.l.b16 %v6776
    %v6943 = vunpack.c.l.b16 %v6777
    %v6944 = vunpack.c.l.b16 %v6778
    %v6945 = vunpack.c.l.b16 %v6779
    %v6946 = vunpack.c.l.b16 %v6780
    %v6947 = vunpack.c.l.b16 %v6781
    %v6948 = vpack.c.b16 %v6941, %v6940
    %v6949 = vpack.c.b16 %v6943, %v6942
    %v6950 = vpack.c.b16 %v6945, %v6944
    %v6951 = vpack.c.b16 %v6947, %v6946
    %v6957 = vsel %vm3796, %v6770, 0
    %v6960 = vsel %vm3796, %v6771, 0
    %v6963 = vsel %vm3796, %v6772, 0
    %v6966 = vsel %vm3796, %v6773, 0
    %6968 = vmatprep.subr.bf16.mxu0 0
    %6969 = vmatpush1.bf16.msra.mxu0 %v6948
    %6970 = vmatprep.subr.bf16.mxu0 0
    %6971 = vmatpush1.bf16.msra.mxu0 %v6949
    %6972 = vmatprep.subr.bf16.mxu0 0
    %6973 = vmatpush1.bf16.msra.mxu0 %v6950
    %6974 = vmatprep.subr.bf16.mxu0 0
    %6975 = vmatpush1.bf16.msra.mxu0 %v6951
    %6976 = vmatprep.subr.bf16.mxu0 0
    %6977 = vmatpush1.bf16.msra.mxu0 0
    %6978 = vmatprep.subr.bf16.mxu0 0
    %6979 = vmatpush1.bf16.msra.mxu0 0
    %6980 = vmatprep.subr.bf16.mxu0 0
    %6981 = vmatpush1.bf16.msra.mxu0 0
    %6982 = vmatprep.subr.bf16.mxu0 0
    %6983 = vmatpush1.bf16.msra.mxu0 0
    %6984 = vmatprep.subr.bf16.mxu0 0
    %6985 = vmatpush1.bf16.msra.mxu0 0
    %6986 = vmatprep.subr.bf16.mxu0 0
    %6987 = vmatpush1.bf16.msra.mxu0 0
    %6988 = vmatprep.subr.bf16.mxu0 0
    %6989 = vmatpush1.bf16.msra.mxu0 0
    %6990 = vmatprep.subr.bf16.mxu0 0
    %6991 = vmatpush1.bf16.msra.mxu0 0
    %6992 = vmatprep.subr.bf16.mxu0 0
    %6993 = vmatpush1.bf16.msra.mxu0 0
    %6994 = vmatprep.subr.bf16.mxu0 0
    %6995 = vmatpush1.bf16.msra.mxu0 0
    %6996 = vmatprep.subr.bf16.mxu0 0
    %6997 = vmatpush1.bf16.msra.mxu0 0
    %6998 = vmatprep.subr.bf16.mxu0 0
    %6999 = vmatpush1.bf16.msra.mxu0 0
    %7000 = vmatprep.mubr.bf16.mxu0 0
    %7001 = vmatmul.mubr.bf16.gmra.mrb[0].mxu0 %v6957
    %v7002 = vpop.f32.mrb[0].mxu0
    %v7003 = vadd.f32 %v6902, %v7002
    %v7004 = vpop.f32.mrb[0].mxu0
    %v7005 = vpop.f32.mrb[0].mxu0
    %v7006 = vadd.f32 %v6905, %v7005
    %v7007 = vpop.f32.mrb[0].mxu0
    %7008 = vmatprep.mubr.bf16.mxu0 0
    %7009 = vmatmul.mubr.bf16.gmra.mrb[0].mxu0 %v6960
    %v7010 = vpop.f32.mrb[0].mxu0
    %v7011 = vadd.f32 %v6910, %v7010
    %v7012 = vpop.f32.mrb[0].mxu0
    %v7013 = vpop.f32.mrb[0].mxu0
    %v7014 = vadd.f32 %v6913, %v7013
    %v7015 = vpop.f32.mrb[0].mxu0
    %7016 = vmatprep.mubr.bf16.mxu0 0
    %7017 = vmatmul.mubr.bf16.gmra.mrb[0].mxu0 %v6963
    %v7018 = vpop.f32.mrb[0].mxu0
    %v7019 = vadd.f32 %v6918, %v7018
    %v7020 = vpop.f32.mrb[0].mxu0
    %v7021 = vpop.f32.mrb[0].mxu0
    %v7022 = vadd.f32 %v6921, %v7021
    %v7023 = vpop.f32.mrb[0].mxu0
    %7024 = vmatprep.mubr.bf16.mxu0 0
    %7025 = vmatmul.mubr.bf16.gmra.mrb[0].mxu0 %v6966
    %v7026 = vpop.f32.mrb[0].mxu0
    %v7027 = vadd.f32 %v6926, %v7026
    %v7028 = vpop.f32.mrb[0].mxu0
    %v7029 = vpop.f32.mrb[0].mxu0
    %v7030 = vadd.f32 %v6929, %v7029
    %v7031 = vpop.f32.mrb[0].mxu0
    %7032 = vdwg.mxu0
    %v7033 = vpack.c.bf16 %v6734, 0.0
    %v7034 = vpack.c.bf16 %v6714, %v6712
    %v7035 = vpack.c.bf16 %v6718, %v6716
    %v7036 = vpack.c.bf16 %v6722, %v6720
    %v7037 = vpack.c.bf16 %v6724, %v6724
    %v7038 = vld [vmem:[%s11 + $0x40] sm:$0xf]
    %v7039 = vld [vmem:[%s11 + $0x44] sm:$0xf]
    %v7040 = vld [vmem:[%s11 + $0x48] sm:$0xf]
    %v7041 = vld [vmem:[%s11 + $0x4c] sm:$0xf]
    %v7042 = vld [vmem:[%s11 + $0x50] sm:$0xf]
    %v7043 = vld [vmem:[%s11 + $0x54] sm:$0xf]
    %v7044 = vld [vmem:[%s11 + $0x58] sm:$0xf]
    %v7045 = vld [vmem:[%s11 + $0x5c] sm:$0xf]
    %v7051 = vrot.slane %v7033, 1
    %v7052 = vrot.slane %v7034, 1
    %v7053 = vsel %vm1545, %v7051, %v7052
    %v7054 = vrot.slane %v7035, 1
    %v7055 = vsel %vm1545, %v7052, %v7054
    %v7056 = vrot.slane %v7036, 1
    %v7057 = vsel %vm1545, %v7054, %v7056
    %v7058 = vrot.slane %v7037, 1
    %v7059 = vsel %vm1545, %v7056, %v7058
    %v7068 = vunpack.c.l.b16 %v7038
    %v7069 = vunpack.c.l.b16 %v7039
    %v7070 = vunpack.c.l.b16 %v7040
    %v7071 = vunpack.c.l.b16 %v7041
    %v7072 = vunpack.c.l.b16 %v7042
    %v7073 = vunpack.c.l.b16 %v7043
    %v7074 = vunpack.c.l.b16 %v7044
    %v7075 = vunpack.c.l.b16 %v7045
    %v7076 = vpack.c.b16 %v7069, %v7068
    %v7077 = vpack.c.b16 %v7071, %v7070
    %v7078 = vpack.c.b16 %v7073, %v7072
    %v7079 = vpack.c.b16 %v7075, %v7074
    %v7085 = vsel %vm3796, %v7053, 0
    %v7088 = vsel %vm3796, %v7055, 0
    %v7091 = vsel %vm3796, %v7057, 0
    %v7094 = vsel %vm3796, %v7059, 0
    %7096 = vmatprep.subr.bf16.mxu0 0
    %7097 = vmatpush1.bf16.msra.mxu0 %v7076
    %7098 = vmatprep.subr.bf16.mxu0 0
    %7099 = vmatpush1.bf16.msra.mxu0 %v7077
    %7100 = vmatprep.subr.bf16.mxu0 0
    %7101 = vmatpush1.bf16.msra.mxu0 %v7078
    %7102 = vmatprep.subr.bf16.mxu0 0
    %7103 = vmatpush1.bf16.msra.mxu0 %v7079
    %7104 = vmatprep.subr.bf16.mxu0 0
    %7105 = vmatpush1.bf16.msra.mxu0 0
    %7106 = vmatprep.subr.bf16.mxu0 0
    %7107 = vmatpush1.bf16.msra.mxu0 0
    %7108 = vmatprep.subr.bf16.mxu0 0
    %7109 = vmatpush1.bf16.msra.mxu0 0
    %7110 = vmatprep.subr.bf16.mxu0 0
    %7111 = vmatpush1.bf16.msra.mxu0 0
    %7112 = vmatprep.subr.bf16.mxu0 0
    %7113 = vmatpush1.bf16.msra.mxu0 0
    %7114 = vmatprep.subr.bf16.mxu0 0
    %7115 = vmatpush1.bf16.msra.mxu0 0
    %7116 = vmatprep.subr.bf16.mxu0 0
    %7117 = vmatpush1.bf16.msra.mxu0 0
    %7118 = vmatprep.subr.bf16.mxu0 0
    %7119 = vmatpush1.bf16.msra.mxu0 0
    %7120 = vmatprep.subr.bf16.mxu0 0
    %7121 = vmatpush1.bf16.msra.mxu0 0
    %7122 = vmatprep.subr.bf16.mxu0 0
    %7123 = vmatpush1.bf16.msra.mxu0 0
    %7124 = vmatprep.subr.bf16.mxu0 0
    %7125 = vmatpush1.bf16.msra.mxu0 0
    %7126 = vmatprep.subr.bf16.mxu0 0
    %7127 = vmatpush1.bf16.msra.mxu0 0
    %7128 = vmatprep.mubr.bf16.mxu0 0
    %7129 = vmatmul.mubr.bf16.gmra.mrb[0].mxu0 %v7085
    %v7130 = vpop.f32.mrb[0].mxu0
    %v7131 = vadd.f32 0.0, %v7130
    %v7132 = vpop.f32.mrb[0].mxu0
    %v7133 = vpop.f32.mrb[0].mxu0
    %v7134 = vadd.f32 0.0, %v7133
    %v7135 = vpop.f32.mrb[0].mxu0
    %7136 = vmatprep.mubr.bf16.mxu0 0
    %7137 = vmatmul.mubr.bf16.gmra.mrb[0].mxu0 %v7088
    %v7138 = vpop.f32.mrb[0].mxu0
    %v7139 = vadd.f32 0.0, %v7138
    %v7140 = vpop.f32.mrb[0].mxu0
    %v7141 = vpop.f32.mrb[0].mxu0
    %v7142 = vadd.f32 0.0, %v7141
    %v7143 = vpop.f32.mrb[0].mxu0
    %7144 = vmatprep.mubr.bf16.mxu0 0
    %7145 = vmatmul.mubr.bf16.gmra.mrb[0].mxu0 %v7091
    %v7146 = vpop.f32.mrb[0].mxu0
    %v7147 = vadd.f32 0.0, %v7146
    %v7148 = vpop.f32.mrb[0].mxu0
    %v7149 = vpop.f32.mrb[0].mxu0
    %v7150 = vadd.f32 0.0, %v7149
    %v7151 = vpop.f32.mrb[0].mxu0
    %7152 = vmatprep.mubr.bf16.mxu0 0
    %7153 = vmatmul.mubr.bf16.gmra.mrb[0].mxu0 %v7094
    %v7154 = vpop.f32.mrb[0].mxu0
    %v7155 = vadd.f32 0.0, %v7154
    %v7156 = vpop.f32.mrb[0].mxu0
    %v7157 = vpop.f32.mrb[0].mxu0
    %v7158 = vadd.f32 0.0, %v7157
    %v7159 = vpop.f32.mrb[0].mxu0
    %7160 = vdwg.mxu0
    %v7161 = vadd.f32 %v7003, %v7131
    %v7162 = vadd.f32 %v7006, %v7134
    %v7163 = vadd.f32 %v7011, %v7139
    %v7164 = vadd.f32 %v7014, %v7142
    %v7165 = vadd.f32 %v7019, %v7147
    %v7166 = vadd.f32 %v7022, %v7150
    %v7167 = vadd.f32 %v7027, %v7155
    %v7168 = vadd.f32 %v7030, %v7158
    %v7169 = vpack.c.bf16 %v6746, %v6768
    %v7170 = vpack.c.bf16 %v6750, %v6748
    %v7171 = vpack.c.bf16 %v6754, %v6752
    %v7172 = vpack.c.bf16 %v6758, %v6756
    %v7173 = vld [vmem:[%s11 + $0x60] sm:$0xf]
    %v7174 = vld [vmem:[%s11 + $0x64] sm:$0xf]
    %v7175 = vld [vmem:[%s11 + $0x68] sm:$0xf]
    %v7176 = vld [vmem:[%s11 + $0x6c] sm:$0xf]
    %v7177 = vld [vmem:[%s11 + $0x70] sm:$0xf]
    %v7178 = vld [vmem:[%s11 + $0x74] sm:$0xf]
    %v7179 = vld [vmem:[%s11 + $0x78] sm:$0xf]
    %v7180 = vld [vmem:[%s11 + $0x7c] sm:$0xf]
    %v7189 = vunpack.c.l.b16 %v7173
    %v7190 = vunpack.c.l.b16 %v7174
    %v7191 = vunpack.c.l.b16 %v7175
    %v7192 = vunpack.c.l.b16 %v7176
    %v7193 = vunpack.c.l.b16 %v7177
    %v7194 = vunpack.c.l.b16 %v7178
    %v7195 = vunpack.c.l.b16 %v7179
    %v7196 = vunpack.c.l.b16 %v7180
    %v7197 = vpack.c.b16 %v7190, %v7189
    %v7198 = vpack.c.b16 %v7192, %v7191
    %v7199 = vpack.c.b16 %v7194, %v7193
    %v7200 = vpack.c.b16 %v7196, %v7195
    %v7206 = vsel %vm3796, %v7169, 0
    %v7209 = vsel %vm3796, %v7170, 0
    %v7212 = vsel %vm3796, %v7171, 0
    %v7215 = vsel %vm3796, %v7172, 0
    %7217 = vmatprep.subr.bf16.mxu0 0
    %7218 = vmatpush1.bf16.msra.mxu0 %v7197
    %7219 = vmatprep.subr.bf16.mxu0 0
    %7220 = vmatpush1.bf16.msra.mxu0 %v7198
    %7221 = vmatprep.subr.bf16.mxu0 0
    %7222 = vmatpush1.bf16.msra.mxu0 %v7199
    %7223 = vmatprep.subr.bf16.mxu0 0
    %7224 = vmatpush1.bf16.msra.mxu0 %v7200
    %7225 = vmatprep.subr.bf16.mxu0 0
    %7226 = vmatpush1.bf16.msra.mxu0 0
    %7227 = vmatprep.subr.bf16.mxu0 0
    %7228 = vmatpush1.bf16.msra.mxu0 0
    %7229 = vmatprep.subr.bf16.mxu0 0
    %7230 = vmatpush1.bf16.msra.mxu0 0
    %7231 = vmatprep.subr.bf16.mxu0 0
    %7232 = vmatpush1.bf16.msra.mxu0 0
    %7233 = vmatprep.subr.bf16.mxu0 0
    %7234 = vmatpush1.bf16.msra.mxu0 0
    %7235 = vmatprep.subr.bf16.mxu0 0
    %7236 = vmatpush1.bf16.msra.mxu0 0
    %7237 = vmatprep.subr.bf16.mxu0 0
    %7238 = vmatpush1.bf16.msra.mxu0 0
    %7239 = vmatprep.subr.bf16.mxu0 0
    %7240 = vmatpush1.bf16.msra.mxu0 0
    %7241 = vmatprep.subr.bf16.mxu0 0
    %7242 = vmatpush1.bf16.msra.mxu0 0
    %7243 = vmatprep.subr.bf16.mxu0 0
    %7244 = vmatpush1.bf16.msra.mxu0 0
    %7245 = vmatprep.subr.bf16.mxu0 0
    %7246 = vmatpush1.bf16.msra.mxu0 0
    %7247 = vmatprep.subr.bf16.mxu0 0
    %7248 = vmatpush1.bf16.msra.mxu0 0
    %7249 = vmatprep.mubr.bf16.mxu0 0
    %7250 = vmatmul.mubr.bf16.gmra.mrb[0].mxu0 %v7206
    %v7251 = vpop.f32.mrb[0].mxu0
    %v7252 = vadd.f32 0.0, %v7251
    %v7253 = vpop.f32.mrb[0].mxu0
    %v7254 = vpop.f32.mrb[0].mxu0
    %v7255 = vadd.f32 0.0, %v7254
    %v7256 = vpop.f32.mrb[0].mxu0
    %7257 = vmatprep.mubr.bf16.mxu0 0
    %7258 = vmatmul.mubr.bf16.gmra.mrb[0].mxu0 %v7209
    %v7259 = vpop.f32.mrb[0].mxu0
    %v7260 = vadd.f32 0.0, %v7259
    %v7261 = vpop.f32.mrb[0].mxu0
    %v7262 = vpop.f32.mrb[0].mxu0
    %v7263 = vadd.f32 0.0, %v7262
    %v7264 = vpop.f32.mrb[0].mxu0
    %7265 = vmatprep.mubr.bf16.mxu0 0
    %7266 = vmatmul.mubr.bf16.gmra.mrb[0].mxu0 %v7212
    %v7267 = vpop.f32.mrb[0].mxu0
    %v7268 = vadd.f32 0.0, %v7267
    %v7269 = vpop.f32.mrb[0].mxu0
    %v7270 = vpop.f32.mrb[0].mxu0
    %v7271 = vadd.f32 0.0, %v7270
    %v7272 = vpop.f32.mrb[0].mxu0
    %7273 = vmatprep.mubr.bf16.mxu0 0
    %7274 = vmatmul.mubr.bf16.gmra.mrb[0].mxu0 %v7215
    %v7275 = vpop.f32.mrb[0].mxu0
    %v7276 = vadd.f32 0.0, %v7275
    %v7277 = vpop.f32.mrb[0].mxu0
    %v7278 = vpop.f32.mrb[0].mxu0
    %v7279 = vadd.f32 0.0, %v7278
    %v7280 = vpop.f32.mrb[0].mxu0
    %7281 = vdwg.mxu0
    %v7282 = vadd.f32 %v7161, %v7252
    %v7283 = vadd.f32 %v7162, %v7255
    %v7284 = vadd.f32 %v7163, %v7260
    %v7285 = vadd.f32 %v7164, %v7263
    %v7286 = vadd.f32 %v7165, %v7268
    %v7287 = vadd.f32 %v7166, %v7271
    %v7288 = vadd.f32 %v7167, %v7276
    %v7289 = vadd.f32 %v7168, %v7279
    %v7290 = vpack.c.bf16 %v6678, %v6700
    %v7291 = vpack.c.bf16 %v6682, %v6680
    %v7292 = vpack.c.bf16 %v6686, %v6684
    %v7293 = vpack.c.bf16 %v6690, %v6688
    %v7294 = vpack.c.bf16 %v6701, %v6701
    %v7295 = vld [vmem:[%s11 + $0x80] sm:$0xf]
    %v7296 = vld [vmem:[%s11 + $0x84] sm:$0xf]
    %v7297 = vld [vmem:[%s11 + $0x88] sm:$0xf]
    %v7298 = vld [vmem:[%s11 + $0x8c] sm:$0xf]
    %v7299 = vld [vmem:[%s11 + $0x90] sm:$0xf]
    %v7300 = vld [vmem:[%s11 + $0x94] sm:$0xf]
    %v7301 = vld [vmem:[%s11 + $0x98] sm:$0xf]
    %v7302 = vld [vmem:[%s11 + $0x9c] sm:$0xf]
    %v7304 = vshrl.u32 %v7290, 16
    %v7306 = vshll.u32 %v7290, 16
    %v7308 = vrot.slane %v7306, 1
    %v7309 = vor.u32 %v7304, %v7308
    %v7311 = vshll.u32 %v7291, 16
    %v7313 = vrot.slane %v7311, 1
    %v7314 = vsel %vm953, %v7309, %v7313
    %v7315 = vshrl.u32 %v7291, 16
    %v7317 = vor.u32 %v7315, %v7313
    %v7319 = vshll.u32 %v7292, 16
    %v7321 = vrot.slane %v7319, 1
    %v7322 = vsel %vm953, %v7317, %v7321
    %v7323 = vshrl.u32 %v7292, 16
    %v7325 = vor.u32 %v7323, %v7321
    %v7327 = vshll.u32 %v7293, 16
    %v7329 = vrot.slane %v7327, 1
    %v7330 = vsel %vm953, %v7325, %v7329
    %v7331 = vshrl.u32 %v7293, 16
    %v7333 = vor.u32 %v7331, %v7329
    %v7335 = vshll.u32 %v7294, 16
    %v7337 = vrot.slane %v7335, 1
    %v7338 = vsel %vm953, %v7333, %v7337
    %v7347 = vunpack.c.l.b16 %v7295
    %v7348 = vunpack.c.l.b16 %v7296
    %v7349 = vunpack.c.l.b16 %v7297
    %v7350 = vunpack.c.l.b16 %v7298
    %v7351 = vunpack.c.l.b16 %v7299
    %v7352 = vunpack.c.l.b16 %v7300
    %v7353 = vunpack.c.l.b16 %v7301
    %v7354 = vunpack.c.l.b16 %v7302
    %v7355 = vpack.c.b16 %v7348, %v7347
    %v7356 = vpack.c.b16 %v7350, %v7349
    %v7357 = vpack.c.b16 %v7352, %v7351
    %v7358 = vpack.c.b16 %v7354, %v7353
    %v7364 = vsel %vm3796, %v7314, 0
    %v7367 = vsel %vm3796, %v7322, 0
    %v7370 = vsel %vm3796, %v7330, 0
    %v7373 = vsel %vm3796, %v7338, 0
    %7375 = vmatprep.subr.bf16.mxu0 0
    %7376 = vmatpush1.bf16.msra.mxu0 %v7355
    %7377 = vmatprep.subr.bf16.mxu0 0
    %7378 = vmatpush1.bf16.msra.mxu0 %v7356
    %7379 = vmatprep.subr.bf16.mxu0 0
    %7380 = vmatpush1.bf16.msra.mxu0 %v7357
    %7381 = vmatprep.subr.bf16.mxu0 0
    %7382 = vmatpush1.bf16.msra.mxu0 %v7358
    %7383 = vmatprep.subr.bf16.mxu0 0
    %7384 = vmatpush1.bf16.msra.mxu0 0
    %7385 = vmatprep.subr.bf16.mxu0 0
    %7386 = vmatpush1.bf16.msra.mxu0 0
    %7387 = vmatprep.subr.bf16.mxu0 0
    %7388 = vmatpush1.bf16.msra.mxu0 0
    %7389 = vmatprep.subr.bf16.mxu0 0
    %7390 = vmatpush1.bf16.msra.mxu0 0
    %7391 = vmatprep.subr.bf16.mxu0 0
    %7392 = vmatpush1.bf16.msra.mxu0 0
    %7393 = vmatprep.subr.bf16.mxu0 0
    %7394 = vmatpush1.bf16.msra.mxu0 0
    %7395 = vmatprep.subr.bf16.mxu0 0
    %7396 = vmatpush1.bf16.msra.mxu0 0
    %7397 = vmatprep.subr.bf16.mxu0 0
    %7398 = vmatpush1.bf16.msra.mxu0 0
    %7399 = vmatprep.subr.bf16.mxu0 0
    %7400 = vmatpush1.bf16.msra.mxu0 0
    %7401 = vmatprep.subr.bf16.mxu0 0
    %7402 = vmatpush1.bf16.msra.mxu0 0
    %7403 = vmatprep.subr.bf16.mxu0 0
    %7404 = vmatpush1.bf16.msra.mxu0 0
    %7405 = vmatprep.subr.bf16.mxu0 0
    %7406 = vmatpush1.bf16.msra.mxu0 0
    %7407 = vmatprep.mubr.bf16.mxu0 0
    %7408 = vmatmul.mubr.bf16.gmra.mrb[0].mxu0 %v7364
    %v7409 = vpop.f32.mrb[0].mxu0
    %v7410 = vadd.f32 0.0, %v7409
    %v7411 = vpop.f32.mrb[0].mxu0
    %v7412 = vpop.f32.mrb[0].mxu0
    %v7413 = vadd.f32 0.0, %v7412
    %v7414 = vpop.f32.mrb[0].mxu0
    %7415 = vmatprep.mubr.bf16.mxu0 0
    %7416 = vmatmul.mubr.bf16.gmra.mrb[0].mxu0 %v7367
    %v7417 = vpop.f32.mrb[0].mxu0
    %v7418 = vadd.f32 0.0, %v7417
    %v7419 = vpop.f32.mrb[0].mxu0
    %v7420 = vpop.f32.mrb[0].mxu0
    %v7421 = vadd.f32 0.0, %v7420
    %v7422 = vpop.f32.mrb[0].mxu0
    %7423 = vmatprep.mubr.bf16.mxu0 0
    %7424 = vmatmul.mubr.bf16.gmra.mrb[0].mxu0 %v7370
    %v7425 = vpop.f32.mrb[0].mxu0
    %v7426 = vadd.f32 0.0, %v7425
    %v7427 = vpop.f32.mrb[0].mxu0
    %v7428 = vpop.f32.mrb[0].mxu0
    %v7429 = vadd.f32 0.0, %v7428
    %v7430 = vpop.f32.mrb[0].mxu0
    %7431 = vmatprep.mubr.bf16.mxu0 0
    %7432 = vmatmul.mubr.bf16.gmra.mrb[0].mxu0 %v7373
    %v7433 = vpop.f32.mrb[0].mxu0
    %v7434 = vadd.f32 0.0, %v7433
    %v7435 = vpop.f32.mrb[0].mxu0
    %v7436 = vpop.f32.mrb[0].mxu0
    %v7437 = vadd.f32 0.0, %v7436
    %v7438 = vpop.f32.mrb[0].mxu0
    %7439 = vdwg.mxu0
    %v7440 = vadd.f32 %v7282, %v7410
    %v7441 = vadd.f32 %v7283, %v7413
    %v7442 = vadd.f32 %v7284, %v7418
    %v7443 = vadd.f32 %v7285, %v7421
    %v7444 = vadd.f32 %v7286, %v7426
    %v7445 = vadd.f32 %v7287, %v7429
    %v7446 = vadd.f32 %v7288, %v7434
    %v7447 = vadd.f32 %v7289, %v7437
    %v7448 = vpack.c.bf16 %v6712, %v6734
    %v7449 = vpack.c.bf16 %v6716, %v6714
    %v7450 = vpack.c.bf16 %v6720, %v6718
    %v7451 = vpack.c.bf16 %v6724, %v6722
    %v7452 = vpack.c.bf16 %v6735, %v6735
    %v7453 = vld [vmem:[%s11 + $0xa0] sm:$0xf]
    %v7454 = vld [vmem:[%s11 + $0xa4] sm:$0xf]
    %v7455 = vld [vmem:[%s11 + $0xa8] sm:$0xf]
    %v7456 = vld [vmem:[%s11 + $0xac] sm:$0xf]
    %v7457 = vld [vmem:[%s11 + $0xb0] sm:$0xf]
    %v7458 = vld [vmem:[%s11 + $0xb4] sm:$0xf]
    %v7459 = vld [vmem:[%s11 + $0xb8] sm:$0xf]
    %v7460 = vld [vmem:[%s11 + $0xbc] sm:$0xf]
    %v7466 = vrot.slane %v7448, 1
    %v7467 = vrot.slane %v7449, 1
    %v7468 = vsel %vm1545, %v7466, %v7467
    %v7469 = vrot.slane %v7450, 1
    %v7470 = vsel %vm1545, %v7467, %v7469
    %v7471 = vrot.slane %v7451, 1
    %v7472 = vsel %vm1545, %v7469, %v7471
    %v7473 = vrot.slane %v7452, 1
    %v7474 = vsel %vm1545, %v7471, %v7473
    %v7483 = vunpack.c.l.b16 %v7453
    %v7484 = vunpack.c.l.b16 %v7454
    %v7485 = vunpack.c.l.b16 %v7455
    %v7486 = vunpack.c.l.b16 %v7456
    %v7487 = vunpack.c.l.b16 %v7457
    %v7488 = vunpack.c.l.b16 %v7458
    %v7489 = vunpack.c.l.b16 %v7459
    %v7490 = vunpack.c.l.b16 %v7460
    %v7491 = vpack.c.b16 %v7484, %v7483
    %v7492 = vpack.c.b16 %v7486, %v7485
    %v7493 = vpack.c.b16 %v7488, %v7487
    %v7494 = vpack.c.b16 %v7490, %v7489
    %v7500 = vsel %vm3796, %v7468, 0
    %v7503 = vsel %vm3796, %v7470, 0
    %v7506 = vsel %vm3796, %v7472, 0
    %v7509 = vsel %vm3796, %v7474, 0
    %7511 = vmatprep.subr.bf16.mxu0 0
    %7512 = vmatpush1.bf16.msra.mxu0 %v7491
    %7513 = vmatprep.subr.bf16.mxu0 0
    %7514 = vmatpush1.bf16.msra.mxu0 %v7492
    %7515 = vmatprep.subr.bf16.mxu0 0
    %7516 = vmatpush1.bf16.msra.mxu0 %v7493
    %7517 = vmatprep.subr.bf16.mxu0 0
    %7518 = vmatpush1.bf16.msra.mxu0 %v7494
    %7519 = vmatprep.subr.bf16.mxu0 0
    %7520 = vmatpush1.bf16.msra.mxu0 0
    %7521 = vmatprep.subr.bf16.mxu0 0
    %7522 = vmatpush1.bf16.msra.mxu0 0
    %7523 = vmatprep.subr.bf16.mxu0 0
    %7524 = vmatpush1.bf16.msra.mxu0 0
    %7525 = vmatprep.subr.bf16.mxu0 0
    %7526 = vmatpush1.bf16.msra.mxu0 0
    %7527 = vmatprep.subr.bf16.mxu0 0
    %7528 = vmatpush1.bf16.msra.mxu0 0
    %7529 = vmatprep.subr.bf16.mxu0 0
    %7530 = vmatpush1.bf16.msra.mxu0 0
    %7531 = vmatprep.subr.bf16.mxu0 0
    %7532 = vmatpush1.bf16.msra.mxu0 0
    %7533 = vmatprep.subr.bf16.mxu0 0
    %7534 = vmatpush1.bf16.msra.mxu0 0
    %7535 = vmatprep.subr.bf16.mxu0 0
    %7536 = vmatpush1.bf16.msra.mxu0 0
    %7537 = vmatprep.subr.bf16.mxu0 0
    %7538 = vmatpush1.bf16.msra.mxu0 0
    %7539 = vmatprep.subr.bf16.mxu0 0
    %7540 = vmatpush1.bf16.msra.mxu0 0
    %7541 = vmatprep.subr.bf16.mxu0 0
    %7542 = vmatpush1.bf16.msra.mxu0 0
    %7543 = vmatprep.mubr.bf16.mxu0 0
    %7544 = vmatmul.mubr.bf16.gmra.mrb[0].mxu0 %v7500
    %v7545 = vpop.f32.mrb[0].mxu0
    %v7546 = vadd.f32 0.0, %v7545
    %v7547 = vpop.f32.mrb[0].mxu0
    %v7548 = vpop.f32.mrb[0].mxu0
    %v7549 = vadd.f32 0.0, %v7548
    %v7550 = vpop.f32.mrb[0].mxu0
    %7551 = vmatprep.mubr.bf16.mxu0 0
    %7552 = vmatmul.mubr.bf16.gmra.mrb[0].mxu0 %v7503
    %v7553 = vpop.f32.mrb[0].mxu0
    %v7554 = vadd.f32 0.0, %v7553
    %v7555 = vpop.f32.mrb[0].mxu0
    %v7556 = vpop.f32.mrb[0].mxu0
    %v7557 = vadd.f32 0.0, %v7556
    %v7558 = vpop.f32.mrb[0].mxu0
    %7559 = vmatprep.mubr.bf16.mxu0 0
    %7560 = vmatmul.mubr.bf16.gmra.mrb[0].mxu0 %v7506
    %v7561 = vpop.f32.mrb[0].mxu0
    %v7562 = vadd.f32 0.0, %v7561
    %v7563 = vpop.f32.mrb[0].mxu0
    %v7564 = vpop.f32.mrb[0].mxu0
    %v7565 = vadd.f32 0.0, %v7564
    %v7566 = vpop.f32.mrb[0].mxu0
    %7567 = vmatprep.mubr.bf16.mxu0 0
    %7568 = vmatmul.mubr.bf16.gmra.mrb[0].mxu0 %v7509
    %v7569 = vpop.f32.mrb[0].mxu0
    %v7570 = vadd.f32 0.0, %v7569
    %v7571 = vpop.f32.mrb[0].mxu0
    %v7572 = vpop.f32.mrb[0].mxu0
    %v7573 = vadd.f32 0.0, %v7572
    %v7574 = vpop.f32.mrb[0].mxu0
    %7575 = vdwg.mxu0
    %v7576 = vadd.f32 %v7440, %v7546
    %v7577 = vadd.f32 %v7441, %v7549
    %v7578 = vadd.f32 %v7442, %v7554
    %v7579 = vadd.f32 %v7443, %v7557
    %v7580 = vadd.f32 %v7444, %v7562
    %v7581 = vadd.f32 %v7445, %v7565
    %v7582 = vadd.f32 %v7446, %v7570
    %v7583 = vadd.f32 %v7447, %v7573
    %v7584 = vpack.c.bf16 %v6769, %v6758
    %v7585 = vld [vmem:[%s11 + $0xc0] sm:$0xf]
    %v7586 = vld [vmem:[%s11 + $0xc4] sm:$0xf]
    %v7587 = vld [vmem:[%s11 + $0xc8] sm:$0xf]
    %v7588 = vld [vmem:[%s11 + $0xcc] sm:$0xf]
    %v7589 = vld [vmem:[%s11 + $0xd0] sm:$0xf]
    %v7590 = vld [vmem:[%s11 + $0xd4] sm:$0xf]
    %v7591 = vld [vmem:[%s11 + $0xd8] sm:$0xf]
    %v7592 = vld [vmem:[%s11 + $0xdc] sm:$0xf]
    %v7601 = vunpack.c.l.b16 %v7585
    %v7602 = vunpack.c.l.b16 %v7586
    %v7603 = vunpack.c.l.b16 %v7587
    %v7604 = vunpack.c.l.b16 %v7588
    %v7605 = vunpack.c.l.b16 %v7589
    %v7606 = vunpack.c.l.b16 %v7590
    %v7607 = vunpack.c.l.b16 %v7591
    %v7608 = vunpack.c.l.b16 %v7592
    %v7609 = vpack.c.b16 %v7602, %v7601
    %v7610 = vpack.c.b16 %v7604, %v7603
    %v7611 = vpack.c.b16 %v7606, %v7605
    %v7612 = vpack.c.b16 %v7608, %v7607
    %v7618 = vsel %vm3796, %v7584, 0
    %7620 = vmatprep.subr.bf16.mxu0 0
    %7621 = vmatpush1.bf16.msra.mxu0 %v7609
    %7622 = vmatprep.subr.bf16.mxu0 0
    %7623 = vmatpush1.bf16.msra.mxu0 %v7610
    %7624 = vmatprep.subr.bf16.mxu0 0
    %7625 = vmatpush1.bf16.msra.mxu0 %v7611
    %7626 = vmatprep.subr.bf16.mxu0 0
    %7627 = vmatpush1.bf16.msra.mxu0 %v7612
    %7628 = vmatprep.subr.bf16.mxu0 0
    %7629 = vmatpush1.bf16.msra.mxu0 0
    %7630 = vmatprep.subr.bf16.mxu0 0
    %7631 = vmatpush1.bf16.msra.mxu0 0
    %7632 = vmatprep.subr.bf16.mxu0 0
    %7633 = vmatpush1.bf16.msra.mxu0 0
    %7634 = vmatprep.subr.bf16.mxu0 0
    %7635 = vmatpush1.bf16.msra.mxu0 0
    %7636 = vmatprep.subr.bf16.mxu0 0
    %7637 = vmatpush1.bf16.msra.mxu0 0
    %7638 = vmatprep.subr.bf16.mxu0 0
    %7639 = vmatpush1.bf16.msra.mxu0 0
    %7640 = vmatprep.subr.bf16.mxu0 0
    %7641 = vmatpush1.bf16.msra.mxu0 0
    %7642 = vmatprep.subr.bf16.mxu0 0
    %7643 = vmatpush1.bf16.msra.mxu0 0
    %7644 = vmatprep.subr.bf16.mxu0 0
    %7645 = vmatpush1.bf16.msra.mxu0 0
    %7646 = vmatprep.subr.bf16.mxu0 0
    %7647 = vmatpush1.bf16.msra.mxu0 0
    %7648 = vmatprep.subr.bf16.mxu0 0
    %7649 = vmatpush1.bf16.msra.mxu0 0
    %7650 = vmatprep.subr.bf16.mxu0 0
    %7651 = vmatpush1.bf16.msra.mxu0 0
    %7652 = vmatprep.mubr.bf16.mxu0 0
    %7653 = vmatmul.mubr.bf16.gmra.mrb[0].mxu0 %v6960
    %v7654 = vpop.f32.mrb[0].mxu0
    %v7655 = vadd.f32 0.0, %v7654
    %v7656 = vpop.f32.mrb[0].mxu0
    %v7657 = vpop.f32.mrb[0].mxu0
    %v7658 = vadd.f32 0.0, %v7657
    %v7659 = vpop.f32.mrb[0].mxu0
    %7660 = vmatprep.mubr.bf16.mxu0 0
    %7661 = vmatmul.mubr.bf16.gmra.mrb[0].mxu0 %v6963
    %v7662 = vpop.f32.mrb[0].mxu0
    %v7663 = vadd.f32 0.0, %v7662
    %v7664 = vpop.f32.mrb[0].mxu0
    %v7665 = vpop.f32.mrb[0].mxu0
    %v7666 = vadd.f32 0.0, %v7665
    %v7667 = vpop.f32.mrb[0].mxu0
    %7668 = vmatprep.mubr.bf16.mxu0 0
    %7669 = vmatmul.mubr.bf16.gmra.mrb[0].mxu0 %v6966
    %v7670 = vpop.f32.mrb[0].mxu0
    %v7671 = vadd.f32 0.0, %v7670
    %v7672 = vpop.f32.mrb[0].mxu0
    %v7673 = vpop.f32.mrb[0].mxu0
    %v7674 = vadd.f32 0.0, %v7673
    %v7675 = vpop.f32.mrb[0].mxu0
    %7676 = vmatprep.mubr.bf16.mxu0 0
    %7677 = vmatmul.mubr.bf16.gmra.mrb[0].mxu0 %v7618
    %v7678 = vpop.f32.mrb[0].mxu0
    %v7679 = vadd.f32 0.0, %v7678
    %v7680 = vpop.f32.mrb[0].mxu0
    %v7681 = vpop.f32.mrb[0].mxu0
    %v7682 = vadd.f32 0.0, %v7681
    %v7683 = vpop.f32.mrb[0].mxu0
    %7684 = vdwg.mxu0
    %v7685 = vadd.f32 %v7576, %v7655
    %v7686 = vadd.f32 %v7577, %v7658
    %v7687 = vadd.f32 %v7578, %v7663
    %v7688 = vadd.f32 %v7579, %v7666
    %v7689 = vadd.f32 %v7580, %v7671
    %v7690 = vadd.f32 %v7581, %v7674
    %v7691 = vadd.f32 %v7582, %v7679
    %v7692 = vadd.f32 %v7583, %v7682
    %v7693 = vpack.c.bf16 %v6701, %v6690
    %v7694 = vld [vmem:[%s11 + $0xe0] sm:$0xf]
    %v7695 = vld [vmem:[%s11 + $0xe4] sm:$0xf]
    %v7696 = vld [vmem:[%s11 + $0xe8] sm:$0xf]
    %v7697 = vld [vmem:[%s11 + $0xec] sm:$0xf]
    %v7698 = vld [vmem:[%s11 + $0xf0] sm:$0xf]
    %v7699 = vld [vmem:[%s11 + $0xf4] sm:$0xf]
    %v7700 = vld [vmem:[%s11 + $0xf8] sm:$0xf]
    %v7701 = vld [vmem:[%s11 + $0xfc] sm:$0xf]
    %v7703 = vshll.u32 %v7693, 16
    %v7705 = vrot.slane %v7703, 1
    %v7706 = vsel %vm953, %v6825, %v7705
    %v7707 = vshrl.u32 %v7693, 16
    %v7709 = vor.u32 %v7707, %v7705
    %v7710 = vsel %vm953, %v7709, %v959
    %v7719 = vunpack.c.l.b16 %v7694
    %v7720 = vunpack.c.l.b16 %v7695
    %v7721 = vunpack.c.l.b16 %v7696
    %v7722 = vunpack.c.l.b16 %v7697
    %v7723 = vunpack.c.l.b16 %v7698
    %v7724 = vunpack.c.l.b16 %v7699
    %v7725 = vunpack.c.l.b16 %v7700
    %v7726 = vunpack.c.l.b16 %v7701
    %v7727 = vpack.c.b16 %v7720, %v7719
    %v7728 = vpack.c.b16 %v7722, %v7721
    %v7729 = vpack.c.b16 %v7724, %v7723
    %v7730 = vpack.c.b16 %v7726, %v7725
    %v7736 = vsel %vm3796, %v7706, 0
    %v7739 = vsel %vm3796, %v7710, 0
    %7741 = vmatprep.subr.bf16.mxu0 0
    %7742 = vmatpush1.bf16.msra.mxu0 %v7727
    %7743 = vmatprep.subr.bf16.mxu0 0
    %7744 = vmatpush1.bf16.msra.mxu0 %v7728
    %7745 = vmatprep.subr.bf16.mxu0 0
    %7746 = vmatpush1.bf16.msra.mxu0 %v7729
    %7747 = vmatprep.subr.bf16.mxu0 0
    %7748 = vmatpush1.bf16.msra.mxu0 %v7730
    %7749 = vmatprep.subr.bf16.mxu0 0
    %7750 = vmatpush1.bf16.msra.mxu0 0
    %7751 = vmatprep.subr.bf16.mxu0 0
    %7752 = vmatpush1.bf16.msra.mxu0 0
    %7753 = vmatprep.subr.bf16.mxu0 0
    %7754 = vmatpush1.bf16.msra.mxu0 0
    %7755 = vmatprep.subr.bf16.mxu0 0
    %7756 = vmatpush1.bf16.msra.mxu0 0
    %7757 = vmatprep.subr.bf16.mxu0 0
    %7758 = vmatpush1.bf16.msra.mxu0 0
    %7759 = vmatprep.subr.bf16.mxu0 0
    %7760 = vmatpush1.bf16.msra.mxu0 0
    %7761 = vmatprep.subr.bf16.mxu0 0
    %7762 = vmatpush1.bf16.msra.mxu0 0
    %7763 = vmatprep.subr.bf16.mxu0 0
    %7764 = vmatpush1.bf16.msra.mxu0 0
    %7765 = vmatprep.subr.bf16.mxu0 0
    %7766 = vmatpush1.bf16.msra.mxu0 0
    %7767 = vmatprep.subr.bf16.mxu0 0
    %7768 = vmatpush1.bf16.msra.mxu0 0
    %7769 = vmatprep.subr.bf16.mxu0 0
    %7770 = vmatpush1.bf16.msra.mxu0 0
    %7771 = vmatprep.subr.bf16.mxu0 0
    %7772 = vmatpush1.bf16.msra.mxu0 0
    %7773 = vmatprep.mubr.bf16.mxu0 0
    %7774 = vmatmul.mubr.bf16.gmra.mrb[0].mxu0 %v6859
    %v7775 = vpop.f32.mrb[0].mxu0
    %v7776 = vadd.f32 0.0, %v7775
    %v7777 = vpop.f32.mrb[0].mxu0
    %v7778 = vpop.f32.mrb[0].mxu0
    %v7779 = vadd.f32 0.0, %v7778
    %v7780 = vpop.f32.mrb[0].mxu0
    %7781 = vmatprep.mubr.bf16.mxu0 0
    %7782 = vmatmul.mubr.bf16.gmra.mrb[0].mxu0 %v6862
    %v7783 = vpop.f32.mrb[0].mxu0
    %v7784 = vadd.f32 0.0, %v7783
    %v7785 = vpop.f32.mrb[0].mxu0
    %v7786 = vpop.f32.mrb[0].mxu0
    %v7787 = vadd.f32 0.0, %v7786
    %v7788 = vpop.f32.mrb[0].mxu0
    %7789 = vmatprep.mubr.bf16.mxu0 0
    %7790 = vmatmul.mubr.bf16.gmra.mrb[0].mxu0 %v7736
    %v7791 = vpop.f32.mrb[0].mxu0
    %v7792 = vadd.f32 0.0, %v7791
    %v7793 = vpop.f32.mrb[0].mxu0
    %v7794 = vpop.f32.mrb[0].mxu0
    %v7795 = vadd.f32 0.0, %v7794
    %v7796 = vpop.f32.mrb[0].mxu0
    %7797 = vmatprep.mubr.bf16.mxu0 0
    %7798 = vmatmul.mubr.bf16.gmra.mrb[0].mxu0 %v7739
    %v7799 = vpop.f32.mrb[0].mxu0
    %v7800 = vadd.f32 0.0, %v7799
    %v7801 = vpop.f32.mrb[0].mxu0
    %v7802 = vpop.f32.mrb[0].mxu0
    %v7803 = vadd.f32 0.0, %v7802
    %v7804 = vpop.f32.mrb[0].mxu0
    %7805 = vdwg.mxu0
    %v7806 = vadd.f32 %v7685, %v7776
    %v7807 = vadd.f32 %v7686, %v7779
    %v7808 = vadd.f32 %v7687, %v7784
    %v7809 = vadd.f32 %v7688, %v7787
    %v7810 = vadd.f32 %v7689, %v7792
    %v7811 = vadd.f32 %v7690, %v7795
    %v7812 = vadd.f32 %v7691, %v7800
    %v7813 = vadd.f32 %v7692, %v7803
    %v7814 = vpack.c.bf16 %v6735, %v6724
    %v7815 = vld [vmem:[%s11 + $0x100] sm:$0xf]
    %v7816 = vld [vmem:[%s11 + $0x104] sm:$0xf]
    %v7817 = vld [vmem:[%s11 + $0x108] sm:$0xf]
    %v7818 = vld [vmem:[%s11 + $0x10c] sm:$0xf]
    %v7819 = vld [vmem:[%s11 + $0x110] sm:$0xf]
    %v7820 = vld [vmem:[%s11 + $0x114] sm:$0xf]
    %v7821 = vld [vmem:[%s11 + $0x118] sm:$0xf]
    %v7822 = vld [vmem:[%s11 + $0x11c] sm:$0xf]
    %v7824 = vrot.slane %v7814, 1
    %v7825 = vsel %vm1545, %v7056, %v7824
    %v7826 = vsel %vm1545, %v7824, %v1546
    %v7835 = vunpack.c.l.b16 %v7815
    %v7836 = vunpack.c.l.b16 %v7816
    %v7837 = vunpack.c.l.b16 %v7817
    %v7838 = vunpack.c.l.b16 %v7818
    %v7839 = vunpack.c.l.b16 %v7819
    %v7840 = vunpack.c.l.b16 %v7820
    %v7841 = vunpack.c.l.b16 %v7821
    %v7842 = vunpack.c.l.b16 %v7822
    %v7843 = vpack.c.b16 %v7836, %v7835
    %v7844 = vpack.c.b16 %v7838, %v7837
    %v7845 = vpack.c.b16 %v7840, %v7839
    %v7846 = vpack.c.b16 %v7842, %v7841
    %v7852 = vsel %vm3796, %v7825, 0
    %v7855 = vsel %vm3796, %v7826, 0
    %7857 = vmatprep.subr.bf16.mxu0 0
    %7858 = vmatpush1.bf16.msra.mxu0 %v7843
    %7859 = vmatprep.subr.bf16.mxu0 0
    %7860 = vmatpush1.bf16.msra.mxu0 %v7844
    %7861 = vmatprep.subr.bf16.mxu0 0
    %7862 = vmatpush1.bf16.msra.mxu0 %v7845
    %7863 = vmatprep.subr.bf16.mxu0 0
    %7864 = vmatpush1.bf16.msra.mxu0 %v7846
    %7865 = vmatprep.subr.bf16.mxu0 0
    %7866 = vmatpush1.bf16.msra.mxu0 0
    %7867 = vmatprep.subr.bf16.mxu0 0
    %7868 = vmatpush1.bf16.msra.mxu0 0
    %7869 = vmatprep.subr.bf16.mxu0 0
    %7870 = vmatpush1.bf16.msra.mxu0 0
    %7871 = vmatprep.subr.bf16.mxu0 0
    %7872 = vmatpush1.bf16.msra.mxu0 0
    %7873 = vmatprep.subr.bf16.mxu0 0
    %7874 = vmatpush1.bf16.msra.mxu0 0
    %7875 = vmatprep.subr.bf16.mxu0 0
    %7876 = vmatpush1.bf16.msra.mxu0 0
    %7877 = vmatprep.subr.bf16.mxu0 0
    %7878 = vmatpush1.bf16.msra.mxu0 0
    %7879 = vmatprep.subr.bf16.mxu0 0
    %7880 = vmatpush1.bf16.msra.mxu0 0
    %7881 = vmatprep.subr.bf16.mxu0 0
    %7882 = vmatpush1.bf16.msra.mxu0 0
    %7883 = vmatprep.subr.bf16.mxu0 0
    %7884 = vmatpush1.bf16.msra.mxu0 0
    %7885 = vmatprep.subr.bf16.mxu0 0
    %7886 = vmatpush1.bf16.msra.mxu0 0
    %7887 = vmatprep.subr.bf16.mxu0 0
    %7888 = vmatpush1.bf16.msra.mxu0 0
    %7889 = vmatprep.mubr.bf16.mxu0 0
    %7890 = vmatmul.mubr.bf16.gmra.mrb[0].mxu0 %v7088
    %v7891 = vpop.f32.mrb[0].mxu0
    %v7892 = vadd.f32 0.0, %v7891
    %v7893 = vpop.f32.mrb[0].mxu0
    %v7894 = vpop.f32.mrb[0].mxu0
    %v7895 = vadd.f32 0.0, %v7894
    %v7896 = vpop.f32.mrb[0].mxu0
    %7897 = vmatprep.mubr.bf16.mxu0 0
    %7898 = vmatmul.mubr.bf16.gmra.mrb[0].mxu0 %v7091
    %v7899 = vpop.f32.mrb[0].mxu0
    %v7900 = vadd.f32 0.0, %v7899
    %v7901 = vpop.f32.mrb[0].mxu0
    %v7902 = vpop.f32.mrb[0].mxu0
    %v7903 = vadd.f32 0.0, %v7902
    %v7904 = vpop.f32.mrb[0].mxu0
    %7905 = vmatprep.mubr.bf16.mxu0 0
    %7906 = vmatmul.mubr.bf16.gmra.mrb[0].mxu0 %v7852
    %v7907 = vpop.f32.mrb[0].mxu0
    %v7908 = vadd.f32 0.0, %v7907
    %v7909 = vpop.f32.mrb[0].mxu0
    %v7910 = vpop.f32.mrb[0].mxu0
    %v7911 = vadd.f32 0.0, %v7910
    %v7912 = vpop.f32.mrb[0].mxu0
    %7913 = vmatprep.mubr.bf16.mxu0 0
    %7914 = vmatmul.mubr.bf16.gmra.mrb[0].mxu0 %v7855
    %v7915 = vpop.f32.mrb[0].mxu0
    %v7916 = vadd.f32 0.0, %v7915
    %v7917 = vpop.f32.mrb[0].mxu0
    %v7918 = vpop.f32.mrb[0].mxu0
    %v7919 = vadd.f32 0.0, %v7918
    %v7920 = vpop.f32.mrb[0].mxu0
    %7921 = vdwg.mxu0
    %v7922 = vadd.f32 %v7806, %v7892
    %v7923 = vadd.f32 %v7807, %v7895
    %v7924 = vadd.f32 %v7808, %v7900
    %v7925 = vadd.f32 %v7809, %v7903
    %v7926 = vadd.f32 %v7810, %v7908
    %v7927 = vadd.f32 %v7811, %v7911
    %v7928 = vadd.f32 %v7812, %v7916
    %v7929 = vadd.f32 %v7813, %v7919
    %v7930 = vld [vmem:[%s12] sm:$0x1]
    %v7932 = vlaneseq
    %v7933 = vshrl.u32 %v7932, 7
    %v7934 = vsub.s32 0, %v7933
    %v7935 = vrot.slane %v7930, %v7934
    %v7937 = vadd.f32 %v7922, %v7935
    %v7938 = vadd.f32 %v7923, %v7935
    %v7939 = vadd.f32 %v7924, %v7935
    %v7940 = vadd.f32 %v7925, %v7935
    %v7941 = vadd.f32 %v7926, %v7935
    %v7942 = vadd.f32 %v7927, %v7935
    %v7943 = vadd.f32 %v7928, %v7935
    %v7944 = vadd.f32 %v7929, %v7935
    %v7945 = vmax.f32 %v7937, 0.0
    %v7946 = vmax.f32 %v7938, 0.0
    %v7947 = vmax.f32 %v7939, 0.0
    %v7948 = vmax.f32 %v7940, 0.0
    %v7949 = vmax.f32 %v7941, 0.0
    %v7950 = vmax.f32 %v7942, 0.0
    %v7951 = vmax.f32 %v7943, 0.0
    %v7952 = vmax.f32 %v7944, 0.0
    %7953 = vst [vmem:[#allocation2] sm:$0xff] %v7937
    %7954 = vst [vmem:[#allocation2 + $0x8] sm:$0xff] %v7938
    %7955 = vst [vmem:[#allocation2 + $0x10] sm:$0xff] %v7939
    %7956 = vst [vmem:[#allocation2 + $0x18] sm:$0xff] %v7940
    %7957 = vst [vmem:[#allocation2 + $0x20] sm:$0xff] %v7941
    %7958 = vst [vmem:[#allocation2 + $0x28] sm:$0xff] %v7942
    %7959 = vst [vmem:[#allocation2 + $0x30] sm:$0xff] %v7943
    %7960 = vst [vmem:[#allocation2 + $0x38] sm:$0xff] %v7944
    %v7961 = vmul.f32 %v7945, %v6583
    %v7962 = vmul.f32 %v7946, %v6588
    %v7963 = vmul.f32 %v7947, %v6593
    %v7964 = vmul.f32 %v7948, %v6598
    %v7965 = vmul.f32 %v7949, %v6603
    %v7966 = vmul.f32 %v7950, %v6608
    %v7967 = vmul.f32 %v7951, %v6613
    %v7968 = vmul.f32 %v7952, %v6618
    %v7969 = vmul.f32 %v7945, %v6630
    %v7970 = vmul.f32 %v7946, %v6634
    %v7971 = vmul.f32 %v7947, %v6638
    %v7972 = vmul.f32 %v7948, %v6642
    %v7973 = vmul.f32 %v7949, %v6646
    %v7974 = vmul.f32 %v7950, %v6650
    %v7975 = vmul.f32 %v7951, %v6654
    %v7976 = vmul.f32 %v7952, %v6658
    %v7985 = vrot.slane %v7945, 7
    %v7986 = vrot.slane %v7946, 7
    %v7987 = vsel %vm560, %v7985, %v7986
    %v7988 = vrot.slane %v7947, 7
    %v7989 = vsel %vm560, %v7986, %v7988
    %v7990 = vrot.slane %v7948, 7
    %v7991 = vsel %vm560, %v7988, %v7990
    %v7992 = vrot.slane %v7949, 7
    %v7993 = vsel %vm560, %v7990, %v7992
    %v7994 = vrot.slane %v7950, 7
    %v7995 = vsel %vm560, %v7992, %v7994
    %v7996 = vrot.slane %v7951, 7
    %v7997 = vsel %vm560, %v7994, %v7996
    %v7998 = vrot.slane %v7952, 7
    %v7999 = vsel %vm560, %v7996, %v7998
    %v8009 = vsel %vm560, 0.0, %v7985
    %v8010 = vsel %vm560, %v7998, 0.0
    %v8019 = vrot.slane %v7961, 7
    %v8020 = vrot.slane %v7962, 7
    %v8021 = vsel %vm560, %v8019, %v8020
    %v8022 = vrot.slane %v7963, 7
    %v8023 = vsel %vm560, %v8020, %v8022
    %v8024 = vrot.slane %v7964, 7
    %v8025 = vsel %vm560, %v8022, %v8024
    %v8026 = vrot.slane %v7965, 7
    %v8027 = vsel %vm560, %v8024, %v8026
    %v8028 = vrot.slane %v7966, 7
    %v8029 = vsel %vm560, %v8026, %v8028
    %v8030 = vrot.slane %v7967, 7
    %v8031 = vsel %vm560, %v8028, %v8030
    %v8032 = vrot.slane %v7968, 7
    %v8033 = vsel %vm560, %v8030, %v8032
    %v8043 = vsel %vm560, 0.0, %v8019
    %v8044 = vsel %vm560, %v8032, 0.0
    %v8053 = vrot.slane %v7969, 7
    %v8054 = vrot.slane %v7970, 7
    %v8055 = vsel %vm560, %v8053, %v8054
    %v8056 = vrot.slane %v7971, 7
    %v8057 = vsel %vm560, %v8054, %v8056
    %v8058 = vrot.slane %v7972, 7
    %v8059 = vsel %vm560, %v8056, %v8058
    %v8060 = vrot.slane %v7973, 7
    %v8061 = vsel %vm560, %v8058, %v8060
    %v8062 = vrot.slane %v7974, 7
    %v8063 = vsel %vm560, %v8060, %v8062
    %v8064 = vrot.slane %v7975, 7
    %v8065 = vsel %vm560, %v8062, %v8064
    %v8066 = vrot.slane %v7976, 7
    %v8067 = vsel %vm560, %v8064, %v8066
    %v8077 = vsel %vm560, 0.0, %v8053
    %v8078 = vsel %vm560, %v8066, 0.0
    %v8079 = vpack.c.bf16 %v8077, 0.0
    %v8080 = vpack.c.bf16 %v8057, %v8055
    %v8081 = vpack.c.bf16 %v8061, %v8059
    %v8082 = vpack.c.bf16 %v8065, %v8063
    %v8083 = vld [vmem:[%s13] sm:$0xf]
    %v8084 = vld [vmem:[%s13 + $0x4] sm:$0xf]
    %v8085 = vld [vmem:[%s13 + $0x8] sm:$0xf]
    %v8086 = vld [vmem:[%s13 + $0xc] sm:$0xf]
    %v8087 = vld [vmem:[%s13 + $0x10] sm:$0xf]
    %v8088 = vld [vmem:[%s13 + $0x14] sm:$0xf]
    %v8089 = vld [vmem:[%s13 + $0x18] sm:$0xf]
    %v8090 = vld [vmem:[%s13 + $0x1c] sm:$0xf]
    %v8091 = vld [vmem:[%s13 + $0x20] sm:$0xf]
    %v8092 = vld [vmem:[%s13 + $0x24] sm:$0xf]
    %v8093 = vld [vmem:[%s13 + $0x28] sm:$0xf]
    %v8094 = vld [vmem:[%s13 + $0x2c] sm:$0xf]
    %v8095 = vld [vmem:[%s13 + $0x30] sm:$0xf]
    %v8096 = vld [vmem:[%s13 + $0x34] sm:$0xf]
    %v8097 = vld [vmem:[%s13 + $0x38] sm:$0xf]
    %v8098 = vld [vmem:[%s13 + $0x3c] sm:$0xf]
    %v8099 = vpack.c.bf16 %v8009, 0.0
    %v8100 = vpack.c.bf16 %v7989, %v7987
    %v8101 = vpack.c.bf16 %v7993, %v7991
    %v8102 = vpack.c.bf16 %v7997, %v7995
    %v8103 = vpack.c.bf16 %v7999, %v7999
    %v8104 = vld [vmem:[%s13 + $0x40] sm:$0xf]
    %v8105 = vld [vmem:[%s13 + $0x44] sm:$0xf]
    %v8106 = vld [vmem:[%s13 + $0x48] sm:$0xf]
    %v8107 = vld [vmem:[%s13 + $0x4c] sm:$0xf]
    %v8108 = vld [vmem:[%s13 + $0x50] sm:$0xf]
    %v8109 = vld [vmem:[%s13 + $0x54] sm:$0xf]
    %v8110 = vld [vmem:[%s13 + $0x58] sm:$0xf]
    %v8111 = vld [vmem:[%s13 + $0x5c] sm:$0xf]
    %v8112 = vld [vmem:[%s13 + $0x60] sm:$0xf]
    %v8113 = vld [vmem:[%s13 + $0x64] sm:$0xf]
    %v8114 = vld [vmem:[%s13 + $0x68] sm:$0xf]
    %v8115 = vld [vmem:[%s13 + $0x6c] sm:$0xf]
    %v8116 = vld [vmem:[%s13 + $0x70] sm:$0xf]
    %v8117 = vld [vmem:[%s13 + $0x74] sm:$0xf]
    %v8118 = vld [vmem:[%s13 + $0x78] sm:$0xf]
    %v8119 = vld [vmem:[%s13 + $0x7c] sm:$0xf]
    %v8121 = vshrl.u32 %v8099, 16
    %v8123 = vshll.u32 %v8099, 16
    %v8125 = vrot.slane %v8123, 1
    %v8126 = vor.u32 %v8121, %v8125
    %v8128 = vshll.u32 %v8100, 16
    %v8130 = vrot.slane %v8128, 1
    %v8131 = vsel %vm953, %v8126, %v8130
    %v8132 = vshrl.u32 %v8100, 16
    %v8134 = vor.u32 %v8132, %v8130
    %v8136 = vshll.u32 %v8101, 16
    %v8138 = vrot.slane %v8136, 1
    %v8139 = vsel %vm953, %v8134, %v8138
    %v8140 = vshrl.u32 %v8101, 16
    %v8142 = vor.u32 %v8140, %v8138
    %v8144 = vshll.u32 %v8102, 16
    %v8146 = vrot.slane %v8144, 1
    %v8147 = vsel %vm953, %v8142, %v8146
    %v8148 = vshrl.u32 %v8102, 16
    %v8150 = vor.u32 %v8148, %v8146
    %v8152 = vshll.u32 %v8103, 16
    %v8154 = vrot.slane %v8152, 1
    %v8155 = vsel %vm953, %v8150, %v8154
    %v8176 = vunpack.c.l.b16 %v8104
    %v8177 = vunpack.c.l.b16 %v8105
    %v8178 = vunpack.c.l.b16 %v8106
    %v8179 = vunpack.c.l.b16 %v8107
    %v8180 = vunpack.c.l.b16 %v8108
    %v8181 = vunpack.c.l.b16 %v8109
    %v8182 = vunpack.c.l.b16 %v8110
    %v8183 = vunpack.c.l.b16 %v8111
    %v8184 = vunpack.c.l.b16 %v8112
    %v8185 = vunpack.c.l.b16 %v8113
    %v8186 = vunpack.c.l.b16 %v8114
    %v8187 = vunpack.c.l.b16 %v8115
    %v8188 = vunpack.c.l.b16 %v8116
    %v8189 = vunpack.c.l.b16 %v8117
    %v8190 = vunpack.c.l.b16 %v8118
    %v8191 = vunpack.c.l.b16 %v8119
    %v8192 = vpack.c.b16 %v8177, %v8176
    %v8193 = vpack.c.b16 %v8179, %v8178
    %v8194 = vpack.c.b16 %v8181, %v8180
    %v8195 = vpack.c.b16 %v8183, %v8182
    %v8196 = vpack.c.b16 %v8185, %v8184
    %v8197 = vpack.c.b16 %v8187, %v8186
    %v8198 = vpack.c.b16 %v8189, %v8188
    %v8199 = vpack.c.b16 %v8191, %v8190
    %8208 = vmatprep.subr.bf16.mxu0 0
    %8209 = vmatpush1.bf16.msra.mxu0 %v8192
    %8210 = vmatprep.subr.bf16.mxu0 0
    %8211 = vmatpush1.bf16.msra.mxu0 %v8193
    %8212 = vmatprep.subr.bf16.mxu0 0
    %8213 = vmatpush1.bf16.msra.mxu0 %v8194
    %8214 = vmatprep.subr.bf16.mxu0 0
    %8215 = vmatpush1.bf16.msra.mxu0 %v8195
    %8216 = vmatprep.subr.bf16.mxu0 0
    %8217 = vmatpush1.bf16.msra.mxu0 %v8196
    %8218 = vmatprep.subr.bf16.mxu0 0
    %8219 = vmatpush1.bf16.msra.mxu0 %v8197
    %8220 = vmatprep.subr.bf16.mxu0 0
    %8221 = vmatpush1.bf16.msra.mxu0 %v8198
    %8222 = vmatprep.subr.bf16.mxu0 0
    %8223 = vmatpush1.bf16.msra.mxu0 %v8199
    %8224 = vmatprep.subr.bf16.mxu0 0
    %8225 = vmatpush1.bf16.msra.mxu0 0
    %8226 = vmatprep.subr.bf16.mxu0 0
    %8227 = vmatpush1.bf16.msra.mxu0 0
    %8228 = vmatprep.subr.bf16.mxu0 0
    %8229 = vmatpush1.bf16.msra.mxu0 0
    %8230 = vmatprep.subr.bf16.mxu0 0
    %8231 = vmatpush1.bf16.msra.mxu0 0
    %8232 = vmatprep.subr.bf16.mxu0 0
    %8233 = vmatpush1.bf16.msra.mxu0 0
    %8234 = vmatprep.subr.bf16.mxu0 0
    %8235 = vmatpush1.bf16.msra.mxu0 0
    %8236 = vmatprep.subr.bf16.mxu0 0
    %8237 = vmatpush1.bf16.msra.mxu0 0
    %8238 = vmatprep.subr.bf16.mxu0 0
    %8239 = vmatpush1.bf16.msra.mxu0 0
    %8240 = vmatprep.mubr.bf16.mxu0 0
    %8241 = vmatmul.mubr.bf16.gmra.mrb[0].mxu0 %v8131
    %v8242 = vpop.f32.mrb[0].mxu0
    %v8243 = vadd.f32 0.0, %v8242
    %v8244 = vpop.f32.mrb[0].mxu0
    %v8245 = vpop.f32.mrb[0].mxu0
    %v8246 = vadd.f32 0.0, %v8245
    %v8247 = vpop.f32.mrb[0].mxu0
    %8248 = vmatprep.mubr.bf16.mxu0 0
    %8249 = vmatmul.mubr.bf16.gmra.mrb[0].mxu0 %v8139
    %v8250 = vpop.f32.mrb[0].mxu0
    %v8251 = vadd.f32 0.0, %v8250
    %v8252 = vpop.f32.mrb[0].mxu0
    %v8253 = vpop.f32.mrb[0].mxu0
    %v8254 = vadd.f32 0.0, %v8253
    %v8255 = vpop.f32.mrb[0].mxu0
    %8256 = vmatprep.mubr.bf16.mxu0 0
    %8257 = vmatmul.mubr.bf16.gmra.mrb[0].mxu0 %v8147
    %v8258 = vpop.f32.mrb[0].mxu0
    %v8259 = vadd.f32 0.0, %v8258
    %v8260 = vpop.f32.mrb[0].mxu0
    %v8261 = vpop.f32.mrb[0].mxu0
    %v8262 = vadd.f32 0.0, %v8261
    %v8263 = vpop.f32.mrb[0].mxu0
    %8264 = vmatprep.mubr.bf16.mxu0 0
    %8265 = vmatmul.mubr.bf16.gmra.mrb[0].mxu0 %v8155
    %v8266 = vpop.f32.mrb[0].mxu0
    %v8267 = vadd.f32 0.0, %v8266
    %v8268 = vpop.f32.mrb[0].mxu0
    %v8269 = vpop.f32.mrb[0].mxu0
    %v8270 = vadd.f32 0.0, %v8269
    %v8271 = vpop.f32.mrb[0].mxu0
    %8272 = vdwg.mxu0
    %v8289 = vunpack.c.l.b16 %v8083
    %v8290 = vunpack.c.l.b16 %v8084
    %v8291 = vunpack.c.l.b16 %v8085
    %v8292 = vunpack.c.l.b16 %v8086
    %v8293 = vunpack.c.l.b16 %v8087
    %v8294 = vunpack.c.l.b16 %v8088
    %v8295 = vunpack.c.l.b16 %v8089
    %v8296 = vunpack.c.l.b16 %v8090
    %v8297 = vunpack.c.l.b16 %v8091
    %v8298 = vunpack.c.l.b16 %v8092
    %v8299 = vunpack.c.l.b16 %v8093
    %v8300 = vunpack.c.l.b16 %v8094
    %v8301 = vunpack.c.l.b16 %v8095
    %v8302 = vunpack.c.l.b16 %v8096
    %v8303 = vunpack.c.l.b16 %v8097
    %v8304 = vunpack.c.l.b16 %v8098
    %v8305 = vpack.c.b16 %v8290, %v8289
    %v8306 = vpack.c.b16 %v8292, %v8291
    %v8307 = vpack.c.b16 %v8294, %v8293
    %v8308 = vpack.c.b16 %v8296, %v8295
    %v8309 = vpack.c.b16 %v8298, %v8297
    %v8310 = vpack.c.b16 %v8300, %v8299
    %v8311 = vpack.c.b16 %v8302, %v8301
    %v8312 = vpack.c.b16 %v8304, %v8303
    %8321 = vmatprep.subr.bf16.mxu0 0
    %8322 = vmatpush1.bf16.msra.mxu0 %v8305
    %8323 = vmatprep.subr.bf16.mxu0 0
    %8324 = vmatpush1.bf16.msra.mxu0 %v8306
    %8325 = vmatprep.subr.bf16.mxu0 0
    %8326 = vmatpush1.bf16.msra.mxu0 %v8307
    %8327 = vmatprep.subr.bf16.mxu0 0
    %8328 = vmatpush1.bf16.msra.mxu0 %v8308
    %8329 = vmatprep.subr.bf16.mxu0 0
    %8330 = vmatpush1.bf16.msra.mxu0 %v8309
    %8331 = vmatprep.subr.bf16.mxu0 0
    %8332 = vmatpush1.bf16.msra.mxu0 %v8310
    %8333 = vmatprep.subr.bf16.mxu0 0
    %8334 = vmatpush1.bf16.msra.mxu0 %v8311
    %8335 = vmatprep.subr.bf16.mxu0 0
    %8336 = vmatpush1.bf16.msra.mxu0 %v8312
    %8337 = vmatprep.subr.bf16.mxu0 0
    %8338 = vmatpush1.bf16.msra.mxu0 0
    %8339 = vmatprep.subr.bf16.mxu0 0
    %8340 = vmatpush1.bf16.msra.mxu0 0
    %8341 = vmatprep.subr.bf16.mxu0 0
    %8342 = vmatpush1.bf16.msra.mxu0 0
    %8343 = vmatprep.subr.bf16.mxu0 0
    %8344 = vmatpush1.bf16.msra.mxu0 0
    %8345 = vmatprep.subr.bf16.mxu0 0
    %8346 = vmatpush1.bf16.msra.mxu0 0
    %8347 = vmatprep.subr.bf16.mxu0 0
    %8348 = vmatpush1.bf16.msra.mxu0 0
    %8349 = vmatprep.subr.bf16.mxu0 0
    %8350 = vmatpush1.bf16.msra.mxu0 0
    %8351 = vmatprep.subr.bf16.mxu0 0
    %8352 = vmatpush1.bf16.msra.mxu0 0
    %8353 = vmatprep.mubr.bf16.mxu0 0
    %8354 = vmatmul.mubr.bf16.gmra.mrb[0].mxu0 %v8079
    %v8355 = vpop.f32.mrb[0].mxu0
    %v8356 = vadd.f32 %v8243, %v8355
    %v8357 = vpop.f32.mrb[0].mxu0
    %v8358 = vpop.f32.mrb[0].mxu0
    %v8359 = vadd.f32 %v8246, %v8358
    %v8360 = vpop.f32.mrb[0].mxu0
    %8361 = vmatprep.mubr.bf16.mxu0 0
    %8362 = vmatmul.mubr.bf16.gmra.mrb[0].mxu0 %v8080
    %v8363 = vpop.f32.mrb[0].mxu0
    %v8364 = vadd.f32 %v8251, %v8363
    %v8365 = vpop.f32.mrb[0].mxu0
    %v8366 = vpop.f32.mrb[0].mxu0
    %v8367 = vadd.f32 %v8254, %v8366
    %v8368 = vpop.f32.mrb[0].mxu0
    %8369 = vmatprep.mubr.bf16.mxu0 0
    %8370 = vmatmul.mubr.bf16.gmra.mrb[0].mxu0 %v8081
    %v8371 = vpop.f32.mrb[0].mxu0
    %v8372 = vadd.f32 %v8259, %v8371
    %v8373 = vpop.f32.mrb[0].mxu0
    %v8374 = vpop.f32.mrb[0].mxu0
    %v8375 = vadd.f32 %v8262, %v8374
    %v8376 = vpop.f32.mrb[0].mxu0
    %8377 = vmatprep.mubr.bf16.mxu0 0
    %8378 = vmatmul.mubr.bf16.gmra.mrb[0].mxu0 %v8082
    %v8379 = vpop.f32.mrb[0].mxu0
    %v8380 = vadd.f32 %v8267, %v8379
    %v8381 = vpop.f32.mrb[0].mxu0
    %v8382 = vpop.f32.mrb[0].mxu0
    %v8383 = vadd.f32 %v8270, %v8382
    %v8384 = vpop.f32.mrb[0].mxu0
    %8385 = vdwg.mxu0
    %v8386 = vpack.c.bf16 %v8043, 0.0
    %v8387 = vpack.c.bf16 %v8023, %v8021
    %v8388 = vpack.c.bf16 %v8027, %v8025
    %v8389 = vpack.c.bf16 %v8031, %v8029
    %v8390 = vpack.c.bf16 %v8033, %v8033
    %v8391 = vld [vmem:[%s13 + $0x80] sm:$0xf]
    %v8392 = vld [vmem:[%s13 + $0x84] sm:$0xf]
    %v8393 = vld [vmem:[%s13 + $0x88] sm:$0xf]
    %v8394 = vld [vmem:[%s13 + $0x8c] sm:$0xf]
    %v8395 = vld [vmem:[%s13 + $0x90] sm:$0xf]
    %v8396 = vld [vmem:[%s13 + $0x94] sm:$0xf]
    %v8397 = vld [vmem:[%s13 + $0x98] sm:$0xf]
    %v8398 = vld [vmem:[%s13 + $0x9c] sm:$0xf]
    %v8399 = vld [vmem:[%s13 + $0xa0] sm:$0xf]
    %v8400 = vld [vmem:[%s13 + $0xa4] sm:$0xf]
    %v8401 = vld [vmem:[%s13 + $0xa8] sm:$0xf]
    %v8402 = vld [vmem:[%s13 + $0xac] sm:$0xf]
    %v8403 = vld [vmem:[%s13 + $0xb0] sm:$0xf]
    %v8404 = vld [vmem:[%s13 + $0xb4] sm:$0xf]
    %v8405 = vld [vmem:[%s13 + $0xb8] sm:$0xf]
    %v8406 = vld [vmem:[%s13 + $0xbc] sm:$0xf]
    %v8412 = vrot.slane %v8386, 1
    %v8413 = vrot.slane %v8387, 1
    %v8414 = vsel %vm1545, %v8412, %v8413
    %v8415 = vrot.slane %v8388, 1
    %v8416 = vsel %vm1545, %v8413, %v8415
    %v8417 = vrot.slane %v8389, 1
    %v8418 = vsel %vm1545, %v8415, %v8417
    %v8419 = vrot.slane %v8390, 1
    %v8420 = vsel %vm1545, %v8417, %v8419
    %v8441 = vunpack.c.l.b16 %v8391
    %v8442 = vunpack.c.l.b16 %v8392
    %v8443 = vunpack.c.l.b16 %v8393
    %v8444 = vunpack.c.l.b16 %v8394
    %v8445 = vunpack.c.l.b16 %v8395
    %v8446 = vunpack.c.l.b16 %v8396
    %v8447 = vunpack.c.l.b16 %v8397
    %v8448 = vunpack.c.l.b16 %v8398
    %v8449 = vunpack.c.l.b16 %v8399
    %v8450 = vunpack.c.l.b16 %v8400
    %v8451 = vunpack.c.l.b16 %v8401
    %v8452 = vunpack.c.l.b16 %v8402
    %v8453 = vunpack.c.l.b16 %v8403
    %v8454 = vunpack.c.l.b16 %v8404
    %v8455 = vunpack.c.l.b16 %v8405
    %v8456 = vunpack.c.l.b16 %v8406
    %v8457 = vpack.c.b16 %v8442, %v8441
    %v8458 = vpack.c.b16 %v8444, %v8443
    %v8459 = vpack.c.b16 %v8446, %v8445
    %v8460 = vpack.c.b16 %v8448, %v8447
    %v8461 = vpack.c.b16 %v8450, %v8449
    %v8462 = vpack.c.b16 %v8452, %v8451
    %v8463 = vpack.c.b16 %v8454, %v8453
    %v8464 = vpack.c.b16 %v8456, %v8455
    %8473 = vmatprep.subr.bf16.mxu0 0
    %8474 = vmatpush1.bf16.msra.mxu0 %v8457
    %8475 = vmatprep.subr.bf16.mxu0 0
    %8476 = vmatpush1.bf16.msra.mxu0 %v8458
    %8477 = vmatprep.subr.bf16.mxu0 0
    %8478 = vmatpush1.bf16.msra.mxu0 %v8459
    %8479 = vmatprep.subr.bf16.mxu0 0
    %8480 = vmatpush1.bf16.msra.mxu0 %v8460
    %8481 = vmatprep.subr.bf16.mxu0 0
    %8482 = vmatpush1.bf16.msra.mxu0 %v8461
    %8483 = vmatprep.subr.bf16.mxu0 0
    %8484 = vmatpush1.bf16.msra.mxu0 %v8462
    %8485 = vmatprep.subr.bf16.mxu0 0
    %8486 = vmatpush1.bf16.msra.mxu0 %v8463
    %8487 = vmatprep.subr.bf16.mxu0 0
    %8488 = vmatpush1.bf16.msra.mxu0 %v8464
    %8489 = vmatprep.subr.bf16.mxu0 0
    %8490 = vmatpush1.bf16.msra.mxu0 0
    %8491 = vmatprep.subr.bf16.mxu0 0
    %8492 = vmatpush1.bf16.msra.mxu0 0
    %8493 = vmatprep.subr.bf16.mxu0 0
    %8494 = vmatpush1.bf16.msra.mxu0 0
    %8495 = vmatprep.subr.bf16.mxu0 0
    %8496 = vmatpush1.bf16.msra.mxu0 0
    %8497 = vmatprep.subr.bf16.mxu0 0
    %8498 = vmatpush1.bf16.msra.mxu0 0
    %8499 = vmatprep.subr.bf16.mxu0 0
    %8500 = vmatpush1.bf16.msra.mxu0 0
    %8501 = vmatprep.subr.bf16.mxu0 0
    %8502 = vmatpush1.bf16.msra.mxu0 0
    %8503 = vmatprep.subr.bf16.mxu0 0
    %8504 = vmatpush1.bf16.msra.mxu0 0
    %8505 = vmatprep.mubr.bf16.mxu0 0
    %8506 = vmatmul.mubr.bf16.gmra.mrb[0].mxu0 %v8414
    %v8507 = vpop.f32.mrb[0].mxu0
    %v8508 = vadd.f32 0.0, %v8507
    %v8509 = vpop.f32.mrb[0].mxu0
    %v8510 = vpop.f32.mrb[0].mxu0
    %v8511 = vadd.f32 0.0, %v8510
    %v8512 = vpop.f32.mrb[0].mxu0
    %8513 = vmatprep.mubr.bf16.mxu0 0
    %8514 = vmatmul.mubr.bf16.gmra.mrb[0].mxu0 %v8416
    %v8515 = vpop.f32.mrb[0].mxu0
    %v8516 = vadd.f32 0.0, %v8515
    %v8517 = vpop.f32.mrb[0].mxu0
    %v8518 = vpop.f32.mrb[0].mxu0
    %v8519 = vadd.f32 0.0, %v8518
    %v8520 = vpop.f32.mrb[0].mxu0
    %8521 = vmatprep.mubr.bf16.mxu0 0
    %8522 = vmatmul.mubr.bf16.gmra.mrb[0].mxu0 %v8418
    %v8523 = vpop.f32.mrb[0].mxu0
    %v8524 = vadd.f32 0.0, %v8523
    %v8525 = vpop.f32.mrb[0].mxu0
    %v8526 = vpop.f32.mrb[0].mxu0
    %v8527 = vadd.f32 0.0, %v8526
    %v8528 = vpop.f32.mrb[0].mxu0
    %8529 = vmatprep.mubr.bf16.mxu0 0
    %8530 = vmatmul.mubr.bf16.gmra.mrb[0].mxu0 %v8420
    %v8531 = vpop.f32.mrb[0].mxu0
    %v8532 = vadd.f32 0.0, %v8531
    %v8533 = vpop.f32.mrb[0].mxu0
    %v8534 = vpop.f32.mrb[0].mxu0
    %v8535 = vadd.f32 0.0, %v8534
    %v8536 = vpop.f32.mrb[0].mxu0
    %8537 = vdwg.mxu0
    %v8538 = vadd.f32 %v8356, %v8508
    %v8539 = vadd.f32 %v8359, %v8511
    %v8540 = vadd.f32 %v8364, %v8516
    %v8541 = vadd.f32 %v8367, %v8519
    %v8542 = vadd.f32 %v8372, %v8524
    %v8543 = vadd.f32 %v8375, %v8527
    %v8544 = vadd.f32 %v8380, %v8532
    %v8545 = vadd.f32 %v8383, %v8535
    %v8546 = vpack.c.bf16 %v8055, %v8077
    %v8547 = vpack.c.bf16 %v8059, %v8057
    %v8548 = vpack.c.bf16 %v8063, %v8061
    %v8549 = vpack.c.bf16 %v8067, %v8065
    %v8550 = vld [vmem:[%s13 + $0xc0] sm:$0xf]
    %v8551 = vld [vmem:[%s13 + $0xc4] sm:$0xf]
    %v8552 = vld [vmem:[%s13 + $0xc8] sm:$0xf]
    %v8553 = vld [vmem:[%s13 + $0xcc] sm:$0xf]
    %v8554 = vld [vmem:[%s13 + $0xd0] sm:$0xf]
    %v8555 = vld [vmem:[%s13 + $0xd4] sm:$0xf]
    %v8556 = vld [vmem:[%s13 + $0xd8] sm:$0xf]
    %v8557 = vld [vmem:[%s13 + $0xdc] sm:$0xf]
    %v8558 = vld [vmem:[%s13 + $0xe0] sm:$0xf]
    %v8559 = vld [vmem:[%s13 + $0xe4] sm:$0xf]
    %v8560 = vld [vmem:[%s13 + $0xe8] sm:$0xf]
    %v8561 = vld [vmem:[%s13 + $0xec] sm:$0xf]
    %v8562 = vld [vmem:[%s13 + $0xf0] sm:$0xf]
    %v8563 = vld [vmem:[%s13 + $0xf4] sm:$0xf]
    %v8564 = vld [vmem:[%s13 + $0xf8] sm:$0xf]
    %v8565 = vld [vmem:[%s13 + $0xfc] sm:$0xf]
    %v8582 = vunpack.c.l.b16 %v8550
    %v8583 = vunpack.c.l.b16 %v8551
    %v8584 = vunpack.c.l.b16 %v8552
    %v8585 = vunpack.c.l.b16 %v8553
    %v8586 = vunpack.c.l.b16 %v8554
    %v8587 = vunpack.c.l.b16 %v8555
    %v8588 = vunpack.c.l.b16 %v8556
    %v8589 = vunpack.c.l.b16 %v8557
    %v8590 = vunpack.c.l.b16 %v8558
    %v8591 = vunpack.c.l.b16 %v8559
    %v8592 = vunpack.c.l.b16 %v8560
    %v8593 = vunpack.c.l.b16 %v8561
    %v8594 = vunpack.c.l.b16 %v8562
    %v8595 = vunpack.c.l.b16 %v8563
    %v8596 = vunpack.c.l.b16 %v8564
    %v8597 = vunpack.c.l.b16 %v8565
    %v8598 = vpack.c.b16 %v8583, %v8582
    %v8599 = vpack.c.b16 %v8585, %v8584
    %v8600 = vpack.c.b16 %v8587, %v8586
    %v8601 = vpack.c.b16 %v8589, %v8588
    %v8602 = vpack.c.b16 %v8591, %v8590
    %v8603 = vpack.c.b16 %v8593, %v8592
    %v8604 = vpack.c.b16 %v8595, %v8594
    %v8605 = vpack.c.b16 %v8597, %v8596
    %8614 = vmatprep.subr.bf16.mxu0 0
    %8615 = vmatpush1.bf16.msra.mxu0 %v8598
    %8616 = vmatprep.subr.bf16.mxu0 0
    %8617 = vmatpush1.bf16.msra.mxu0 %v8599
    %8618 = vmatprep.subr.bf16.mxu0 0
    %8619 = vmatpush1.bf16.msra.mxu0 %v8600
    %8620 = vmatprep.subr.bf16.mxu0 0
    %8621 = vmatpush1.bf16.msra.mxu0 %v8601
    %8622 = vmatprep.subr.bf16.mxu0 0
    %8623 = vmatpush1.bf16.msra.mxu0 %v8602
    %8624 = vmatprep.subr.bf16.mxu0 0
    %8625 = vmatpush1.bf16.msra.mxu0 %v8603
    %8626 = vmatprep.subr.bf16.mxu0 0
    %8627 = vmatpush1.bf16.msra.mxu0 %v8604
    %8628 = vmatprep.subr.bf16.mxu0 0
    %8629 = vmatpush1.bf16.msra.mxu0 %v8605
    %8630 = vmatprep.subr.bf16.mxu0 0
    %8631 = vmatpush1.bf16.msra.mxu0 0
    %8632 = vmatprep.subr.bf16.mxu0 0
    %8633 = vmatpush1.bf16.msra.mxu0 0
    %8634 = vmatprep.subr.bf16.mxu0 0
    %8635 = vmatpush1.bf16.msra.mxu0 0
    %8636 = vmatprep.subr.bf16.mxu0 0
    %8637 = vmatpush1.bf16.msra.mxu0 0
    %8638 = vmatprep.subr.bf16.mxu0 0
    %8639 = vmatpush1.bf16.msra.mxu0 0
    %8640 = vmatprep.subr.bf16.mxu0 0
    %8641 = vmatpush1.bf16.msra.mxu0 0
    %8642 = vmatprep.subr.bf16.mxu0 0
    %8643 = vmatpush1.bf16.msra.mxu0 0
    %8644 = vmatprep.subr.bf16.mxu0 0
    %8645 = vmatpush1.bf16.msra.mxu0 0
    %8646 = vmatprep.mubr.bf16.mxu0 0
    %8647 = vmatmul.mubr.bf16.gmra.mrb[0].mxu0 %v8546
    %v8648 = vpop.f32.mrb[0].mxu0
    %v8649 = vadd.f32 0.0, %v8648
    %v8650 = vpop.f32.mrb[0].mxu0
    %v8651 = vpop.f32.mrb[0].mxu0
    %v8652 = vadd.f32 0.0, %v8651
    %v8653 = vpop.f32.mrb[0].mxu0
    %8654 = vmatprep.mubr.bf16.mxu0 0
    %8655 = vmatmul.mubr.bf16.gmra.mrb[0].mxu0 %v8547
    %v8656 = vpop.f32.mrb[0].mxu0
    %v8657 = vadd.f32 0.0, %v8656
    %v8658 = vpop.f32.mrb[0].mxu0
    %v8659 = vpop.f32.mrb[0].mxu0
    %v8660 = vadd.f32 0.0, %v8659
    %v8661 = vpop.f32.mrb[0].mxu0
    %8662 = vmatprep.mubr.bf16.mxu0 0
    %8663 = vmatmul.mubr.bf16.gmra.mrb[0].mxu0 %v8548
    %v8664 = vpop.f32.mrb[0].mxu0
    %v8665 = vadd.f32 0.0, %v8664
    %v8666 = vpop.f32.mrb[0].mxu0
    %v8667 = vpop.f32.mrb[0].mxu0
    %v8668 = vadd.f32 0.0, %v8667
    %v8669 = vpop.f32.mrb[0].mxu0
    %8670 = vmatprep.mubr.bf16.mxu0 0
    %8671 = vmatmul.mubr.bf16.gmra.mrb[0].mxu0 %v8549
    %v8672 = vpop.f32.mrb[0].mxu0
    %v8673 = vadd.f32 0.0, %v8672
    %v8674 = vpop.f32.mrb[0].mxu0
    %v8675 = vpop.f32.mrb[0].mxu0
    %v8676 = vadd.f32 0.0, %v8675
    %v8677 = vpop.f32.mrb[0].mxu0
    %8678 = vdwg.mxu0
    %v8679 = vadd.f32 %v8538, %v8649
    %v8680 = vadd.f32 %v8539, %v8652
    %v8681 = vadd.f32 %v8540, %v8657
    %v8682 = vadd.f32 %v8541, %v8660
    %v8683 = vadd.f32 %v8542, %v8665
    %v8684 = vadd.f32 %v8543, %v8668
    %v8685 = vadd.f32 %v8544, %v8673
    %v8686 = vadd.f32 %v8545, %v8676
    %v8687 = vpack.c.bf16 %v7987, %v8009
    %v8688 = vpack.c.bf16 %v7991, %v7989
    %v8689 = vpack.c.bf16 %v7995, %v7993
    %v8690 = vpack.c.bf16 %v7999, %v7997
    %v8691 = vpack.c.bf16 %v8010, %v8010
    %v8692 = vld [vmem:[%s13 + $0x100] sm:$0xf]
    %v8693 = vld [vmem:[%s13 + $0x104] sm:$0xf]
    %v8694 = vld [vmem:[%s13 + $0x108] sm:$0xf]
    %v8695 = vld [vmem:[%s13 + $0x10c] sm:$0xf]
    %v8696 = vld [vmem:[%s13 + $0x110] sm:$0xf]
    %v8697 = vld [vmem:[%s13 + $0x114] sm:$0xf]
    %v8698 = vld [vmem:[%s13 + $0x118] sm:$0xf]
    %v8699 = vld [vmem:[%s13 + $0x11c] sm:$0xf]
    %v8700 = vld [vmem:[%s13 + $0x120] sm:$0xf]
    %v8701 = vld [vmem:[%s13 + $0x124] sm:$0xf]
    %v8702 = vld [vmem:[%s13 + $0x128] sm:$0xf]
    %v8703 = vld [vmem:[%s13 + $0x12c] sm:$0xf]
    %v8704 = vld [vmem:[%s13 + $0x130] sm:$0xf]
    %v8705 = vld [vmem:[%s13 + $0x134] sm:$0xf]
    %v8706 = vld [vmem:[%s13 + $0x138] sm:$0xf]
    %v8707 = vld [vmem:[%s13 + $0x13c] sm:$0xf]
    %v8709 = vshrl.u32 %v8687, 16
    %v8711 = vshll.u32 %v8687, 16
    %v8713 = vrot.slane %v8711, 1
    %v8714 = vor.u32 %v8709, %v8713
    %v8716 = vshll.u32 %v8688, 16
    %v8718 = vrot.slane %v8716, 1
    %v8719 = vsel %vm953, %v8714, %v8718
    %v8720 = vshrl.u32 %v8688, 16
    %v8722 = vor.u32 %v8720, %v8718
    %v8724 = vshll.u32 %v8689, 16
    %v8726 = vrot.slane %v8724, 1
    %v8727 = vsel %vm953, %v8722, %v8726
    %v8728 = vshrl.u32 %v8689, 16
    %v8730 = vor.u32 %v8728, %v8726
    %v8732 = vshll.u32 %v8690, 16
    %v8734 = vrot.slane %v8732, 1
    %v8735 = vsel %vm953, %v8730, %v8734
    %v8736 = vshrl.u32 %v8690, 16
    %v8738 = vor.u32 %v8736, %v8734
    %v8740 = vshll.u32 %v8691, 16
    %v8742 = vrot.slane %v8740, 1
    %v8743 = vsel %vm953, %v8738, %v8742
    %v8764 = vunpack.c.l.b16 %v8692
    %v8765 = vunpack.c.l.b16 %v8693
    %v8766 = vunpack.c.l.b16 %v8694
    %v8767 = vunpack.c.l.b16 %v8695
    %v8768 = vunpack.c.l.b16 %v8696
    %v8769 = vunpack.c.l.b16 %v8697
    %v8770 = vunpack.c.l.b16 %v8698
    %v8771 = vunpack.c.l.b16 %v8699
    %v8772 = vunpack.c.l.b16 %v8700
    %v8773 = vunpack.c.l.b16 %v8701
    %v8774 = vunpack.c.l.b16 %v8702
    %v8775 = vunpack.c.l.b16 %v8703
    %v8776 = vunpack.c.l.b16 %v8704
    %v8777 = vunpack.c.l.b16 %v8705
    %v8778 = vunpack.c.l.b16 %v8706
    %v8779 = vunpack.c.l.b16 %v8707
    %v8780 = vpack.c.b16 %v8765, %v8764
    %v8781 = vpack.c.b16 %v8767, %v8766
    %v8782 = vpack.c.b16 %v8769, %v8768
    %v8783 = vpack.c.b16 %v8771, %v8770
    %v8784 = vpack.c.b16 %v8773, %v8772
    %v8785 = vpack.c.b16 %v8775, %v8774
    %v8786 = vpack.c.b16 %v8777, %v8776
    %v8787 = vpack.c.b16 %v8779, %v8778
    %8796 = vmatprep.subr.bf16.mxu0 0
    %8797 = vmatpush1.bf16.msra.mxu0 %v8780
    %8798 = vmatprep.subr.bf16.mxu0 0
    %8799 = vmatpush1.bf16.msra.mxu0 %v8781
    %8800 = vmatprep.subr.bf16.mxu0 0
    %8801 = vmatpush1.bf16.msra.mxu0 %v8782
    %8802 = vmatprep.subr.bf16.mxu0 0
    %8803 = vmatpush1.bf16.msra.mxu0 %v8783
    %8804 = vmatprep.subr.bf16.mxu0 0
    %8805 = vmatpush1.bf16.msra.mxu0 %v8784
    %8806 = vmatprep.subr.bf16.mxu0 0
    %8807 = vmatpush1.bf16.msra.mxu0 %v8785
    %8808 = vmatprep.subr.bf16.mxu0 0
    %8809 = vmatpush1.bf16.msra.mxu0 %v8786
    %8810 = vmatprep.subr.bf16.mxu0 0
    %8811 = vmatpush1.bf16.msra.mxu0 %v8787
    %8812 = vmatprep.subr.bf16.mxu0 0
    %8813 = vmatpush1.bf16.msra.mxu0 0
    %8814 = vmatprep.subr.bf16.mxu0 0
    %8815 = vmatpush1.bf16.msra.mxu0 0
    %8816 = vmatprep.subr.bf16.mxu0 0
    %8817 = vmatpush1.bf16.msra.mxu0 0
    %8818 = vmatprep.subr.bf16.mxu0 0
    %8819 = vmatpush1.bf16.msra.mxu0 0
    %8820 = vmatprep.subr.bf16.mxu0 0
    %8821 = vmatpush1.bf16.msra.mxu0 0
    %8822 = vmatprep.subr.bf16.mxu0 0
    %8823 = vmatpush1.bf16.msra.mxu0 0
    %8824 = vmatprep.subr.bf16.mxu0 0
    %8825 = vmatpush1.bf16.msra.mxu0 0
    %8826 = vmatprep.subr.bf16.mxu0 0
    %8827 = vmatpush1.bf16.msra.mxu0 0
    %8828 = vmatprep.mubr.bf16.mxu0 0
    %8829 = vmatmul.mubr.bf16.gmra.mrb[0].mxu0 %v8719
    %v8830 = vpop.f32.mrb[0].mxu0
    %v8831 = vadd.f32 0.0, %v8830
    %v8832 = vpop.f32.mrb[0].mxu0
    %v8833 = vpop.f32.mrb[0].mxu0
    %v8834 = vadd.f32 0.0, %v8833
    %v8835 = vpop.f32.mrb[0].mxu0
    %8836 = vmatprep.mubr.bf16.mxu0 0
    %8837 = vmatmul.mubr.bf16.gmra.mrb[0].mxu0 %v8727
    %v8838 = vpop.f32.mrb[0].mxu0
    %v8839 = vadd.f32 0.0, %v8838
    %v8840 = vpop.f32.mrb[0].mxu0
    %v8841 = vpop.f32.mrb[0].mxu0
    %v8842 = vadd.f32 0.0, %v8841
    %v8843 = vpop.f32.mrb[0].mxu0
    %8844 = vmatprep.mubr.bf16.mxu0 0
    %8845 = vmatmul.mubr.bf16.gmra.mrb[0].mxu0 %v8735
    %v8846 = vpop.f32.mrb[0].mxu0
    %v8847 = vadd.f32 0.0, %v8846
    %v8848 = vpop.f32.mrb[0].mxu0
    %v8849 = vpop.f32.mrb[0].mxu0
    %v8850 = vadd.f32 0.0, %v8849
    %v8851 = vpop.f32.mrb[0].mxu0
    %8852 = vmatprep.mubr.bf16.mxu0 0
    %8853 = vmatmul.mubr.bf16.gmra.mrb[0].mxu0 %v8743
    %v8854 = vpop.f32.mrb[0].mxu0
    %v8855 = vadd.f32 0.0, %v8854
    %v8856 = vpop.f32.mrb[0].mxu0
    %v8857 = vpop.f32.mrb[0].mxu0
    %v8858 = vadd.f32 0.0, %v8857
    %v8859 = vpop.f32.mrb[0].mxu0
    %8860 = vdwg.mxu0
    %v8861 = vadd.f32 %v8679, %v8831
    %v8862 = vadd.f32 %v8680, %v8834
    %v8863 = vadd.f32 %v8681, %v8839
    %v8864 = vadd.f32 %v8682, %v8842
    %v8865 = vadd.f32 %v8683, %v8847
    %v8866 = vadd.f32 %v8684, %v8850
    %v8867 = vadd.f32 %v8685, %v8855
    %v8868 = vadd.f32 %v8686, %v8858
    %v8869 = vpack.c.bf16 %v8021, %v8043
    %v8870 = vpack.c.bf16 %v8025, %v8023
    %v8871 = vpack.c.bf16 %v8029, %v8027
    %v8872 = vpack.c.bf16 %v8033, %v8031
    %v8873 = vpack.c.bf16 %v8044, %v8044
    %v8874 = vld [vmem:[%s13 + $0x140] sm:$0xf]
    %v8875 = vld [vmem:[%s13 + $0x144] sm:$0xf]
    %v8876 = vld [vmem:[%s13 + $0x148] sm:$0xf]
    %v8877 = vld [vmem:[%s13 + $0x14c] sm:$0xf]
    %v8878 = vld [vmem:[%s13 + $0x150] sm:$0xf]
    %v8879 = vld [vmem:[%s13 + $0x154] sm:$0xf]
    %v8880 = vld [vmem:[%s13 + $0x158] sm:$0xf]
    %v8881 = vld [vmem:[%s13 + $0x15c] sm:$0xf]
    %v8882 = vld [vmem:[%s13 + $0x160] sm:$0xf]
    %v8883 = vld [vmem:[%s13 + $0x164] sm:$0xf]
    %v8884 = vld [vmem:[%s13 + $0x168] sm:$0xf]
    %v8885 = vld [vmem:[%s13 + $0x16c] sm:$0xf]
    %v8886 = vld [vmem:[%s13 + $0x170] sm:$0xf]
    %v8887 = vld [vmem:[%s13 + $0x174] sm:$0xf]
    %v8888 = vld [vmem:[%s13 + $0x178] sm:$0xf]
    %v8889 = vld [vmem:[%s13 + $0x17c] sm:$0xf]
    %v8895 = vrot.slane %v8869, 1
    %v8896 = vrot.slane %v8870, 1
    %v8897 = vsel %vm1545, %v8895, %v8896
    %v8898 = vrot.slane %v8871, 1
    %v8899 = vsel %vm1545, %v8896, %v8898
    %v8900 = vrot.slane %v8872, 1
    %v8901 = vsel %vm1545, %v8898, %v8900
    %v8902 = vrot.slane %v8873, 1
    %v8903 = vsel %vm1545, %v8900, %v8902
    %v8924 = vunpack.c.l.b16 %v8874
    %v8925 = vunpack.c.l.b16 %v8875
    %v8926 = vunpack.c.l.b16 %v8876
    %v8927 = vunpack.c.l.b16 %v8877
    %v8928 = vunpack.c.l.b16 %v8878
    %v8929 = vunpack.c.l.b16 %v8879
    %v8930 = vunpack.c.l.b16 %v8880
    %v8931 = vunpack.c.l.b16 %v8881
    %v8932 = vunpack.c.l.b16 %v8882
    %v8933 = vunpack.c.l.b16 %v8883
    %v8934 = vunpack.c.l.b16 %v8884
    %v8935 = vunpack.c.l.b16 %v8885
    %v8936 = vunpack.c.l.b16 %v8886
    %v8937 = vunpack.c.l.b16 %v8887
    %v8938 = vunpack.c.l.b16 %v8888
    %v8939 = vunpack.c.l.b16 %v8889
    %v8940 = vpack.c.b16 %v8925, %v8924
    %v8941 = vpack.c.b16 %v8927, %v8926
    %v8942 = vpack.c.b16 %v8929, %v8928
    %v8943 = vpack.c.b16 %v8931, %v8930
    %v8944 = vpack.c.b16 %v8933, %v8932
    %v8945 = vpack.c.b16 %v8935, %v8934
    %v8946 = vpack.c.b16 %v8937, %v8936
    %v8947 = vpack.c.b16 %v8939, %v8938
    %8956 = vmatprep.subr.bf16.mxu0 0
    %8957 = vmatpush1.bf16.msra.mxu0 %v8940
    %8958 = vmatprep.subr.bf16.mxu0 0
    %8959 = vmatpush1.bf16.msra.mxu0 %v8941
    %8960 = vmatprep.subr.bf16.mxu0 0
    %8961 = vmatpush1.bf16.msra.mxu0 %v8942
    %8962 = vmatprep.subr.bf16.mxu0 0
    %8963 = vmatpush1.bf16.msra.mxu0 %v8943
    %8964 = vmatprep.subr.bf16.mxu0 0
    %8965 = vmatpush1.bf16.msra.mxu0 %v8944
    %8966 = vmatprep.subr.bf16.mxu0 0
    %8967 = vmatpush1.bf16.msra.mxu0 %v8945
    %8968 = vmatprep.subr.bf16.mxu0 0
    %8969 = vmatpush1.bf16.msra.mxu0 %v8946
    %8970 = vmatprep.subr.bf16.mxu0 0
    %8971 = vmatpush1.bf16.msra.mxu0 %v8947
    %8972 = vmatprep.subr.bf16.mxu0 0
    %8973 = vmatpush1.bf16.msra.mxu0 0
    %8974 = vmatprep.subr.bf16.mxu0 0
    %8975 = vmatpush1.bf16.msra.mxu0 0
    %8976 = vmatprep.subr.bf16.mxu0 0
    %8977 = vmatpush1.bf16.msra.mxu0 0
    %8978 = vmatprep.subr.bf16.mxu0 0
    %8979 = vmatpush1.bf16.msra.mxu0 0
    %8980 = vmatprep.subr.bf16.mxu0 0
    %8981 = vmatpush1.bf16.msra.mxu0 0
    %8982 = vmatprep.subr.bf16.mxu0 0
    %8983 = vmatpush1.bf16.msra.mxu0 0
    %8984 = vmatprep.subr.bf16.mxu0 0
    %8985 = vmatpush1.bf16.msra.mxu0 0
    %8986 = vmatprep.subr.bf16.mxu0 0
    %8987 = vmatpush1.bf16.msra.mxu0 0
    %8988 = vmatprep.mubr.bf16.mxu0 0
    %8989 = vmatmul.mubr.bf16.gmra.mrb[0].mxu0 %v8897
    %v8990 = vpop.f32.mrb[0].mxu0
    %v8991 = vadd.f32 0.0, %v8990
    %v8992 = vpop.f32.mrb[0].mxu0
    %v8993 = vpop.f32.mrb[0].mxu0
    %v8994 = vadd.f32 0.0, %v8993
    %v8995 = vpop.f32.mrb[0].mxu0
    %8996 = vmatprep.mubr.bf16.mxu0 0
    %8997 = vmatmul.mubr.bf16.gmra.mrb[0].mxu0 %v8899
    %v8998 = vpop.f32.mrb[0].mxu0
    %v8999 = vadd.f32 0.0, %v8998
    %v9000 = vpop.f32.mrb[0].mxu0
    %v9001 = vpop.f32.mrb[0].mxu0
    %v9002 = vadd.f32 0.0, %v9001
    %v9003 = vpop.f32.mrb[0].mxu0
    %9004 = vmatprep.mubr.bf16.mxu0 0
    %9005 = vmatmul.mubr.bf16.gmra.mrb[0].mxu0 %v8901
    %v9006 = vpop.f32.mrb[0].mxu0
    %v9007 = vadd.f32 0.0, %v9006
    %v9008 = vpop.f32.mrb[0].mxu0
    %v9009 = vpop.f32.mrb[0].mxu0
    %v9010 = vadd.f32 0.0, %v9009
    %v9011 = vpop.f32.mrb[0].mxu0
    %9012 = vmatprep.mubr.bf16.mxu0 0
    %9013 = vmatmul.mubr.bf16.gmra.mrb[0].mxu0 %v8903
    %v9014 = vpop.f32.mrb[0].mxu0
    %v9015 = vadd.f32 0.0, %v9014
    %v9016 = vpop.f32.mrb[0].mxu0
    %v9017 = vpop.f32.mrb[0].mxu0
    %v9018 = vadd.f32 0.0, %v9017
    %v9019 = vpop.f32.mrb[0].mxu0
    %9020 = vdwg.mxu0
    %v9021 = vadd.f32 %v8861, %v8991
    %v9022 = vadd.f32 %v8862, %v8994
    %v9023 = vadd.f32 %v8863, %v8999
    %v9024 = vadd.f32 %v8864, %v9002
    %v9025 = vadd.f32 %v8865, %v9007
    %v9026 = vadd.f32 %v8866, %v9010
    %v9027 = vadd.f32 %v8867, %v9015
    %v9028 = vadd.f32 %v8868, %v9018
    %v9029 = vpack.c.bf16 %v8078, %v8067
    %v9030 = vld [vmem:[%s13 + $0x180] sm:$0xf]
    %v9031 = vld [vmem:[%s13 + $0x184] sm:$0xf]
    %v9032 = vld [vmem:[%s13 + $0x188] sm:$0xf]
    %v9033 = vld [vmem:[%s13 + $0x18c] sm:$0xf]
    %v9034 = vld [vmem:[%s13 + $0x190] sm:$0xf]
    %v9035 = vld [vmem:[%s13 + $0x194] sm:$0xf]
    %v9036 = vld [vmem:[%s13 + $0x198] sm:$0xf]
    %v9037 = vld [vmem:[%s13 + $0x19c] sm:$0xf]
    %v9038 = vld [vmem:[%s13 + $0x1a0] sm:$0xf]
    %v9039 = vld [vmem:[%s13 + $0x1a4] sm:$0xf]
    %v9040 = vld [vmem:[%s13 + $0x1a8] sm:$0xf]
    %v9041 = vld [vmem:[%s13 + $0x1ac] sm:$0xf]
    %v9042 = vld [vmem:[%s13 + $0x1b0] sm:$0xf]
    %v9043 = vld [vmem:[%s13 + $0x1b4] sm:$0xf]
    %v9044 = vld [vmem:[%s13 + $0x1b8] sm:$0xf]
    %v9045 = vld [vmem:[%s13 + $0x1bc] sm:$0xf]
    %v9062 = vunpack.c.l.b16 %v9030
    %v9063 = vunpack.c.l.b16 %v9031
    %v9064 = vunpack.c.l.b16 %v9032
    %v9065 = vunpack.c.l.b16 %v9033
    %v9066 = vunpack.c.l.b16 %v9034
    %v9067 = vunpack.c.l.b16 %v9035
    %v9068 = vunpack.c.l.b16 %v9036
    %v9069 = vunpack.c.l.b16 %v9037
    %v9070 = vunpack.c.l.b16 %v9038
    %v9071 = vunpack.c.l.b16 %v9039
    %v9072 = vunpack.c.l.b16 %v9040
    %v9073 = vunpack.c.l.b16 %v9041
    %v9074 = vunpack.c.l.b16 %v9042
    %v9075 = vunpack.c.l.b16 %v9043
    %v9076 = vunpack.c.l.b16 %v9044
    %v9077 = vunpack.c.l.b16 %v9045
    %v9078 = vpack.c.b16 %v9063, %v9062
    %v9079 = vpack.c.b16 %v9065, %v9064
    %v9080 = vpack.c.b16 %v9067, %v9066
    %v9081 = vpack.c.b16 %v9069, %v9068
    %v9082 = vpack.c.b16 %v9071, %v9070
    %v9083 = vpack.c.b16 %v9073, %v9072
    %v9084 = vpack.c.b16 %v9075, %v9074
    %v9085 = vpack.c.b16 %v9077, %v9076
    %9094 = vmatprep.subr.bf16.mxu0 0
    %9095 = vmatpush1.bf16.msra.mxu0 %v9078
    %9096 = vmatprep.subr.bf16.mxu0 0
    %9097 = vmatpush1.bf16.msra.mxu0 %v9079
    %9098 = vmatprep.subr.bf16.mxu0 0
    %9099 = vmatpush1.bf16.msra.mxu0 %v9080
    %9100 = vmatprep.subr.bf16.mxu0 0
    %9101 = vmatpush1.bf16.msra.mxu0 %v9081
    %9102 = vmatprep.subr.bf16.mxu0 0
    %9103 = vmatpush1.bf16.msra.mxu0 %v9082
    %9104 = vmatprep.subr.bf16.mxu0 0
    %9105 = vmatpush1.bf16.msra.mxu0 %v9083
    %9106 = vmatprep.subr.bf16.mxu0 0
    %9107 = vmatpush1.bf16.msra.mxu0 %v9084
    %9108 = vmatprep.subr.bf16.mxu0 0
    %9109 = vmatpush1.bf16.msra.mxu0 %v9085
    %9110 = vmatprep.subr.bf16.mxu0 0
    %9111 = vmatpush1.bf16.msra.mxu0 0
    %9112 = vmatprep.subr.bf16.mxu0 0
    %9113 = vmatpush1.bf16.msra.mxu0 0
    %9114 = vmatprep.subr.bf16.mxu0 0
    %9115 = vmatpush1.bf16.msra.mxu0 0
    %9116 = vmatprep.subr.bf16.mxu0 0
    %9117 = vmatpush1.bf16.msra.mxu0 0
    %9118 = vmatprep.subr.bf16.mxu0 0
    %9119 = vmatpush1.bf16.msra.mxu0 0
    %9120 = vmatprep.subr.bf16.mxu0 0
    %9121 = vmatpush1.bf16.msra.mxu0 0
    %9122 = vmatprep.subr.bf16.mxu0 0
    %9123 = vmatpush1.bf16.msra.mxu0 0
    %9124 = vmatprep.subr.bf16.mxu0 0
    %9125 = vmatpush1.bf16.msra.mxu0 0
    %9126 = vmatprep.mubr.bf16.mxu0 0
    %9127 = vmatmul.mubr.bf16.gmra.mrb[0].mxu0 %v8080
    %v9128 = vpop.f32.mrb[0].mxu0
    %v9129 = vadd.f32 0.0, %v9128
    %v9130 = vpop.f32.mrb[0].mxu0
    %v9131 = vpop.f32.mrb[0].mxu0
    %v9132 = vadd.f32 0.0, %v9131
    %v9133 = vpop.f32.mrb[0].mxu0
    %9134 = vmatprep.mubr.bf16.mxu0 0
    %9135 = vmatmul.mubr.bf16.gmra.mrb[0].mxu0 %v8081
    %v9136 = vpop.f32.mrb[0].mxu0
    %v9137 = vadd.f32 0.0, %v9136
    %v9138 = vpop.f32.mrb[0].mxu0
    %v9139 = vpop.f32.mrb[0].mxu0
    %v9140 = vadd.f32 0.0, %v9139
    %v9141 = vpop.f32.mrb[0].mxu0
    %9142 = vmatprep.mubr.bf16.mxu0 0
    %9143 = vmatmul.mubr.bf16.gmra.mrb[0].mxu0 %v8082
    %v9144 = vpop.f32.mrb[0].mxu0
    %v9145 = vadd.f32 0.0, %v9144
    %v9146 = vpop.f32.mrb[0].mxu0
    %v9147 = vpop.f32.mrb[0].mxu0
    %v9148 = vadd.f32 0.0, %v9147
    %v9149 = vpop.f32.mrb[0].mxu0
    %9150 = vmatprep.mubr.bf16.mxu0 0
    %9151 = vmatmul.mubr.bf16.gmra.mrb[0].mxu0 %v9029
    %v9152 = vpop.f32.mrb[0].mxu0
    %v9153 = vadd.f32 0.0, %v9152
    %v9154 = vpop.f32.mrb[0].mxu0
    %v9155 = vpop.f32.mrb[0].mxu0
    %v9156 = vadd.f32 0.0, %v9155
    %v9157 = vpop.f32.mrb[0].mxu0
    %9158 = vdwg.mxu0
    %v9159 = vadd.f32 %v9021, %v9129
    %v9160 = vadd.f32 %v9022, %v9132
    %v9161 = vadd.f32 %v9023, %v9137
    %v9162 = vadd.f32 %v9024, %v9140
    %v9163 = vadd.f32 %v9025, %v9145
    %v9164 = vadd.f32 %v9026, %v9148
    %v9165 = vadd.f32 %v9027, %v9153
    %v9166 = vadd.f32 %v9028, %v9156
    %v9167 = vpack.c.bf16 %v8010, %v7999
    %v9168 = vld [vmem:[%s13 + $0x1c0] sm:$0xf]
    %v9169 = vld [vmem:[%s13 + $0x1c4] sm:$0xf]
    %v9170 = vld [vmem:[%s13 + $0x1c8] sm:$0xf]
    %v9171 = vld [vmem:[%s13 + $0x1cc] sm:$0xf]
    %v9172 = vld [vmem:[%s13 + $0x1d0] sm:$0xf]
    %v9173 = vld [vmem:[%s13 + $0x1d4] sm:$0xf]
    %v9174 = vld [vmem:[%s13 + $0x1d8] sm:$0xf]
    %v9175 = vld [vmem:[%s13 + $0x1dc] sm:$0xf]
    %v9176 = vld [vmem:[%s13 + $0x1e0] sm:$0xf]
    %v9177 = vld [vmem:[%s13 + $0x1e4] sm:$0xf]
    %v9178 = vld [vmem:[%s13 + $0x1e8] sm:$0xf]
    %v9179 = vld [vmem:[%s13 + $0x1ec] sm:$0xf]
    %v9180 = vld [vmem:[%s13 + $0x1f0] sm:$0xf]
    %v9181 = vld [vmem:[%s13 + $0x1f4] sm:$0xf]
    %v9182 = vld [vmem:[%s13 + $0x1f8] sm:$0xf]
    %v9183 = vld [vmem:[%s13 + $0x1fc] sm:$0xf]
    %v9185 = vshll.u32 %v9167, 16
    %v9187 = vrot.slane %v9185, 1
    %v9188 = vsel %vm953, %v8150, %v9187
    %v9189 = vshrl.u32 %v9167, 16
    %v9191 = vor.u32 %v9189, %v9187
    %v9192 = vsel %vm953, %v9191, %v959
    %v9211 = vunpack.c.l.b16 %v9168
    %v9212 = vunpack.c.l.b16 %v9169
    %v9213 = vunpack.c.l.b16 %v9170
    %v9214 = vunpack.c.l.b16 %v9171
    %v9215 = vunpack.c.l.b16 %v9172
    %v9216 = vunpack.c.l.b16 %v9173
    %v9217 = vunpack.c.l.b16 %v9174
    %v9218 = vunpack.c.l.b16 %v9175
    %v9219 = vunpack.c.l.b16 %v9176
    %v9220 = vunpack.c.l.b16 %v9177
    %v9221 = vunpack.c.l.b16 %v9178
    %v9222 = vunpack.c.l.b16 %v9179
    %v9223 = vunpack.c.l.b16 %v9180
    %v9224 = vunpack.c.l.b16 %v9181
    %v9225 = vunpack.c.l.b16 %v9182
    %v9226 = vunpack.c.l.b16 %v9183
    %v9227 = vpack.c.b16 %v9212, %v9211
    %v9228 = vpack.c.b16 %v9214, %v9213
    %v9229 = vpack.c.b16 %v9216, %v9215
    %v9230 = vpack.c.b16 %v9218, %v9217
    %v9231 = vpack.c.b16 %v9220, %v9219
    %v9232 = vpack.c.b16 %v9222, %v9221
    %v9233 = vpack.c.b16 %v9224, %v9223
    %v9234 = vpack.c.b16 %v9226, %v9225
    %9243 = vmatprep.subr.bf16.mxu0 0
    %9244 = vmatpush1.bf16.msra.mxu0 %v9227
    %9245 = vmatprep.subr.bf16.mxu0 0
    %9246 = vmatpush1.bf16.msra.mxu0 %v9228
    %9247 = vmatprep.subr.bf16.mxu0 0
    %9248 = vmatpush1.bf16.msra.mxu0 %v9229
    %9249 = vmatprep.subr.bf16.mxu0 0
    %9250 = vmatpush1.bf16.msra.mxu0 %v9230
    %9251 = vmatprep.subr.bf16.mxu0 0
    %9252 = vmatpush1.bf16.msra.mxu0 %v9231
    %9253 = vmatprep.subr.bf16.mxu0 0
    %9254 = vmatpush1.bf16.msra.mxu0 %v9232
    %9255 = vmatprep.subr.bf16.mxu0 0
    %9256 = vmatpush1.bf16.msra.mxu0 %v9233
    %9257 = vmatprep.subr.bf16.mxu0 0
    %9258 = vmatpush1.bf16.msra.mxu0 %v9234
    %9259 = vmatprep.subr.bf16.mxu0 0
    %9260 = vmatpush1.bf16.msra.mxu0 0
    %9261 = vmatprep.subr.bf16.mxu0 0
    %9262 = vmatpush1.bf16.msra.mxu0 0
    %9263 = vmatprep.subr.bf16.mxu0 0
    %9264 = vmatpush1.bf16.msra.mxu0 0
    %9265 = vmatprep.subr.bf16.mxu0 0
    %9266 = vmatpush1.bf16.msra.mxu0 0
    %9267 = vmatprep.subr.bf16.mxu0 0
    %9268 = vmatpush1.bf16.msra.mxu0 0
    %9269 = vmatprep.subr.bf16.mxu0 0
    %9270 = vmatpush1.bf16.msra.mxu0 0
    %9271 = vmatprep.subr.bf16.mxu0 0
    %9272 = vmatpush1.bf16.msra.mxu0 0
    %9273 = vmatprep.subr.bf16.mxu0 0
    %9274 = vmatpush1.bf16.msra.mxu0 0
    %9275 = vmatprep.mubr.bf16.mxu0 0
    %9276 = vmatmul.mubr.bf16.gmra.mrb[0].mxu0 %v8139
    %v9277 = vpop.f32.mrb[0].mxu0
    %v9278 = vadd.f32 0.0, %v9277
    %v9279 = vpop.f32.mrb[0].mxu0
    %v9280 = vpop.f32.mrb[0].mxu0
    %v9281 = vadd.f32 0.0, %v9280
    %v9282 = vpop.f32.mrb[0].mxu0
    %9283 = vmatprep.mubr.bf16.mxu0 0
    %9284 = vmatmul.mubr.bf16.gmra.mrb[0].mxu0 %v8147
    %v9285 = vpop.f32.mrb[0].mxu0
    %v9286 = vadd.f32 0.0, %v9285
    %v9287 = vpop.f32.mrb[0].mxu0
    %v9288 = vpop.f32.mrb[0].mxu0
    %v9289 = vadd.f32 0.0, %v9288
    %v9290 = vpop.f32.mrb[0].mxu0
    %9291 = vmatprep.mubr.bf16.mxu0 0
    %9292 = vmatmul.mubr.bf16.gmra.mrb[0].mxu0 %v9188
    %v9293 = vpop.f32.mrb[0].mxu0
    %v9294 = vadd.f32 0.0, %v9293
    %v9295 = vpop.f32.mrb[0].mxu0
    %v9296 = vpop.f32.mrb[0].mxu0
    %v9297 = vadd.f32 0.0, %v9296
    %v9298 = vpop.f32.mrb[0].mxu0
    %9299 = vmatprep.mubr.bf16.mxu0 0
    %9300 = vmatmul.mubr.bf16.gmra.mrb[0].mxu0 %v9192
    %v9301 = vpop.f32.mrb[0].mxu0
    %v9302 = vadd.f32 0.0, %v9301
    %v9303 = vpop.f32.mrb[0].mxu0
    %v9304 = vpop.f32.mrb[0].mxu0
    %v9305 = vadd.f32 0.0, %v9304
    %v9306 = vpop.f32.mrb[0].mxu0
    %9307 = vdwg.mxu0
    %v9308 = vadd.f32 %v9159, %v9278
    %v9309 = vadd.f32 %v9160, %v9281
    %v9310 = vadd.f32 %v9161, %v9286
    %v9311 = vadd.f32 %v9162, %v9289
    %v9312 = vadd.f32 %v9163, %v9294
    %v9313 = vadd.f32 %v9164, %v9297
    %v9314 = vadd.f32 %v9165, %v9302
    %v9315 = vadd.f32 %v9166, %v9305
    %v9316 = vpack.c.bf16 %v8044, %v8033
    %v9317 = vld [vmem:[%s13 + $0x200] sm:$0xf]
    %v9318 = vld [vmem:[%s13 + $0x204] sm:$0xf]
    %v9319 = vld [vmem:[%s13 + $0x208] sm:$0xf]
    %v9320 = vld [vmem:[%s13 + $0x20c] sm:$0xf]
    %v9321 = vld [vmem:[%s13 + $0x210] sm:$0xf]
    %v9322 = vld [vmem:[%s13 + $0x214] sm:$0xf]
    %v9323 = vld [vmem:[%s13 + $0x218] sm:$0xf]
    %v9324 = vld [vmem:[%s13 + $0x21c] sm:$0xf]
    %v9325 = vld [vmem:[%s13 + $0x220] sm:$0xf]
    %v9326 = vld [vmem:[%s13 + $0x224] sm:$0xf]
    %v9327 = vld [vmem:[%s13 + $0x228] sm:$0xf]
    %v9328 = vld [vmem:[%s13 + $0x22c] sm:$0xf]
    %v9329 = vld [vmem:[%s13 + $0x230] sm:$0xf]
    %v9330 = vld [vmem:[%s13 + $0x234] sm:$0xf]
    %v9331 = vld [vmem:[%s13 + $0x238] sm:$0xf]
    %v9332 = vld [vmem:[%s13 + $0x23c] sm:$0xf]
    %v9334 = vrot.slane %v9316, 1
    %v9335 = vsel %vm1545, %v8417, %v9334
    %v9336 = vsel %vm1545, %v9334, %v1546
    %v9355 = vunpack.c.l.b16 %v9317
    %v9356 = vunpack.c.l.b16 %v9318
    %v9357 = vunpack.c.l.b16 %v9319
    %v9358 = vunpack.c.l.b16 %v9320
    %v9359 = vunpack.c.l.b16 %v9321
    %v9360 = vunpack.c.l.b16 %v9322
    %v9361 = vunpack.c.l.b16 %v9323
    %v9362 = vunpack.c.l.b16 %v9324
    %v9363 = vunpack.c.l.b16 %v9325
    %v9364 = vunpack.c.l.b16 %v9326
    %v9365 = vunpack.c.l.b16 %v9327
    %v9366 = vunpack.c.l.b16 %v9328
    %v9367 = vunpack.c.l.b16 %v9329
    %v9368 = vunpack.c.l.b16 %v9330
    %v9369 = vunpack.c.l.b16 %v9331
    %v9370 = vunpack.c.l.b16 %v9332
    %v9371 = vpack.c.b16 %v9356, %v9355
    %v9372 = vpack.c.b16 %v9358, %v9357
    %v9373 = vpack.c.b16 %v9360, %v9359
    %v9374 = vpack.c.b16 %v9362, %v9361
    %v9375 = vpack.c.b16 %v9364, %v9363
    %v9376 = vpack.c.b16 %v9366, %v9365
    %v9377 = vpack.c.b16 %v9368, %v9367
    %v9378 = vpack.c.b16 %v9370, %v9369
    %9387 = vmatprep.subr.bf16.mxu0 0
    %9388 = vmatpush1.bf16.msra.mxu0 %v9371
    %9389 = vmatprep.subr.bf16.mxu0 0
    %9390 = vmatpush1.bf16.msra.mxu0 %v9372
    %9391 = vmatprep.subr.bf16.mxu0 0
    %9392 = vmatpush1.bf16.msra.mxu0 %v9373
    %9393 = vmatprep.subr.bf16.mxu0 0
    %9394 = vmatpush1.bf16.msra.mxu0 %v9374
    %9395 = vmatprep.subr.bf16.mxu0 0
    %9396 = vmatpush1.bf16.msra.mxu0 %v9375
    %9397 = vmatprep.subr.bf16.mxu0 0
    %9398 = vmatpush1.bf16.msra.mxu0 %v9376
    %9399 = vmatprep.subr.bf16.mxu0 0
    %9400 = vmatpush1.bf16.msra.mxu0 %v9377
    %9401 = vmatprep.subr.bf16.mxu0 0
    %9402 = vmatpush1.bf16.msra.mxu0 %v9378
    %9403 = vmatprep.subr.bf16.mxu0 0
    %9404 = vmatpush1.bf16.msra.mxu0 0
    %9405 = vmatprep.subr.bf16.mxu0 0
    %9406 = vmatpush1.bf16.msra.mxu0 0
    %9407 = vmatprep.subr.bf16.mxu0 0
    %9408 = vmatpush1.bf16.msra.mxu0 0
    %9409 = vmatprep.subr.bf16.mxu0 0
    %9410 = vmatpush1.bf16.msra.mxu0 0
    %9411 = vmatprep.subr.bf16.mxu0 0
    %9412 = vmatpush1.bf16.msra.mxu0 0
    %9413 = vmatprep.subr.bf16.mxu0 0
    %9414 = vmatpush1.bf16.msra.mxu0 0
    %9415 = vmatprep.subr.bf16.mxu0 0
    %9416 = vmatpush1.bf16.msra.mxu0 0
    %9417 = vmatprep.subr.bf16.mxu0 0
    %9418 = vmatpush1.bf16.msra.mxu0 0
    %9419 = vmatprep.mubr.bf16.mxu0 0
    %9420 = vmatmul.mubr.bf16.gmra.mrb[0].mxu0 %v8416
    %v9421 = vpop.f32.mrb[0].mxu0
    %v9422 = vadd.f32 0.0, %v9421
    %v9423 = vpop.f32.mrb[0].mxu0
    %v9424 = vpop.f32.mrb[0].mxu0
    %v9425 = vadd.f32 0.0, %v9424
    %v9426 = vpop.f32.mrb[0].mxu0
    %9427 = vmatprep.mubr.bf16.mxu0 0
    %9428 = vmatmul.mubr.bf16.gmra.mrb[0].mxu0 %v8418
    %v9429 = vpop.f32.mrb[0].mxu0
    %v9430 = vadd.f32 0.0, %v9429
    %v9431 = vpop.f32.mrb[0].mxu0
    %v9432 = vpop.f32.mrb[0].mxu0
    %v9433 = vadd.f32 0.0, %v9432
    %v9434 = vpop.f32.mrb[0].mxu0
    %9435 = vmatprep.mubr.bf16.mxu0 0
    %9436 = vmatmul.mubr.bf16.gmra.mrb[0].mxu0 %v9335
    %v9437 = vpop.f32.mrb[0].mxu0
    %v9438 = vadd.f32 0.0, %v9437
    %v9439 = vpop.f32.mrb[0].mxu0
    %v9440 = vpop.f32.mrb[0].mxu0
    %v9441 = vadd.f32 0.0, %v9440
    %v9442 = vpop.f32.mrb[0].mxu0
    %9443 = vmatprep.mubr.bf16.mxu0 0
    %9444 = vmatmul.mubr.bf16.gmra.mrb[0].mxu0 %v9336
    %v9445 = vpop.f32.mrb[0].mxu0
    %v9446 = vadd.f32 0.0, %v9445
    %v9447 = vpop.f32.mrb[0].mxu0
    %v9448 = vpop.f32.mrb[0].mxu0
    %v9449 = vadd.f32 0.0, %v9448
    %v9450 = vpop.f32.mrb[0].mxu0
    %9451 = vdwg.mxu0
    %v9452 = vadd.f32 %v9308, %v9422
    %v9453 = vadd.f32 %v9309, %v9425
    %v9454 = vadd.f32 %v9310, %v9430
    %v9455 = vadd.f32 %v9311, %v9433
    %v9456 = vadd.f32 %v9312, %v9438
    %v9457 = vadd.f32 %v9313, %v9441
    %v9458 = vadd.f32 %v9314, %v9446
    %v9459 = vadd.f32 %v9315, %v9449
    %v9460 = vld [vmem:[%s14] sm:$0x1]
    %v9462 = vlaneseq
    %v9463 = vshrl.u32 %v9462, 7
    %v9464 = vsub.s32 0, %v9463
    %v9465 = vrot.slane %v9460, %v9464
    %v9467 = vadd.f32 %v9452, %v9465
    %v9468 = vadd.f32 %v9453, %v9465
    %v9469 = vadd.f32 %v9454, %v9465
    %v9470 = vadd.f32 %v9455, %v9465
    %v9471 = vadd.f32 %v9456, %v9465
    %v9472 = vadd.f32 %v9457, %v9465
    %v9473 = vadd.f32 %v9458, %v9465
    %v9474 = vadd.f32 %v9459, %v9465
    %v9475 = vmax.f32 %v9467, 0.0
    %v9476 = vmax.f32 %v9468, 0.0
    %v9477 = vmax.f32 %v9469, 0.0
    %v9478 = vmax.f32 %v9470, 0.0
    %v9479 = vmax.f32 %v9471, 0.0
    %v9480 = vmax.f32 %v9472, 0.0
    %v9481 = vmax.f32 %v9473, 0.0
    %v9482 = vmax.f32 %v9474, 0.0
    %9483 = vst [vmem:[#allocation4] sm:$0xff] %v9467
    %9484 = vst [vmem:[#allocation4 + $0x8] sm:$0xff] %v9468
    %9485 = vst [vmem:[#allocation4 + $0x10] sm:$0xff] %v9469
    %9486 = vst [vmem:[#allocation4 + $0x18] sm:$0xff] %v9470
    %9487 = vst [vmem:[#allocation4 + $0x20] sm:$0xff] %v9471
    %9488 = vst [vmem:[#allocation4 + $0x28] sm:$0xff] %v9472
    %9489 = vst [vmem:[#allocation4 + $0x30] sm:$0xff] %v9473
    %9490 = vst [vmem:[#allocation4 + $0x38] sm:$0xff] %v9474
    %v9499 = vrot.slane %v9475, 1
    %v9500 = vrot.slane %v9476, 1
    %v9501 = vsel %vm6290, %v9499, %v9500
    %v9502 = vrot.slane %v9477, 1
    %v9503 = vsel %vm6290, %v9500, %v9502
    %v9504 = vrot.slane %v9478, 1
    %v9505 = vsel %vm6290, %v9502, %v9504
    %v9506 = vrot.slane %v9479, 1
    %v9507 = vsel %vm6290, %v9504, %v9506
    %v9508 = vrot.slane %v9480, 1
    %v9509 = vsel %vm6290, %v9506, %v9508
    %v9510 = vrot.slane %v9481, 1
    %v9511 = vsel %vm6290, %v9508, %v9510
    %v9512 = vrot.slane %v9482, 1
    %v9513 = vsel %vm6290, %v9510, %v9512
    %v9522 = vsel %vm6290, %v9512, 0.0
    %v9523 = vmax.f32 %v9475, %v9501
    %v9524 = vmax.f32 %v9476, %v9503
    %v9525 = vmax.f32 %v9477, %v9505
    %v9526 = vmax.f32 %v9478, %v9507
    %v9527 = vmax.f32 %v9479, %v9509
    %v9528 = vmax.f32 %v9480, %v9511
    %v9529 = vmax.f32 %v9481, %v9513
    %v9530 = vmax.f32 %v9482, %v9522
    %v9531 = vmax.f32 %v9523, %v9524
    %v9532 = vmax.f32 %v9524, %v9525
    %v9533 = vmax.f32 %v9525, %v9526
    %v9534 = vmax.f32 %v9526, %v9527
    %v9535 = vmax.f32 %v9527, %v9528
    %v9536 = vmax.f32 %v9528, %v9529
    %v9537 = vmax.f32 %v9529, %v9530
    %v9538 = vmax.f32 %v9530, 0.0
    %v9539 = vld [vmem:[%s6] sm:$0xf]
    %v9540 = vld [vmem:[%s6 + $0x4] sm:$0xf]
    %v9541 = vpack.c.bf16 %v9532, %v9531
    %v9542 = vpack.c.bf16 %v9534, %v9533
    %v9543 = vpack.c.bf16 %v9536, %v9535
    %v9544 = vpack.c.bf16 %v9538, %v9537
    %v9547 = vunpack.c.l.b16 %v9539
    %v9548 = vunpack.c.l.b16 %v9540
    %v9549 = vpack.c.b16 %v9548, %v9547
    %v9551 = vsel %vm3796, %v9549, 0
    %9553 = vmatprep.subr.bf16.mxu0 0
    %9554 = vmatpush1.bf16.msra.mxu0 %v9541
    %9555 = vmatprep.subr.bf16.mxu0 0
    %9556 = vmatpush1.bf16.msra.mxu0 %v9542
    %9557 = vmatprep.subr.bf16.mxu0 0
    %9558 = vmatpush1.bf16.msra.mxu0 %v9543
    %9559 = vmatprep.subr.bf16.mxu0 0
    %9560 = vmatpush1.bf16.msra.mxu0 %v9544
    %9561 = vmatprep.subr.bf16.mxu0 0
    %9562 = vmatpush1.bf16.msra.mxu0 0
    %9563 = vmatprep.subr.bf16.mxu0 0
    %9564 = vmatpush1.bf16.msra.mxu0 0
    %9565 = vmatprep.subr.bf16.mxu0 0
    %9566 = vmatpush1.bf16.msra.mxu0 0
    %9567 = vmatprep.subr.bf16.mxu0 0
    %9568 = vmatpush1.bf16.msra.mxu0 0
    %9569 = vmatprep.subr.bf16.mxu0 0
    %9570 = vmatpush1.bf16.msra.mxu0 0
    %9571 = vmatprep.subr.bf16.mxu0 0
    %9572 = vmatpush1.bf16.msra.mxu0 0
    %9573 = vmatprep.subr.bf16.mxu0 0
    %9574 = vmatpush1.bf16.msra.mxu0 0
    %9575 = vmatprep.subr.bf16.mxu0 0
    %9576 = vmatpush1.bf16.msra.mxu0 0
    %9577 = vmatprep.subr.bf16.mxu0 0
    %9578 = vmatpush1.bf16.msra.mxu0 0
    %9579 = vmatprep.subr.bf16.mxu0 0
    %9580 = vmatpush1.bf16.msra.mxu0 0
    %9581 = vmatprep.subr.bf16.mxu0 0
    %9582 = vmatpush1.bf16.msra.mxu0 0
    %9583 = vmatprep.subr.bf16.mxu0 0
    %9584 = vmatpush1.bf16.msra.mxu0 0
    %9585 = vmatprep.mubr.bf16.mxu0 0
    %9586 = vmatmul.mubr.bf16.gmra.mrb[0].mxu0 %v9551
    %v9587 = vpop.f32.mrb[0].mxu0
    %v9588 = vadd.f32 0.0, %v9587
    %v9589 = vpop.f32.mrb[0].mxu0
    %v9590 = vpop.f32.mrb[0].mxu0
    %v9591 = vadd.f32 0.0, %v9590
    %v9592 = vpop.f32.mrb[0].mxu0
    %9593 = vdwg.mxu0
    %9595 = vset.pattern.permute.xlu0 0
    %9596 = vperm.xlu0 %9595, %v174
    %v9597 = vpop.permute.xlu0 %9596
    %9600 = vset.pattern.permute.xlu0 0
    %9601 = vperm.xlu0 %9600, %v175
    %v9602 = vpop.permute.xlu0 %9601
    %v9604 = vmul.f32 %v9588, %v9597
    %v9605 = vmul.f32 %v9591, %v9602
    %9606 = vset.pattern.permute.xlu0 1
    %9607 = vperm.xlu0 %9606, %v174
    %v9608 = vpop.permute.xlu0 %9607
    %9610 = vset.pattern.permute.xlu0 1
    %9611 = vperm.xlu0 %9610, %v175
    %v9612 = vpop.permute.xlu0 %9611
    %v9614 = vmul.f32 %v9588, %v9608
    %v9615 = vmul.f32 %v9591, %v9612
    %vm9618 = vcmask 1044480
    %v9619 = vrot.slane %v9588, 3
    %v9620 = vrot.slane %v9591, 3
    %v9621 = vsel %vm9618, %v9619, %v9620
    %v9625 = vsel %vm9618, 0.0, %v9619
    %v9626 = vsel %vm9618, %v9620, 0.0
    %v9629 = vrot.slane %v9604, 3
    %v9630 = vrot.slane %v9605, 3
    %v9631 = vsel %vm9618, %v9629, %v9630
    %v9635 = vsel %vm9618, 0.0, %v9629
    %v9636 = vsel %vm9618, %v9630, 0.0
    %v9639 = vrot.slane %v9614, 3
    %v9640 = vrot.slane %v9615, 3
    %v9641 = vsel %vm9618, %v9639, %v9640
    %v9645 = vsel %vm9618, 0.0, %v9639
    %v9646 = vsel %vm9618, %v9640, 0.0
    %v9647 = vpack.c.bf16 %v9641, %v9645
    %v9648 = vld [vmem:[%s15] sm:$0xff]
    %v9649 = vld [vmem:[%s15 + $0x8] sm:$0xff]
    %v9650 = vld [vmem:[%s15 + $0x10] sm:$0xff]
    %v9651 = vld [vmem:[%s15 + $0x18] sm:$0xff]
    %v9652 = vld [vmem:[%s15 + $0x20] sm:$0xff]
    %v9653 = vld [vmem:[%s15 + $0x28] sm:$0xff]
    %v9654 = vld [vmem:[%s15 + $0x30] sm:$0xff]
    %v9655 = vld [vmem:[%s15 + $0x38] sm:$0xff]
    %v9656 = vld [vmem:[%s15 + $0x40] sm:$0xff]
    %v9657 = vld [vmem:[%s15 + $0x48] sm:$0xff]
    %v9658 = vld [vmem:[%s15 + $0x50] sm:$0xff]
    %v9659 = vld [vmem:[%s15 + $0x58] sm:$0xff]
    %v9660 = vld [vmem:[%s15 + $0x60] sm:$0xff]
    %v9661 = vld [vmem:[%s15 + $0x68] sm:$0xff]
    %v9662 = vld [vmem:[%s15 + $0x70] sm:$0xff]
    %v9663 = vld [vmem:[%s15 + $0x78] sm:$0xff]
    %v9664 = vpack.c.bf16 %v9621, %v9625
    %v9665 = vpack.c.bf16 %v9626, %v9626
    %v9666 = vld [vmem:[%s15 + $0x80] sm:$0xff]
    %v9667 = vld [vmem:[%s15 + $0x88] sm:$0xff]
    %v9668 = vld [vmem:[%s15 + $0x90] sm:$0xff]
    %v9669 = vld [vmem:[%s15 + $0x98] sm:$0xff]
    %v9670 = vld [vmem:[%s15 + $0xa0] sm:$0xff]
    %v9671 = vld [vmem:[%s15 + $0xa8] sm:$0xff]
    %v9672 = vld [vmem:[%s15 + $0xb0] sm:$0xff]
    %v9673 = vld [vmem:[%s15 + $0xb8] sm:$0xff]
    %v9674 = vld [vmem:[%s15 + $0xc0] sm:$0xff]
    %v9675 = vld [vmem:[%s15 + $0xc8] sm:$0xff]
    %v9676 = vld [vmem:[%s15 + $0xd0] sm:$0xff]
    %v9677 = vld [vmem:[%s15 + $0xd8] sm:$0xff]
    %v9678 = vld [vmem:[%s15 + $0xe0] sm:$0xff]
    %v9679 = vld [vmem:[%s15 + $0xe8] sm:$0xff]
    %v9680 = vld [vmem:[%s15 + $0xf0] sm:$0xff]
    %v9681 = vld [vmem:[%s15 + $0xf8] sm:$0xff]
    %v9683 = vshrl.u32 %v9664, 16
    %v9685 = vshll.u32 %v9664, 16
    %v9687 = vrot.slane %v9685, 1
    %v9688 = vor.u32 %v9683, %v9687
    %v9690 = vshll.u32 %v9665, 16
    %v9692 = vrot.slane %v9690, 1
    %v9693 = vsel %vm953, %v9688, %v9692
    %v9711 = vunpack.c.l.b16 %v9666
    %v9712 = vunpack.c.h.b16 %v9666
    %v9713 = vunpack.c.l.b16 %v9667
    %v9714 = vunpack.c.h.b16 %v9667
    %v9715 = vunpack.c.l.b16 %v9668
    %v9716 = vunpack.c.h.b16 %v9668
    %v9717 = vunpack.c.l.b16 %v9669
    %v9718 = vunpack.c.h.b16 %v9669
    %v9719 = vunpack.c.l.b16 %v9670
    %v9720 = vunpack.c.h.b16 %v9670
    %v9721 = vunpack.c.l.b16 %v9671
    %v9722 = vunpack.c.h.b16 %v9671
    %v9723 = vunpack.c.l.b16 %v9672
    %v9724 = vunpack.c.h.b16 %v9672
    %v9725 = vunpack.c.l.b16 %v9673
    %v9726 = vunpack.c.h.b16 %v9673
    %v9727 = vunpack.c.l.b16 %v9674
    %v9728 = vunpack.c.h.b16 %v9674
    %v9729 = vunpack.c.l.b16 %v9675
    %v9730 = vunpack.c.h.b16 %v9675
    %v9731 = vunpack.c.l.b16 %v9676
    %v9732 = vunpack.c.h.b16 %v9676
    %v9733 = vunpack.c.l.b16 %v9677
    %v9734 = vunpack.c.h.b16 %v9677
    %v9735 = vunpack.c.l.b16 %v9678
    %v9736 = vunpack.c.h.b16 %v9678
    %v9737 = vunpack.c.l.b16 %v9679
    %v9738 = vunpack.c.h.b16 %v9679
    %v9739 = vunpack.c.l.b16 %v9680
    %v9740 = vunpack.c.h.b16 %v9680
    %v9741 = vunpack.c.l.b16 %v9681
    %v9742 = vunpack.c.h.b16 %v9681
    %v9743 = vpack.c.b16 %v9713, %v9711
    %v9744 = vpack.c.b16 %v9714, %v9712
    %v9745 = vpack.c.b16 %v9717, %v9715
    %v9746 = vpack.c.b16 %v9718, %v9716
    %v9747 = vpack.c.b16 %v9721, %v9719
    %v9748 = vpack.c.b16 %v9722, %v9720
    %v9749 = vpack.c.b16 %v9725, %v9723
    %v9750 = vpack.c.b16 %v9726, %v9724
    %v9751 = vpack.c.b16 %v9729, %v9727
    %v9752 = vpack.c.b16 %v9730, %v9728
    %v9753 = vpack.c.b16 %v9733, %v9731
    %v9754 = vpack.c.b16 %v9734, %v9732
    %v9755 = vpack.c.b16 %v9737, %v9735
    %v9756 = vpack.c.b16 %v9738, %v9736
    %v9757 = vpack.c.b16 %v9741, %v9739
    %v9758 = vpack.c.b16 %v9742, %v9740
    %9775 = vmatprep.subr.bf16.mxu0 %v9744
    %9776 = vmatpush1.bf16.msra.mxu0 %v9743
    %9777 = vmatprep.subr.bf16.mxu0 %v9746
    %9778 = vmatpush1.bf16.msra.mxu0 %v9745
    %9779 = vmatprep.subr.bf16.mxu0 %v9748
    %9780 = vmatpush1.bf16.msra.mxu0 %v9747
    %9781 = vmatprep.subr.bf16.mxu0 %v9750
    %9782 = vmatpush1.bf16.msra.mxu0 %v9749
    %9783 = vmatprep.subr.bf16.mxu0 %v9752
    %9784 = vmatpush1.bf16.msra.mxu0 %v9751
    %9785 = vmatprep.subr.bf16.mxu0 %v9754
    %9786 = vmatpush1.bf16.msra.mxu0 %v9753
    %9787 = vmatprep.subr.bf16.mxu0 %v9756
    %9788 = vmatpush1.bf16.msra.mxu0 %v9755
    %9789 = vmatprep.subr.bf16.mxu0 %v9758
    %9790 = vmatpush1.bf16.msra.mxu0 %v9757
    %9791 = vmatprep.subr.bf16.mxu0 0
    %9792 = vmatpush1.bf16.msra.mxu0 0
    %9793 = vmatprep.subr.bf16.mxu0 0
    %9794 = vmatpush1.bf16.msra.mxu0 0
    %9795 = vmatprep.subr.bf16.mxu0 0
    %9796 = vmatpush1.bf16.msra.mxu0 0
    %9797 = vmatprep.subr.bf16.mxu0 0
    %9798 = vmatpush1.bf16.msra.mxu0 0
    %9799 = vmatprep.subr.bf16.mxu0 0
    %9800 = vmatpush1.bf16.msra.mxu0 0
    %9801 = vmatprep.subr.bf16.mxu0 0
    %9802 = vmatpush1.bf16.msra.mxu0 0
    %9803 = vmatprep.subr.bf16.mxu0 0
    %9804 = vmatpush1.bf16.msra.mxu0 0
    %9805 = vmatprep.subr.bf16.mxu0 0
    %9806 = vmatpush1.bf16.msra.mxu0 0
    %9807 = vmatprep.mubr.bf16.mxu0 0
    %9808 = vmatmul.mubr.bf16.gmra.mrb[0].mxu0 %v9693
    %v9809 = vpop.f32.mrb[0].mxu0
    %v9810 = vadd.f32 0.0, %v9809
    %v9811 = vpop.f32.mrb[0].mxu0
    %v9812 = vadd.f32 0.0, %v9811
    %v9813 = vpop.f32.mrb[0].mxu0
    %v9814 = vadd.f32 0.0, %v9813
    %v9815 = vpop.f32.mrb[0].mxu0
    %v9816 = vadd.f32 0.0, %v9815
    %9817 = vdwg.mxu0
    %v9834 = vunpack.c.l.b16 %v9648
    %v9835 = vunpack.c.h.b16 %v9648
    %v9836 = vunpack.c.l.b16 %v9649
    %v9837 = vunpack.c.h.b16 %v9649
    %v9838 = vunpack.c.l.b16 %v9650
    %v9839 = vunpack.c.h.b16 %v9650
    %v9840 = vunpack.c.l.b16 %v9651
    %v9841 = vunpack.c.h.b16 %v9651
    %v9842 = vunpack.c.l.b16 %v9652
    %v9843 = vunpack.c.h.b16 %v9652
    %v9844 = vunpack.c.l.b16 %v9653
    %v9845 = vunpack.c.h.b16 %v9653
    %v9846 = vunpack.c.l.b16 %v9654
    %v9847 = vunpack.c.h.b16 %v9654
    %v9848 = vunpack.c.l.b16 %v9655
    %v9849 = vunpack.c.h.b16 %v9655
    %v9850 = vunpack.c.l.b16 %v9656
    %v9851 = vunpack.c.h.b16 %v9656
    %v9852 = vunpack.c.l.b16 %v9657
    %v9853 = vunpack.c.h.b16 %v9657
    %v9854 = vunpack.c.l.b16 %v9658
    %v9855 = vunpack.c.h.b16 %v9658
    %v9856 = vunpack.c.l.b16 %v9659
    %v9857 = vunpack.c.h.b16 %v9659
    %v9858 = vunpack.c.l.b16 %v9660
    %v9859 = vunpack.c.h.b16 %v9660
    %v9860 = vunpack.c.l.b16 %v9661
    %v9861 = vunpack.c.h.b16 %v9661
    %v9862 = vunpack.c.l.b16 %v9662
    %v9863 = vunpack.c.h.b16 %v9662
    %v9864 = vunpack.c.l.b16 %v9663
    %v9865 = vunpack.c.h.b16 %v9663
    %v9866 = vpack.c.b16 %v9836, %v9834
    %v9867 = vpack.c.b16 %v9837, %v9835
    %v9868 = vpack.c.b16 %v9840, %v9838
    %v9869 = vpack.c.b16 %v9841, %v9839
    %v9870 = vpack.c.b16 %v9844, %v9842
    %v9871 = vpack.c.b16 %v9845, %v9843
    %v9872 = vpack.c.b16 %v9848, %v9846
    %v9873 = vpack.c.b16 %v9849, %v9847
    %v9874 = vpack.c.b16 %v9852, %v9850
    %v9875 = vpack.c.b16 %v9853, %v9851
    %v9876 = vpack.c.b16 %v9856, %v9854
    %v9877 = vpack.c.b16 %v9857, %v9855
    %v9878 = vpack.c.b16 %v9860, %v9858
    %v9879 = vpack.c.b16 %v9861, %v9859
    %v9880 = vpack.c.b16 %v9864, %v9862
    %v9881 = vpack.c.b16 %v9865, %v9863
    %9898 = vmatprep.subr.bf16.mxu0 %v9867
    %9899 = vmatpush1.bf16.msra.mxu0 %v9866
    %9900 = vmatprep.subr.bf16.mxu0 %v9869
    %9901 = vmatpush1.bf16.msra.mxu0 %v9868
    %9902 = vmatprep.subr.bf16.mxu0 %v9871
    %9903 = vmatpush1.bf16.msra.mxu0 %v9870
    %9904 = vmatprep.subr.bf16.mxu0 %v9873
    %9905 = vmatpush1.bf16.msra.mxu0 %v9872
    %9906 = vmatprep.subr.bf16.mxu0 %v9875
    %9907 = vmatpush1.bf16.msra.mxu0 %v9874
    %9908 = vmatprep.subr.bf16.mxu0 %v9877
    %9909 = vmatpush1.bf16.msra.mxu0 %v9876
    %9910 = vmatprep.subr.bf16.mxu0 %v9879
    %9911 = vmatpush1.bf16.msra.mxu0 %v9878
    %9912 = vmatprep.subr.bf16.mxu0 %v9881
    %9913 = vmatpush1.bf16.msra.mxu0 %v9880
    %9914 = vmatprep.subr.bf16.mxu0 0
    %9915 = vmatpush1.bf16.msra.mxu0 0
    %9916 = vmatprep.subr.bf16.mxu0 0
    %9917 = vmatpush1.bf16.msra.mxu0 0
    %9918 = vmatprep.subr.bf16.mxu0 0
    %9919 = vmatpush1.bf16.msra.mxu0 0
    %9920 = vmatprep.subr.bf16.mxu0 0
    %9921 = vmatpush1.bf16.msra.mxu0 0
    %9922 = vmatprep.subr.bf16.mxu0 0
    %9923 = vmatpush1.bf16.msra.mxu0 0
    %9924 = vmatprep.subr.bf16.mxu0 0
    %9925 = vmatpush1.bf16.msra.mxu0 0
    %9926 = vmatprep.subr.bf16.mxu0 0
    %9927 = vmatpush1.bf16.msra.mxu0 0
    %9928 = vmatprep.subr.bf16.mxu0 0
    %9929 = vmatpush1.bf16.msra.mxu0 0
    %9930 = vmatprep.mubr.bf16.mxu0 0
    %9931 = vmatmul.mubr.bf16.gmra.mrb[0].mxu0 %v9647
    %v9932 = vpop.f32.mrb[0].mxu0
    %v9933 = vadd.f32 %v9810, %v9932
    %v9934 = vpop.f32.mrb[0].mxu0
    %v9935 = vadd.f32 %v9812, %v9934
    %v9936 = vpop.f32.mrb[0].mxu0
    %v9937 = vadd.f32 %v9814, %v9936
    %v9938 = vpop.f32.mrb[0].mxu0
    %v9939 = vadd.f32 %v9816, %v9938
    %9940 = vdwg.mxu0
    %v9941 = vpack.c.bf16 %v9631, %v9635
    %v9942 = vpack.c.bf16 %v9636, %v9636
    %v9943 = vld [vmem:[%s15 + $0x100] sm:$0xff]
    %v9944 = vld [vmem:[%s15 + $0x108] sm:$0xff]
    %v9945 = vld [vmem:[%s15 + $0x110] sm:$0xff]
    %v9946 = vld [vmem:[%s15 + $0x118] sm:$0xff]
    %v9947 = vld [vmem:[%s15 + $0x120] sm:$0xff]
    %v9948 = vld [vmem:[%s15 + $0x128] sm:$0xff]
    %v9949 = vld [vmem:[%s15 + $0x130] sm:$0xff]
    %v9950 = vld [vmem:[%s15 + $0x138] sm:$0xff]
    %v9951 = vld [vmem:[%s15 + $0x140] sm:$0xff]
    %v9952 = vld [vmem:[%s15 + $0x148] sm:$0xff]
    %v9953 = vld [vmem:[%s15 + $0x150] sm:$0xff]
    %v9954 = vld [vmem:[%s15 + $0x158] sm:$0xff]
    %v9955 = vld [vmem:[%s15 + $0x160] sm:$0xff]
    %v9956 = vld [vmem:[%s15 + $0x168] sm:$0xff]
    %v9957 = vld [vmem:[%s15 + $0x170] sm:$0xff]
    %v9958 = vld [vmem:[%s15 + $0x178] sm:$0xff]
    %v9961 = vrot.slane %v9941, 1
    %v9962 = vrot.slane %v9942, 1
    %v9963 = vsel %vm1545, %v9961, %v9962
    %v9981 = vunpack.c.l.b16 %v9943
    %v9982 = vunpack.c.h.b16 %v9943
    %v9983 = vunpack.c.l.b16 %v9944
    %v9984 = vunpack.c.h.b16 %v9944
    %v9985 = vunpack.c.l.b16 %v9945
    %v9986 = vunpack.c.h.b16 %v9945
    %v9987 = vunpack.c.l.b16 %v9946
    %v9988 = vunpack.c.h.b16 %v9946
    %v9989 = vunpack.c.l.b16 %v9947
    %v9990 = vunpack.c.h.b16 %v9947
    %v9991 = vunpack.c.l.b16 %v9948
    %v9992 = vunpack.c.h.b16 %v9948
    %v9993 = vunpack.c.l.b16 %v9949
    %v9994 = vunpack.c.h.b16 %v9949
    %v9995 = vunpack.c.l.b16 %v9950
    %v9996 = vunpack.c.h.b16 %v9950
    %v9997 = vunpack.c.l.b16 %v9951
    %v9998 = vunpack.c.h.b16 %v9951
    %v9999 = vunpack.c.l.b16 %v9952
    %v10000 = vunpack.c.h.b16 %v9952
    %v10001 = vunpack.c.l.b16 %v9953
    %v10002 = vunpack.c.h.b16 %v9953
    %v10003 = vunpack.c.l.b16 %v9954
    %v10004 = vunpack.c.h.b16 %v9954
    %v10005 = vunpack.c.l.b16 %v9955
    %v10006 = vunpack.c.h.b16 %v9955
    %v10007 = vunpack.c.l.b16 %v9956
    %v10008 = vunpack.c.h.b16 %v9956
    %v10009 = vunpack.c.l.b16 %v9957
    %v10010 = vunpack.c.h.b16 %v9957
    %v10011 = vunpack.c.l.b16 %v9958
    %v10012 = vunpack.c.h.b16 %v9958
    %v10013 = vpack.c.b16 %v9983, %v9981
    %v10014 = vpack.c.b16 %v9984, %v9982
    %v10015 = vpack.c.b16 %v9987, %v9985
    %v10016 = vpack.c.b16 %v9988, %v9986
    %v10017 = vpack.c.b16 %v9991, %v9989
    %v10018 = vpack.c.b16 %v9992, %v9990
    %v10019 = vpack.c.b16 %v9995, %v9993
    %v10020 = vpack.c.b16 %v9996, %v9994
    %v10021 = vpack.c.b16 %v9999, %v9997
    %v10022 = vpack.c.b16 %v10000, %v9998
    %v10023 = vpack.c.b16 %v10003, %v10001
    %v10024 = vpack.c.b16 %v10004, %v10002
    %v10025 = vpack.c.b16 %v10007, %v10005
    %v10026 = vpack.c.b16 %v10008, %v10006
    %v10027 = vpack.c.b16 %v10011, %v10009
    %v10028 = vpack.c.b16 %v10012, %v10010
    %10045 = vmatprep.subr.bf16.mxu0 %v10014
    %10046 = vmatpush1.bf16.msra.mxu0 %v10013
    %10047 = vmatprep.subr.bf16.mxu0 %v10016
    %10048 = vmatpush1.bf16.msra.mxu0 %v10015
    %10049 = vmatprep.subr.bf16.mxu0 %v10018
    %10050 = vmatpush1.bf16.msra.mxu0 %v10017
    %10051 = vmatprep.subr.bf16.mxu0 %v10020
    %10052 = vmatpush1.bf16.msra.mxu0 %v10019
    %10053 = vmatprep.subr.bf16.mxu0 %v10022
    %10054 = vmatpush1.bf16.msra.mxu0 %v10021
    %10055 = vmatprep.subr.bf16.mxu0 %v10024
    %10056 = vmatpush1.bf16.msra.mxu0 %v10023
    %10057 = vmatprep.subr.bf16.mxu0 %v10026
    %10058 = vmatpush1.bf16.msra.mxu0 %v10025
    %10059 = vmatprep.subr.bf16.mxu0 %v10028
    %10060 = vmatpush1.bf16.msra.mxu0 %v10027
    %10061 = vmatprep.subr.bf16.mxu0 0
    %10062 = vmatpush1.bf16.msra.mxu0 0
    %10063 = vmatprep.subr.bf16.mxu0 0
    %10064 = vmatpush1.bf16.msra.mxu0 0
    %10065 = vmatprep.subr.bf16.mxu0 0
    %10066 = vmatpush1.bf16.msra.mxu0 0
    %10067 = vmatprep.subr.bf16.mxu0 0
    %10068 = vmatpush1.bf16.msra.mxu0 0
    %10069 = vmatprep.subr.bf16.mxu0 0
    %10070 = vmatpush1.bf16.msra.mxu0 0
    %10071 = vmatprep.subr.bf16.mxu0 0
    %10072 = vmatpush1.bf16.msra.mxu0 0
    %10073 = vmatprep.subr.bf16.mxu0 0
    %10074 = vmatpush1.bf16.msra.mxu0 0
    %10075 = vmatprep.subr.bf16.mxu0 0
    %10076 = vmatpush1.bf16.msra.mxu0 0
    %10077 = vmatprep.mubr.bf16.mxu0 0
    %10078 = vmatmul.mubr.bf16.gmra.mrb[0].mxu0 %v9963
    %v10079 = vpop.f32.mrb[0].mxu0
    %v10080 = vadd.f32 0.0, %v10079
    %v10081 = vpop.f32.mrb[0].mxu0
    %v10082 = vadd.f32 0.0, %v10081
    %v10083 = vpop.f32.mrb[0].mxu0
    %v10084 = vadd.f32 0.0, %v10083
    %v10085 = vpop.f32.mrb[0].mxu0
    %v10086 = vadd.f32 0.0, %v10085
    %10087 = vdwg.mxu0
    %v10088 = vadd.f32 %v9933, %v10080
    %v10089 = vadd.f32 %v9935, %v10082
    %v10090 = vadd.f32 %v9937, %v10084
    %v10091 = vadd.f32 %v9939, %v10086
    %v10092 = vpack.c.bf16 %v9646, %v9646
    %v10093 = vld [vmem:[%s15 + $0x180] sm:$0xff]
    %v10094 = vld [vmem:[%s15 + $0x188] sm:$0xff]
    %v10095 = vld [vmem:[%s15 + $0x190] sm:$0xff]
    %v10096 = vld [vmem:[%s15 + $0x198] sm:$0xff]
    %v10097 = vld [vmem:[%s15 + $0x1a0] sm:$0xff]
    %v10098 = vld [vmem:[%s15 + $0x1a8] sm:$0xff]
    %v10099 = vld [vmem:[%s15 + $0x1b0] sm:$0xff]
    %v10100 = vld [vmem:[%s15 + $0x1b8] sm:$0xff]
    %v10101 = vld [vmem:[%s15 + $0x1c0] sm:$0xff]
    %v10102 = vld [vmem:[%s15 + $0x1c8] sm:$0xff]
    %v10103 = vld [vmem:[%s15 + $0x1d0] sm:$0xff]
    %v10104 = vld [vmem:[%s15 + $0x1d8] sm:$0xff]
    %v10105 = vld [vmem:[%s15 + $0x1e0] sm:$0xff]
    %v10106 = vld [vmem:[%s15 + $0x1e8] sm:$0xff]
    %v10107 = vld [vmem:[%s15 + $0x1f0] sm:$0xff]
    %v10108 = vld [vmem:[%s15 + $0x1f8] sm:$0xff]
    %vm10111 = vcmask 1045504
    %v10112 = vrot.slane %v9647, 2
    %v10113 = vrot.slane %v10092, 2
    %v10114 = vsel %vm10111, %v10112, %v10113
    %v10132 = vunpack.c.l.b16 %v10093
    %v10133 = vunpack.c.h.b16 %v10093
    %v10134 = vunpack.c.l.b16 %v10094
    %v10135 = vunpack.c.h.b16 %v10094
    %v10136 = vunpack.c.l.b16 %v10095
    %v10137 = vunpack.c.h.b16 %v10095
    %v10138 = vunpack.c.l.b16 %v10096
    %v10139 = vunpack.c.h.b16 %v10096
    %v10140 = vunpack.c.l.b16 %v10097
    %v10141 = vunpack.c.h.b16 %v10097
    %v10142 = vunpack.c.l.b16 %v10098
    %v10143 = vunpack.c.h.b16 %v10098
    %v10144 = vunpack.c.l.b16 %v10099
    %v10145 = vunpack.c.h.b16 %v10099
    %v10146 = vunpack.c.l.b16 %v10100
    %v10147 = vunpack.c.h.b16 %v10100
    %v10148 = vunpack.c.l.b16 %v10101
    %v10149 = vunpack.c.h.b16 %v10101
    %v10150 = vunpack.c.l.b16 %v10102
    %v10151 = vunpack.c.h.b16 %v10102
    %v10152 = vunpack.c.l.b16 %v10103
    %v10153 = vunpack.c.h.b16 %v10103
    %v10154 = vunpack.c.l.b16 %v10104
    %v10155 = vunpack.c.h.b16 %v10104
    %v10156 = vunpack.c.l.b16 %v10105
    %v10157 = vunpack.c.h.b16 %v10105
    %v10158 = vunpack.c.l.b16 %v10106
    %v10159 = vunpack.c.h.b16 %v10106
    %v10160 = vunpack.c.l.b16 %v10107
    %v10161 = vunpack.c.h.b16 %v10107
    %v10162 = vunpack.c.l.b16 %v10108
    %v10163 = vunpack.c.h.b16 %v10108
    %v10164 = vpack.c.b16 %v10134, %v10132
    %v10165 = vpack.c.b16 %v10135, %v10133
    %v10166 = vpack.c.b16 %v10138, %v10136
    %v10167 = vpack.c.b16 %v10139, %v10137
    %v10168 = vpack.c.b16 %v10142, %v10140
    %v10169 = vpack.c.b16 %v10143, %v10141
    %v10170 = vpack.c.b16 %v10146, %v10144
    %v10171 = vpack.c.b16 %v10147, %v10145
    %v10172 = vpack.c.b16 %v10150, %v10148
    %v10173 = vpack.c.b16 %v10151, %v10149
    %v10174 = vpack.c.b16 %v10154, %v10152
    %v10175 = vpack.c.b16 %v10155, %v10153
    %v10176 = vpack.c.b16 %v10158, %v10156
    %v10177 = vpack.c.b16 %v10159, %v10157
    %v10178 = vpack.c.b16 %v10162, %v10160
    %v10179 = vpack.c.b16 %v10163, %v10161
    %10196 = vmatprep.subr.bf16.mxu0 %v10165
    %10197 = vmatpush1.bf16.msra.mxu0 %v10164
    %10198 = vmatprep.subr.bf16.mxu0 %v10167
    %10199 = vmatpush1.bf16.msra.mxu0 %v10166
    %10200 = vmatprep.subr.bf16.mxu0 %v10169
    %10201 = vmatpush1.bf16.msra.mxu0 %v10168
    %10202 = vmatprep.subr.bf16.mxu0 %v10171
    %10203 = vmatpush1.bf16.msra.mxu0 %v10170
    %10204 = vmatprep.subr.bf16.mxu0 %v10173
    %10205 = vmatpush1.bf16.msra.mxu0 %v10172
    %10206 = vmatprep.subr.bf16.mxu0 %v10175
    %10207 = vmatpush1.bf16.msra.mxu0 %v10174
    %10208 = vmatprep.subr.bf16.mxu0 %v10177
    %10209 = vmatpush1.bf16.msra.mxu0 %v10176
    %10210 = vmatprep.subr.bf16.mxu0 %v10179
    %10211 = vmatpush1.bf16.msra.mxu0 %v10178
    %10212 = vmatprep.subr.bf16.mxu0 0
    %10213 = vmatpush1.bf16.msra.mxu0 0
    %10214 = vmatprep.subr.bf16.mxu0 0
    %10215 = vmatpush1.bf16.msra.mxu0 0
    %10216 = vmatprep.subr.bf16.mxu0 0
    %10217 = vmatpush1.bf16.msra.mxu0 0
    %10218 = vmatprep.subr.bf16.mxu0 0
    %10219 = vmatpush1.bf16.msra.mxu0 0
    %10220 = vmatprep.subr.bf16.mxu0 0
    %10221 = vmatpush1.bf16.msra.mxu0 0
    %10222 = vmatprep.subr.bf16.mxu0 0
    %10223 = vmatpush1.bf16.msra.mxu0 0
    %10224 = vmatprep.subr.bf16.mxu0 0
    %10225 = vmatpush1.bf16.msra.mxu0 0
    %10226 = vmatprep.subr.bf16.mxu0 0
    %10227 = vmatpush1.bf16.msra.mxu0 0
    %10228 = vmatprep.mubr.bf16.mxu0 0
    %10229 = vmatmul.mubr.bf16.gmra.mrb[0].mxu0 %v10114
    %v10230 = vpop.f32.mrb[0].mxu0
    %v10231 = vadd.f32 0.0, %v10230
    %v10232 = vpop.f32.mrb[0].mxu0
    %v10233 = vadd.f32 0.0, %v10232
    %v10234 = vpop.f32.mrb[0].mxu0
    %v10235 = vadd.f32 0.0, %v10234
    %v10236 = vpop.f32.mrb[0].mxu0
    %v10237 = vadd.f32 0.0, %v10236
    %10238 = vdwg.mxu0
    %v10239 = vadd.f32 %v10088, %v10231
    %v10240 = vadd.f32 %v10089, %v10233
    %v10241 = vadd.f32 %v10090, %v10235
    %v10242 = vadd.f32 %v10091, %v10237
    %v10243 = vld [vmem:[%s15 + $0x200] sm:$0xff]
    %v10244 = vld [vmem:[%s15 + $0x208] sm:$0xff]
    %v10245 = vld [vmem:[%s15 + $0x210] sm:$0xff]
    %v10246 = vld [vmem:[%s15 + $0x218] sm:$0xff]
    %v10247 = vld [vmem:[%s15 + $0x220] sm:$0xff]
    %v10248 = vld [vmem:[%s15 + $0x228] sm:$0xff]
    %v10249 = vld [vmem:[%s15 + $0x230] sm:$0xff]
    %v10250 = vld [vmem:[%s15 + $0x238] sm:$0xff]
    %v10251 = vld [vmem:[%s15 + $0x240] sm:$0xff]
    %v10252 = vld [vmem:[%s15 + $0x248] sm:$0xff]
    %v10253 = vld [vmem:[%s15 + $0x250] sm:$0xff]
    %v10254 = vld [vmem:[%s15 + $0x258] sm:$0xff]
    %v10255 = vld [vmem:[%s15 + $0x260] sm:$0xff]
    %v10256 = vld [vmem:[%s15 + $0x268] sm:$0xff]
    %v10257 = vld [vmem:[%s15 + $0x270] sm:$0xff]
    %v10258 = vld [vmem:[%s15 + $0x278] sm:$0xff]
    %vm10259 = vsmask.f32 5376
    %v10260 = vrot.slane %v9683, 2
    %v10261 = vrot.slane %v9685, 3
    %v10262 = vor.u32 %v10260, %v10261
    %v10263 = vshrl.u32 %v9665, 16
    %v10265 = vrot.slane %v10263, 2
    %v10266 = vrot.slane %v9690, 3
    %v10267 = vor.u32 %v10265, %v10266
    %v10268 = vsel %vm10259, %v10262, %v10267
    %v10286 = vunpack.c.l.b16 %v10243
    %v10287 = vunpack.c.h.b16 %v10243
    %v10288 = vunpack.c.l.b16 %v10244
    %v10289 = vunpack.c.h.b16 %v10244
    %v10290 = vunpack.c.l.b16 %v10245
    %v10291 = vunpack.c.h.b16 %v10245
    %v10292 = vunpack.c.l.b16 %v10246
    %v10293 = vunpack.c.h.b16 %v10246
    %v10294 = vunpack.c.l.b16 %v10247
    %v10295 = vunpack.c.h.b16 %v10247
    %v10296 = vunpack.c.l.b16 %v10248
    %v10297 = vunpack.c.h.b16 %v10248
    %v10298 = vunpack.c.l.b16 %v10249
    %v10299 = vunpack.c.h.b16 %v10249
    %v10300 = vunpack.c.l.b16 %v10250
    %v10301 = vunpack.c.h.b16 %v10250
    %v10302 = vunpack.c.l.b16 %v10251
    %v10303 = vunpack.c.h.b16 %v10251
    %v10304 = vunpack.c.l.b16 %v10252
    %v10305 = vunpack.c.h.b16 %v10252
    %v10306 = vunpack.c.l.b16 %v10253
    %v10307 = vunpack.c.h.b16 %v10253
    %v10308 = vunpack.c.l.b16 %v10254
    %v10309 = vunpack.c.h.b16 %v10254
    %v10310 = vunpack.c.l.b16 %v10255
    %v10311 = vunpack.c.h.b16 %v10255
    %v10312 = vunpack.c.l.b16 %v10256
    %v10313 = vunpack.c.h.b16 %v10256
    %v10314 = vunpack.c.l.b16 %v10257
    %v10315 = vunpack.c.h.b16 %v10257
    %v10316 = vunpack.c.l.b16 %v10258
    %v10317 = vunpack.c.h.b16 %v10258
    %v10318 = vpack.c.b16 %v10288, %v10286
    %v10319 = vpack.c.b16 %v10289, %v10287
    %v10320 = vpack.c.b16 %v10292, %v10290
    %v10321 = vpack.c.b16 %v10293, %v10291
    %v10322 = vpack.c.b16 %v10296, %v10294
    %v10323 = vpack.c.b16 %v10297, %v10295
    %v10324 = vpack.c.b16 %v10300, %v10298
    %v10325 = vpack.c.b16 %v10301, %v10299
    %v10326 = vpack.c.b16 %v10304, %v10302
    %v10327 = vpack.c.b16 %v10305, %v10303
    %v10328 = vpack.c.b16 %v10308, %v10306
    %v10329 = vpack.c.b16 %v10309, %v10307
    %v10330 = vpack.c.b16 %v10312, %v10310
    %v10331 = vpack.c.b16 %v10313, %v10311
    %v10332 = vpack.c.b16 %v10316, %v10314
    %v10333 = vpack.c.b16 %v10317, %v10315
    %10350 = vmatprep.subr.bf16.mxu0 %v10319
    %10351 = vmatpush1.bf16.msra.mxu0 %v10318
    %10352 = vmatprep.subr.bf16.mxu0 %v10321
    %10353 = vmatpush1.bf16.msra.mxu0 %v10320
    %10354 = vmatprep.subr.bf16.mxu0 %v10323
    %10355 = vmatpush1.bf16.msra.mxu0 %v10322
    %10356 = vmatprep.subr.bf16.mxu0 %v10325
    %10357 = vmatpush1.bf16.msra.mxu0 %v10324
    %10358 = vmatprep.subr.bf16.mxu0 %v10327
    %10359 = vmatpush1.bf16.msra.mxu0 %v10326
    %10360 = vmatprep.subr.bf16.mxu0 %v10329
    %10361 = vmatpush1.bf16.msra.mxu0 %v10328
    %10362 = vmatprep.subr.bf16.mxu0 %v10331
    %10363 = vmatpush1.bf16.msra.mxu0 %v10330
    %10364 = vmatprep.subr.bf16.mxu0 %v10333
    %10365 = vmatpush1.bf16.msra.mxu0 %v10332
    %10366 = vmatprep.subr.bf16.mxu0 0
    %10367 = vmatpush1.bf16.msra.mxu0 0
    %10368 = vmatprep.subr.bf16.mxu0 0
    %10369 = vmatpush1.bf16.msra.mxu0 0
    %10370 = vmatprep.subr.bf16.mxu0 0
    %10371 = vmatpush1.bf16.msra.mxu0 0
    %10372 = vmatprep.subr.bf16.mxu0 0
    %10373 = vmatpush1.bf16.msra.mxu0 0
    %10374 = vmatprep.subr.bf16.mxu0 0
    %10375 = vmatpush1.bf16.msra.mxu0 0
    %10376 = vmatprep.subr.bf16.mxu0 0
    %10377 = vmatpush1.bf16.msra.mxu0 0
    %10378 = vmatprep.subr.bf16.mxu0 0
    %10379 = vmatpush1.bf16.msra.mxu0 0
    %10380 = vmatprep.subr.bf16.mxu0 0
    %10381 = vmatpush1.bf16.msra.mxu0 0
    %10382 = vmatprep.mubr.bf16.mxu0 0
    %10383 = vmatmul.mubr.bf16.gmra.mrb[0].mxu0 %v10268
    %v10384 = vpop.f32.mrb[0].mxu0
    %v10385 = vadd.f32 0.0, %v10384
    %v10386 = vpop.f32.mrb[0].mxu0
    %v10387 = vadd.f32 0.0, %v10386
    %v10388 = vpop.f32.mrb[0].mxu0
    %v10389 = vadd.f32 0.0, %v10388
    %v10390 = vpop.f32.mrb[0].mxu0
    %v10391 = vadd.f32 0.0, %v10390
    %10392 = vdwg.mxu0
    %v10393 = vadd.f32 %v10239, %v10385
    %v10394 = vadd.f32 %v10240, %v10387
    %v10395 = vadd.f32 %v10241, %v10389
    %v10396 = vadd.f32 %v10242, %v10391
    %v10397 = vld [vmem:[%s15 + $0x280] sm:$0xff]
    %v10398 = vld [vmem:[%s15 + $0x288] sm:$0xff]
    %v10399 = vld [vmem:[%s15 + $0x290] sm:$0xff]
    %v10400 = vld [vmem:[%s15 + $0x298] sm:$0xff]
    %v10401 = vld [vmem:[%s15 + $0x2a0] sm:$0xff]
    %v10402 = vld [vmem:[%s15 + $0x2a8] sm:$0xff]
    %v10403 = vld [vmem:[%s15 + $0x2b0] sm:$0xff]
    %v10404 = vld [vmem:[%s15 + $0x2b8] sm:$0xff]
    %v10405 = vld [vmem:[%s15 + $0x2c0] sm:$0xff]
    %v10406 = vld [vmem:[%s15 + $0x2c8] sm:$0xff]
    %v10407 = vld [vmem:[%s15 + $0x2d0] sm:$0xff]
    %v10408 = vld [vmem:[%s15 + $0x2d8] sm:$0xff]
    %v10409 = vld [vmem:[%s15 + $0x2e0] sm:$0xff]
    %v10410 = vld [vmem:[%s15 + $0x2e8] sm:$0xff]
    %v10411 = vld [vmem:[%s15 + $0x2f0] sm:$0xff]
    %v10412 = vld [vmem:[%s15 + $0x2f8] sm:$0xff]
    %vm10413 = vcmask 1044480
    %v10414 = vrot.slane %v9941, 3
    %v10415 = vrot.slane %v9942, 3
    %v10416 = vsel %vm10413, %v10414, %v10415
    %v10434 = vunpack.c.l.b16 %v10397
    %v10435 = vunpack.c.h.b16 %v10397
    %v10436 = vunpack.c.l.b16 %v10398
    %v10437 = vunpack.c.h.b16 %v10398
    %v10438 = vunpack.c.l.b16 %v10399
    %v10439 = vunpack.c.h.b16 %v10399
    %v10440 = vunpack.c.l.b16 %v10400
    %v10441 = vunpack.c.h.b16 %v10400
    %v10442 = vunpack.c.l.b16 %v10401
    %v10443 = vunpack.c.h.b16 %v10401
    %v10444 = vunpack.c.l.b16 %v10402
    %v10445 = vunpack.c.h.b16 %v10402
    %v10446 = vunpack.c.l.b16 %v10403
    %v10447 = vunpack.c.h.b16 %v10403
    %v10448 = vunpack.c.l.b16 %v10404
    %v10449 = vunpack.c.h.b16 %v10404
    %v10450 = vunpack.c.l.b16 %v10405
    %v10451 = vunpack.c.h.b16 %v10405
    %v10452 = vunpack.c.l.b16 %v10406
    %v10453 = vunpack.c.h.b16 %v10406
    %v10454 = vunpack.c.l.b16 %v10407
    %v10455 = vunpack.c.h.b16 %v10407
    %v10456 = vunpack.c.l.b16 %v10408
    %v10457 = vunpack.c.h.b16 %v10408
    %v10458 = vunpack.c.l.b16 %v10409
    %v10459 = vunpack.c.h.b16 %v10409
    %v10460 = vunpack.c.l.b16 %v10410
    %v10461 = vunpack.c.h.b16 %v10410
    %v10462 = vunpack.c.l.b16 %v10411
    %v10463 = vunpack.c.h.b16 %v10411
    %v10464 = vunpack.c.l.b16 %v10412
    %v10465 = vunpack.c.h.b16 %v10412
    %v10466 = vpack.c.b16 %v10436, %v10434
    %v10467 = vpack.c.b16 %v10437, %v10435
    %v10468 = vpack.c.b16 %v10440, %v10438
    %v10469 = vpack.c.b16 %v10441, %v10439
    %v10470 = vpack.c.b16 %v10444, %v10442
    %v10471 = vpack.c.b16 %v10445, %v10443
    %v10472 = vpack.c.b16 %v10448, %v10446
    %v10473 = vpack.c.b16 %v10449, %v10447
    %v10474 = vpack.c.b16 %v10452, %v10450
    %v10475 = vpack.c.b16 %v10453, %v10451
    %v10476 = vpack.c.b16 %v10456, %v10454
    %v10477 = vpack.c.b16 %v10457, %v10455
    %v10478 = vpack.c.b16 %v10460, %v10458
    %v10479 = vpack.c.b16 %v10461, %v10459
    %v10480 = vpack.c.b16 %v10464, %v10462
    %v10481 = vpack.c.b16 %v10465, %v10463
    %10498 = vmatprep.subr.bf16.mxu0 %v10467
    %10499 = vmatpush1.bf16.msra.mxu0 %v10466
    %10500 = vmatprep.subr.bf16.mxu0 %v10469
    %10501 = vmatpush1.bf16.msra.mxu0 %v10468
    %10502 = vmatprep.subr.bf16.mxu0 %v10471
    %10503 = vmatpush1.bf16.msra.mxu0 %v10470
    %10504 = vmatprep.subr.bf16.mxu0 %v10473
    %10505 = vmatpush1.bf16.msra.mxu0 %v10472
    %10506 = vmatprep.subr.bf16.mxu0 %v10475
    %10507 = vmatpush1.bf16.msra.mxu0 %v10474
    %10508 = vmatprep.subr.bf16.mxu0 %v10477
    %10509 = vmatpush1.bf16.msra.mxu0 %v10476
    %10510 = vmatprep.subr.bf16.mxu0 %v10479
    %10511 = vmatpush1.bf16.msra.mxu0 %v10478
    %10512 = vmatprep.subr.bf16.mxu0 %v10481
    %10513 = vmatpush1.bf16.msra.mxu0 %v10480
    %10514 = vmatprep.subr.bf16.mxu0 0
    %10515 = vmatpush1.bf16.msra.mxu0 0
    %10516 = vmatprep.subr.bf16.mxu0 0
    %10517 = vmatpush1.bf16.msra.mxu0 0
    %10518 = vmatprep.subr.bf16.mxu0 0
    %10519 = vmatpush1.bf16.msra.mxu0 0
    %10520 = vmatprep.subr.bf16.mxu0 0
    %10521 = vmatpush1.bf16.msra.mxu0 0
    %10522 = vmatprep.subr.bf16.mxu0 0
    %10523 = vmatpush1.bf16.msra.mxu0 0
    %10524 = vmatprep.subr.bf16.mxu0 0
    %10525 = vmatpush1.bf16.msra.mxu0 0
    %10526 = vmatprep.subr.bf16.mxu0 0
    %10527 = vmatpush1.bf16.msra.mxu0 0
    %10528 = vmatprep.subr.bf16.mxu0 0
    %10529 = vmatpush1.bf16.msra.mxu0 0
    %10530 = vmatprep.mubr.bf16.mxu0 0
    %10531 = vmatmul.mubr.bf16.gmra.mrb[0].mxu0 %v10416
    %v10532 = vpop.f32.mrb[0].mxu0
    %v10533 = vadd.f32 0.0, %v10532
    %v10534 = vpop.f32.mrb[0].mxu0
    %v10535 = vadd.f32 0.0, %v10534
    %v10536 = vpop.f32.mrb[0].mxu0
    %v10537 = vadd.f32 0.0, %v10536
    %v10538 = vpop.f32.mrb[0].mxu0
    %v10539 = vadd.f32 0.0, %v10538
    %10540 = vdwg.mxu0
    %v10541 = vadd.f32 %v10393, %v10533
    %v10542 = vadd.f32 %v10394, %v10535
    %v10543 = vadd.f32 %v10395, %v10537
    %v10544 = vadd.f32 %v10396, %v10539
    %v10545 = vpack.c.bf16 %v9646, %v9641
    %v10546 = vld [vmem:[%s15 + $0x300] sm:$0xff]
    %v10547 = vld [vmem:[%s15 + $0x308] sm:$0xff]
    %v10548 = vld [vmem:[%s15 + $0x310] sm:$0xff]
    %v10549 = vld [vmem:[%s15 + $0x318] sm:$0xff]
    %v10550 = vld [vmem:[%s15 + $0x320] sm:$0xff]
    %v10551 = vld [vmem:[%s15 + $0x328] sm:$0xff]
    %v10552 = vld [vmem:[%s15 + $0x330] sm:$0xff]
    %v10553 = vld [vmem:[%s15 + $0x338] sm:$0xff]
    %v10554 = vld [vmem:[%s15 + $0x340] sm:$0xff]
    %v10555 = vld [vmem:[%s15 + $0x348] sm:$0xff]
    %v10556 = vld [vmem:[%s15 + $0x350] sm:$0xff]
    %v10557 = vld [vmem:[%s15 + $0x358] sm:$0xff]
    %v10558 = vld [vmem:[%s15 + $0x360] sm:$0xff]
    %v10559 = vld [vmem:[%s15 + $0x368] sm:$0xff]
    %v10560 = vld [vmem:[%s15 + $0x370] sm:$0xff]
    %v10561 = vld [vmem:[%s15 + $0x378] sm:$0xff]
    %v10578 = vunpack.c.l.b16 %v10546
    %v10579 = vunpack.c.h.b16 %v10546
    %v10580 = vunpack.c.l.b16 %v10547
    %v10581 = vunpack.c.h.b16 %v10547
    %v10582 = vunpack.c.l.b16 %v10548
    %v10583 = vunpack.c.h.b16 %v10548
    %v10584 = vunpack.c.l.b16 %v10549
    %v10585 = vunpack.c.h.b16 %v10549
    %v10586 = vunpack.c.l.b16 %v10550
    %v10587 = vunpack.c.h.b16 %v10550
    %v10588 = vunpack.c.l.b16 %v10551
    %v10589 = vunpack.c.h.b16 %v10551
    %v10590 = vunpack.c.l.b16 %v10552
    %v10591 = vunpack.c.h.b16 %v10552
    %v10592 = vunpack.c.l.b16 %v10553
    %v10593 = vunpack.c.h.b16 %v10553
    %v10594 = vunpack.c.l.b16 %v10554
    %v10595 = vunpack.c.h.b16 %v10554
    %v10596 = vunpack.c.l.b16 %v10555
    %v10597 = vunpack.c.h.b16 %v10555
    %v10598 = vunpack.c.l.b16 %v10556
    %v10599 = vunpack.c.h.b16 %v10556
    %v10600 = vunpack.c.l.b16 %v10557
    %v10601 = vunpack.c.h.b16 %v10557
    %v10602 = vunpack.c.l.b16 %v10558
    %v10603 = vunpack.c.h.b16 %v10558
    %v10604 = vunpack.c.l.b16 %v10559
    %v10605 = vunpack.c.h.b16 %v10559
    %v10606 = vunpack.c.l.b16 %v10560
    %v10607 = vunpack.c.h.b16 %v10560
    %v10608 = vunpack.c.l.b16 %v10561
    %v10609 = vunpack.c.h.b16 %v10561
    %v10610 = vpack.c.b16 %v10580, %v10578
    %v10611 = vpack.c.b16 %v10581, %v10579
    %v10612 = vpack.c.b16 %v10584, %v10582
    %v10613 = vpack.c.b16 %v10585, %v10583
    %v10614 = vpack.c.b16 %v10588, %v10586
    %v10615 = vpack.c.b16 %v10589, %v10587
    %v10616 = vpack.c.b16 %v10592, %v10590
    %v10617 = vpack.c.b16 %v10593, %v10591
    %v10618 = vpack.c.b16 %v10596, %v10594
    %v10619 = vpack.c.b16 %v10597, %v10595
    %v10620 = vpack.c.b16 %v10600, %v10598
    %v10621 = vpack.c.b16 %v10601, %v10599
    %v10622 = vpack.c.b16 %v10604, %v10602
    %v10623 = vpack.c.b16 %v10605, %v10603
    %v10624 = vpack.c.b16 %v10608, %v10606
    %v10625 = vpack.c.b16 %v10609, %v10607
    %10642 = vmatprep.subr.bf16.mxu0 %v10611
    %10643 = vmatpush1.bf16.msra.mxu0 %v10610
    %10644 = vmatprep.subr.bf16.mxu0 %v10613
    %10645 = vmatpush1.bf16.msra.mxu0 %v10612
    %10646 = vmatprep.subr.bf16.mxu0 %v10615
    %10647 = vmatpush1.bf16.msra.mxu0 %v10614
    %10648 = vmatprep.subr.bf16.mxu0 %v10617
    %10649 = vmatpush1.bf16.msra.mxu0 %v10616
    %10650 = vmatprep.subr.bf16.mxu0 %v10619
    %10651 = vmatpush1.bf16.msra.mxu0 %v10618
    %10652 = vmatprep.subr.bf16.mxu0 %v10621
    %10653 = vmatpush1.bf16.msra.mxu0 %v10620
    %10654 = vmatprep.subr.bf16.mxu0 %v10623
    %10655 = vmatpush1.bf16.msra.mxu0 %v10622
    %10656 = vmatprep.subr.bf16.mxu0 %v10625
    %10657 = vmatpush1.bf16.msra.mxu0 %v10624
    %10658 = vmatprep.subr.bf16.mxu0 0
    %10659 = vmatpush1.bf16.msra.mxu0 0
    %10660 = vmatprep.subr.bf16.mxu0 0
    %10661 = vmatpush1.bf16.msra.mxu0 0
    %10662 = vmatprep.subr.bf16.mxu0 0
    %10663 = vmatpush1.bf16.msra.mxu0 0
    %10664 = vmatprep.subr.bf16.mxu0 0
    %10665 = vmatpush1.bf16.msra.mxu0 0
    %10666 = vmatprep.subr.bf16.mxu0 0
    %10667 = vmatpush1.bf16.msra.mxu0 0
    %10668 = vmatprep.subr.bf16.mxu0 0
    %10669 = vmatpush1.bf16.msra.mxu0 0
    %10670 = vmatprep.subr.bf16.mxu0 0
    %10671 = vmatpush1.bf16.msra.mxu0 0
    %10672 = vmatprep.subr.bf16.mxu0 0
    %10673 = vmatpush1.bf16.msra.mxu0 0
    %10674 = vmatprep.mubr.bf16.mxu0 0
    %10675 = vmatmul.mubr.bf16.gmra.mrb[0].mxu0 %v10545
    %v10676 = vpop.f32.mrb[0].mxu0
    %v10677 = vadd.f32 0.0, %v10676
    %v10678 = vpop.f32.mrb[0].mxu0
    %v10679 = vadd.f32 0.0, %v10678
    %v10680 = vpop.f32.mrb[0].mxu0
    %v10681 = vadd.f32 0.0, %v10680
    %v10682 = vpop.f32.mrb[0].mxu0
    %v10683 = vadd.f32 0.0, %v10682
    %10684 = vdwg.mxu0
    %v10685 = vadd.f32 %v10541, %v10677
    %v10686 = vadd.f32 %v10542, %v10679
    %v10687 = vadd.f32 %v10543, %v10681
    %v10688 = vadd.f32 %v10544, %v10683
    %v10689 = vpack.c.bf16 %v9626, %v9621
    %v10690 = vld [vmem:[%s15 + $0x380] sm:$0xff]
    %v10691 = vld [vmem:[%s15 + $0x388] sm:$0xff]
    %v10692 = vld [vmem:[%s15 + $0x390] sm:$0xff]
    %v10693 = vld [vmem:[%s15 + $0x398] sm:$0xff]
    %v10694 = vld [vmem:[%s15 + $0x3a0] sm:$0xff]
    %v10695 = vld [vmem:[%s15 + $0x3a8] sm:$0xff]
    %v10696 = vld [vmem:[%s15 + $0x3b0] sm:$0xff]
    %v10697 = vld [vmem:[%s15 + $0x3b8] sm:$0xff]
    %v10698 = vld [vmem:[%s15 + $0x3c0] sm:$0xff]
    %v10699 = vld [vmem:[%s15 + $0x3c8] sm:$0xff]
    %v10700 = vld [vmem:[%s15 + $0x3d0] sm:$0xff]
    %v10701 = vld [vmem:[%s15 + $0x3d8] sm:$0xff]
    %v10702 = vld [vmem:[%s15 + $0x3e0] sm:$0xff]
    %v10703 = vld [vmem:[%s15 + $0x3e8] sm:$0xff]
    %v10704 = vld [vmem:[%s15 + $0x3f0] sm:$0xff]
    %v10705 = vld [vmem:[%s15 + $0x3f8] sm:$0xff]
    %v10707 = vshrl.u32 %v10689, 16
    %v10709 = vshll.u32 %v10689, 16
    %v10711 = vrot.slane %v10709, 1
    %v10712 = vor.u32 %v10707, %v10711
    %v10713 = vsel %vm953, %v10712, %v959
    %v10731 = vunpack.c.l.b16 %v10690
    %v10732 = vunpack.c.h.b16 %v10690
    %v10733 = vunpack.c.l.b16 %v10691
    %v10734 = vunpack.c.h.b16 %v10691
    %v10735 = vunpack.c.l.b16 %v10692
    %v10736 = vunpack.c.h.b16 %v10692
    %v10737 = vunpack.c.l.b16 %v10693
    %v10738 = vunpack.c.h.b16 %v10693
    %v10739 = vunpack.c.l.b16 %v10694
    %v10740 = vunpack.c.h.b16 %v10694
    %v10741 = vunpack.c.l.b16 %v10695
    %v10742 = vunpack.c.h.b16 %v10695
    %v10743 = vunpack.c.l.b16 %v10696
    %v10744 = vunpack.c.h.b16 %v10696
    %v10745 = vunpack.c.l.b16 %v10697
    %v10746 = vunpack.c.h.b16 %v10697
    %v10747 = vunpack.c.l.b16 %v10698
    %v10748 = vunpack.c.h.b16 %v10698
    %v10749 = vunpack.c.l.b16 %v10699
    %v10750 = vunpack.c.h.b16 %v10699
    %v10751 = vunpack.c.l.b16 %v10700
    %v10752 = vunpack.c.h.b16 %v10700
    %v10753 = vunpack.c.l.b16 %v10701
    %v10754 = vunpack.c.h.b16 %v10701
    %v10755 = vunpack.c.l.b16 %v10702
    %v10756 = vunpack.c.h.b16 %v10702
    %v10757 = vunpack.c.l.b16 %v10703
    %v10758 = vunpack.c.h.b16 %v10703
    %v10759 = vunpack.c.l.b16 %v10704
    %v10760 = vunpack.c.h.b16 %v10704
    %v10761 = vunpack.c.l.b16 %v10705
    %v10762 = vunpack.c.h.b16 %v10705
    %v10763 = vpack.c.b16 %v10733, %v10731
    %v10764 = vpack.c.b16 %v10734, %v10732
    %v10765 = vpack.c.b16 %v10737, %v10735
    %v10766 = vpack.c.b16 %v10738, %v10736
    %v10767 = vpack.c.b16 %v10741, %v10739
    %v10768 = vpack.c.b16 %v10742, %v10740
    %v10769 = vpack.c.b16 %v10745, %v10743
    %v10770 = vpack.c.b16 %v10746, %v10744
    %v10771 = vpack.c.b16 %v10749, %v10747
    %v10772 = vpack.c.b16 %v10750, %v10748
    %v10773 = vpack.c.b16 %v10753, %v10751
    %v10774 = vpack.c.b16 %v10754, %v10752
    %v10775 = vpack.c.b16 %v10757, %v10755
    %v10776 = vpack.c.b16 %v10758, %v10756
    %v10777 = vpack.c.b16 %v10761, %v10759
    %v10778 = vpack.c.b16 %v10762, %v10760
    %10795 = vmatprep.subr.bf16.mxu0 %v10764
    %10796 = vmatpush1.bf16.msra.mxu0 %v10763
    %10797 = vmatprep.subr.bf16.mxu0 %v10766
    %10798 = vmatpush1.bf16.msra.mxu0 %v10765
    %10799 = vmatprep.subr.bf16.mxu0 %v10768
    %10800 = vmatpush1.bf16.msra.mxu0 %v10767
    %10801 = vmatprep.subr.bf16.mxu0 %v10770
    %10802 = vmatpush1.bf16.msra.mxu0 %v10769
    %10803 = vmatprep.subr.bf16.mxu0 %v10772
    %10804 = vmatpush1.bf16.msra.mxu0 %v10771
    %10805 = vmatprep.subr.bf16.mxu0 %v10774
    %10806 = vmatpush1.bf16.msra.mxu0 %v10773
    %10807 = vmatprep.subr.bf16.mxu0 %v10776
    %10808 = vmatpush1.bf16.msra.mxu0 %v10775
    %10809 = vmatprep.subr.bf16.mxu0 %v10778
    %10810 = vmatpush1.bf16.msra.mxu0 %v10777
    %10811 = vmatprep.subr.bf16.mxu0 0
    %10812 = vmatpush1.bf16.msra.mxu0 0
    %10813 = vmatprep.subr.bf16.mxu0 0
    %10814 = vmatpush1.bf16.msra.mxu0 0
    %10815 = vmatprep.subr.bf16.mxu0 0
    %10816 = vmatpush1.bf16.msra.mxu0 0
    %10817 = vmatprep.subr.bf16.mxu0 0
    %10818 = vmatpush1.bf16.msra.mxu0 0
    %10819 = vmatprep.subr.bf16.mxu0 0
    %10820 = vmatpush1.bf16.msra.mxu0 0
    %10821 = vmatprep.subr.bf16.mxu0 0
    %10822 = vmatpush1.bf16.msra.mxu0 0
    %10823 = vmatprep.subr.bf16.mxu0 0
    %10824 = vmatpush1.bf16.msra.mxu0 0
    %10825 = vmatprep.subr.bf16.mxu0 0
    %10826 = vmatpush1.bf16.msra.mxu0 0
    %10827 = vmatprep.mubr.bf16.mxu0 0
    %10828 = vmatmul.mubr.bf16.gmra.mrb[0].mxu0 %v10713
    %v10829 = vpop.f32.mrb[0].mxu0
    %v10830 = vadd.f32 0.0, %v10829
    %v10831 = vpop.f32.mrb[0].mxu0
    %v10832 = vadd.f32 0.0, %v10831
    %v10833 = vpop.f32.mrb[0].mxu0
    %v10834 = vadd.f32 0.0, %v10833
    %v10835 = vpop.f32.mrb[0].mxu0
    %v10836 = vadd.f32 0.0, %v10835
    %10837 = vdwg.mxu0
    %v10838 = vadd.f32 %v10685, %v10830
    %v10839 = vadd.f32 %v10686, %v10832
    %v10840 = vadd.f32 %v10687, %v10834
    %v10841 = vadd.f32 %v10688, %v10836
    %v10842 = vpack.c.bf16 %v9636, %v9631
    %v10843 = vld [vmem:[%s15 + $0x400] sm:$0xff]
    %v10844 = vld [vmem:[%s15 + $0x408] sm:$0xff]
    %v10845 = vld [vmem:[%s15 + $0x410] sm:$0xff]
    %v10846 = vld [vmem:[%s15 + $0x418] sm:$0xff]
    %v10847 = vld [vmem:[%s15 + $0x420] sm:$0xff]
    %v10848 = vld [vmem:[%s15 + $0x428] sm:$0xff]
    %v10849 = vld [vmem:[%s15 + $0x430] sm:$0xff]
    %v10850 = vld [vmem:[%s15 + $0x438] sm:$0xff]
    %v10851 = vld [vmem:[%s15 + $0x440] sm:$0xff]
    %v10852 = vld [vmem:[%s15 + $0x448] sm:$0xff]
    %v10853 = vld [vmem:[%s15 + $0x450] sm:$0xff]
    %v10854 = vld [vmem:[%s15 + $0x458] sm:$0xff]
    %v10855 = vld [vmem:[%s15 + $0x460] sm:$0xff]
    %v10856 = vld [vmem:[%s15 + $0x468] sm:$0xff]
    %v10857 = vld [vmem:[%s15 + $0x470] sm:$0xff]
    %v10858 = vld [vmem:[%s15 + $0x478] sm:$0xff]
    %v10860 = vrot.slane %v10842, 1
    %v10861 = vsel %vm1545, %v10860, %v1546
    %v10879 = vunpack.c.l.b16 %v10843
    %v10880 = vunpack.c.h.b16 %v10843
    %v10881 = vunpack.c.l.b16 %v10844
    %v10882 = vunpack.c.h.b16 %v10844
    %v10883 = vunpack.c.l.b16 %v10845
    %v10884 = vunpack.c.h.b16 %v10845
    %v10885 = vunpack.c.l.b16 %v10846
    %v10886 = vunpack.c.h.b16 %v10846
    %v10887 = vunpack.c.l.b16 %v10847
    %v10888 = vunpack.c.h.b16 %v10847
    %v10889 = vunpack.c.l.b16 %v10848
    %v10890 = vunpack.c.h.b16 %v10848
    %v10891 = vunpack.c.l.b16 %v10849
    %v10892 = vunpack.c.h.b16 %v10849
    %v10893 = vunpack.c.l.b16 %v10850
    %v10894 = vunpack.c.h.b16 %v10850
    %v10895 = vunpack.c.l.b16 %v10851
    %v10896 = vunpack.c.h.b16 %v10851
    %v10897 = vunpack.c.l.b16 %v10852
    %v10898 = vunpack.c.h.b16 %v10852
    %v10899 = vunpack.c.l.b16 %v10853
    %v10900 = vunpack.c.h.b16 %v10853
    %v10901 = vunpack.c.l.b16 %v10854
    %v10902 = vunpack.c.h.b16 %v10854
    %v10903 = vunpack.c.l.b16 %v10855
    %v10904 = vunpack.c.h.b16 %v10855
    %v10905 = vunpack.c.l.b16 %v10856
    %v10906 = vunpack.c.h.b16 %v10856
    %v10907 = vunpack.c.l.b16 %v10857
    %v10908 = vunpack.c.h.b16 %v10857
    %v10909 = vunpack.c.l.b16 %v10858
    %v10910 = vunpack.c.h.b16 %v10858
    %v10911 = vpack.c.b16 %v10881, %v10879
    %v10912 = vpack.c.b16 %v10882, %v10880
    %v10913 = vpack.c.b16 %v10885, %v10883
    %v10914 = vpack.c.b16 %v10886, %v10884
    %v10915 = vpack.c.b16 %v10889, %v10887
    %v10916 = vpack.c.b16 %v10890, %v10888
    %v10917 = vpack.c.b16 %v10893, %v10891
    %v10918 = vpack.c.b16 %v10894, %v10892
    %v10919 = vpack.c.b16 %v10897, %v10895
    %v10920 = vpack.c.b16 %v10898, %v10896
    %v10921 = vpack.c.b16 %v10901, %v10899
    %v10922 = vpack.c.b16 %v10902, %v10900
    %v10923 = vpack.c.b16 %v10905, %v10903
    %v10924 = vpack.c.b16 %v10906, %v10904
    %v10925 = vpack.c.b16 %v10909, %v10907
    %v10926 = vpack.c.b16 %v10910, %v10908
    %10943 = vmatprep.subr.bf16.mxu0 %v10912
    %10944 = vmatpush1.bf16.msra.mxu0 %v10911
    %10945 = vmatprep.subr.bf16.mxu0 %v10914
    %10946 = vmatpush1.bf16.msra.mxu0 %v10913
    %10947 = vmatprep.subr.bf16.mxu0 %v10916
    %10948 = vmatpush1.bf16.msra.mxu0 %v10915
    %10949 = vmatprep.subr.bf16.mxu0 %v10918
    %10950 = vmatpush1.bf16.msra.mxu0 %v10917
    %10951 = vmatprep.subr.bf16.mxu0 %v10920
    %10952 = vmatpush1.bf16.msra.mxu0 %v10919
    %10953 = vmatprep.subr.bf16.mxu0 %v10922
    %10954 = vmatpush1.bf16.msra.mxu0 %v10921
    %10955 = vmatprep.subr.bf16.mxu0 %v10924
    %10956 = vmatpush1.bf16.msra.mxu0 %v10923
    %10957 = vmatprep.subr.bf16.mxu0 %v10926
    %10958 = vmatpush1.bf16.msra.mxu0 %v10925
    %10959 = vmatprep.subr.bf16.mxu0 0
    %10960 = vmatpush1.bf16.msra.mxu0 0
    %10961 = vmatprep.subr.bf16.mxu0 0
    %10962 = vmatpush1.bf16.msra.mxu0 0
    %10963 = vmatprep.subr.bf16.mxu0 0
    %10964 = vmatpush1.bf16.msra.mxu0 0
    %10965 = vmatprep.subr.bf16.mxu0 0
    %10966 = vmatpush1.bf16.msra.mxu0 0
    %10967 = vmatprep.subr.bf16.mxu0 0
    %10968 = vmatpush1.bf16.msra.mxu0 0
    %10969 = vmatprep.subr.bf16.mxu0 0
    %10970 = vmatpush1.bf16.msra.mxu0 0
    %10971 = vmatprep.subr.bf16.mxu0 0
    %10972 = vmatpush1.bf16.msra.mxu0 0
    %10973 = vmatprep.subr.bf16.mxu0 0
    %10974 = vmatpush1.bf16.msra.mxu0 0
    %10975 = vmatprep.mubr.bf16.mxu0 0
    %10976 = vmatmul.mubr.bf16.gmra.mrb[0].mxu0 %v10861
    %v10977 = vpop.f32.mrb[0].mxu0
    %v10978 = vadd.f32 0.0, %v10977
    %v10979 = vpop.f32.mrb[0].mxu0
    %v10980 = vadd.f32 0.0, %v10979
    %v10981 = vpop.f32.mrb[0].mxu0
    %v10982 = vadd.f32 0.0, %v10981
    %v10983 = vpop.f32.mrb[0].mxu0
    %v10984 = vadd.f32 0.0, %v10983
    %10985 = vdwg.mxu0
    %v10986 = vadd.f32 %v10838, %v10978
    %v10987 = vadd.f32 %v10839, %v10980
    %v10988 = vadd.f32 %v10840, %v10982
    %v10989 = vadd.f32 %v10841, %v10984
    %v10990 = vld [vmem:[%s16] sm:$0x3]
    %v10992 = vlaneseq
    %v10993 = vshrl.u32 %v10992, 7
    %v10994 = vsub.s32 0, %v10993
    %v10995 = vrot.slane %v10990, %v10994
    %v10996 = vlaneseq
    %v10997 = vshrl.u32 %v10996, 7
    %v10998 = vsub.s32 1, %v10997
    %v10999 = vrot.slane %v10990, %v10998
    %v11002 = vadd.f32 %v10986, %v10995
    %v11003 = vadd.f32 %v10987, %v10999
    %v11004 = vadd.f32 %v10988, %v10995
    %v11005 = vadd.f32 %v10989, %v10999
    %11006 = vst [vmem:[%s20] sm:$0xff] %v11002
    %11007 = vst [vmem:[%s20 + $0x8] sm:$0xff] %v11003
    %11008 = vst [vmem:[%s20 + $0x10] sm:$0xff] %v11004
    %11009 = vst [vmem:[%s20 + $0x18] sm:$0xff] %v11005
    // Predicated region
    $region70: #{vgg19_features.1} parent=1 // pred_check
      _
    $region71: #{vgg19_features.1} parent=1 // pred_check_branch
      %11011 = sbr.rel (0) target = $region73
    $region72: #{vgg19_features.1} parent=1 // pred_region
      _
    $region73: #{vgg19_features.1} parent=1 // pred_fallthru
      _
    // Predicated region
    $region74: #{vgg19_features.1} parent=1 // pred_check
      _
    $region75: #{vgg19_features.1} parent=1 // pred_check_branch
      %11013 = sbr.rel (0) target = $region77
    $region76: #{vgg19_features.1} parent=1 // pred_region
      %s11015 = ssub.s32 1024, 1024
      %11016 = vsyncadd [#allocation3], %s11015
      %s11017 = sshll.u32 [#allocation2], 4
      %s11018 = int_to_ptr.vmem [resolvable:$true] %s11017
      %11023 = dma.vmem_to_hbm [thread:$0]  %s11018, 1024, %s18, [#allocation3], 128, 128, 8
    $region77: #{vgg19_features.1} parent=1 // pred_fallthru
      _
    // Predicated region
    $region78: #{vgg19_features.1} parent=1 // pred_check
      _
    $region79: #{vgg19_features.1} parent=1 // pred_check_branch
      %11025 = sbr.rel (0) target = $region81
    $region80: #{vgg19_features.1} parent=1 // pred_region
      %s11027 = ssub.s32 1024, 1024
      %11028 = vsyncadd [#allocation5], %s11027
      %s11029 = sshll.u32 [#allocation4], 4
      %s11030 = int_to_ptr.vmem [resolvable:$true] %s11029
      %11035 = dma.vmem_to_hbm [thread:$0]  %s11030, 1024, %s19, [#allocation5], 128, 128, 8
    $region81: #{vgg19_features.1} parent=1 // pred_fallthru
      _
    // Predicated region
    $region82: #{vgg19_features.1} parent=1 // pred_check
      _
    $region83: #{vgg19_features.1} parent=1 // pred_check_branch
      %11037 = sbr.rel (0) target = $region85
    $region84: #{vgg19_features.1} parent=1 // pred_region
      _
    $region85: #{vgg19_features.1} parent=1 // pred_fallthru
      _
    // Predicated region
    $region86: #{vgg19_features.1} parent=1 // pred_check
      _
    $region87: #{vgg19_features.1} parent=1 // pred_check_branch
      %11039 = sbr.rel (0) target = $region89
    $region88: #{vgg19_features.1} parent=1 // pred_region
      _
    $region89: #{vgg19_features.1} parent=1 // pred_fallthru
      _
    // Predicated region
    $region90: #{vgg19_features.1} parent=1 // pred_check
      _
    $region91: #{vgg19_features.1} parent=1 // pred_check_branch
      %11041 = sbr.rel (0) target = $region93
    $region92: #{vgg19_features.1} parent=1 // pred_region
      %11042 = dma.done [#allocation3], 1024
    $region93: #{vgg19_features.1} parent=1 // pred_fallthru
      _
    // Predicated region
    $region94: #{vgg19_features.1} parent=1 // pred_check
      _
    $region95: #{vgg19_features.1} parent=1 // pred_check_branch
      %11044 = sbr.rel (0) target = $region97
    $region96: #{vgg19_features.1} parent=1 // pred_region
      %11045 = dma.done [#allocation5], 1024
    $region97: #{vgg19_features.1} parent=1 // pred_fallthru
      _
    // Predicated region
    $region98: #{vgg19_features.1} parent=1 // pred_check
      _
    $region99: #{vgg19_features.1} parent=1 // pred_check_branch
      %11047 = sbr.rel (0) target = $region101
    $region100: #{vgg19_features.1} parent=1 // pred_region
      _
    $region101: #{vgg19_features.1} parent=1 // pred_fallthru
      _
    %11048 = vsyncpa [#allocation3], 1
    %11049 = vsyncpa [#allocation5], 1

</llo_original>
